<compile_context>
chip_gen: v6e
topology: v6e:2x2x1
jax: 0.10.0
libtpu: 0.0.40
codegen_flags: <defaults>
</compile_context>

<pallas_src>
import functools

import jax
import jax.numpy as jnp
from jax.experimental import pallas as pl
from jax.experimental.pallas import tpu as pltpu

# (planes, num_blocks, stride of first block) -- ResNet-34
LAYER_CFG = ((64, 3, 1), (128, 4, 2), (256, 6, 2), (512, 3, 2))
BN_EPS = 1e-5
TM_PREF = 256  # preferred M tile (rows)


def _round_up(x, m):
    return ((x + m - 1) // m) * m


def _pick_m_tile(m):
    """Returns (padded M, tile size) with tile = TM_PREF when possible."""
    if m >= TM_PREF:
        mp = _round_up(m, TM_PREF)
        return mp, TM_PREF
    mp = _round_up(m, 8)
    return mp, mp


def _pick_k_tile(k):
    for tk in (512, 256, 128):
        if k % tk == 0:
            return tk
    return k  # full-K block (lane-dim == full dim is legal)


# ----------------------------------------------------------------------------
# Pallas kernels
# ----------------------------------------------------------------------------
def _matmul_stats_kernel(lhs_ref, rhs_ref, o_ref, stats_ref, acc_ref):
    """Tiled matmul with fused per-channel sum / sum-of-squares accumulation.

    grid = (M tiles, K tiles); K is the inner (reduction) axis.
    stats output block index is constant -> stays resident across the whole
    grid and accumulates the per-Cout statistics needed by batch-norm.
    """
    i = pl.program_id(0)
    k = pl.program_id(1)
    nk = pl.num_programs(1)

    @pl.when((i == 0) & (k == 0))
    def _():
        stats_ref[...] = jnp.zeros_like(stats_ref)

    @pl.when(k == 0)
    def _():
        acc_ref[...] = jnp.zeros_like(acc_ref)

    acc_ref[...] += jnp.dot(lhs_ref[...], rhs_ref[...],
                            preferred_element_type=jnp.float32)

    @pl.when(k == nk - 1)
    def _():
        y = acc_ref[...]
        o_ref[...] = y
        stats_ref[...] += jnp.concatenate(
            [jnp.sum(y, axis=0, keepdims=True),
             jnp.sum(y * y, axis=0, keepdims=True)], axis=0)


def pallas_matmul_stats(lhs, rhs, tm):
    """lhs [Mp,K] bf16 @ rhs [K,N] bf16 -> (out [Mp,N] f32, stats [2,N] f32)."""
    mp, kdim = lhs.shape
    _, n = rhs.shape
    tk = _pick_k_tile(kdim)
    grid = (mp // tm, kdim // tk)
    return pl.pallas_call(
        _matmul_stats_kernel,
        out_shape=(jax.ShapeDtypeStruct((mp, n), jnp.float32),
                   jax.ShapeDtypeStruct((2, n), jnp.float32)),
        grid=grid,
        in_specs=[
            pl.BlockSpec((tm, tk), lambda i, k: (i, k)),
            pl.BlockSpec((tk, n), lambda i, k: (k, 0)),
        ],
        out_specs=(
            pl.BlockSpec((tm, n), lambda i, k: (i, 0)),
            pl.BlockSpec((2, n), lambda i, k: (0, 0)),
        ),
        scratch_shapes=[pltpu.VMEM((tm, n), jnp.float32)],
        compiler_params=pltpu.CompilerParams(
            dimension_semantics=("arbitrary", "arbitrary")),
        cost_estimate=pl.CostEstimate(
            flops=2 * mp * n * kdim,
            transcendentals=0,
            bytes_accessed=mp * kdim * 2 + kdim * n * 2 + mp * n * 4),
    )(lhs, rhs)


def _bn_kernel(x_ref, s_ref, g_ref, b_ref, o_ref, *, inv_m, relu):
    x = x_ref[...]
    mean = s_ref[0:1, :] * inv_m
    var = jnp.maximum(s_ref[1:2, :] * inv_m - mean * mean, 0.0)
    y = (x - mean) * jax.lax.rsqrt(var + BN_EPS)
    y = y * g_ref[...] + b_ref[...]
    if relu:
        y = jnp.maximum(y, 0.0)
    o_ref[...] = y.astype(o_ref.dtype)


def _bn_add_relu_kernel(x_ref, r_ref, s_ref, g_ref, b_ref, o_ref, *, inv_m):
    x = x_ref[...]
    mean = s_ref[0:1, :] * inv_m
    var = jnp.maximum(s_ref[1:2, :] * inv_m - mean * mean, 0.0)
    y = (x - mean) * jax.lax.rsqrt(var + BN_EPS)
    y = y * g_ref[...] + b_ref[...]
    y = y + r_ref[...].astype(jnp.float32)
    o_ref[...] = jnp.maximum(y, 0.0).astype(o_ref.dtype)


def _max_taps_kernel(x_ref, o_ref):
    o_ref[...] = jnp.max(x_ref[...], axis=0)


def _mean_kernel(x_ref, o_ref, *, inv_hw):
    o_ref[...] = jnp.sum(x_ref[...].astype(jnp.float32), axis=1) * inv_hw


# ----------------------------------------------------------------------------
# Plain-JAX glue (im2col patch extraction, reshapes) + kernel wrappers
# ----------------------------------------------------------------------------
def _im2col(x, kh, kw, stride, pad):
    """x: [N,H,W,C]. Returns patches [N,Ho,Wo,kh*kw,C], Ho, Wo."""
    N, H, W, C = x.shape
    Ho = (H + 2 * pad - kh) // stride + 1
    Wo = (W + 2 * pad - kw) // stride + 1
    xp = jnp.pad(x, ((0, 0), (pad, pad), (pad, pad), (0, 0)))
    taps = []
    for i in range(kh):
        for j in range(kw):
            taps.append(xp[:, i:i + stride * (Ho - 1) + 1:stride,
                           j:j + stride * (Wo - 1) + 1:stride, :])
    pat = jnp.stack(taps, axis=3)      # [N, Ho, Wo, kh*kw, C]
    return pat, Ho, Wo


def conv2d(x, w, stride, pad):
    """Conv via (im2col +) tiled Pallas matmul with fused BN statistics.

    x: NHWC activation, w: PyTorch-layout [Cout, Cin, KH, KW].
    Returns (y [Mp, Cout] f32, stats [2, Cout] f32, meta).
    """
    cout, cin, kh, kw = w.shape
    x = x.astype(jnp.bfloat16)
    N = x.shape[0]
    if kh == 1 and kw == 1:
        xs = x[:, ::stride, ::stride, :]
        Ho, Wo = xs.shape[1], xs.shape[2]
        lhs = xs.reshape(N * Ho * Wo, cin)
    else:
        pat, Ho, Wo = _im2col(x, kh, kw, stride, pad)
        lhs = pat.reshape(N * Ho * Wo, kh * kw * cin)
    lhs = lhs.astype(jnp.bfloat16)
    rhs = jnp.transpose(w, (2, 3, 1, 0)).reshape(kh * kw * cin,
                                                 cout).astype(jnp.bfloat16)
    M = N * Ho * Wo
    Mp, tm = _pick_m_tile(M)
    if Mp != M:
        lhs = jnp.pad(lhs, ((0, Mp - M), (0, 0)))   # zero rows: no effect on stats sums
    y, stats = pallas_matmul_stats(lhs, rhs, tm)
    return y, stats, (N, Ho, Wo, cout, M, Mp, tm)


def bn_act(y, stats, gamma, beta, meta, *, relu):
    """Batch-stat BN (+optional ReLU) over the padded conv output; NHWC bf16 out."""
    N, Ho, Wo, C, M, Mp, tm = meta
    g = gamma.reshape(1, C)
    b = beta.reshape(1, C)
    out = pl.pallas_call(
        functools.partial(_bn_kernel, inv_m=1.0 / M, relu=relu),
        out_shape=jax.ShapeDtypeStruct((Mp, C), jnp.bfloat16),
        grid=(Mp // tm,),
        in_specs=[
            pl.BlockSpec((tm, C), lambda i: (i, 0)),
            pl.BlockSpec((2, C), lambda i: (0, 0)),
            pl.BlockSpec((1, C), lambda i: (0, 0)),
            pl.BlockSpec((1, C), lambda i: (0, 0)),
        ],
        out_specs=pl.BlockSpec((tm, C), lambda i: (i, 0)),
        compiler_params=pltpu.CompilerParams(
            dimension_semantics=("parallel",)),
    )(y, stats, g, b)
    return out[:M].reshape(N, Ho, Wo, C)


def bn_add_relu(y, stats, gamma, beta, identity_nhwc, meta):
    """BN + residual add + ReLU, fused, tiled over M."""
    N, Ho, Wo, C, M, Mp, tm = meta
    g = gamma.reshape(1, C)
    b = beta.reshape(1, C)
    r = identity_nhwc.reshape(M, C).astype(jnp.bfloat16)
    if Mp != M:
        r = jnp.pad(r, ((0, Mp - M), (0, 0)))
    out = pl.pallas_call(
        functools.partial(_bn_add_relu_kernel, inv_m=1.0 / M),
        out_shape=jax.ShapeDtypeStruct((Mp, C), jnp.bfloat16),
        grid=(Mp // tm,),
        in_specs=[
            pl.BlockSpec((tm, C), lambda i: (i, 0)),
            pl.BlockSpec((tm, C), lambda i: (i, 0)),
            pl.BlockSpec((2, C), lambda i: (0, 0)),
            pl.BlockSpec((1, C), lambda i: (0, 0)),
            pl.BlockSpec((1, C), lambda i: (0, 0)),
        ],
        out_specs=pl.BlockSpec((tm, C), lambda i: (i, 0)),
        compiler_params=pltpu.CompilerParams(
            dimension_semantics=("parallel",)),
    )(y, r, stats, g, b)
    return out[:M].reshape(N, Ho, Wo, C)


def maxpool_3x3_s2p1(x):
    """3x3/2 maxpool.  Input follows a ReLU, so zero padding == -inf padding."""
    N, H, W, C = x.shape
    Ho = (H + 2 - 3) // 2 + 1
    Wo = (W + 2 - 3) // 2 + 1
    xp = jnp.pad(x, ((0, 0), (1, 1), (1, 1), (0, 0)))
    taps = []
    for i in range(3):
        for j in range(3):
            taps.append(xp[:, i:i + 2 * (Ho - 1) + 1:2,
                           j:j + 2 * (Wo - 1) + 1:2, :].reshape(N * Ho * Wo, C))
    t = jnp.stack(taps, axis=0)         # [9, M, C] -- taps on the leading axis
    M = N * Ho * Wo
    Mp, tm = _pick_m_tile(M)
    if Mp != M:
        t = jnp.pad(t, ((0, 0), (0, Mp - M), (0, 0)))
    out = pl.pallas_call(
        _max_taps_kernel,
        out_shape=jax.ShapeDtypeStruct((Mp, C), x.dtype),
        grid=(Mp // tm,),
        in_specs=[pl.BlockSpec((9, tm, C), lambda i: (0, i, 0))],
        out_specs=pl.BlockSpec((tm, C), lambda i: (i, 0)),
        compiler_params=pltpu.CompilerParams(
            dimension_semantics=("parallel",)),
    )(t)
    return out[:M].reshape(N, Ho, Wo, C)


def global_avgpool(x):
    """AdaptiveAvgPool2d((1,1)): mean over H,W. Output [N, C] f32 (tiny)."""
    N, H, W, C = x.shape
    xf = x.reshape(N, H * W, C)
    return pl.pallas_call(
        functools.partial(_mean_kernel, inv_hw=1.0 / (H * W)),
        out_shape=jax.ShapeDtypeStruct((N, C), jnp.float32),
        grid=(1,),
        in_specs=[pl.BlockSpec((N, H * W, C), lambda i: (0, 0, 0))],
        out_specs=pl.BlockSpec((N, C), lambda i: (0, 0)),
    )(xf)


# ----------------------------------------------------------------------------
# ResNet-34 forward
# ----------------------------------------------------------------------------
def basic_block(x, blk, stride):
    y1, s1, m1 = conv2d(x, blk["c1w"], stride, 1)
    h1 = bn_act(y1, s1, blk["b1g"], blk["b1b"], m1, relu=True)
    y2, s2, m2 = conv2d(h1, blk["c2w"], 1, 1)
    if "dsw" in blk:
        yd, sd, md = conv2d(x, blk["dsw"], stride, 0)
        identity = bn_act(yd, sd, blk["dsg"], blk["dsb"], md, relu=False)
    else:
        identity = x
    return bn_add_relu(y2, s2, blk["b2g"], blk["b2b"], identity, m2)


def resnet34_forward(x_nchw, params):
    # NCHW (PyTorch) -> NHWC internal layout, bf16 activations.
    x = jnp.transpose(x_nchw, (0, 2, 3, 1)).astype(jnp.bfloat16)
    y, s, meta = conv2d(x, params["conv1_w"], 2, 3)            # 7x7 / 2
    x = bn_act(y, s, params["bn1_g"], params["bn1_b"], meta, relu=True)
    x = maxpool_3x3_s2p1(x)
    for (planes, blocks, stride), layer in zip(LAYER_CFG, params["layers"]):
        for bidx, blk in enumerate(layer):
            x = basic_block(x, blk, stride if bidx == 0 else 1)
    pooled = global_avgpool(x)                                 # [N, 512] f32
    # fc = Identity ; then torch .squeeze()
    return jnp.squeeze(pooled)


# ----------------------------------------------------------------------------
# Deterministic parameter init (shapes follow torchvision resnet34 with
# conv1 replaced by Conv2d(1, 64, 7, stride=2, padding=3, bias=False)).
# ----------------------------------------------------------------------------
def init_params(seed=42):
    keys = iter(jax.random.split(jax.random.PRNGKey(seed), 64))

    def conv_w(cout, cin, kh, kw):
        fan_in = cin * kh * kw
        std = (2.0 / fan_in) ** 0.5
        return std * jax.random.normal(next(keys), (cout, cin, kh, kw),
                                       jnp.float32)

    def bn(c):
        return jnp.ones((c,), jnp.float32), jnp.zeros((c,), jnp.float32)

    params = {}
    params["conv1_w"] = conv_w(64, 1, 7, 7)
    params["bn1_g"], params["bn1_b"] = bn(64)

    layers = []
    inplanes = 64
    for planes, blocks, stride in LAYER_CFG:
        layer = []
        for bidx in range(blocks):
            s = stride if bidx == 0 else 1
            blk = {}
            blk["c1w"] = conv_w(planes, inplanes, 3, 3)
            blk["b1g"], blk["b1b"] = bn(planes)
            blk["c2w"] = conv_w(planes, planes, 3, 3)
            blk["b2g"], blk["b2b"] = bn(planes)
            if s != 1 or inplanes != planes:
                blk["dsw"] = conv_w(planes, inplanes, 1, 1)
                blk["dsg"], blk["dsb"] = bn(planes)
            layer.append(blk)
            inplanes = planes
        layers.append(layer)
    params["layers"] = layers
    return params


if __name__ == "__main__":
    params = init_params()
    x = jax.random.normal(jax.random.PRNGKey(0), (2, 1, 16, 16), jnp.float32)

    fwd = jax.jit(resnet34_forward)
    out = jax.block_until_ready(fwd(x, params))

    assert out.shape == (2, 512), out.shape
    assert out.dtype == jnp.float32
    assert bool(jnp.all(jnp.isfinite(out)))
    print("KERNEL_OK")
</pallas_src>

<mosaic_0001>
module attributes {stable_mosaic.version = 11 : i64} {
  func.func @_matmul_stats_kernel(%arg0: i32, %arg1: i32, %arg2: memref<128x49xbf16, #tpu.memory_space<vmem>>, %arg3: memref<49x64xbf16, #tpu.memory_space<vmem>>, %arg4: memref<128x64xf32, #tpu.memory_space<vmem>>, %arg5: memref<2x64xf32, #tpu.memory_space<vmem>>, %arg6: memref<128x64xf32, #tpu.memory_space<vmem>>) attributes {dimension_semantics = [#tpu.dimension_semantics<arbitrary>, #tpu.dimension_semantics<arbitrary>], iteration_bounds = array<i64: 1, 1>, scalar_prefetch = 0 : i64, scratch_operands = 1 : i64, tpu.core_type = #tpu.core_type<tc>, window_params = [{transform_indices = @transform_0, window_bounds = array<i64: 128, 49>}, {transform_indices = @transform_1, window_bounds = array<i64: 49, 64>}, {transform_indices = @transform_2, window_bounds = array<i64: 128, 64>}, {pipeline_mode = #tpu.pipeline_mode<synchronous>, transform_indices = @transform_3, window_bounds = array<i64: 2, 64>}]} {
    %c0_i32 = arith.constant 0 : i32
    %0 = arith.cmpi eq, %arg0, %c0_i32 : i32
    %c0_i32_0 = arith.constant 0 : i32
    %1 = arith.cmpi eq, %arg1, %c0_i32_0 : i32
    %2 = arith.andi %0, %1 : i1
    %3 = arith.extui %2 : i1 to i32
    %c0_i32_1 = arith.constant 0 : i32
    %4 = arith.cmpi ne, %3, %c0_i32_1 : i32
    scf.if %4 {
      %cst_13 = arith.constant 0.000000e+00 : f32
      %17 = vector.broadcast %cst_13 : f32 to vector<2x64xf32>
      %c0_14 = arith.constant 0 : index
      %c0_15 = arith.constant 0 : index
      %18 = vector.load %arg5[%c0_14, %c0_15] : memref<2x64xf32, #tpu.memory_space<vmem>>, vector<2x64xf32>
      tpu.vector_store %arg5[%c0_14, %c0_15], %17 {strides = array<i32>} : memref<2x64xf32, #tpu.memory_space<vmem>>, vector<2x64xf32>,
    } else {
    }
    %c0_i32_2 = arith.constant 0 : i32
    %5 = arith.cmpi eq, %arg1, %c0_i32_2 : i32
    %6 = arith.extui %5 : i1 to i32
    %c0_i32_3 = arith.constant 0 : i32
    %7 = arith.cmpi ne, %6, %c0_i32_3 : i32
    scf.if %7 {
      %cst_13 = arith.constant 0.000000e+00 : f32
      %17 = vector.broadcast %cst_13 : f32 to vector<128x64xf32>
      %c0_14 = arith.constant 0 : index
      %c0_15 = arith.constant 0 : index
      %18 = vector.load %arg6[%c0_14, %c0_15] : memref<128x64xf32, #tpu.memory_space<vmem>>, vector<128x64xf32>
      tpu.vector_store %arg6[%c0_14, %c0_15], %17 {strides = array<i32>} : memref<128x64xf32, #tpu.memory_space<vmem>>, vector<128x64xf32>,
    } else {
    }
    %c0 = arith.constant 0 : index
    %c0_4 = arith.constant 0 : index
    %8 = vector.load %arg6[%c0, %c0_4] : memref<128x64xf32, #tpu.memory_space<vmem>>, vector<128x64xf32>
    %c0_5 = arith.constant 0 : index
    %c0_6 = arith.constant 0 : index
    %9 = vector.load %arg2[%c0_5, %c0_6] : memref<128x49xbf16, #tpu.memory_space<vmem>>, vector<128x49xbf16>
    %c0_7 = arith.constant 0 : index
    %c0_8 = arith.constant 0 : index
    %10 = vector.load %arg3[%c0_7, %c0_8] : memref<49x64xbf16, #tpu.memory_space<vmem>>, vector<49x64xbf16>
    %cst = arith.constant dense<0.000000e+00> : vector<128x64xf32>
    %11 = tpu.matmul %9, %10, %cst {dimension_numbers = #tpu.dot_dimension_numbers<[1], [0], [0], [1], [0, 0, 1, 1], [], []>} : vector<128x49xbf16>, vector<49x64xbf16>, vector<128x64xf32> -> vector<128x64xf32>
    %12 = arith.addf %8, %11 : vector<128x64xf32>
    %c0_9 = arith.constant 0 : index
    %c0_10 = arith.constant 0 : index
    %13 = vector.load %arg6[%c0_9, %c0_10] : memref<128x64xf32, #tpu.memory_space<vmem>>, vector<128x64xf32>
    tpu.vector_store %arg6[%c0_9, %c0_10], %12 {strides = array<i32>} : memref<128x64xf32, #tpu.memory_space<vmem>>, vector<128x64xf32>,
    %c0_i32_11 = arith.constant 0 : i32
    %14 = arith.cmpi eq, %arg1, %c0_i32_11 : i32
    %15 = arith.extui %14 : i1 to i32
    %c0_i32_12 = arith.constant 0 : i32
    %16 = arith.cmpi ne, %15, %c0_i32_12 : i32
    scf.if %16 {
      %c0_13 = arith.constant 0 : index
      %c0_14 = arith.constant 0 : index
      %17 = vector.load %arg6[%c0_13, %c0_14] : memref<128x64xf32, #tpu.memory_space<vmem>>, vector<128x64xf32>
      %c0_15 = arith.constant 0 : index
      %c0_16 = arith.constant 0 : index
      %18 = vector.load %arg4[%c0_15, %c0_16] : memref<128x64xf32, #tpu.memory_space<vmem>>, vector<128x64xf32>
      tpu.vector_store %arg4[%c0_15, %c0_16], %17 {strides = array<i32>} : memref<128x64xf32, #tpu.memory_space<vmem>>, vector<128x64xf32>,
      %c0_17 = arith.constant 0 : index
      %c0_18 = arith.constant 0 : index
      %19 = vector.load %arg5[%c0_17, %c0_18] : memref<2x64xf32, #tpu.memory_space<vmem>>, vector<2x64xf32>
      %cst_19 = arith.constant dense<0.000000e+00> : vector<64xf32>
      %20 = vector.multi_reduction <add>, %17, %cst_19 [0] : vector<128x64xf32> to vector<64xf32>
      %21 = vector.shape_cast %20 : vector<64xf32> to vector<1x64xf32>
      %22 = arith.mulf %17, %17 : vector<128x64xf32>
      %cst_20 = arith.constant dense<0.000000e+00> : vector<64xf32>
      %23 = vector.multi_reduction <add>, %22, %cst_20 [0] : vector<128x64xf32> to vector<64xf32>
      %24 = vector.shape_cast %23 : vector<64xf32> to vector<1x64xf32>
      %25 = tpu.concatenate %21, %24 in 0 : vector<1x64xf32>, vector<1x64xf32> -> vector<2x64xf32>
      %26 = arith.addf %19, %25 : vector<2x64xf32>
      %c0_21 = arith.constant 0 : index
      %c0_22 = arith.constant 0 : index
      %27 = vector.load %arg5[%c0_21, %c0_22] : memref<2x64xf32, #tpu.memory_space<vmem>>, vector<2x64xf32>
      tpu.vector_store %arg5[%c0_21, %c0_22], %26 {strides = array<i32>} : memref<2x64xf32, #tpu.memory_space<vmem>>, vector<2x64xf32>,
    } else {
    }
    return
  }
  func.func @transform_0(%arg0: i32, %arg1: i32) -> (i32, i32) {
    %c0_i32 = arith.constant 0 : i32
    return %arg0, %arg1 : i32, i32
  }
  func.func @transform_1(%arg0: i32, %arg1: i32) -> (i32, i32) {
    %c0_i32 = arith.constant 0 : i32
    %c0_i32_0 = arith.constant 0 : i32
    return %arg1, %c0_i32 : i32, i32
  }
  func.func @transform_2(%arg0: i32, %arg1: i32) -> (i32, i32) {
    %c0_i32 = arith.constant 0 : i32
    %c0_i32_0 = arith.constant 0 : i32
    return %arg0, %c0_i32 : i32, i32
  }
  func.func @transform_3(%arg0: i32, %arg1: i32) -> (i32, i32) {
    %c0_i32 = arith.constant 0 : i32
    %c0_i32_0 = arith.constant 0 : i32
    %c0_i32_1 = arith.constant 0 : i32
    return %c0_i32, %c0_i32_0 : i32, i32
  }
}

module attributes {stable_mosaic.version = 11 : i64} {
  func.func @_bn_kernel(%arg0: i32, %arg1: memref<128x64xf32, #tpu.memory_space<vmem>>, %arg2: memref<2x64xf32, #tpu.memory_space<vmem>>, %arg3: memref<1x64xf32, #tpu.memory_space<vmem>>, %arg4: memref<1x64xf32, #tpu.memory_space<vmem>>, %arg5: memref<128x64xbf16, #tpu.memory_space<vmem>>) attributes {dimension_semantics = [#tpu.dimension_semantics<parallel>], iteration_bounds = array<i64: 1>, scalar_prefetch = 0 : i64, scratch_operands = 0 : i64, tpu.core_type = #tpu.core_type<tc>, window_params = [{transform_indices = @transform_0, window_bounds = array<i64: 128, 64>}, {pipeline_mode = #tpu.pipeline_mode<synchronous>, transform_indices = @transform_1, window_bounds = array<i64: 2, 64>}, {pipeline_mode = #tpu.pipeline_mode<synchronous>, transform_indices = @transform_2, window_bounds = array<i64: 1, 64>}, {pipeline_mode = #tpu.pipeline_mode<synchronous>, transform_indices = @transform_3, window_bounds = array<i64: 1, 64>}, {transform_indices = @transform_4, window_bounds = array<i64: 128, 64>}]} {
    %c0 = arith.constant 0 : index
    %c0_0 = arith.constant 0 : index
    %0 = vector.load %arg1[%c0, %c0_0] : memref<128x64xf32, #tpu.memory_space<vmem>>, vector<128x64xf32>
    %c0_1 = arith.constant 0 : index
    %c0_2 = arith.constant 0 : index
    %1 = vector.load %arg2[%c0_1, %c0_2] : memref<2x64xf32, #tpu.memory_space<vmem>>, vector<1x64xf32>
    %cst = arith.constant 7.812500e-03 : f32
    %2 = vector.broadcast %cst : f32 to vector<1x64xf32>
    %3 = arith.mulf %1, %2 : vector<1x64xf32>
    %c1 = arith.constant 1 : index
    %c0_3 = arith.constant 0 : index
    %4 = vector.load %arg2[%c1, %c0_3] : memref<2x64xf32, #tpu.memory_space<vmem>>, vector<1x64xf32>
    %cst_4 = arith.constant 7.812500e-03 : f32
    %5 = vector.broadcast %cst_4 : f32 to vector<1x64xf32>
    %6 = arith.mulf %4, %5 : vector<1x64xf32>
    %7 = arith.mulf %3, %3 : vector<1x64xf32>
    %8 = arith.subf %6, %7 : vector<1x64xf32>
    %cst_5 = arith.constant 0.000000e+00 : f32
    %9 = vector.broadcast %cst_5 : f32 to vector<1x64xf32>
    %10 = arith.maximumf %8, %9 : vector<1x64xf32>
    %11 = vector.broadcast %3 : vector<1x64xf32> to vector<128x64xf32>
    %12 = arith.subf %0, %11 : vector<128x64xf32>
    %cst_6 = arith.constant 9.99999974E-6 : f32
    %13 = vector.broadcast %cst_6 : f32 to vector<1x64xf32>
    %14 = arith.addf %10, %13 : vector<1x64xf32>
    %15 = math.rsqrt %14 : vector<1x64xf32>
    %16 = vector.broadcast %15 : vector<1x64xf32> to vector<128x64xf32>
    %17 = arith.mulf %12, %16 : vector<128x64xf32>
    %c0_7 = arith.constant 0 : index
    %c0_8 = arith.constant 0 : index
    %18 = vector.load %arg3[%c0_7, %c0_8] : memref<1x64xf32, #tpu.memory_space<vmem>>, vector<1x64xf32>
    %19 = vector.broadcast %18 : vector<1x64xf32> to vector<128x64xf32>
    %20 = arith.mulf %17, %19 : vector<128x64xf32>
    %c0_9 = arith.constant 0 : index
    %c0_10 = arith.constant 0 : index
    %21 = vector.load %arg4[%c0_9, %c0_10] : memref<1x64xf32, #tpu.memory_space<vmem>>, vector<1x64xf32>
    %22 = vector.broadcast %21 : vector<1x64xf32> to vector<128x64xf32>
    %23 = arith.addf %20, %22 : vector<128x64xf32>
    %cst_11 = arith.constant 0.000000e+00 : f32
    %24 = vector.broadcast %cst_11 : f32 to vector<128x64xf32>
    %25 = arith.maximumf %23, %24 : vector<128x64xf32>
    %26 = arith.truncf %25 : vector<128x64xf32> to vector<128x64xbf16>
    %c0_12 = arith.constant 0 : index
    %c0_13 = arith.constant 0 : index
    %27 = vector.load %arg5[%c0_12, %c0_13] : memref<128x64xbf16, #tpu.memory_space<vmem>>, vector<128x64xbf16>
    tpu.vector_store %arg5[%c0_12, %c0_13], %26 {strides = array<i32>} : memref<128x64xbf16, #tpu.memory_space<vmem>>, vector<128x64xbf16>,
    return
  }
  func.func @transform_0(%arg0: i32) -> (i32, i32) {
    %c0_i32 = arith.constant 0 : i32
    %c0_i32_0 = arith.constant 0 : i32
    return %arg0, %c0_i32 : i32, i32
  }
  func.func @transform_1(%arg0: i32) -> (i32, i32) {
    %c0_i32 = arith.constant 0 : i32
    %c0_i32_0 = arith.constant 0 : i32
    %c0_i32_1 = arith.constant 0 : i32
    return %c0_i32, %c0_i32_0 : i32, i32
  }
  func.func @transform_2(%arg0: i32) -> (i32, i32) {
    %c0_i32 = arith.constant 0 : i32
    %c0_i32_0 = arith.constant 0 : i32
    %c0_i32_1 = arith.constant 0 : i32
    return %c0_i32, %c0_i32_0 : i32, i32
  }
  func.func @transform_3(%arg0: i32) -> (i32, i32) {
    %c0_i32 = arith.constant 0 : i32
    %c0_i32_0 = arith.constant 0 : i32
    %c0_i32_1 = arith.constant 0 : i32
    return %c0_i32, %c0_i32_0 : i32, i32
  }
  func.func @transform_4(%arg0: i32) -> (i32, i32) {
    %c0_i32 = arith.constant 0 : i32
    %c0_i32_0 = arith.constant 0 : i32
    return %arg0, %c0_i32 : i32, i32
  }
}

module attributes {stable_mosaic.version = 11 : i64} {
  func.func @_max_taps_kernel(%arg0: i32, %arg1: memref<9x32x64xbf16, #tpu.memory_space<vmem>>, %arg2: memref<32x64xbf16, #tpu.memory_space<vmem>>) attributes {dimension_semantics = [#tpu.dimension_semantics<parallel>], iteration_bounds = array<i64: 1>, scalar_prefetch = 0 : i64, scratch_operands = 0 : i64, tpu.core_type = #tpu.core_type<tc>, window_params = [{transform_indices = @transform_0, window_bounds = array<i64: 9, 32, 64>}, {transform_indices = @transform_1, window_bounds = array<i64: 32, 64>}]} {
    %c0 = arith.constant 0 : index
    %c0_0 = arith.constant 0 : index
    %c0_1 = arith.constant 0 : index
    %0 = vector.load %arg1[%c0, %c0_0, %c0_1] : memref<9x32x64xbf16, #tpu.memory_space<vmem>>, vector<9x32x64xbf16>
    %cst = arith.constant dense<0xFF80> : vector<32x64xbf16>
    %1 = vector.multi_reduction <maximumf>, %0, %cst [0] : vector<9x32x64xbf16> to vector<32x64xbf16>
    %c0_2 = arith.constant 0 : index
    %c0_3 = arith.constant 0 : index
    %2 = vector.load %arg2[%c0_2, %c0_3] : memref<32x64xbf16, #tpu.memory_space<vmem>>, vector<32x64xbf16>
    tpu.vector_store %arg2[%c0_2, %c0_3], %1 {strides = array<i32>} : memref<32x64xbf16, #tpu.memory_space<vmem>>, vector<32x64xbf16>,
    return
  }
  func.func @transform_0(%arg0: i32) -> (i32, i32, i32) {
    %c0_i32 = arith.constant 0 : i32
    %c0_i32_0 = arith.constant 0 : i32
    %c0_i32_1 = arith.constant 0 : i32
    return %c0_i32, %arg0, %c0_i32_0 : i32, i32, i32
  }
  func.func @transform_1(%arg0: i32) -> (i32, i32) {
    %c0_i32 = arith.constant 0 : i32
    %c0_i32_0 = arith.constant 0 : i32
    return %arg0, %c0_i32 : i32, i32
  }
}

module attributes {stable_mosaic.version = 11 : i64} {
  func.func @_bn_kernel(%arg0: i32, %arg1: memref<32x64xf32, #tpu.memory_space<vmem>>, %arg2: memref<2x64xf32, #tpu.memory_space<vmem>>, %arg3: memref<1x64xf32, #tpu.memory_space<vmem>>, %arg4: memref<1x64xf32, #tpu.memory_space<vmem>>, %arg5: memref<32x64xbf16, #tpu.memory_space<vmem>>) attributes {dimension_semantics = [#tpu.dimension_semantics<parallel>], iteration_bounds = array<i64: 1>, scalar_prefetch = 0 : i64, scratch_operands = 0 : i64, tpu.core_type = #tpu.core_type<tc>, window_params = [{transform_indices = @transform_0, window_bounds = array<i64: 32, 64>}, {pipeline_mode = #tpu.pipeline_mode<synchronous>, transform_indices = @transform_1, window_bounds = array<i64: 2, 64>}, {pipeline_mode = #tpu.pipeline_mode<synchronous>, transform_indices = @transform_2, window_bounds = array<i64: 1, 64>}, {pipeline_mode = #tpu.pipeline_mode<synchronous>, transform_indices = @transform_3, window_bounds = array<i64: 1, 64>}, {transform_indices = @transform_4, window_bounds = array<i64: 32, 64>}]} {
    %c0 = arith.constant 0 : index
    %c0_0 = arith.constant 0 : index
    %0 = vector.load %arg1[%c0, %c0_0] : memref<32x64xf32, #tpu.memory_space<vmem>>, vector<32x64xf32>
    %c0_1 = arith.constant 0 : index
    %c0_2 = arith.constant 0 : index
    %1 = vector.load %arg2[%c0_1, %c0_2] : memref<2x64xf32, #tpu.memory_space<vmem>>, vector<1x64xf32>
    %cst = arith.constant 3.125000e-02 : f32
    %2 = vector.broadcast %cst : f32 to vector<1x64xf32>
    %3 = arith.mulf %1, %2 : vector<1x64xf32>
    %c1 = arith.constant 1 : index
    %c0_3 = arith.constant 0 : index
    %4 = vector.load %arg2[%c1, %c0_3] : memref<2x64xf32, #tpu.memory_space<vmem>>, vector<1x64xf32>
    %cst_4 = arith.constant 3.125000e-02 : f32
    %5 = vector.broadcast %cst_4 : f32 to vector<1x64xf32>
    %6 = arith.mulf %4, %5 : vector<1x64xf32>
    %7 = arith.mulf %3, %3 : vector<1x64xf32>
    %8 = arith.subf %6, %7 : vector<1x64xf32>
    %cst_5 = arith.constant 0.000000e+00 : f32
    %9 = vector.broadcast %cst_5 : f32 to vector<1x64xf32>
    %10 = arith.maximumf %8, %9 : vector<1x64xf32>
    %11 = vector.broadcast %3 : vector<1x64xf32> to vector<32x64xf32>
    %12 = arith.subf %0, %11 : vector<32x64xf32>
    %cst_6 = arith.constant 9.99999974E-6 : f32
    %13 = vector.broadcast %cst_6 : f32 to vector<1x64xf32>
    %14 = arith.addf %10, %13 : vector<1x64xf32>
    %15 = math.rsqrt %14 : vector<1x64xf32>
    %16 = vector.broadcast %15 : vector<1x64xf32> to vector<32x64xf32>
    %17 = arith.mulf %12, %16 : vector<32x64xf32>
    %c0_7 = arith.constant 0 : index
    %c0_8 = arith.constant 0 : index
    %18 = vector.load %arg3[%c0_7, %c0_8] : memref<1x64xf32, #tpu.memory_space<vmem>>, vector<1x64xf32>
    %19 = vector.broadcast %18 : vector<1x64xf32> to vector<32x64xf32>
    %20 = arith.mulf %17, %19 : vector<32x64xf32>
    %c0_9 = arith.constant 0 : index
    %c0_10 = arith.constant 0 : index
    %21 = vector.load %arg4[%c0_9, %c0_10] : memref<1x64xf32, #tpu.memory_space<vmem>>, vector<1x64xf32>
    %22 = vector.broadcast %21 : vector<1x64xf32> to vector<32x64xf32>
    %23 = arith.addf %20, %22 : vector<32x64xf32>
    %cst_11 = arith.constant 0.000000e+00 : f32
    %24 = vector.broadcast %cst_11 : f32 to vector<32x64xf32>
    %25 = arith.maximumf %23, %24 : vector<32x64xf32>
    %26 = arith.truncf %25 : vector<32x64xf32> to vector<32x64xbf16>
    %c0_12 = arith.constant 0 : index
    %c0_13 = arith.constant 0 : index
    %27 = vector.load %arg5[%c0_12, %c0_13] : memref<32x64xbf16, #tpu.memory_space<vmem>>, vector<32x64xbf16>
    tpu.vector_store %arg5[%c0_12, %c0_13], %26 {strides = array<i32>} : memref<32x64xbf16, #tpu.memory_space<vmem>>, vector<32x64xbf16>,
    return
  }
  func.func @transform_0(%arg0: i32) -> (i32, i32) {
    %c0_i32 = arith.constant 0 : i32
    %c0_i32_0 = arith.constant 0 : i32
    return %arg0, %c0_i32 : i32, i32
  }
  func.func @transform_1(%arg0: i32) -> (i32, i32) {
    %c0_i32 = arith.constant 0 : i32
    %c0_i32_0 = arith.constant 0 : i32
    %c0_i32_1 = arith.constant 0 : i32
    return %c0_i32, %c0_i32_0 : i32, i32
  }
  func.func @transform_2(%arg0: i32) -> (i32, i32) {
    %c0_i32 = arith.constant 0 : i32
    %c0_i32_0 = arith.constant 0 : i32
    %c0_i32_1 = arith.constant 0 : i32
    return %c0_i32, %c0_i32_0 : i32, i32
  }
  func.func @transform_3(%arg0: i32) -> (i32, i32) {
    %c0_i32 = arith.constant 0 : i32
    %c0_i32_0 = arith.constant 0 : i32
    %c0_i32_1 = arith.constant 0 : i32
    return %c0_i32, %c0_i32_0 : i32, i32
  }
  func.func @transform_4(%arg0: i32) -> (i32, i32) {
    %c0_i32 = arith.constant 0 : i32
    %c0_i32_0 = arith.constant 0 : i32
    return %arg0, %c0_i32 : i32, i32
  }
}

module attributes {stable_mosaic.version = 11 : i64} {
  func.func @_bn_kernel(%arg0: i32, %arg1: memref<8x128xf32, #tpu.memory_space<vmem>>, %arg2: memref<2x128xf32, #tpu.memory_space<vmem>>, %arg3: memref<1x128xf32, #tpu.memory_space<vmem>>, %arg4: memref<1x128xf32, #tpu.memory_space<vmem>>, %arg5: memref<8x128xbf16, #tpu.memory_space<vmem>>) attributes {dimension_semantics = [#tpu.dimension_semantics<parallel>], iteration_bounds = array<i64: 1>, scalar_prefetch = 0 : i64, scratch_operands = 0 : i64, tpu.core_type = #tpu.core_type<tc>, window_params = [{transform_indices = @transform_0, window_bounds = array<i64: 8, 128>}, {pipeline_mode = #tpu.pipeline_mode<synchronous>, transform_indices = @transform_1, window_bounds = array<i64: 2, 128>}, {pipeline_mode = #tpu.pipeline_mode<synchronous>, transform_indices = @transform_2, window_bounds = array<i64: 1, 128>}, {pipeline_mode = #tpu.pipeline_mode<synchronous>, transform_indices = @transform_3, window_bounds = array<i64: 1, 128>}, {transform_indices = @transform_4, window_bounds = array<i64: 8, 128>}]} {
    %c0 = arith.constant 0 : index
    %c0_0 = arith.constant 0 : index
    %0 = vector.load %arg1[%c0, %c0_0] : memref<8x128xf32, #tpu.memory_space<vmem>>, vector<8x128xf32>
    %c0_1 = arith.constant 0 : index
    %c0_2 = arith.constant 0 : index
    %1 = vector.load %arg2[%c0_1, %c0_2] : memref<2x128xf32, #tpu.memory_space<vmem>>, vector<1x128xf32>
    %cst = arith.constant 1.250000e-01 : f32
    %2 = vector.broadcast %cst : f32 to vector<1x128xf32>
    %3 = arith.mulf %1, %2 : vector<1x128xf32>
    %c1 = arith.constant 1 : index
    %c0_3 = arith.constant 0 : index
    %4 = vector.load %arg2[%c1, %c0_3] : memref<2x128xf32, #tpu.memory_space<vmem>>, vector<1x128xf32>
    %cst_4 = arith.constant 1.250000e-01 : f32
    %5 = vector.broadcast %cst_4 : f32 to vector<1x128xf32>
    %6 = arith.mulf %4, %5 : vector<1x128xf32>
    %7 = arith.mulf %3, %3 : vector<1x128xf32>
    %8 = arith.subf %6, %7 : vector<1x128xf32>
    %cst_5 = arith.constant 0.000000e+00 : f32
    %9 = vector.broadcast %cst_5 : f32 to vector<1x128xf32>
    %10 = arith.maximumf %8, %9 : vector<1x128xf32>
    %11 = vector.broadcast %3 : vector<1x128xf32> to vector<8x128xf32>
    %12 = arith.subf %0, %11 : vector<8x128xf32>
    %cst_6 = arith.constant 9.99999974E-6 : f32
    %13 = vector.broadcast %cst_6 : f32 to vector<1x128xf32>
    %14 = arith.addf %10, %13 : vector<1x128xf32>
    %15 = math.rsqrt %14 : vector<1x128xf32>
    %16 = vector.broadcast %15 : vector<1x128xf32> to vector<8x128xf32>
    %17 = arith.mulf %12, %16 : vector<8x128xf32>
    %c0_7 = arith.constant 0 : index
    %c0_8 = arith.constant 0 : index
    %18 = vector.load %arg3[%c0_7, %c0_8] : memref<1x128xf32, #tpu.memory_space<vmem>>, vector<1x128xf32>
    %19 = vector.broadcast %18 : vector<1x128xf32> to vector<8x128xf32>
    %20 = arith.mulf %17, %19 : vector<8x128xf32>
    %c0_9 = arith.constant 0 : index
    %c0_10 = arith.constant 0 : index
    %21 = vector.load %arg4[%c0_9, %c0_10] : memref<1x128xf32, #tpu.memory_space<vmem>>, vector<1x128xf32>
    %22 = vector.broadcast %21 : vector<1x128xf32> to vector<8x128xf32>
    %23 = arith.addf %20, %22 : vector<8x128xf32>
    %24 = arith.truncf %23 : vector<8x128xf32> to vector<8x128xbf16>
    %c0_11 = arith.constant 0 : index
    %c0_12 = arith.constant 0 : index
    %25 = vector.load %arg5[%c0_11, %c0_12] : memref<8x128xbf16, #tpu.memory_space<vmem>>, vector<8x128xbf16>
    tpu.vector_store %arg5[%c0_11, %c0_12], %24 {strides = array<i32>} : memref<8x128xbf16, #tpu.memory_space<vmem>>, vector<8x128xbf16>,
    return
  }
  func.func @transform_0(%arg0: i32) -> (i32, i32) {
    %c0_i32 = arith.constant 0 : i32
    %c0_i32_0 = arith.constant 0 : i32
    return %arg0, %c0_i32 : i32, i32
  }
  func.func @transform_1(%arg0: i32) -> (i32, i32) {
    %c0_i32 = arith.constant 0 : i32
    %c0_i32_0 = arith.constant 0 : i32
    %c0_i32_1 = arith.constant 0 : i32
    return %c0_i32, %c0_i32_0 : i32, i32
  }
  func.func @transform_2(%arg0: i32) -> (i32, i32) {
    %c0_i32 = arith.constant 0 : i32
    %c0_i32_0 = arith.constant 0 : i32
    %c0_i32_1 = arith.constant 0 : i32
    return %c0_i32, %c0_i32_0 : i32, i32
  }
  func.func @transform_3(%arg0: i32) -> (i32, i32) {
    %c0_i32 = arith.constant 0 : i32
    %c0_i32_0 = arith.constant 0 : i32
    %c0_i32_1 = arith.constant 0 : i32
    return %c0_i32, %c0_i32_0 : i32, i32
  }
  func.func @transform_4(%arg0: i32) -> (i32, i32) {
    %c0_i32 = arith.constant 0 : i32
    %c0_i32_0 = arith.constant 0 : i32
    return %arg0, %c0_i32 : i32, i32
  }
}

module attributes {stable_mosaic.version = 11 : i64} {
  func.func @_matmul_stats_kernel(%arg0: i32, %arg1: i32, %arg2: memref<32x576xbf16, #tpu.memory_space<vmem>>, %arg3: memref<576x64xbf16, #tpu.memory_space<vmem>>, %arg4: memref<32x64xf32, #tpu.memory_space<vmem>>, %arg5: memref<2x64xf32, #tpu.memory_space<vmem>>, %arg6: memref<32x64xf32, #tpu.memory_space<vmem>>) attributes {dimension_semantics = [#tpu.dimension_semantics<arbitrary>, #tpu.dimension_semantics<arbitrary>], iteration_bounds = array<i64: 1, 1>, scalar_prefetch = 0 : i64, scratch_operands = 1 : i64, tpu.core_type = #tpu.core_type<tc>, window_params = [{transform_indices = @transform_0, window_bounds = array<i64: 32, 576>}, {transform_indices = @transform_1, window_bounds = array<i64: 576, 64>}, {transform_indices = @transform_2, window_bounds = array<i64: 32, 64>}, {pipeline_mode = #tpu.pipeline_mode<synchronous>, transform_indices = @transform_3, window_bounds = array<i64: 2, 64>}]} {
    %c0_i32 = arith.constant 0 : i32
    %0 = arith.cmpi eq, %arg0, %c0_i32 : i32
    %c0_i32_0 = arith.constant 0 : i32
    %1 = arith.cmpi eq, %arg1, %c0_i32_0 : i32
    %2 = arith.andi %0, %1 : i1
    %3 = arith.extui %2 : i1 to i32
    %c0_i32_1 = arith.constant 0 : i32
    %4 = arith.cmpi ne, %3, %c0_i32_1 : i32
    scf.if %4 {
      %cst_13 = arith.constant 0.000000e+00 : f32
      %17 = vector.broadcast %cst_13 : f32 to vector<2x64xf32>
      %c0_14 = arith.constant 0 : index
      %c0_15 = arith.constant 0 : index
      %18 = vector.load %arg5[%c0_14, %c0_15] : memref<2x64xf32, #tpu.memory_space<vmem>>, vector<2x64xf32>
      tpu.vector_store %arg5[%c0_14, %c0_15], %17 {strides = array<i32>} : memref<2x64xf32, #tpu.memory_space<vmem>>, vector<2x64xf32>,
    } else {
    }
    %c0_i32_2 = arith.constant 0 : i32
    %5 = arith.cmpi eq, %arg1, %c0_i32_2 : i32
    %6 = arith.extui %5 : i1 to i32
    %c0_i32_3 = arith.constant 0 : i32
    %7 = arith.cmpi ne, %6, %c0_i32_3 : i32
    scf.if %7 {
      %cst_13 = arith.constant 0.000000e+00 : f32
      %17 = vector.broadcast %cst_13 : f32 to vector<32x64xf32>
      %c0_14 = arith.constant 0 : index
      %c0_15 = arith.constant 0 : index
      %18 = vector.load %arg6[%c0_14, %c0_15] : memref<32x64xf32, #tpu.memory_space<vmem>>, vector<32x64xf32>
      tpu.vector_store %arg6[%c0_14, %c0_15], %17 {strides = array<i32>} : memref<32x64xf32, #tpu.memory_space<vmem>>, vector<32x64xf32>,
    } else {
    }
    %c0 = arith.constant 0 : index
    %c0_4 = arith.constant 0 : index
    %8 = vector.load %arg6[%c0, %c0_4] : memref<32x64xf32, #tpu.memory_space<vmem>>, vector<32x64xf32>
    %c0_5 = arith.constant 0 : index
    %c0_6 = arith.constant 0 : index
    %9 = vector.load %arg2[%c0_5, %c0_6] : memref<32x576xbf16, #tpu.memory_space<vmem>>, vector<32x576xbf16>
    %c0_7 = arith.constant 0 : index
    %c0_8 = arith.constant 0 : index
    %10 = vector.load %arg3[%c0_7, %c0_8] : memref<576x64xbf16, #tpu.memory_space<vmem>>, vector<576x64xbf16>
    %cst = arith.constant dense<0.000000e+00> : vector<32x64xf32>
    %11 = tpu.matmul %9, %10, %cst {dimension_numbers = #tpu.dot_dimension_numbers<[1], [0], [0], [1], [0, 0, 1, 1], [], []>} : vector<32x576xbf16>, vector<576x64xbf16>, vector<32x64xf32> -> vector<32x64xf32>
    %12 = arith.addf %8, %11 : vector<32x64xf32>
    %c0_9 = arith.constant 0 : index
    %c0_10 = arith.constant 0 : index
    %13 = vector.load %arg6[%c0_9, %c0_10] : memref<32x64xf32, #tpu.memory_space<vmem>>, vector<32x64xf32>
    tpu.vector_store %arg6[%c0_9, %c0_10], %12 {strides = array<i32>} : memref<32x64xf32, #tpu.memory_space<vmem>>, vector<32x64xf32>,
    %c0_i32_11 = arith.constant 0 : i32
    %14 = arith.cmpi eq, %arg1, %c0_i32_11 : i32
    %15 = arith.extui %14 : i1 to i32
    %c0_i32_12 = arith.constant 0 : i32
    %16 = arith.cmpi ne, %15, %c0_i32_12 : i32
    scf.if %16 {
      %c0_13 = arith.constant 0 : index
      %c0_14 = arith.constant 0 : index
      %17 = vector.load %arg6[%c0_13, %c0_14] : memref<32x64xf32, #tpu.memory_space<vmem>>, vector<32x64xf32>
      %c0_15 = arith.constant 0 : index
      %c0_16 = arith.constant 0 : index
      %18 = vector.load %arg4[%c0_15, %c0_16] : memref<32x64xf32, #tpu.memory_space<vmem>>, vector<32x64xf32>
      tpu.vector_store %arg4[%c0_15, %c0_16], %17 {strides = array<i32>} : memref<32x64xf32, #tpu.memory_space<vmem>>, vector<32x64xf32>,
      %c0_17 = arith.constant 0 : index
      %c0_18 = arith.constant 0 : index
      %19 = vector.load %arg5[%c0_17, %c0_18] : memref<2x64xf32, #tpu.memory_space<vmem>>, vector<2x64xf32>
      %cst_19 = arith.constant dense<0.000000e+00> : vector<64xf32>
      %20 = vector.multi_reduction <add>, %17, %cst_19 [0] : vector<32x64xf32> to vector<64xf32>
      %21 = vector.shape_cast %20 : vector<64xf32> to vector<1x64xf32>
      %22 = arith.mulf %17, %17 : vector<32x64xf32>
      %cst_20 = arith.constant dense<0.000000e+00> : vector<64xf32>
      %23 = vector.multi_reduction <add>, %22, %cst_20 [0] : vector<32x64xf32> to vector<64xf32>
      %24 = vector.shape_cast %23 : vector<64xf32> to vector<1x64xf32>
      %25 = tpu.concatenate %21, %24 in 0 : vector<1x64xf32>, vector<1x64xf32> -> vector<2x64xf32>
      %26 = arith.addf %19, %25 : vector<2x64xf32>
      %c0_21 = arith.constant 0 : index
      %c0_22 = arith.constant 0 : index
      %27 = vector.load %arg5[%c0_21, %c0_22] : memref<2x64xf32, #tpu.memory_space<vmem>>, vector<2x64xf32>
      tpu.vector_store %arg5[%c0_21, %c0_22], %26 {strides = array<i32>} : memref<2x64xf32, #tpu.memory_space<vmem>>, vector<2x64xf32>,
    } else {
    }
    return
  }
  func.func @transform_0(%arg0: i32, %arg1: i32) -> (i32, i32) {
    %c0_i32 = arith.constant 0 : i32
    return %arg0, %arg1 : i32, i32
  }
  func.func @transform_1(%arg0: i32, %arg1: i32) -> (i32, i32) {
    %c0_i32 = arith.constant 0 : i32
    %c0_i32_0 = arith.constant 0 : i32
    return %arg1, %c0_i32 : i32, i32
  }
  func.func @transform_2(%arg0: i32, %arg1: i32) -> (i32, i32) {
    %c0_i32 = arith.constant 0 : i32
    %c0_i32_0 = arith.constant 0 : i32
    return %arg0, %c0_i32 : i32, i32
  }
  func.func @transform_3(%arg0: i32, %arg1: i32) -> (i32, i32) {
    %c0_i32 = arith.constant 0 : i32
    %c0_i32_0 = arith.constant 0 : i32
    %c0_i32_1 = arith.constant 0 : i32
    return %c0_i32, %c0_i32_0 : i32, i32
  }
}

module attributes {stable_mosaic.version = 11 : i64} {
  func.func @_matmul_stats_kernel(%arg0: i32, %arg1: i32, %arg2: memref<8x64xbf16, #tpu.memory_space<vmem>>, %arg3: memref<64x128xbf16, #tpu.memory_space<vmem>>, %arg4: memref<8x128xf32, #tpu.memory_space<vmem>>, %arg5: memref<2x128xf32, #tpu.memory_space<vmem>>, %arg6: memref<8x128xf32, #tpu.memory_space<vmem>>) attributes {dimension_semantics = [#tpu.dimension_semantics<arbitrary>, #tpu.dimension_semantics<arbitrary>], iteration_bounds = array<i64: 1, 1>, scalar_prefetch = 0 : i64, scratch_operands = 1 : i64, tpu.core_type = #tpu.core_type<tc>, window_params = [{transform_indices = @transform_0, window_bounds = array<i64: 8, 64>}, {transform_indices = @transform_1, window_bounds = array<i64: 64, 128>}, {transform_indices = @transform_2, window_bounds = array<i64: 8, 128>}, {pipeline_mode = #tpu.pipeline_mode<synchronous>, transform_indices = @transform_3, window_bounds = array<i64: 2, 128>}]} {
    %c0_i32 = arith.constant 0 : i32
    %0 = arith.cmpi eq, %arg0, %c0_i32 : i32
    %c0_i32_0 = arith.constant 0 : i32
    %1 = arith.cmpi eq, %arg1, %c0_i32_0 : i32
    %2 = arith.andi %0, %1 : i1
    %3 = arith.extui %2 : i1 to i32
    %c0_i32_1 = arith.constant 0 : i32
    %4 = arith.cmpi ne, %3, %c0_i32_1 : i32
    scf.if %4 {
      %cst_13 = arith.constant 0.000000e+00 : f32
      %17 = vector.broadcast %cst_13 : f32 to vector<2x128xf32>
      %c0_14 = arith.constant 0 : index
      %c0_15 = arith.constant 0 : index
      %18 = vector.load %arg5[%c0_14, %c0_15] : memref<2x128xf32, #tpu.memory_space<vmem>>, vector<2x128xf32>
      tpu.vector_store %arg5[%c0_14, %c0_15], %17 {strides = array<i32>} : memref<2x128xf32, #tpu.memory_space<vmem>>, vector<2x128xf32>,
    } else {
    }
    %c0_i32_2 = arith.constant 0 : i32
    %5 = arith.cmpi eq, %arg1, %c0_i32_2 : i32
    %6 = arith.extui %5 : i1 to i32
    %c0_i32_3 = arith.constant 0 : i32
    %7 = arith.cmpi ne, %6, %c0_i32_3 : i32
    scf.if %7 {
      %cst_13 = arith.constant 0.000000e+00 : f32
      %17 = vector.broadcast %cst_13 : f32 to vector<8x128xf32>
      %c0_14 = arith.constant 0 : index
      %c0_15 = arith.constant 0 : index
      %18 = vector.load %arg6[%c0_14, %c0_15] : memref<8x128xf32, #tpu.memory_space<vmem>>, vector<8x128xf32>
      tpu.vector_store %arg6[%c0_14, %c0_15], %17 {strides = array<i32>} : memref<8x128xf32, #tpu.memory_space<vmem>>, vector<8x128xf32>,
    } else {
    }
    %c0 = arith.constant 0 : index
    %c0_4 = arith.constant 0 : index
    %8 = vector.load %arg6[%c0, %c0_4] : memref<8x128xf32, #tpu.memory_space<vmem>>, vector<8x128xf32>
    %c0_5 = arith.constant 0 : index
    %c0_6 = arith.constant 0 : index
    %9 = vector.load %arg2[%c0_5, %c0_6] : memref<8x64xbf16, #tpu.memory_space<vmem>>, vector<8x64xbf16>
    %c0_7 = arith.constant 0 : index
    %c0_8 = arith.constant 0 : index
    %10 = vector.load %arg3[%c0_7, %c0_8] : memref<64x128xbf16, #tpu.memory_space<vmem>>, vector<64x128xbf16>
    %cst = arith.constant dense<0.000000e+00> : vector<8x128xf32>
    %11 = tpu.matmul %9, %10, %cst {dimension_numbers = #tpu.dot_dimension_numbers<[1], [0], [0], [1], [0, 0, 1, 1], [], []>} : vector<8x64xbf16>, vector<64x128xbf16>, vector<8x128xf32> -> vector<8x128xf32>
    %12 = arith.addf %8, %11 : vector<8x128xf32>
    %c0_9 = arith.constant 0 : index
    %c0_10 = arith.constant 0 : index
    %13 = vector.load %arg6[%c0_9, %c0_10] : memref<8x128xf32, #tpu.memory_space<vmem>>, vector<8x128xf32>
    tpu.vector_store %arg6[%c0_9, %c0_10], %12 {strides = array<i32>} : memref<8x128xf32, #tpu.memory_space<vmem>>, vector<8x128xf32>,
    %c0_i32_11 = arith.constant 0 : i32
    %14 = arith.cmpi eq, %arg1, %c0_i32_11 : i32
    %15 = arith.extui %14 : i1 to i32
    %c0_i32_12 = arith.constant 0 : i32
    %16 = arith.cmpi ne, %15, %c0_i32_12 : i32
    scf.if %16 {
      %c0_13 = arith.constant 0 : index
      %c0_14 = arith.constant 0 : index
      %17 = vector.load %arg6[%c0_13, %c0_14] : memref<8x128xf32, #tpu.memory_space<vmem>>, vector<8x128xf32>
      %c0_15 = arith.constant 0 : index
      %c0_16 = arith.constant 0 : index
      %18 = vector.load %arg4[%c0_15, %c0_16] : memref<8x128xf32, #tpu.memory_space<vmem>>, vector<8x128xf32>
      tpu.vector_store %arg4[%c0_15, %c0_16], %17 {strides = array<i32>} : memref<8x128xf32, #tpu.memory_space<vmem>>, vector<8x128xf32>,
      %c0_17 = arith.constant 0 : index
      %c0_18 = arith.constant 0 : index
      %19 = vector.load %arg5[%c0_17, %c0_18] : memref<2x128xf32, #tpu.memory_space<vmem>>, vector<2x128xf32>
      %cst_19 = arith.constant dense<0.000000e+00> : vector<128xf32>
      %20 = vector.multi_reduction <add>, %17, %cst_19 [0] : vector<8x128xf32> to vector<128xf32>
      %21 = vector.shape_cast %20 : vector<128xf32> to vector<1x128xf32>
      %22 = arith.mulf %17, %17 : vector<8x128xf32>
      %cst_20 = arith.constant dense<0.000000e+00> : vector<128xf32>
      %23 = vector.multi_reduction <add>, %22, %cst_20 [0] : vector<8x128xf32> to vector<128xf32>
      %24 = vector.shape_cast %23 : vector<128xf32> to vector<1x128xf32>
      %25 = tpu.concatenate %21, %24 in 0 : vector<1x128xf32>, vector<1x128xf32> -> vector<2x128xf32>
      %26 = arith.addf %19, %25 : vector<2x128xf32>
      %c0_21 = arith.constant 0 : index
      %c0_22 = arith.constant 0 : index
      %27 = vector.load %arg5[%c0_21, %c0_22] : memref<2x128xf32, #tpu.memory_space<vmem>>, vector<2x128xf32>
      tpu.vector_store %arg5[%c0_21, %c0_22], %26 {strides = array<i32>} : memref<2x128xf32, #tpu.memory_space<vmem>>, vector<2x128xf32>,
    } else {
    }
    return
  }
  func.func @transform_0(%arg0: i32, %arg1: i32) -> (i32, i32) {
    %c0_i32 = arith.constant 0 : i32
    return %arg0, %arg1 : i32, i32
  }
  func.func @transform_1(%arg0: i32, %arg1: i32) -> (i32, i32) {
    %c0_i32 = arith.constant 0 : i32
    %c0_i32_0 = arith.constant 0 : i32
    return %arg1, %c0_i32 : i32, i32
  }
  func.func @transform_2(%arg0: i32, %arg1: i32) -> (i32, i32) {
    %c0_i32 = arith.constant 0 : i32
    %c0_i32_0 = arith.constant 0 : i32
    return %arg0, %c0_i32 : i32, i32
  }
  func.func @transform_3(%arg0: i32, %arg1: i32) -> (i32, i32) {
    %c0_i32 = arith.constant 0 : i32
    %c0_i32_0 = arith.constant 0 : i32
    %c0_i32_1 = arith.constant 0 : i32
    return %c0_i32, %c0_i32_0 : i32, i32
  }
}

module attributes {stable_mosaic.version = 11 : i64} {
  func.func @_bn_add_relu_kernel(%arg0: i32, %arg1: memref<32x64xf32, #tpu.memory_space<vmem>>, %arg2: memref<32x64xbf16, #tpu.memory_space<vmem>>, %arg3: memref<2x64xf32, #tpu.memory_space<vmem>>, %arg4: memref<1x64xf32, #tpu.memory_space<vmem>>, %arg5: memref<1x64xf32, #tpu.memory_space<vmem>>, %arg6: memref<32x64xbf16, #tpu.memory_space<vmem>>) attributes {dimension_semantics = [#tpu.dimension_semantics<parallel>], iteration_bounds = array<i64: 1>, scalar_prefetch = 0 : i64, scratch_operands = 0 : i64, tpu.core_type = #tpu.core_type<tc>, window_params = [{transform_indices = @transform_0, window_bounds = array<i64: 32, 64>}, {transform_indices = @transform_1, window_bounds = array<i64: 32, 64>}, {pipeline_mode = #tpu.pipeline_mode<synchronous>, transform_indices = @transform_2, window_bounds = array<i64: 2, 64>}, {pipeline_mode = #tpu.pipeline_mode<synchronous>, transform_indices = @transform_3, window_bounds = array<i64: 1, 64>}, {pipeline_mode = #tpu.pipeline_mode<synchronous>, transform_indices = @transform_4, window_bounds = array<i64: 1, 64>}, {transform_indices = @transform_5, window_bounds = array<i64: 32, 64>}]} {
    %c0 = arith.constant 0 : index
    %c0_0 = arith.constant 0 : index
    %0 = vector.load %arg1[%c0, %c0_0] : memref<32x64xf32, #tpu.memory_space<vmem>>, vector<32x64xf32>
    %c0_1 = arith.constant 0 : index
    %c0_2 = arith.constant 0 : index
    %1 = vector.load %arg3[%c0_1, %c0_2] : memref<2x64xf32, #tpu.memory_space<vmem>>, vector<1x64xf32>
    %cst = arith.constant 3.125000e-02 : f32
    %2 = vector.broadcast %cst : f32 to vector<1x64xf32>
    %3 = arith.mulf %1, %2 : vector<1x64xf32>
    %c1 = arith.constant 1 : index
    %c0_3 = arith.constant 0 : index
    %4 = vector.load %arg3[%c1, %c0_3] : memref<2x64xf32, #tpu.memory_space<vmem>>, vector<1x64xf32>
    %cst_4 = arith.constant 3.125000e-02 : f32
    %5 = vector.broadcast %cst_4 : f32 to vector<1x64xf32>
    %6 = arith.mulf %4, %5 : vector<1x64xf32>
    %7 = arith.mulf %3, %3 : vector<1x64xf32>
    %8 = arith.subf %6, %7 : vector<1x64xf32>
    %cst_5 = arith.constant 0.000000e+00 : f32
    %9 = vector.broadcast %cst_5 : f32 to vector<1x64xf32>
    %10 = arith.maximumf %8, %9 : vector<1x64xf32>
    %11 = vector.broadcast %3 : vector<1x64xf32> to vector<32x64xf32>
    %12 = arith.subf %0, %11 : vector<32x64xf32>
    %cst_6 = arith.constant 9.99999974E-6 : f32
    %13 = vector.broadcast %cst_6 : f32 to vector<1x64xf32>
    %14 = arith.addf %10, %13 : vector<1x64xf32>
    %15 = math.rsqrt %14 : vector<1x64xf32>
    %16 = vector.broadcast %15 : vector<1x64xf32> to vector<32x64xf32>
    %17 = arith.mulf %12, %16 : vector<32x64xf32>
    %c0_7 = arith.constant 0 : index
    %c0_8 = arith.constant 0 : index
    %18 = vector.load %arg4[%c0_7, %c0_8] : memref<1x64xf32, #tpu.memory_space<vmem>>, vector<1x64xf32>
    %19 = vector.broadcast %18 : vector<1x64xf32> to vector<32x64xf32>
    %20 = arith.mulf %17, %19 : vector<32x64xf32>
    %c0_9 = arith.constant 0 : index
    %c0_10 = arith.constant 0 : index
    %21 = vector.load %arg5[%c0_9, %c0_10] : memref<1x64xf32, #tpu.memory_space<vmem>>, vector<1x64xf32>
    %22 = vector.broadcast %21 : vector<1x64xf32> to vector<32x64xf32>
    %23 = arith.addf %20, %22 : vector<32x64xf32>
    %c0_11 = arith.constant 0 : index
    %c0_12 = arith.constant 0 : index
    %24 = vector.load %arg2[%c0_11, %c0_12] : memref<32x64xbf16, #tpu.memory_space<vmem>>, vector<32x64xbf16>
    %25 = arith.extf %24 : vector<32x64xbf16> to vector<32x64xf32>
    %26 = arith.addf %23, %25 : vector<32x64xf32>
    %cst_13 = arith.constant 0.000000e+00 : f32
    %27 = vector.broadcast %cst_13 : f32 to vector<32x64xf32>
    %28 = arith.maximumf %26, %27 : vector<32x64xf32>
    %29 = arith.truncf %28 : vector<32x64xf32> to vector<32x64xbf16>
    %c0_14 = arith.constant 0 : index
    %c0_15 = arith.constant 0 : index
    %30 = vector.load %arg6[%c0_14, %c0_15] : memref<32x64xbf16, #tpu.memory_space<vmem>>, vector<32x64xbf16>
    tpu.vector_store %arg6[%c0_14, %c0_15], %29 {strides = array<i32>} : memref<32x64xbf16, #tpu.memory_space<vmem>>, vector<32x64xbf16>,
    return
  }
  func.func @transform_0(%arg0: i32) -> (i32, i32) {
    %c0_i32 = arith.constant 0 : i32
    %c0_i32_0 = arith.constant 0 : i32
    return %arg0, %c0_i32 : i32, i32
  }
  func.func @transform_1(%arg0: i32) -> (i32, i32) {
    %c0_i32 = arith.constant 0 : i32
    %c0_i32_0 = arith.constant 0 : i32
    return %arg0, %c0_i32 : i32, i32
  }
  func.func @transform_2(%arg0: i32) -> (i32, i32) {
    %c0_i32 = arith.constant 0 : i32
    %c0_i32_0 = arith.constant 0 : i32
    %c0_i32_1 = arith.constant 0 : i32
    return %c0_i32, %c0_i32_0 : i32, i32
  }
  func.func @transform_3(%arg0: i32) -> (i32, i32) {
    %c0_i32 = arith.constant 0 : i32
    %c0_i32_0 = arith.constant 0 : i32
    %c0_i32_1 = arith.constant 0 : i32
    return %c0_i32, %c0_i32_0 : i32, i32
  }
  func.func @transform_4(%arg0: i32) -> (i32, i32) {
    %c0_i32 = arith.constant 0 : i32
    %c0_i32_0 = arith.constant 0 : i32
    %c0_i32_1 = arith.constant 0 : i32
    return %c0_i32, %c0_i32_0 : i32, i32
  }
  func.func @transform_5(%arg0: i32) -> (i32, i32) {
    %c0_i32 = arith.constant 0 : i32
    %c0_i32_0 = arith.constant 0 : i32
    return %arg0, %c0_i32 : i32, i32
  }
}

module attributes {stable_mosaic.version = 11 : i64} {
  func.func @_matmul_stats_kernel(%arg0: i32, %arg1: i32, %arg2: memref<8x576xbf16, #tpu.memory_space<vmem>>, %arg3: memref<576x128xbf16, #tpu.memory_space<vmem>>, %arg4: memref<8x128xf32, #tpu.memory_space<vmem>>, %arg5: memref<2x128xf32, #tpu.memory_space<vmem>>, %arg6: memref<8x128xf32, #tpu.memory_space<vmem>>) attributes {dimension_semantics = [#tpu.dimension_semantics<arbitrary>, #tpu.dimension_semantics<arbitrary>], iteration_bounds = array<i64: 1, 1>, scalar_prefetch = 0 : i64, scratch_operands = 1 : i64, tpu.core_type = #tpu.core_type<tc>, window_params = [{transform_indices = @transform_0, window_bounds = array<i64: 8, 576>}, {transform_indices = @transform_1, window_bounds = array<i64: 576, 128>}, {transform_indices = @transform_2, window_bounds = array<i64: 8, 128>}, {pipeline_mode = #tpu.pipeline_mode<synchronous>, transform_indices = @transform_3, window_bounds = array<i64: 2, 128>}]} {
    %c0_i32 = arith.constant 0 : i32
    %0 = arith.cmpi eq, %arg0, %c0_i32 : i32
    %c0_i32_0 = arith.constant 0 : i32
    %1 = arith.cmpi eq, %arg1, %c0_i32_0 : i32
    %2 = arith.andi %0, %1 : i1
    %3 = arith.extui %2 : i1 to i32
    %c0_i32_1 = arith.constant 0 : i32
    %4 = arith.cmpi ne, %3, %c0_i32_1 : i32
    scf.if %4 {
      %cst_13 = arith.constant 0.000000e+00 : f32
      %17 = vector.broadcast %cst_13 : f32 to vector<2x128xf32>
      %c0_14 = arith.constant 0 : index
      %c0_15 = arith.constant 0 : index
      %18 = vector.load %arg5[%c0_14, %c0_15] : memref<2x128xf32, #tpu.memory_space<vmem>>, vector<2x128xf32>
      tpu.vector_store %arg5[%c0_14, %c0_15], %17 {strides = array<i32>} : memref<2x128xf32, #tpu.memory_space<vmem>>, vector<2x128xf32>,
    } else {
    }
    %c0_i32_2 = arith.constant 0 : i32
    %5 = arith.cmpi eq, %arg1, %c0_i32_2 : i32
    %6 = arith.extui %5 : i1 to i32
    %c0_i32_3 = arith.constant 0 : i32
    %7 = arith.cmpi ne, %6, %c0_i32_3 : i32
    scf.if %7 {
      %cst_13 = arith.constant 0.000000e+00 : f32
      %17 = vector.broadcast %cst_13 : f32 to vector<8x128xf32>
      %c0_14 = arith.constant 0 : index
      %c0_15 = arith.constant 0 : index
      %18 = vector.load %arg6[%c0_14, %c0_15] : memref<8x128xf32, #tpu.memory_space<vmem>>, vector<8x128xf32>
      tpu.vector_store %arg6[%c0_14, %c0_15], %17 {strides = array<i32>} : memref<8x128xf32, #tpu.memory_space<vmem>>, vector<8x128xf32>,
    } else {
    }
    %c0 = arith.constant 0 : index
    %c0_4 = arith.constant 0 : index
    %8 = vector.load %arg6[%c0, %c0_4] : memref<8x128xf32, #tpu.memory_space<vmem>>, vector<8x128xf32>
    %c0_5 = arith.constant 0 : index
    %c0_6 = arith.constant 0 : index
    %9 = vector.load %arg2[%c0_5, %c0_6] : memref<8x576xbf16, #tpu.memory_space<vmem>>, vector<8x576xbf16>
    %c0_7 = arith.constant 0 : index
    %c0_8 = arith.constant 0 : index
    %10 = vector.load %arg3[%c0_7, %c0_8] : memref<576x128xbf16, #tpu.memory_space<vmem>>, vector<576x128xbf16>
    %cst = arith.constant dense<0.000000e+00> : vector<8x128xf32>
    %11 = tpu.matmul %9, %10, %cst {dimension_numbers = #tpu.dot_dimension_numbers<[1], [0], [0], [1], [0, 0, 1, 1], [], []>} : vector<8x576xbf16>, vector<576x128xbf16>, vector<8x128xf32> -> vector<8x128xf32>
    %12 = arith.addf %8, %11 : vector<8x128xf32>
    %c0_9 = arith.constant 0 : index
    %c0_10 = arith.constant 0 : index
    %13 = vector.load %arg6[%c0_9, %c0_10] : memref<8x128xf32, #tpu.memory_space<vmem>>, vector<8x128xf32>
    tpu.vector_store %arg6[%c0_9, %c0_10], %12 {strides = array<i32>} : memref<8x128xf32, #tpu.memory_space<vmem>>, vector<8x128xf32>,
    %c0_i32_11 = arith.constant 0 : i32
    %14 = arith.cmpi eq, %arg1, %c0_i32_11 : i32
    %15 = arith.extui %14 : i1 to i32
    %c0_i32_12 = arith.constant 0 : i32
    %16 = arith.cmpi ne, %15, %c0_i32_12 : i32
    scf.if %16 {
      %c0_13 = arith.constant 0 : index
      %c0_14 = arith.constant 0 : index
      %17 = vector.load %arg6[%c0_13, %c0_14] : memref<8x128xf32, #tpu.memory_space<vmem>>, vector<8x128xf32>
      %c0_15 = arith.constant 0 : index
      %c0_16 = arith.constant 0 : index
      %18 = vector.load %arg4[%c0_15, %c0_16] : memref<8x128xf32, #tpu.memory_space<vmem>>, vector<8x128xf32>
      tpu.vector_store %arg4[%c0_15, %c0_16], %17 {strides = array<i32>} : memref<8x128xf32, #tpu.memory_space<vmem>>, vector<8x128xf32>,
      %c0_17 = arith.constant 0 : index
      %c0_18 = arith.constant 0 : index
      %19 = vector.load %arg5[%c0_17, %c0_18] : memref<2x128xf32, #tpu.memory_space<vmem>>, vector<2x128xf32>
      %cst_19 = arith.constant dense<0.000000e+00> : vector<128xf32>
      %20 = vector.multi_reduction <add>, %17, %cst_19 [0] : vector<8x128xf32> to vector<128xf32>
      %21 = vector.shape_cast %20 : vector<128xf32> to vector<1x128xf32>
      %22 = arith.mulf %17, %17 : vector<8x128xf32>
      %cst_20 = arith.constant dense<0.000000e+00> : vector<128xf32>
      %23 = vector.multi_reduction <add>, %22, %cst_20 [0] : vector<8x128xf32> to vector<128xf32>
      %24 = vector.shape_cast %23 : vector<128xf32> to vector<1x128xf32>
      %25 = tpu.concatenate %21, %24 in 0 : vector<1x128xf32>, vector<1x128xf32> -> vector<2x128xf32>
      %26 = arith.addf %19, %25 : vector<2x128xf32>
      %c0_21 = arith.constant 0 : index
      %c0_22 = arith.constant 0 : index
      %27 = vector.load %arg5[%c0_21, %c0_22] : memref<2x128xf32, #tpu.memory_space<vmem>>, vector<2x128xf32>
      tpu.vector_store %arg5[%c0_21, %c0_22], %26 {strides = array<i32>} : memref<2x128xf32, #tpu.memory_space<vmem>>, vector<2x128xf32>,
    } else {
    }
    return
  }
  func.func @transform_0(%arg0: i32, %arg1: i32) -> (i32, i32) {
    %c0_i32 = arith.constant 0 : i32
    return %arg0, %arg1 : i32, i32
  }
  func.func @transform_1(%arg0: i32, %arg1: i32) -> (i32, i32) {
    %c0_i32 = arith.constant 0 : i32
    %c0_i32_0 = arith.constant 0 : i32
    return %arg1, %c0_i32 : i32, i32
  }
  func.func @transform_2(%arg0: i32, %arg1: i32) -> (i32, i32) {
    %c0_i32 = arith.constant 0 : i32
    %c0_i32_0 = arith.constant 0 : i32
    return %arg0, %c0_i32 : i32, i32
  }
  func.func @transform_3(%arg0: i32, %arg1: i32) -> (i32, i32) {
    %c0_i32 = arith.constant 0 : i32
    %c0_i32_0 = arith.constant 0 : i32
    %c0_i32_1 = arith.constant 0 : i32
    return %c0_i32, %c0_i32_0 : i32, i32
  }
}

module attributes {stable_mosaic.version = 11 : i64} {
  func.func @_matmul_stats_kernel(%arg0: i32, %arg1: i32, %arg2: memref<8x128xbf16, #tpu.memory_space<vmem>>, %arg3: memref<128x128xbf16, #tpu.memory_space<vmem>>, %arg4: memref<8x128xf32, #tpu.memory_space<vmem>>, %arg5: memref<2x128xf32, #tpu.memory_space<vmem>>, %arg6: memref<8x128xf32, #tpu.memory_space<vmem>>) attributes {dimension_semantics = [#tpu.dimension_semantics<arbitrary>, #tpu.dimension_semantics<arbitrary>], iteration_bounds = array<i64: 1, 9>, scalar_prefetch = 0 : i64, scratch_operands = 1 : i64, tpu.core_type = #tpu.core_type<tc>, window_params = [{transform_indices = @transform_0, window_bounds = array<i64: 8, 128>}, {transform_indices = @transform_1, window_bounds = array<i64: 128, 128>}, {transform_indices = @transform_2, window_bounds = array<i64: 8, 128>}, {pipeline_mode = #tpu.pipeline_mode<synchronous>, transform_indices = @transform_3, window_bounds = array<i64: 2, 128>}]} {
    %c0_i32 = arith.constant 0 : i32
    %0 = arith.cmpi eq, %arg0, %c0_i32 : i32
    %c0_i32_0 = arith.constant 0 : i32
    %1 = arith.cmpi eq, %arg1, %c0_i32_0 : i32
    %2 = arith.andi %0, %1 : i1
    %3 = arith.extui %2 : i1 to i32
    %c0_i32_1 = arith.constant 0 : i32
    %4 = arith.cmpi ne, %3, %c0_i32_1 : i32
    scf.if %4 {
      %cst_12 = arith.constant 0.000000e+00 : f32
      %17 = vector.broadcast %cst_12 : f32 to vector<2x128xf32>
      %c0_13 = arith.constant 0 : index
      %c0_14 = arith.constant 0 : index
      %18 = vector.load %arg5[%c0_13, %c0_14] : memref<2x128xf32, #tpu.memory_space<vmem>>, vector<2x128xf32>
      tpu.vector_store %arg5[%c0_13, %c0_14], %17 {strides = array<i32>} : memref<2x128xf32, #tpu.memory_space<vmem>>, vector<2x128xf32>,
    } else {
    }
    %c0_i32_2 = arith.constant 0 : i32
    %5 = arith.cmpi eq, %arg1, %c0_i32_2 : i32
    %6 = arith.extui %5 : i1 to i32
    %c0_i32_3 = arith.constant 0 : i32
    %7 = arith.cmpi ne, %6, %c0_i32_3 : i32
    scf.if %7 {
      %cst_12 = arith.constant 0.000000e+00 : f32
      %17 = vector.broadcast %cst_12 : f32 to vector<8x128xf32>
      %c0_13 = arith.constant 0 : index
      %c0_14 = arith.constant 0 : index
      %18 = vector.load %arg6[%c0_13, %c0_14] : memref<8x128xf32, #tpu.memory_space<vmem>>, vector<8x128xf32>
      tpu.vector_store %arg6[%c0_13, %c0_14], %17 {strides = array<i32>} : memref<8x128xf32, #tpu.memory_space<vmem>>, vector<8x128xf32>,
    } else {
    }
    %c0 = arith.constant 0 : index
    %c0_4 = arith.constant 0 : index
    %8 = vector.load %arg6[%c0, %c0_4] : memref<8x128xf32, #tpu.memory_space<vmem>>, vector<8x128xf32>
    %c0_5 = arith.constant 0 : index
    %c0_6 = arith.constant 0 : index
    %9 = vector.load %arg2[%c0_5, %c0_6] : memref<8x128xbf16, #tpu.memory_space<vmem>>, vector<8x128xbf16>
    %c0_7 = arith.constant 0 : index
    %c0_8 = arith.constant 0 : index
    %10 = vector.load %arg3[%c0_7, %c0_8] : memref<128x128xbf16, #tpu.memory_space<vmem>>, vector<128x128xbf16>
    %cst = arith.constant dense<0.000000e+00> : vector<8x128xf32>
    %11 = tpu.matmul %9, %10, %cst {dimension_numbers = #tpu.dot_dimension_numbers<[1], [0], [0], [1], [0, 0, 1, 1], [], []>} : vector<8x128xbf16>, vector<128x128xbf16>, vector<8x128xf32> -> vector<8x128xf32>
    %12 = arith.addf %8, %11 : vector<8x128xf32>
    %c0_9 = arith.constant 0 : index
    %c0_10 = arith.constant 0 : index
    %13 = vector.load %arg6[%c0_9, %c0_10] : memref<8x128xf32, #tpu.memory_space<vmem>>, vector<8x128xf32>
    tpu.vector_store %arg6[%c0_9, %c0_10], %12 {strides = array<i32>} : memref<8x128xf32, #tpu.memory_space<vmem>>, vector<8x128xf32>,
    %c8_i32 = arith.constant 8 : i32
    %14 = arith.cmpi eq, %arg1, %c8_i32 : i32
    %15 = arith.extui %14 : i1 to i32
    %c0_i32_11 = arith.constant 0 : i32
    %16 = arith.cmpi ne, %15, %c0_i32_11 : i32
    scf.if %16 {
      %c0_12 = arith.constant 0 : index
      %c0_13 = arith.constant 0 : index
      %17 = vector.load %arg6[%c0_12, %c0_13] : memref<8x128xf32, #tpu.memory_space<vmem>>, vector<8x128xf32>
      %c0_14 = arith.constant 0 : index
      %c0_15 = arith.constant 0 : index
      %18 = vector.load %arg4[%c0_14, %c0_15] : memref<8x128xf32, #tpu.memory_space<vmem>>, vector<8x128xf32>
      tpu.vector_store %arg4[%c0_14, %c0_15], %17 {strides = array<i32>} : memref<8x128xf32, #tpu.memory_space<vmem>>, vector<8x128xf32>,
      %c0_16 = arith.constant 0 : index
      %c0_17 = arith.constant 0 : index
      %19 = vector.load %arg5[%c0_16, %c0_17] : memref<2x128xf32, #tpu.memory_space<vmem>>, vector<2x128xf32>
      %cst_18 = arith.constant dense<0.000000e+00> : vector<128xf32>
      %20 = vector.multi_reduction <add>, %17, %cst_18 [0] : vector<8x128xf32> to vector<128xf32>
      %21 = vector.shape_cast %20 : vector<128xf32> to vector<1x128xf32>
      %22 = arith.mulf %17, %17 : vector<8x128xf32>
      %cst_19 = arith.constant dense<0.000000e+00> : vector<128xf32>
      %23 = vector.multi_reduction <add>, %22, %cst_19 [0] : vector<8x128xf32> to vector<128xf32>
      %24 = vector.shape_cast %23 : vector<128xf32> to vector<1x128xf32>
      %25 = tpu.concatenate %21, %24 in 0 : vector<1x128xf32>, vector<1x128xf32> -> vector<2x128xf32>
      %26 = arith.addf %19, %25 : vector<2x128xf32>
      %c0_20 = arith.constant 0 : index
      %c0_21 = arith.constant 0 : index
      %27 = vector.load %arg5[%c0_20, %c0_21] : memref<2x128xf32, #tpu.memory_space<vmem>>, vector<2x128xf32>
      tpu.vector_store %arg5[%c0_20, %c0_21], %26 {strides = array<i32>} : memref<2x128xf32, #tpu.memory_space<vmem>>, vector<2x128xf32>,
    } else {
    }
    return
  }
  func.func @transform_0(%arg0: i32, %arg1: i32) -> (i32, i32) {
    %c0_i32 = arith.constant 0 : i32
    return %arg0, %arg1 : i32, i32
  }
  func.func @transform_1(%arg0: i32, %arg1: i32) -> (i32, i32) {
    %c0_i32 = arith.constant 0 : i32
    %c0_i32_0 = arith.constant 0 : i32
    return %arg1, %c0_i32 : i32, i32
  }
  func.func @transform_2(%arg0: i32, %arg1: i32) -> (i32, i32) {
    %c0_i32 = arith.constant 0 : i32
    %c0_i32_0 = arith.constant 0 : i32
    return %arg0, %c0_i32 : i32, i32
  }
  func.func @transform_3(%arg0: i32, %arg1: i32) -> (i32, i32) {
    %c0_i32 = arith.constant 0 : i32
    %c0_i32_0 = arith.constant 0 : i32
    %c0_i32_1 = arith.constant 0 : i32
    return %c0_i32, %c0_i32_0 : i32, i32
  }
}

module attributes {stable_mosaic.version = 11 : i64} {
  func.func @_bn_kernel(%arg0: i32, %arg1: memref<8x128xf32, #tpu.memory_space<vmem>>, %arg2: memref<2x128xf32, #tpu.memory_space<vmem>>, %arg3: memref<1x128xf32, #tpu.memory_space<vmem>>, %arg4: memref<1x128xf32, #tpu.memory_space<vmem>>, %arg5: memref<8x128xbf16, #tpu.memory_space<vmem>>) attributes {dimension_semantics = [#tpu.dimension_semantics<parallel>], iteration_bounds = array<i64: 1>, scalar_prefetch = 0 : i64, scratch_operands = 0 : i64, tpu.core_type = #tpu.core_type<tc>, window_params = [{transform_indices = @transform_0, window_bounds = array<i64: 8, 128>}, {pipeline_mode = #tpu.pipeline_mode<synchronous>, transform_indices = @transform_1, window_bounds = array<i64: 2, 128>}, {pipeline_mode = #tpu.pipeline_mode<synchronous>, transform_indices = @transform_2, window_bounds = array<i64: 1, 128>}, {pipeline_mode = #tpu.pipeline_mode<synchronous>, transform_indices = @transform_3, window_bounds = array<i64: 1, 128>}, {transform_indices = @transform_4, window_bounds = array<i64: 8, 128>}]} {
    %c0 = arith.constant 0 : index
    %c0_0 = arith.constant 0 : index
    %0 = vector.load %arg1[%c0, %c0_0] : memref<8x128xf32, #tpu.memory_space<vmem>>, vector<8x128xf32>
    %c0_1 = arith.constant 0 : index
    %c0_2 = arith.constant 0 : index
    %1 = vector.load %arg2[%c0_1, %c0_2] : memref<2x128xf32, #tpu.memory_space<vmem>>, vector<1x128xf32>
    %cst = arith.constant 1.250000e-01 : f32
    %2 = vector.broadcast %cst : f32 to vector<1x128xf32>
    %3 = arith.mulf %1, %2 : vector<1x128xf32>
    %c1 = arith.constant 1 : index
    %c0_3 = arith.constant 0 : index
    %4 = vector.load %arg2[%c1, %c0_3] : memref<2x128xf32, #tpu.memory_space<vmem>>, vector<1x128xf32>
    %cst_4 = arith.constant 1.250000e-01 : f32
    %5 = vector.broadcast %cst_4 : f32 to vector<1x128xf32>
    %6 = arith.mulf %4, %5 : vector<1x128xf32>
    %7 = arith.mulf %3, %3 : vector<1x128xf32>
    %8 = arith.subf %6, %7 : vector<1x128xf32>
    %cst_5 = arith.constant 0.000000e+00 : f32
    %9 = vector.broadcast %cst_5 : f32 to vector<1x128xf32>
    %10 = arith.maximumf %8, %9 : vector<1x128xf32>
    %11 = vector.broadcast %3 : vector<1x128xf32> to vector<8x128xf32>
    %12 = arith.subf %0, %11 : vector<8x128xf32>
    %cst_6 = arith.constant 9.99999974E-6 : f32
    %13 = vector.broadcast %cst_6 : f32 to vector<1x128xf32>
    %14 = arith.addf %10, %13 : vector<1x128xf32>
    %15 = math.rsqrt %14 : vector<1x128xf32>
    %16 = vector.broadcast %15 : vector<1x128xf32> to vector<8x128xf32>
    %17 = arith.mulf %12, %16 : vector<8x128xf32>
    %c0_7 = arith.constant 0 : index
    %c0_8 = arith.constant 0 : index
    %18 = vector.load %arg3[%c0_7, %c0_8] : memref<1x128xf32, #tpu.memory_space<vmem>>, vector<1x128xf32>
    %19 = vector.broadcast %18 : vector<1x128xf32> to vector<8x128xf32>
    %20 = arith.mulf %17, %19 : vector<8x128xf32>
    %c0_9 = arith.constant 0 : index
    %c0_10 = arith.constant 0 : index
    %21 = vector.load %arg4[%c0_9, %c0_10] : memref<1x128xf32, #tpu.memory_space<vmem>>, vector<1x128xf32>
    %22 = vector.broadcast %21 : vector<1x128xf32> to vector<8x128xf32>
    %23 = arith.addf %20, %22 : vector<8x128xf32>
    %cst_11 = arith.constant 0.000000e+00 : f32
    %24 = vector.broadcast %cst_11 : f32 to vector<8x128xf32>
    %25 = arith.maximumf %23, %24 : vector<8x128xf32>
    %26 = arith.truncf %25 : vector<8x128xf32> to vector<8x128xbf16>
    %c0_12 = arith.constant 0 : index
    %c0_13 = arith.constant 0 : index
    %27 = vector.load %arg5[%c0_12, %c0_13] : memref<8x128xbf16, #tpu.memory_space<vmem>>, vector<8x128xbf16>
    tpu.vector_store %arg5[%c0_12, %c0_13], %26 {strides = array<i32>} : memref<8x128xbf16, #tpu.memory_space<vmem>>, vector<8x128xbf16>,
    return
  }
  func.func @transform_0(%arg0: i32) -> (i32, i32) {
    %c0_i32 = arith.constant 0 : i32
    %c0_i32_0 = arith.constant 0 : i32
    return %arg0, %c0_i32 : i32, i32
  }
  func.func @transform_1(%arg0: i32) -> (i32, i32) {
    %c0_i32 = arith.constant 0 : i32
    %c0_i32_0 = arith.constant 0 : i32
    %c0_i32_1 = arith.constant 0 : i32
    return %c0_i32, %c0_i32_0 : i32, i32
  }
  func.func @transform_2(%arg0: i32) -> (i32, i32) {
    %c0_i32 = arith.constant 0 : i32
    %c0_i32_0 = arith.constant 0 : i32
    %c0_i32_1 = arith.constant 0 : i32
    return %c0_i32, %c0_i32_0 : i32, i32
  }
  func.func @transform_3(%arg0: i32) -> (i32, i32) {
    %c0_i32 = arith.constant 0 : i32
    %c0_i32_0 = arith.constant 0 : i32
    %c0_i32_1 = arith.constant 0 : i32
    return %c0_i32, %c0_i32_0 : i32, i32
  }
  func.func @transform_4(%arg0: i32) -> (i32, i32) {
    %c0_i32 = arith.constant 0 : i32
    %c0_i32_0 = arith.constant 0 : i32
    return %arg0, %c0_i32 : i32, i32
  }
}

module attributes {stable_mosaic.version = 11 : i64} {
  func.func @_matmul_stats_kernel(%arg0: i32, %arg1: i32, %arg2: memref<8x128xbf16, #tpu.memory_space<vmem>>, %arg3: memref<128x256xbf16, #tpu.memory_space<vmem>>, %arg4: memref<8x256xf32, #tpu.memory_space<vmem>>, %arg5: memref<2x256xf32, #tpu.memory_space<vmem>>, %arg6: memref<8x256xf32, #tpu.memory_space<vmem>>) attributes {dimension_semantics = [#tpu.dimension_semantics<arbitrary>, #tpu.dimension_semantics<arbitrary>], iteration_bounds = array<i64: 1, 1>, scalar_prefetch = 0 : i64, scratch_operands = 1 : i64, tpu.core_type = #tpu.core_type<tc>, window_params = [{transform_indices = @transform_0, window_bounds = array<i64: 8, 128>}, {transform_indices = @transform_1, window_bounds = array<i64: 128, 256>}, {transform_indices = @transform_2, window_bounds = array<i64: 8, 256>}, {pipeline_mode = #tpu.pipeline_mode<synchronous>, transform_indices = @transform_3, window_bounds = array<i64: 2, 256>}]} {
    %c0_i32 = arith.constant 0 : i32
    %0 = arith.cmpi eq, %arg0, %c0_i32 : i32
    %c0_i32_0 = arith.constant 0 : i32
    %1 = arith.cmpi eq, %arg1, %c0_i32_0 : i32
    %2 = arith.andi %0, %1 : i1
    %3 = arith.extui %2 : i1 to i32
    %c0_i32_1 = arith.constant 0 : i32
    %4 = arith.cmpi ne, %3, %c0_i32_1 : i32
    scf.if %4 {
      %cst_13 = arith.constant 0.000000e+00 : f32
      %17 = vector.broadcast %cst_13 : f32 to vector<2x256xf32>
      %c0_14 = arith.constant 0 : index
      %c0_15 = arith.constant 0 : index
      %18 = vector.load %arg5[%c0_14, %c0_15] : memref<2x256xf32, #tpu.memory_space<vmem>>, vector<2x256xf32>
      tpu.vector_store %arg5[%c0_14, %c0_15], %17 {strides = array<i32>} : memref<2x256xf32, #tpu.memory_space<vmem>>, vector<2x256xf32>,
    } else {
    }
    %c0_i32_2 = arith.constant 0 : i32
    %5 = arith.cmpi eq, %arg1, %c0_i32_2 : i32
    %6 = arith.extui %5 : i1 to i32
    %c0_i32_3 = arith.constant 0 : i32
    %7 = arith.cmpi ne, %6, %c0_i32_3 : i32
    scf.if %7 {
      %cst_13 = arith.constant 0.000000e+00 : f32
      %17 = vector.broadcast %cst_13 : f32 to vector<8x256xf32>
      %c0_14 = arith.constant 0 : index
      %c0_15 = arith.constant 0 : index
      %18 = vector.load %arg6[%c0_14, %c0_15] : memref<8x256xf32, #tpu.memory_space<vmem>>, vector<8x256xf32>
      tpu.vector_store %arg6[%c0_14, %c0_15], %17 {strides = array<i32>} : memref<8x256xf32, #tpu.memory_space<vmem>>, vector<8x256xf32>,
    } else {
    }
    %c0 = arith.constant 0 : index
    %c0_4 = arith.constant 0 : index
    %8 = vector.load %arg6[%c0, %c0_4] : memref<8x256xf32, #tpu.memory_space<vmem>>, vector<8x256xf32>
    %c0_5 = arith.constant 0 : index
    %c0_6 = arith.constant 0 : index
    %9 = vector.load %arg2[%c0_5, %c0_6] : memref<8x128xbf16, #tpu.memory_space<vmem>>, vector<8x128xbf16>
    %c0_7 = arith.constant 0 : index
    %c0_8 = arith.constant 0 : index
    %10 = vector.load %arg3[%c0_7, %c0_8] : memref<128x256xbf16, #tpu.memory_space<vmem>>, vector<128x256xbf16>
    %cst = arith.constant dense<0.000000e+00> : vector<8x256xf32>
    %11 = tpu.matmul %9, %10, %cst {dimension_numbers = #tpu.dot_dimension_numbers<[1], [0], [0], [1], [0, 0, 1, 1], [], []>} : vector<8x128xbf16>, vector<128x256xbf16>, vector<8x256xf32> -> vector<8x256xf32>
    %12 = arith.addf %8, %11 : vector<8x256xf32>
    %c0_9 = arith.constant 0 : index
    %c0_10 = arith.constant 0 : index
    %13 = vector.load %arg6[%c0_9, %c0_10] : memref<8x256xf32, #tpu.memory_space<vmem>>, vector<8x256xf32>
    tpu.vector_store %arg6[%c0_9, %c0_10], %12 {strides = array<i32>} : memref<8x256xf32, #tpu.memory_space<vmem>>, vector<8x256xf32>,
    %c0_i32_11 = arith.constant 0 : i32
    %14 = arith.cmpi eq, %arg1, %c0_i32_11 : i32
    %15 = arith.extui %14 : i1 to i32
    %c0_i32_12 = arith.constant 0 : i32
    %16 = arith.cmpi ne, %15, %c0_i32_12 : i32
    scf.if %16 {
      %c0_13 = arith.constant 0 : index
      %c0_14 = arith.constant 0 : index
      %17 = vector.load %arg6[%c0_13, %c0_14] : memref<8x256xf32, #tpu.memory_space<vmem>>, vector<8x256xf32>
      %c0_15 = arith.constant 0 : index
      %c0_16 = arith.constant 0 : index
      %18 = vector.load %arg4[%c0_15, %c0_16] : memref<8x256xf32, #tpu.memory_space<vmem>>, vector<8x256xf32>
      tpu.vector_store %arg4[%c0_15, %c0_16], %17 {strides = array<i32>} : memref<8x256xf32, #tpu.memory_space<vmem>>, vector<8x256xf32>,
      %c0_17 = arith.constant 0 : index
      %c0_18 = arith.constant 0 : index
      %19 = vector.load %arg5[%c0_17, %c0_18] : memref<2x256xf32, #tpu.memory_space<vmem>>, vector<2x256xf32>
      %cst_19 = arith.constant dense<0.000000e+00> : vector<256xf32>
      %20 = vector.multi_reduction <add>, %17, %cst_19 [0] : vector<8x256xf32> to vector<256xf32>
      %21 = vector.shape_cast %20 : vector<256xf32> to vector<1x256xf32>
      %22 = arith.mulf %17, %17 : vector<8x256xf32>
      %cst_20 = arith.constant dense<0.000000e+00> : vector<256xf32>
      %23 = vector.multi_reduction <add>, %22, %cst_20 [0] : vector<8x256xf32> to vector<256xf32>
      %24 = vector.shape_cast %23 : vector<256xf32> to vector<1x256xf32>
      %25 = tpu.concatenate %21, %24 in 0 : vector<1x256xf32>, vector<1x256xf32> -> vector<2x256xf32>
      %26 = arith.addf %19, %25 : vector<2x256xf32>
      %c0_21 = arith.constant 0 : index
      %c0_22 = arith.constant 0 : index
      %27 = vector.load %arg5[%c0_21, %c0_22] : memref<2x256xf32, #tpu.memory_space<vmem>>, vector<2x256xf32>
      tpu.vector_store %arg5[%c0_21, %c0_22], %26 {strides = array<i32>} : memref<2x256xf32, #tpu.memory_space<vmem>>, vector<2x256xf32>,
    } else {
    }
    return
  }
  func.func @transform_0(%arg0: i32, %arg1: i32) -> (i32, i32) {
    %c0_i32 = arith.constant 0 : i32
    return %arg0, %arg1 : i32, i32
  }
  func.func @transform_1(%arg0: i32, %arg1: i32) -> (i32, i32) {
    %c0_i32 = arith.constant 0 : i32
    %c0_i32_0 = arith.constant 0 : i32
    return %arg1, %c0_i32 : i32, i32
  }
  func.func @transform_2(%arg0: i32, %arg1: i32) -> (i32, i32) {
    %c0_i32 = arith.constant 0 : i32
    %c0_i32_0 = arith.constant 0 : i32
    return %arg0, %c0_i32 : i32, i32
  }
  func.func @transform_3(%arg0: i32, %arg1: i32) -> (i32, i32) {
    %c0_i32 = arith.constant 0 : i32
    %c0_i32_0 = arith.constant 0 : i32
    %c0_i32_1 = arith.constant 0 : i32
    return %c0_i32, %c0_i32_0 : i32, i32
  }
}

module attributes {stable_mosaic.version = 11 : i64} {
  func.func @_bn_add_relu_kernel(%arg0: i32, %arg1: memref<8x128xf32, #tpu.memory_space<vmem>>, %arg2: memref<8x128xbf16, #tpu.memory_space<vmem>>, %arg3: memref<2x128xf32, #tpu.memory_space<vmem>>, %arg4: memref<1x128xf32, #tpu.memory_space<vmem>>, %arg5: memref<1x128xf32, #tpu.memory_space<vmem>>, %arg6: memref<8x128xbf16, #tpu.memory_space<vmem>>) attributes {dimension_semantics = [#tpu.dimension_semantics<parallel>], iteration_bounds = array<i64: 1>, scalar_prefetch = 0 : i64, scratch_operands = 0 : i64, tpu.core_type = #tpu.core_type<tc>, window_params = [{transform_indices = @transform_0, window_bounds = array<i64: 8, 128>}, {transform_indices = @transform_1, window_bounds = array<i64: 8, 128>}, {pipeline_mode = #tpu.pipeline_mode<synchronous>, transform_indices = @transform_2, window_bounds = array<i64: 2, 128>}, {pipeline_mode = #tpu.pipeline_mode<synchronous>, transform_indices = @transform_3, window_bounds = array<i64: 1, 128>}, {pipeline_mode = #tpu.pipeline_mode<synchronous>, transform_indices = @transform_4, window_bounds = array<i64: 1, 128>}, {transform_indices = @transform_5, window_bounds = array<i64: 8, 128>}]} {
    %c0 = arith.constant 0 : index
    %c0_0 = arith.constant 0 : index
    %0 = vector.load %arg1[%c0, %c0_0] : memref<8x128xf32, #tpu.memory_space<vmem>>, vector<8x128xf32>
    %c0_1 = arith.constant 0 : index
    %c0_2 = arith.constant 0 : index
    %1 = vector.load %arg3[%c0_1, %c0_2] : memref<2x128xf32, #tpu.memory_space<vmem>>, vector<1x128xf32>
    %cst = arith.constant 1.250000e-01 : f32
    %2 = vector.broadcast %cst : f32 to vector<1x128xf32>
    %3 = arith.mulf %1, %2 : vector<1x128xf32>
    %c1 = arith.constant 1 : index
    %c0_3 = arith.constant 0 : index
    %4 = vector.load %arg3[%c1, %c0_3] : memref<2x128xf32, #tpu.memory_space<vmem>>, vector<1x128xf32>
    %cst_4 = arith.constant 1.250000e-01 : f32
    %5 = vector.broadcast %cst_4 : f32 to vector<1x128xf32>
    %6 = arith.mulf %4, %5 : vector<1x128xf32>
    %7 = arith.mulf %3, %3 : vector<1x128xf32>
    %8 = arith.subf %6, %7 : vector<1x128xf32>
    %cst_5 = arith.constant 0.000000e+00 : f32
    %9 = vector.broadcast %cst_5 : f32 to vector<1x128xf32>
    %10 = arith.maximumf %8, %9 : vector<1x128xf32>
    %11 = vector.broadcast %3 : vector<1x128xf32> to vector<8x128xf32>
    %12 = arith.subf %0, %11 : vector<8x128xf32>
    %cst_6 = arith.constant 9.99999974E-6 : f32
    %13 = vector.broadcast %cst_6 : f32 to vector<1x128xf32>
    %14 = arith.addf %10, %13 : vector<1x128xf32>
    %15 = math.rsqrt %14 : vector<1x128xf32>
    %16 = vector.broadcast %15 : vector<1x128xf32> to vector<8x128xf32>
    %17 = arith.mulf %12, %16 : vector<8x128xf32>
    %c0_7 = arith.constant 0 : index
    %c0_8 = arith.constant 0 : index
    %18 = vector.load %arg4[%c0_7, %c0_8] : memref<1x128xf32, #tpu.memory_space<vmem>>, vector<1x128xf32>
    %19 = vector.broadcast %18 : vector<1x128xf32> to vector<8x128xf32>
    %20 = arith.mulf %17, %19 : vector<8x128xf32>
    %c0_9 = arith.constant 0 : index
    %c0_10 = arith.constant 0 : index
    %21 = vector.load %arg5[%c0_9, %c0_10] : memref<1x128xf32, #tpu.memory_space<vmem>>, vector<1x128xf32>
    %22 = vector.broadcast %21 : vector<1x128xf32> to vector<8x128xf32>
    %23 = arith.addf %20, %22 : vector<8x128xf32>
    %c0_11 = arith.constant 0 : index
    %c0_12 = arith.constant 0 : index
    %24 = vector.load %arg2[%c0_11, %c0_12] : memref<8x128xbf16, #tpu.memory_space<vmem>>, vector<8x128xbf16>
    %25 = arith.extf %24 : vector<8x128xbf16> to vector<8x128xf32>
    %26 = arith.addf %23, %25 : vector<8x128xf32>
    %cst_13 = arith.constant 0.000000e+00 : f32
    %27 = vector.broadcast %cst_13 : f32 to vector<8x128xf32>
    %28 = arith.maximumf %26, %27 : vector<8x128xf32>
    %29 = arith.truncf %28 : vector<8x128xf32> to vector<8x128xbf16>
    %c0_14 = arith.constant 0 : index
    %c0_15 = arith.constant 0 : index
    %30 = vector.load %arg6[%c0_14, %c0_15] : memref<8x128xbf16, #tpu.memory_space<vmem>>, vector<8x128xbf16>
    tpu.vector_store %arg6[%c0_14, %c0_15], %29 {strides = array<i32>} : memref<8x128xbf16, #tpu.memory_space<vmem>>, vector<8x128xbf16>,
    return
  }
  func.func @transform_0(%arg0: i32) -> (i32, i32) {
    %c0_i32 = arith.constant 0 : i32
    %c0_i32_0 = arith.constant 0 : i32
    return %arg0, %c0_i32 : i32, i32
  }
  func.func @transform_1(%arg0: i32) -> (i32, i32) {
    %c0_i32 = arith.constant 0 : i32
    %c0_i32_0 = arith.constant 0 : i32
    return %arg0, %c0_i32 : i32, i32
  }
  func.func @transform_2(%arg0: i32) -> (i32, i32) {
    %c0_i32 = arith.constant 0 : i32
    %c0_i32_0 = arith.constant 0 : i32
    %c0_i32_1 = arith.constant 0 : i32
    return %c0_i32, %c0_i32_0 : i32, i32
  }
  func.func @transform_3(%arg0: i32) -> (i32, i32) {
    %c0_i32 = arith.constant 0 : i32
    %c0_i32_0 = arith.constant 0 : i32
    %c0_i32_1 = arith.constant 0 : i32
    return %c0_i32, %c0_i32_0 : i32, i32
  }
  func.func @transform_4(%arg0: i32) -> (i32, i32) {
    %c0_i32 = arith.constant 0 : i32
    %c0_i32_0 = arith.constant 0 : i32
    %c0_i32_1 = arith.constant 0 : i32
    return %c0_i32, %c0_i32_0 : i32, i32
  }
  func.func @transform_5(%arg0: i32) -> (i32, i32) {
    %c0_i32 = arith.constant 0 : i32
    %c0_i32_0 = arith.constant 0 : i32
    return %arg0, %c0_i32 : i32, i32
  }
}

module attributes {stable_mosaic.version = 11 : i64} {
  func.func @_bn_kernel(%arg0: i32, %arg1: memref<8x256xf32, #tpu.memory_space<vmem>>, %arg2: memref<2x256xf32, #tpu.memory_space<vmem>>, %arg3: memref<1x256xf32, #tpu.memory_space<vmem>>, %arg4: memref<1x256xf32, #tpu.memory_space<vmem>>, %arg5: memref<8x256xbf16, #tpu.memory_space<vmem>>) attributes {dimension_semantics = [#tpu.dimension_semantics<parallel>], iteration_bounds = array<i64: 1>, scalar_prefetch = 0 : i64, scratch_operands = 0 : i64, tpu.core_type = #tpu.core_type<tc>, window_params = [{transform_indices = @transform_0, window_bounds = array<i64: 8, 256>}, {pipeline_mode = #tpu.pipeline_mode<synchronous>, transform_indices = @transform_1, window_bounds = array<i64: 2, 256>}, {pipeline_mode = #tpu.pipeline_mode<synchronous>, transform_indices = @transform_2, window_bounds = array<i64: 1, 256>}, {pipeline_mode = #tpu.pipeline_mode<synchronous>, transform_indices = @transform_3, window_bounds = array<i64: 1, 256>}, {transform_indices = @transform_4, window_bounds = array<i64: 8, 256>}]} {
    %c0 = arith.constant 0 : index
    %c0_0 = arith.constant 0 : index
    %0 = vector.load %arg1[%c0, %c0_0] : memref<8x256xf32, #tpu.memory_space<vmem>>, vector<8x256xf32>
    %c0_1 = arith.constant 0 : index
    %c0_2 = arith.constant 0 : index
    %1 = vector.load %arg2[%c0_1, %c0_2] : memref<2x256xf32, #tpu.memory_space<vmem>>, vector<1x256xf32>
    %cst = arith.constant 5.000000e-01 : f32
    %2 = vector.broadcast %cst : f32 to vector<1x256xf32>
    %3 = arith.mulf %1, %2 : vector<1x256xf32>
    %c1 = arith.constant 1 : index
    %c0_3 = arith.constant 0 : index
    %4 = vector.load %arg2[%c1, %c0_3] : memref<2x256xf32, #tpu.memory_space<vmem>>, vector<1x256xf32>
    %cst_4 = arith.constant 5.000000e-01 : f32
    %5 = vector.broadcast %cst_4 : f32 to vector<1x256xf32>
    %6 = arith.mulf %4, %5 : vector<1x256xf32>
    %7 = arith.mulf %3, %3 : vector<1x256xf32>
    %8 = arith.subf %6, %7 : vector<1x256xf32>
    %cst_5 = arith.constant 0.000000e+00 : f32
    %9 = vector.broadcast %cst_5 : f32 to vector<1x256xf32>
    %10 = arith.maximumf %8, %9 : vector<1x256xf32>
    %11 = vector.broadcast %3 : vector<1x256xf32> to vector<8x256xf32>
    %12 = arith.subf %0, %11 : vector<8x256xf32>
    %cst_6 = arith.constant 9.99999974E-6 : f32
    %13 = vector.broadcast %cst_6 : f32 to vector<1x256xf32>
    %14 = arith.addf %10, %13 : vector<1x256xf32>
    %15 = math.rsqrt %14 : vector<1x256xf32>
    %16 = vector.broadcast %15 : vector<1x256xf32> to vector<8x256xf32>
    %17 = arith.mulf %12, %16 : vector<8x256xf32>
    %c0_7 = arith.constant 0 : index
    %c0_8 = arith.constant 0 : index
    %18 = vector.load %arg3[%c0_7, %c0_8] : memref<1x256xf32, #tpu.memory_space<vmem>>, vector<1x256xf32>
    %19 = vector.broadcast %18 : vector<1x256xf32> to vector<8x256xf32>
    %20 = arith.mulf %17, %19 : vector<8x256xf32>
    %c0_9 = arith.constant 0 : index
    %c0_10 = arith.constant 0 : index
    %21 = vector.load %arg4[%c0_9, %c0_10] : memref<1x256xf32, #tpu.memory_space<vmem>>, vector<1x256xf32>
    %22 = vector.broadcast %21 : vector<1x256xf32> to vector<8x256xf32>
    %23 = arith.addf %20, %22 : vector<8x256xf32>
    %24 = arith.truncf %23 : vector<8x256xf32> to vector<8x256xbf16>
    %c0_11 = arith.constant 0 : index
    %c0_12 = arith.constant 0 : index
    %25 = vector.load %arg5[%c0_11, %c0_12] : memref<8x256xbf16, #tpu.memory_space<vmem>>, vector<8x256xbf16>
    tpu.vector_store %arg5[%c0_11, %c0_12], %24 {strides = array<i32>} : memref<8x256xbf16, #tpu.memory_space<vmem>>, vector<8x256xbf16>,
    return
  }
  func.func @transform_0(%arg0: i32) -> (i32, i32) {
    %c0_i32 = arith.constant 0 : i32
    %c0_i32_0 = arith.constant 0 : i32
    return %arg0, %c0_i32 : i32, i32
  }
  func.func @transform_1(%arg0: i32) -> (i32, i32) {
    %c0_i32 = arith.constant 0 : i32
    %c0_i32_0 = arith.constant 0 : i32
    %c0_i32_1 = arith.constant 0 : i32
    return %c0_i32, %c0_i32_0 : i32, i32
  }
  func.func @transform_2(%arg0: i32) -> (i32, i32) {
    %c0_i32 = arith.constant 0 : i32
    %c0_i32_0 = arith.constant 0 : i32
    %c0_i32_1 = arith.constant 0 : i32
    return %c0_i32, %c0_i32_0 : i32, i32
  }
  func.func @transform_3(%arg0: i32) -> (i32, i32) {
    %c0_i32 = arith.constant 0 : i32
    %c0_i32_0 = arith.constant 0 : i32
    %c0_i32_1 = arith.constant 0 : i32
    return %c0_i32, %c0_i32_0 : i32, i32
  }
  func.func @transform_4(%arg0: i32) -> (i32, i32) {
    %c0_i32 = arith.constant 0 : i32
    %c0_i32_0 = arith.constant 0 : i32
    return %arg0, %c0_i32 : i32, i32
  }
}

module attributes {stable_mosaic.version = 11 : i64} {
  func.func @_matmul_stats_kernel(%arg0: i32, %arg1: i32, %arg2: memref<8x128xbf16, #tpu.memory_space<vmem>>, %arg3: memref<128x256xbf16, #tpu.memory_space<vmem>>, %arg4: memref<8x256xf32, #tpu.memory_space<vmem>>, %arg5: memref<2x256xf32, #tpu.memory_space<vmem>>, %arg6: memref<8x256xf32, #tpu.memory_space<vmem>>) attributes {dimension_semantics = [#tpu.dimension_semantics<arbitrary>, #tpu.dimension_semantics<arbitrary>], iteration_bounds = array<i64: 1, 9>, scalar_prefetch = 0 : i64, scratch_operands = 1 : i64, tpu.core_type = #tpu.core_type<tc>, window_params = [{transform_indices = @transform_0, window_bounds = array<i64: 8, 128>}, {transform_indices = @transform_1, window_bounds = array<i64: 128, 256>}, {transform_indices = @transform_2, window_bounds = array<i64: 8, 256>}, {pipeline_mode = #tpu.pipeline_mode<synchronous>, transform_indices = @transform_3, window_bounds = array<i64: 2, 256>}]} {
    %c0_i32 = arith.constant 0 : i32
    %0 = arith.cmpi eq, %arg0, %c0_i32 : i32
    %c0_i32_0 = arith.constant 0 : i32
    %1 = arith.cmpi eq, %arg1, %c0_i32_0 : i32
    %2 = arith.andi %0, %1 : i1
    %3 = arith.extui %2 : i1 to i32
    %c0_i32_1 = arith.constant 0 : i32
    %4 = arith.cmpi ne, %3, %c0_i32_1 : i32
    scf.if %4 {
      %cst_12 = arith.constant 0.000000e+00 : f32
      %17 = vector.broadcast %cst_12 : f32 to vector<2x256xf32>
      %c0_13 = arith.constant 0 : index
      %c0_14 = arith.constant 0 : index
      %18 = vector.load %arg5[%c0_13, %c0_14] : memref<2x256xf32, #tpu.memory_space<vmem>>, vector<2x256xf32>
      tpu.vector_store %arg5[%c0_13, %c0_14], %17 {strides = array<i32>} : memref<2x256xf32, #tpu.memory_space<vmem>>, vector<2x256xf32>,
    } else {
    }
    %c0_i32_2 = arith.constant 0 : i32
    %5 = arith.cmpi eq, %arg1, %c0_i32_2 : i32
    %6 = arith.extui %5 : i1 to i32
    %c0_i32_3 = arith.constant 0 : i32
    %7 = arith.cmpi ne, %6, %c0_i32_3 : i32
    scf.if %7 {
      %cst_12 = arith.constant 0.000000e+00 : f32
      %17 = vector.broadcast %cst_12 : f32 to vector<8x256xf32>
      %c0_13 = arith.constant 0 : index
      %c0_14 = arith.constant 0 : index
      %18 = vector.load %arg6[%c0_13, %c0_14] : memref<8x256xf32, #tpu.memory_space<vmem>>, vector<8x256xf32>
      tpu.vector_store %arg6[%c0_13, %c0_14], %17 {strides = array<i32>} : memref<8x256xf32, #tpu.memory_space<vmem>>, vector<8x256xf32>,
    } else {
    }
    %c0 = arith.constant 0 : index
    %c0_4 = arith.constant 0 : index
    %8 = vector.load %arg6[%c0, %c0_4] : memref<8x256xf32, #tpu.memory_space<vmem>>, vector<8x256xf32>
    %c0_5 = arith.constant 0 : index
    %c0_6 = arith.constant 0 : index
    %9 = vector.load %arg2[%c0_5, %c0_6] : memref<8x128xbf16, #tpu.memory_space<vmem>>, vector<8x128xbf16>
    %c0_7 = arith.constant 0 : index
    %c0_8 = arith.constant 0 : index
    %10 = vector.load %arg3[%c0_7, %c0_8] : memref<128x256xbf16, #tpu.memory_space<vmem>>, vector<128x256xbf16>
    %cst = arith.constant dense<0.000000e+00> : vector<8x256xf32>
    %11 = tpu.matmul %9, %10, %cst {dimension_numbers = #tpu.dot_dimension_numbers<[1], [0], [0], [1], [0, 0, 1, 1], [], []>} : vector<8x128xbf16>, vector<128x256xbf16>, vector<8x256xf32> -> vector<8x256xf32>
    %12 = arith.addf %8, %11 : vector<8x256xf32>
    %c0_9 = arith.constant 0 : index
    %c0_10 = arith.constant 0 : index
    %13 = vector.load %arg6[%c0_9, %c0_10] : memref<8x256xf32, #tpu.memory_space<vmem>>, vector<8x256xf32>
    tpu.vector_store %arg6[%c0_9, %c0_10], %12 {strides = array<i32>} : memref<8x256xf32, #tpu.memory_space<vmem>>, vector<8x256xf32>,
    %c8_i32 = arith.constant 8 : i32
    %14 = arith.cmpi eq, %arg1, %c8_i32 : i32
    %15 = arith.extui %14 : i1 to i32
    %c0_i32_11 = arith.constant 0 : i32
    %16 = arith.cmpi ne, %15, %c0_i32_11 : i32
    scf.if %16 {
      %c0_12 = arith.constant 0 : index
      %c0_13 = arith.constant 0 : index
      %17 = vector.load %arg6[%c0_12, %c0_13] : memref<8x256xf32, #tpu.memory_space<vmem>>, vector<8x256xf32>
      %c0_14 = arith.constant 0 : index
      %c0_15 = arith.constant 0 : index
      %18 = vector.load %arg4[%c0_14, %c0_15] : memref<8x256xf32, #tpu.memory_space<vmem>>, vector<8x256xf32>
      tpu.vector_store %arg4[%c0_14, %c0_15], %17 {strides = array<i32>} : memref<8x256xf32, #tpu.memory_space<vmem>>, vector<8x256xf32>,
      %c0_16 = arith.constant 0 : index
      %c0_17 = arith.constant 0 : index
      %19 = vector.load %arg5[%c0_16, %c0_17] : memref<2x256xf32, #tpu.memory_space<vmem>>, vector<2x256xf32>
      %cst_18 = arith.constant dense<0.000000e+00> : vector<256xf32>
      %20 = vector.multi_reduction <add>, %17, %cst_18 [0] : vector<8x256xf32> to vector<256xf32>
      %21 = vector.shape_cast %20 : vector<256xf32> to vector<1x256xf32>
      %22 = arith.mulf %17, %17 : vector<8x256xf32>
      %cst_19 = arith.constant dense<0.000000e+00> : vector<256xf32>
      %23 = vector.multi_reduction <add>, %22, %cst_19 [0] : vector<8x256xf32> to vector<256xf32>
      %24 = vector.shape_cast %23 : vector<256xf32> to vector<1x256xf32>
      %25 = tpu.concatenate %21, %24 in 0 : vector<1x256xf32>, vector<1x256xf32> -> vector<2x256xf32>
      %26 = arith.addf %19, %25 : vector<2x256xf32>
      %c0_20 = arith.constant 0 : index
      %c0_21 = arith.constant 0 : index
      %27 = vector.load %arg5[%c0_20, %c0_21] : memref<2x256xf32, #tpu.memory_space<vmem>>, vector<2x256xf32>
      tpu.vector_store %arg5[%c0_20, %c0_21], %26 {strides = array<i32>} : memref<2x256xf32, #tpu.memory_space<vmem>>, vector<2x256xf32>,
    } else {
    }
    return
  }
  func.func @transform_0(%arg0: i32, %arg1: i32) -> (i32, i32) {
    %c0_i32 = arith.constant 0 : i32
    return %arg0, %arg1 : i32, i32
  }
  func.func @transform_1(%arg0: i32, %arg1: i32) -> (i32, i32) {
    %c0_i32 = arith.constant 0 : i32
    %c0_i32_0 = arith.constant 0 : i32
    return %arg1, %c0_i32 : i32, i32
  }
  func.func @transform_2(%arg0: i32, %arg1: i32) -> (i32, i32) {
    %c0_i32 = arith.constant 0 : i32
    %c0_i32_0 = arith.constant 0 : i32
    return %arg0, %c0_i32 : i32, i32
  }
  func.func @transform_3(%arg0: i32, %arg1: i32) -> (i32, i32) {
    %c0_i32 = arith.constant 0 : i32
    %c0_i32_0 = arith.constant 0 : i32
    %c0_i32_1 = arith.constant 0 : i32
    return %c0_i32, %c0_i32_0 : i32, i32
  }
}

module attributes {stable_mosaic.version = 11 : i64} {
  func.func @_bn_kernel(%arg0: i32, %arg1: memref<8x256xf32, #tpu.memory_space<vmem>>, %arg2: memref<2x256xf32, #tpu.memory_space<vmem>>, %arg3: memref<1x256xf32, #tpu.memory_space<vmem>>, %arg4: memref<1x256xf32, #tpu.memory_space<vmem>>, %arg5: memref<8x256xbf16, #tpu.memory_space<vmem>>) attributes {dimension_semantics = [#tpu.dimension_semantics<parallel>], iteration_bounds = array<i64: 1>, scalar_prefetch = 0 : i64, scratch_operands = 0 : i64, tpu.core_type = #tpu.core_type<tc>, window_params = [{transform_indices = @transform_0, window_bounds = array<i64: 8, 256>}, {pipeline_mode = #tpu.pipeline_mode<synchronous>, transform_indices = @transform_1, window_bounds = array<i64: 2, 256>}, {pipeline_mode = #tpu.pipeline_mode<synchronous>, transform_indices = @transform_2, window_bounds = array<i64: 1, 256>}, {pipeline_mode = #tpu.pipeline_mode<synchronous>, transform_indices = @transform_3, window_bounds = array<i64: 1, 256>}, {transform_indices = @transform_4, window_bounds = array<i64: 8, 256>}]} {
    %c0 = arith.constant 0 : index
    %c0_0 = arith.constant 0 : index
    %0 = vector.load %arg1[%c0, %c0_0] : memref<8x256xf32, #tpu.memory_space<vmem>>, vector<8x256xf32>
    %c0_1 = arith.constant 0 : index
    %c0_2 = arith.constant 0 : index
    %1 = vector.load %arg2[%c0_1, %c0_2] : memref<2x256xf32, #tpu.memory_space<vmem>>, vector<1x256xf32>
    %cst = arith.constant 5.000000e-01 : f32
    %2 = vector.broadcast %cst : f32 to vector<1x256xf32>
    %3 = arith.mulf %1, %2 : vector<1x256xf32>
    %c1 = arith.constant 1 : index
    %c0_3 = arith.constant 0 : index
    %4 = vector.load %arg2[%c1, %c0_3] : memref<2x256xf32, #tpu.memory_space<vmem>>, vector<1x256xf32>
    %cst_4 = arith.constant 5.000000e-01 : f32
    %5 = vector.broadcast %cst_4 : f32 to vector<1x256xf32>
    %6 = arith.mulf %4, %5 : vector<1x256xf32>
    %7 = arith.mulf %3, %3 : vector<1x256xf32>
    %8 = arith.subf %6, %7 : vector<1x256xf32>
    %cst_5 = arith.constant 0.000000e+00 : f32
    %9 = vector.broadcast %cst_5 : f32 to vector<1x256xf32>
    %10 = arith.maximumf %8, %9 : vector<1x256xf32>
    %11 = vector.broadcast %3 : vector<1x256xf32> to vector<8x256xf32>
    %12 = arith.subf %0, %11 : vector<8x256xf32>
    %cst_6 = arith.constant 9.99999974E-6 : f32
    %13 = vector.broadcast %cst_6 : f32 to vector<1x256xf32>
    %14 = arith.addf %10, %13 : vector<1x256xf32>
    %15 = math.rsqrt %14 : vector<1x256xf32>
    %16 = vector.broadcast %15 : vector<1x256xf32> to vector<8x256xf32>
    %17 = arith.mulf %12, %16 : vector<8x256xf32>
    %c0_7 = arith.constant 0 : index
    %c0_8 = arith.constant 0 : index
    %18 = vector.load %arg3[%c0_7, %c0_8] : memref<1x256xf32, #tpu.memory_space<vmem>>, vector<1x256xf32>
    %19 = vector.broadcast %18 : vector<1x256xf32> to vector<8x256xf32>
    %20 = arith.mulf %17, %19 : vector<8x256xf32>
    %c0_9 = arith.constant 0 : index
    %c0_10 = arith.constant 0 : index
    %21 = vector.load %arg4[%c0_9, %c0_10] : memref<1x256xf32, #tpu.memory_space<vmem>>, vector<1x256xf32>
    %22 = vector.broadcast %21 : vector<1x256xf32> to vector<8x256xf32>
    %23 = arith.addf %20, %22 : vector<8x256xf32>
    %cst_11 = arith.constant 0.000000e+00 : f32
    %24 = vector.broadcast %cst_11 : f32 to vector<8x256xf32>
    %25 = arith.maximumf %23, %24 : vector<8x256xf32>
    %26 = arith.truncf %25 : vector<8x256xf32> to vector<8x256xbf16>
    %c0_12 = arith.constant 0 : index
    %c0_13 = arith.constant 0 : index
    %27 = vector.load %arg5[%c0_12, %c0_13] : memref<8x256xbf16, #tpu.memory_space<vmem>>, vector<8x256xbf16>
    tpu.vector_store %arg5[%c0_12, %c0_13], %26 {strides = array<i32>} : memref<8x256xbf16, #tpu.memory_space<vmem>>, vector<8x256xbf16>,
    return
  }
  func.func @transform_0(%arg0: i32) -> (i32, i32) {
    %c0_i32 = arith.constant 0 : i32
    %c0_i32_0 = arith.constant 0 : i32
    return %arg0, %c0_i32 : i32, i32
  }
  func.func @transform_1(%arg0: i32) -> (i32, i32) {
    %c0_i32 = arith.constant 0 : i32
    %c0_i32_0 = arith.constant 0 : i32
    %c0_i32_1 = arith.constant 0 : i32
    return %c0_i32, %c0_i32_0 : i32, i32
  }
  func.func @transform_2(%arg0: i32) -> (i32, i32) {
    %c0_i32 = arith.constant 0 : i32
    %c0_i32_0 = arith.constant 0 : i32
    %c0_i32_1 = arith.constant 0 : i32
    return %c0_i32, %c0_i32_0 : i32, i32
  }
  func.func @transform_3(%arg0: i32) -> (i32, i32) {
    %c0_i32 = arith.constant 0 : i32
    %c0_i32_0 = arith.constant 0 : i32
    %c0_i32_1 = arith.constant 0 : i32
    return %c0_i32, %c0_i32_0 : i32, i32
  }
  func.func @transform_4(%arg0: i32) -> (i32, i32) {
    %c0_i32 = arith.constant 0 : i32
    %c0_i32_0 = arith.constant 0 : i32
    return %arg0, %c0_i32 : i32, i32
  }
}

module attributes {stable_mosaic.version = 11 : i64} {
  func.func @_matmul_stats_kernel(%arg0: i32, %arg1: i32, %arg2: memref<8x256xbf16, #tpu.memory_space<vmem>>, %arg3: memref<256x256xbf16, #tpu.memory_space<vmem>>, %arg4: memref<8x256xf32, #tpu.memory_space<vmem>>, %arg5: memref<2x256xf32, #tpu.memory_space<vmem>>, %arg6: memref<8x256xf32, #tpu.memory_space<vmem>>) attributes {dimension_semantics = [#tpu.dimension_semantics<arbitrary>, #tpu.dimension_semantics<arbitrary>], iteration_bounds = array<i64: 1, 9>, scalar_prefetch = 0 : i64, scratch_operands = 1 : i64, tpu.core_type = #tpu.core_type<tc>, window_params = [{transform_indices = @transform_0, window_bounds = array<i64: 8, 256>}, {transform_indices = @transform_1, window_bounds = array<i64: 256, 256>}, {transform_indices = @transform_2, window_bounds = array<i64: 8, 256>}, {pipeline_mode = #tpu.pipeline_mode<synchronous>, transform_indices = @transform_3, window_bounds = array<i64: 2, 256>}]} {
    %c0_i32 = arith.constant 0 : i32
    %0 = arith.cmpi eq, %arg0, %c0_i32 : i32
    %c0_i32_0 = arith.constant 0 : i32
    %1 = arith.cmpi eq, %arg1, %c0_i32_0 : i32
    %2 = arith.andi %0, %1 : i1
    %3 = arith.extui %2 : i1 to i32
    %c0_i32_1 = arith.constant 0 : i32
    %4 = arith.cmpi ne, %3, %c0_i32_1 : i32
    scf.if %4 {
      %cst_12 = arith.constant 0.000000e+00 : f32
      %17 = vector.broadcast %cst_12 : f32 to vector<2x256xf32>
      %c0_13 = arith.constant 0 : index
      %c0_14 = arith.constant 0 : index
      %18 = vector.load %arg5[%c0_13, %c0_14] : memref<2x256xf32, #tpu.memory_space<vmem>>, vector<2x256xf32>
      tpu.vector_store %arg5[%c0_13, %c0_14], %17 {strides = array<i32>} : memref<2x256xf32, #tpu.memory_space<vmem>>, vector<2x256xf32>,
    } else {
    }
    %c0_i32_2 = arith.constant 0 : i32
    %5 = arith.cmpi eq, %arg1, %c0_i32_2 : i32
    %6 = arith.extui %5 : i1 to i32
    %c0_i32_3 = arith.constant 0 : i32
    %7 = arith.cmpi ne, %6, %c0_i32_3 : i32
    scf.if %7 {
      %cst_12 = arith.constant 0.000000e+00 : f32
      %17 = vector.broadcast %cst_12 : f32 to vector<8x256xf32>
      %c0_13 = arith.constant 0 : index
      %c0_14 = arith.constant 0 : index
      %18 = vector.load %arg6[%c0_13, %c0_14] : memref<8x256xf32, #tpu.memory_space<vmem>>, vector<8x256xf32>
      tpu.vector_store %arg6[%c0_13, %c0_14], %17 {strides = array<i32>} : memref<8x256xf32, #tpu.memory_space<vmem>>, vector<8x256xf32>,
    } else {
    }
    %c0 = arith.constant 0 : index
    %c0_4 = arith.constant 0 : index
    %8 = vector.load %arg6[%c0, %c0_4] : memref<8x256xf32, #tpu.memory_space<vmem>>, vector<8x256xf32>
    %c0_5 = arith.constant 0 : index
    %c0_6 = arith.constant 0 : index
    %9 = vector.load %arg2[%c0_5, %c0_6] : memref<8x256xbf16, #tpu.memory_space<vmem>>, vector<8x256xbf16>
    %c0_7 = arith.constant 0 : index
    %c0_8 = arith.constant 0 : index
    %10 = vector.load %arg3[%c0_7, %c0_8] : memref<256x256xbf16, #tpu.memory_space<vmem>>, vector<256x256xbf16>
    %cst = arith.constant dense<0.000000e+00> : vector<8x256xf32>
    %11 = tpu.matmul %9, %10, %cst {dimension_numbers = #tpu.dot_dimension_numbers<[1], [0], [0], [1], [0, 0, 1, 1], [], []>} : vector<8x256xbf16>, vector<256x256xbf16>, vector<8x256xf32> -> vector<8x256xf32>
    %12 = arith.addf %8, %11 : vector<8x256xf32>
    %c0_9 = arith.constant 0 : index
    %c0_10 = arith.constant 0 : index
    %13 = vector.load %arg6[%c0_9, %c0_10] : memref<8x256xf32, #tpu.memory_space<vmem>>, vector<8x256xf32>
    tpu.vector_store %arg6[%c0_9, %c0_10], %12 {strides = array<i32>} : memref<8x256xf32, #tpu.memory_space<vmem>>, vector<8x256xf32>,
    %c8_i32 = arith.constant 8 : i32
    %14 = arith.cmpi eq, %arg1, %c8_i32 : i32
    %15 = arith.extui %14 : i1 to i32
    %c0_i32_11 = arith.constant 0 : i32
    %16 = arith.cmpi ne, %15, %c0_i32_11 : i32
    scf.if %16 {
      %c0_12 = arith.constant 0 : index
      %c0_13 = arith.constant 0 : index
      %17 = vector.load %arg6[%c0_12, %c0_13] : memref<8x256xf32, #tpu.memory_space<vmem>>, vector<8x256xf32>
      %c0_14 = arith.constant 0 : index
      %c0_15 = arith.constant 0 : index
      %18 = vector.load %arg4[%c0_14, %c0_15] : memref<8x256xf32, #tpu.memory_space<vmem>>, vector<8x256xf32>
      tpu.vector_store %arg4[%c0_14, %c0_15], %17 {strides = array<i32>} : memref<8x256xf32, #tpu.memory_space<vmem>>, vector<8x256xf32>,
      %c0_16 = arith.constant 0 : index
      %c0_17 = arith.constant 0 : index
      %19 = vector.load %arg5[%c0_16, %c0_17] : memref<2x256xf32, #tpu.memory_space<vmem>>, vector<2x256xf32>
      %cst_18 = arith.constant dense<0.000000e+00> : vector<256xf32>
      %20 = vector.multi_reduction <add>, %17, %cst_18 [0] : vector<8x256xf32> to vector<256xf32>
      %21 = vector.shape_cast %20 : vector<256xf32> to vector<1x256xf32>
      %22 = arith.mulf %17, %17 : vector<8x256xf32>
      %cst_19 = arith.constant dense<0.000000e+00> : vector<256xf32>
      %23 = vector.multi_reduction <add>, %22, %cst_19 [0] : vector<8x256xf32> to vector<256xf32>
      %24 = vector.shape_cast %23 : vector<256xf32> to vector<1x256xf32>
      %25 = tpu.concatenate %21, %24 in 0 : vector<1x256xf32>, vector<1x256xf32> -> vector<2x256xf32>
      %26 = arith.addf %19, %25 : vector<2x256xf32>
      %c0_20 = arith.constant 0 : index
      %c0_21 = arith.constant 0 : index
      %27 = vector.load %arg5[%c0_20, %c0_21] : memref<2x256xf32, #tpu.memory_space<vmem>>, vector<2x256xf32>
      tpu.vector_store %arg5[%c0_20, %c0_21], %26 {strides = array<i32>} : memref<2x256xf32, #tpu.memory_space<vmem>>, vector<2x256xf32>,
    } else {
    }
    return
  }
  func.func @transform_0(%arg0: i32, %arg1: i32) -> (i32, i32) {
    %c0_i32 = arith.constant 0 : i32
    return %arg0, %arg1 : i32, i32
  }
  func.func @transform_1(%arg0: i32, %arg1: i32) -> (i32, i32) {
    %c0_i32 = arith.constant 0 : i32
    %c0_i32_0 = arith.constant 0 : i32
    return %arg1, %c0_i32 : i32, i32
  }
  func.func @transform_2(%arg0: i32, %arg1: i32) -> (i32, i32) {
    %c0_i32 = arith.constant 0 : i32
    %c0_i32_0 = arith.constant 0 : i32
    return %arg0, %c0_i32 : i32, i32
  }
  func.func @transform_3(%arg0: i32, %arg1: i32) -> (i32, i32) {
    %c0_i32 = arith.constant 0 : i32
    %c0_i32_0 = arith.constant 0 : i32
    %c0_i32_1 = arith.constant 0 : i32
    return %c0_i32, %c0_i32_0 : i32, i32
  }
}

module attributes {stable_mosaic.version = 11 : i64} {
  func.func @_bn_add_relu_kernel(%arg0: i32, %arg1: memref<8x256xf32, #tpu.memory_space<vmem>>, %arg2: memref<8x256xbf16, #tpu.memory_space<vmem>>, %arg3: memref<2x256xf32, #tpu.memory_space<vmem>>, %arg4: memref<1x256xf32, #tpu.memory_space<vmem>>, %arg5: memref<1x256xf32, #tpu.memory_space<vmem>>, %arg6: memref<8x256xbf16, #tpu.memory_space<vmem>>) attributes {dimension_semantics = [#tpu.dimension_semantics<parallel>], iteration_bounds = array<i64: 1>, scalar_prefetch = 0 : i64, scratch_operands = 0 : i64, tpu.core_type = #tpu.core_type<tc>, window_params = [{transform_indices = @transform_0, window_bounds = array<i64: 8, 256>}, {transform_indices = @transform_1, window_bounds = array<i64: 8, 256>}, {pipeline_mode = #tpu.pipeline_mode<synchronous>, transform_indices = @transform_2, window_bounds = array<i64: 2, 256>}, {pipeline_mode = #tpu.pipeline_mode<synchronous>, transform_indices = @transform_3, window_bounds = array<i64: 1, 256>}, {pipeline_mode = #tpu.pipeline_mode<synchronous>, transform_indices = @transform_4, window_bounds = array<i64: 1, 256>}, {transform_indices = @transform_5, window_bounds = array<i64: 8, 256>}]} {
    %c0 = arith.constant 0 : index
    %c0_0 = arith.constant 0 : index
    %0 = vector.load %arg1[%c0, %c0_0] : memref<8x256xf32, #tpu.memory_space<vmem>>, vector<8x256xf32>
    %c0_1 = arith.constant 0 : index
    %c0_2 = arith.constant 0 : index
    %1 = vector.load %arg3[%c0_1, %c0_2] : memref<2x256xf32, #tpu.memory_space<vmem>>, vector<1x256xf32>
    %cst = arith.constant 5.000000e-01 : f32
    %2 = vector.broadcast %cst : f32 to vector<1x256xf32>
    %3 = arith.mulf %1, %2 : vector<1x256xf32>
    %c1 = arith.constant 1 : index
    %c0_3 = arith.constant 0 : index
    %4 = vector.load %arg3[%c1, %c0_3] : memref<2x256xf32, #tpu.memory_space<vmem>>, vector<1x256xf32>
    %cst_4 = arith.constant 5.000000e-01 : f32
    %5 = vector.broadcast %cst_4 : f32 to vector<1x256xf32>
    %6 = arith.mulf %4, %5 : vector<1x256xf32>
    %7 = arith.mulf %3, %3 : vector<1x256xf32>
    %8 = arith.subf %6, %7 : vector<1x256xf32>
    %cst_5 = arith.constant 0.000000e+00 : f32
    %9 = vector.broadcast %cst_5 : f32 to vector<1x256xf32>
    %10 = arith.maximumf %8, %9 : vector<1x256xf32>
    %11 = vector.broadcast %3 : vector<1x256xf32> to vector<8x256xf32>
    %12 = arith.subf %0, %11 : vector<8x256xf32>
    %cst_6 = arith.constant 9.99999974E-6 : f32
    %13 = vector.broadcast %cst_6 : f32 to vector<1x256xf32>
    %14 = arith.addf %10, %13 : vector<1x256xf32>
    %15 = math.rsqrt %14 : vector<1x256xf32>
    %16 = vector.broadcast %15 : vector<1x256xf32> to vector<8x256xf32>
    %17 = arith.mulf %12, %16 : vector<8x256xf32>
    %c0_7 = arith.constant 0 : index
    %c0_8 = arith.constant 0 : index
    %18 = vector.load %arg4[%c0_7, %c0_8] : memref<1x256xf32, #tpu.memory_space<vmem>>, vector<1x256xf32>
    %19 = vector.broadcast %18 : vector<1x256xf32> to vector<8x256xf32>
    %20 = arith.mulf %17, %19 : vector<8x256xf32>
    %c0_9 = arith.constant 0 : index
    %c0_10 = arith.constant 0 : index
    %21 = vector.load %arg5[%c0_9, %c0_10] : memref<1x256xf32, #tpu.memory_space<vmem>>, vector<1x256xf32>
    %22 = vector.broadcast %21 : vector<1x256xf32> to vector<8x256xf32>
    %23 = arith.addf %20, %22 : vector<8x256xf32>
    %c0_11 = arith.constant 0 : index
    %c0_12 = arith.constant 0 : index
    %24 = vector.load %arg2[%c0_11, %c0_12] : memref<8x256xbf16, #tpu.memory_space<vmem>>, vector<8x256xbf16>
    %25 = arith.extf %24 : vector<8x256xbf16> to vector<8x256xf32>
    %26 = arith.addf %23, %25 : vector<8x256xf32>
    %cst_13 = arith.constant 0.000000e+00 : f32
    %27 = vector.broadcast %cst_13 : f32 to vector<8x256xf32>
    %28 = arith.maximumf %26, %27 : vector<8x256xf32>
    %29 = arith.truncf %28 : vector<8x256xf32> to vector<8x256xbf16>
    %c0_14 = arith.constant 0 : index
    %c0_15 = arith.constant 0 : index
    %30 = vector.load %arg6[%c0_14, %c0_15] : memref<8x256xbf16, #tpu.memory_space<vmem>>, vector<8x256xbf16>
    tpu.vector_store %arg6[%c0_14, %c0_15], %29 {strides = array<i32>} : memref<8x256xbf16, #tpu.memory_space<vmem>>, vector<8x256xbf16>,
    return
  }
  func.func @transform_0(%arg0: i32) -> (i32, i32) {
    %c0_i32 = arith.constant 0 : i32
    %c0_i32_0 = arith.constant 0 : i32
    return %arg0, %c0_i32 : i32, i32
  }
  func.func @transform_1(%arg0: i32) -> (i32, i32) {
    %c0_i32 = arith.constant 0 : i32
    %c0_i32_0 = arith.constant 0 : i32
    return %arg0, %c0_i32 : i32, i32
  }
  func.func @transform_2(%arg0: i32) -> (i32, i32) {
    %c0_i32 = arith.constant 0 : i32
    %c0_i32_0 = arith.constant 0 : i32
    %c0_i32_1 = arith.constant 0 : i32
    return %c0_i32, %c0_i32_0 : i32, i32
  }
  func.func @transform_3(%arg0: i32) -> (i32, i32) {
    %c0_i32 = arith.constant 0 : i32
    %c0_i32_0 = arith.constant 0 : i32
    %c0_i32_1 = arith.constant 0 : i32
    return %c0_i32, %c0_i32_0 : i32, i32
  }
  func.func @transform_4(%arg0: i32) -> (i32, i32) {
    %c0_i32 = arith.constant 0 : i32
    %c0_i32_0 = arith.constant 0 : i32
    %c0_i32_1 = arith.constant 0 : i32
    return %c0_i32, %c0_i32_0 : i32, i32
  }
  func.func @transform_5(%arg0: i32) -> (i32, i32) {
    %c0_i32 = arith.constant 0 : i32
    %c0_i32_0 = arith.constant 0 : i32
    return %arg0, %c0_i32 : i32, i32
  }
}

module attributes {stable_mosaic.version = 11 : i64} {
  func.func @_bn_kernel(%arg0: i32, %arg1: memref<8x512xf32, #tpu.memory_space<vmem>>, %arg2: memref<2x512xf32, #tpu.memory_space<vmem>>, %arg3: memref<1x512xf32, #tpu.memory_space<vmem>>, %arg4: memref<1x512xf32, #tpu.memory_space<vmem>>, %arg5: memref<8x512xbf16, #tpu.memory_space<vmem>>) attributes {dimension_semantics = [#tpu.dimension_semantics<parallel>], iteration_bounds = array<i64: 1>, scalar_prefetch = 0 : i64, scratch_operands = 0 : i64, tpu.core_type = #tpu.core_type<tc>, window_params = [{transform_indices = @transform_0, window_bounds = array<i64: 8, 512>}, {pipeline_mode = #tpu.pipeline_mode<synchronous>, transform_indices = @transform_1, window_bounds = array<i64: 2, 512>}, {pipeline_mode = #tpu.pipeline_mode<synchronous>, transform_indices = @transform_2, window_bounds = array<i64: 1, 512>}, {pipeline_mode = #tpu.pipeline_mode<synchronous>, transform_indices = @transform_3, window_bounds = array<i64: 1, 512>}, {transform_indices = @transform_4, window_bounds = array<i64: 8, 512>}]} {
    %c0 = arith.constant 0 : index
    %c0_0 = arith.constant 0 : index
    %0 = vector.load %arg1[%c0, %c0_0] : memref<8x512xf32, #tpu.memory_space<vmem>>, vector<8x512xf32>
    %c0_1 = arith.constant 0 : index
    %c0_2 = arith.constant 0 : index
    %1 = vector.load %arg2[%c0_1, %c0_2] : memref<2x512xf32, #tpu.memory_space<vmem>>, vector<1x512xf32>
    %cst = arith.constant 5.000000e-01 : f32
    %2 = vector.broadcast %cst : f32 to vector<1x512xf32>
    %3 = arith.mulf %1, %2 : vector<1x512xf32>
    %c1 = arith.constant 1 : index
    %c0_3 = arith.constant 0 : index
    %4 = vector.load %arg2[%c1, %c0_3] : memref<2x512xf32, #tpu.memory_space<vmem>>, vector<1x512xf32>
    %cst_4 = arith.constant 5.000000e-01 : f32
    %5 = vector.broadcast %cst_4 : f32 to vector<1x512xf32>
    %6 = arith.mulf %4, %5 : vector<1x512xf32>
    %7 = arith.mulf %3, %3 : vector<1x512xf32>
    %8 = arith.subf %6, %7 : vector<1x512xf32>
    %cst_5 = arith.constant 0.000000e+00 : f32
    %9 = vector.broadcast %cst_5 : f32 to vector<1x512xf32>
    %10 = arith.maximumf %8, %9 : vector<1x512xf32>
    %11 = vector.broadcast %3 : vector<1x512xf32> to vector<8x512xf32>
    %12 = arith.subf %0, %11 : vector<8x512xf32>
    %cst_6 = arith.constant 9.99999974E-6 : f32
    %13 = vector.broadcast %cst_6 : f32 to vector<1x512xf32>
    %14 = arith.addf %10, %13 : vector<1x512xf32>
    %15 = math.rsqrt %14 : vector<1x512xf32>
    %16 = vector.broadcast %15 : vector<1x512xf32> to vector<8x512xf32>
    %17 = arith.mulf %12, %16 : vector<8x512xf32>
    %c0_7 = arith.constant 0 : index
    %c0_8 = arith.constant 0 : index
    %18 = vector.load %arg3[%c0_7, %c0_8] : memref<1x512xf32, #tpu.memory_space<vmem>>, vector<1x512xf32>
    %19 = vector.broadcast %18 : vector<1x512xf32> to vector<8x512xf32>
    %20 = arith.mulf %17, %19 : vector<8x512xf32>
    %c0_9 = arith.constant 0 : index
    %c0_10 = arith.constant 0 : index
    %21 = vector.load %arg4[%c0_9, %c0_10] : memref<1x512xf32, #tpu.memory_space<vmem>>, vector<1x512xf32>
    %22 = vector.broadcast %21 : vector<1x512xf32> to vector<8x512xf32>
    %23 = arith.addf %20, %22 : vector<8x512xf32>
    %24 = arith.truncf %23 : vector<8x512xf32> to vector<8x512xbf16>
    %c0_11 = arith.constant 0 : index
    %c0_12 = arith.constant 0 : index
    %25 = vector.load %arg5[%c0_11, %c0_12] : memref<8x512xbf16, #tpu.memory_space<vmem>>, vector<8x512xbf16>
    tpu.vector_store %arg5[%c0_11, %c0_12], %24 {strides = array<i32>} : memref<8x512xbf16, #tpu.memory_space<vmem>>, vector<8x512xbf16>,
    return
  }
  func.func @transform_0(%arg0: i32) -> (i32, i32) {
    %c0_i32 = arith.constant 0 : i32
    %c0_i32_0 = arith.constant 0 : i32
    return %arg0, %c0_i32 : i32, i32
  }
  func.func @transform_1(%arg0: i32) -> (i32, i32) {
    %c0_i32 = arith.constant 0 : i32
    %c0_i32_0 = arith.constant 0 : i32
    %c0_i32_1 = arith.constant 0 : i32
    return %c0_i32, %c0_i32_0 : i32, i32
  }
  func.func @transform_2(%arg0: i32) -> (i32, i32) {
    %c0_i32 = arith.constant 0 : i32
    %c0_i32_0 = arith.constant 0 : i32
    %c0_i32_1 = arith.constant 0 : i32
    return %c0_i32, %c0_i32_0 : i32, i32
  }
  func.func @transform_3(%arg0: i32) -> (i32, i32) {
    %c0_i32 = arith.constant 0 : i32
    %c0_i32_0 = arith.constant 0 : i32
    %c0_i32_1 = arith.constant 0 : i32
    return %c0_i32, %c0_i32_0 : i32, i32
  }
  func.func @transform_4(%arg0: i32) -> (i32, i32) {
    %c0_i32 = arith.constant 0 : i32
    %c0_i32_0 = arith.constant 0 : i32
    return %arg0, %c0_i32 : i32, i32
  }
}

module attributes {stable_mosaic.version = 11 : i64} {
  func.func @_matmul_stats_kernel(%arg0: i32, %arg1: i32, %arg2: memref<8x256xbf16, #tpu.memory_space<vmem>>, %arg3: memref<256x512xbf16, #tpu.memory_space<vmem>>, %arg4: memref<8x512xf32, #tpu.memory_space<vmem>>, %arg5: memref<2x512xf32, #tpu.memory_space<vmem>>, %arg6: memref<8x512xf32, #tpu.memory_space<vmem>>) attributes {dimension_semantics = [#tpu.dimension_semantics<arbitrary>, #tpu.dimension_semantics<arbitrary>], iteration_bounds = array<i64: 1, 1>, scalar_prefetch = 0 : i64, scratch_operands = 1 : i64, tpu.core_type = #tpu.core_type<tc>, window_params = [{transform_indices = @transform_0, window_bounds = array<i64: 8, 256>}, {transform_indices = @transform_1, window_bounds = array<i64: 256, 512>}, {transform_indices = @transform_2, window_bounds = array<i64: 8, 512>}, {pipeline_mode = #tpu.pipeline_mode<synchronous>, transform_indices = @transform_3, window_bounds = array<i64: 2, 512>}]} {
    %c0_i32 = arith.constant 0 : i32
    %0 = arith.cmpi eq, %arg0, %c0_i32 : i32
    %c0_i32_0 = arith.constant 0 : i32
    %1 = arith.cmpi eq, %arg1, %c0_i32_0 : i32
    %2 = arith.andi %0, %1 : i1
    %3 = arith.extui %2 : i1 to i32
    %c0_i32_1 = arith.constant 0 : i32
    %4 = arith.cmpi ne, %3, %c0_i32_1 : i32
    scf.if %4 {
      %cst_13 = arith.constant 0.000000e+00 : f32
      %17 = vector.broadcast %cst_13 : f32 to vector<2x512xf32>
      %c0_14 = arith.constant 0 : index
      %c0_15 = arith.constant 0 : index
      %18 = vector.load %arg5[%c0_14, %c0_15] : memref<2x512xf32, #tpu.memory_space<vmem>>, vector<2x512xf32>
      tpu.vector_store %arg5[%c0_14, %c0_15], %17 {strides = array<i32>} : memref<2x512xf32, #tpu.memory_space<vmem>>, vector<2x512xf32>,
    } else {
    }
    %c0_i32_2 = arith.constant 0 : i32
    %5 = arith.cmpi eq, %arg1, %c0_i32_2 : i32
    %6 = arith.extui %5 : i1 to i32
    %c0_i32_3 = arith.constant 0 : i32
    %7 = arith.cmpi ne, %6, %c0_i32_3 : i32
    scf.if %7 {
      %cst_13 = arith.constant 0.000000e+00 : f32
      %17 = vector.broadcast %cst_13 : f32 to vector<8x512xf32>
      %c0_14 = arith.constant 0 : index
      %c0_15 = arith.constant 0 : index
      %18 = vector.load %arg6[%c0_14, %c0_15] : memref<8x512xf32, #tpu.memory_space<vmem>>, vector<8x512xf32>
      tpu.vector_store %arg6[%c0_14, %c0_15], %17 {strides = array<i32>} : memref<8x512xf32, #tpu.memory_space<vmem>>, vector<8x512xf32>,
    } else {
    }
    %c0 = arith.constant 0 : index
    %c0_4 = arith.constant 0 : index
    %8 = vector.load %arg6[%c0, %c0_4] : memref<8x512xf32, #tpu.memory_space<vmem>>, vector<8x512xf32>
    %c0_5 = arith.constant 0 : index
    %c0_6 = arith.constant 0 : index
    %9 = vector.load %arg2[%c0_5, %c0_6] : memref<8x256xbf16, #tpu.memory_space<vmem>>, vector<8x256xbf16>
    %c0_7 = arith.constant 0 : index
    %c0_8 = arith.constant 0 : index
    %10 = vector.load %arg3[%c0_7, %c0_8] : memref<256x512xbf16, #tpu.memory_space<vmem>>, vector<256x512xbf16>
    %cst = arith.constant dense<0.000000e+00> : vector<8x512xf32>
    %11 = tpu.matmul %9, %10, %cst {dimension_numbers = #tpu.dot_dimension_numbers<[1], [0], [0], [1], [0, 0, 1, 1], [], []>} : vector<8x256xbf16>, vector<256x512xbf16>, vector<8x512xf32> -> vector<8x512xf32>
    %12 = arith.addf %8, %11 : vector<8x512xf32>
    %c0_9 = arith.constant 0 : index
    %c0_10 = arith.constant 0 : index
    %13 = vector.load %arg6[%c0_9, %c0_10] : memref<8x512xf32, #tpu.memory_space<vmem>>, vector<8x512xf32>
    tpu.vector_store %arg6[%c0_9, %c0_10], %12 {strides = array<i32>} : memref<8x512xf32, #tpu.memory_space<vmem>>, vector<8x512xf32>,
    %c0_i32_11 = arith.constant 0 : i32
    %14 = arith.cmpi eq, %arg1, %c0_i32_11 : i32
    %15 = arith.extui %14 : i1 to i32
    %c0_i32_12 = arith.constant 0 : i32
    %16 = arith.cmpi ne, %15, %c0_i32_12 : i32
    scf.if %16 {
      %c0_13 = arith.constant 0 : index
      %c0_14 = arith.constant 0 : index
      %17 = vector.load %arg6[%c0_13, %c0_14] : memref<8x512xf32, #tpu.memory_space<vmem>>, vector<8x512xf32>
      %c0_15 = arith.constant 0 : index
      %c0_16 = arith.constant 0 : index
      %18 = vector.load %arg4[%c0_15, %c0_16] : memref<8x512xf32, #tpu.memory_space<vmem>>, vector<8x512xf32>
      tpu.vector_store %arg4[%c0_15, %c0_16], %17 {strides = array<i32>} : memref<8x512xf32, #tpu.memory_space<vmem>>, vector<8x512xf32>,
      %c0_17 = arith.constant 0 : index
      %c0_18 = arith.constant 0 : index
      %19 = vector.load %arg5[%c0_17, %c0_18] : memref<2x512xf32, #tpu.memory_space<vmem>>, vector<2x512xf32>
      %cst_19 = arith.constant dense<0.000000e+00> : vector<512xf32>
      %20 = vector.multi_reduction <add>, %17, %cst_19 [0] : vector<8x512xf32> to vector<512xf32>
      %21 = vector.shape_cast %20 : vector<512xf32> to vector<1x512xf32>
      %22 = arith.mulf %17, %17 : vector<8x512xf32>
      %cst_20 = arith.constant dense<0.000000e+00> : vector<512xf32>
      %23 = vector.multi_reduction <add>, %22, %cst_20 [0] : vector<8x512xf32> to vector<512xf32>
      %24 = vector.shape_cast %23 : vector<512xf32> to vector<1x512xf32>
      %25 = tpu.concatenate %21, %24 in 0 : vector<1x512xf32>, vector<1x512xf32> -> vector<2x512xf32>
      %26 = arith.addf %19, %25 : vector<2x512xf32>
      %c0_21 = arith.constant 0 : index
      %c0_22 = arith.constant 0 : index
      %27 = vector.load %arg5[%c0_21, %c0_22] : memref<2x512xf32, #tpu.memory_space<vmem>>, vector<2x512xf32>
      tpu.vector_store %arg5[%c0_21, %c0_22], %26 {strides = array<i32>} : memref<2x512xf32, #tpu.memory_space<vmem>>, vector<2x512xf32>,
    } else {
    }
    return
  }
  func.func @transform_0(%arg0: i32, %arg1: i32) -> (i32, i32) {
    %c0_i32 = arith.constant 0 : i32
    return %arg0, %arg1 : i32, i32
  }
  func.func @transform_1(%arg0: i32, %arg1: i32) -> (i32, i32) {
    %c0_i32 = arith.constant 0 : i32
    %c0_i32_0 = arith.constant 0 : i32
    return %arg1, %c0_i32 : i32, i32
  }
  func.func @transform_2(%arg0: i32, %arg1: i32) -> (i32, i32) {
    %c0_i32 = arith.constant 0 : i32
    %c0_i32_0 = arith.constant 0 : i32
    return %arg0, %c0_i32 : i32, i32
  }
  func.func @transform_3(%arg0: i32, %arg1: i32) -> (i32, i32) {
    %c0_i32 = arith.constant 0 : i32
    %c0_i32_0 = arith.constant 0 : i32
    %c0_i32_1 = arith.constant 0 : i32
    return %c0_i32, %c0_i32_0 : i32, i32
  }
}

module attributes {stable_mosaic.version = 11 : i64} {
  func.func @_bn_kernel(%arg0: i32, %arg1: memref<8x512xf32, #tpu.memory_space<vmem>>, %arg2: memref<2x512xf32, #tpu.memory_space<vmem>>, %arg3: memref<1x512xf32, #tpu.memory_space<vmem>>, %arg4: memref<1x512xf32, #tpu.memory_space<vmem>>, %arg5: memref<8x512xbf16, #tpu.memory_space<vmem>>) attributes {dimension_semantics = [#tpu.dimension_semantics<parallel>], iteration_bounds = array<i64: 1>, scalar_prefetch = 0 : i64, scratch_operands = 0 : i64, tpu.core_type = #tpu.core_type<tc>, window_params = [{transform_indices = @transform_0, window_bounds = array<i64: 8, 512>}, {pipeline_mode = #tpu.pipeline_mode<synchronous>, transform_indices = @transform_1, window_bounds = array<i64: 2, 512>}, {pipeline_mode = #tpu.pipeline_mode<synchronous>, transform_indices = @transform_2, window_bounds = array<i64: 1, 512>}, {pipeline_mode = #tpu.pipeline_mode<synchronous>, transform_indices = @transform_3, window_bounds = array<i64: 1, 512>}, {transform_indices = @transform_4, window_bounds = array<i64: 8, 512>}]} {
    %c0 = arith.constant 0 : index
    %c0_0 = arith.constant 0 : index
    %0 = vector.load %arg1[%c0, %c0_0] : memref<8x512xf32, #tpu.memory_space<vmem>>, vector<8x512xf32>
    %c0_1 = arith.constant 0 : index
    %c0_2 = arith.constant 0 : index
    %1 = vector.load %arg2[%c0_1, %c0_2] : memref<2x512xf32, #tpu.memory_space<vmem>>, vector<1x512xf32>
    %cst = arith.constant 5.000000e-01 : f32
    %2 = vector.broadcast %cst : f32 to vector<1x512xf32>
    %3 = arith.mulf %1, %2 : vector<1x512xf32>
    %c1 = arith.constant 1 : index
    %c0_3 = arith.constant 0 : index
    %4 = vector.load %arg2[%c1, %c0_3] : memref<2x512xf32, #tpu.memory_space<vmem>>, vector<1x512xf32>
    %cst_4 = arith.constant 5.000000e-01 : f32
    %5 = vector.broadcast %cst_4 : f32 to vector<1x512xf32>
    %6 = arith.mulf %4, %5 : vector<1x512xf32>
    %7 = arith.mulf %3, %3 : vector<1x512xf32>
    %8 = arith.subf %6, %7 : vector<1x512xf32>
    %cst_5 = arith.constant 0.000000e+00 : f32
    %9 = vector.broadcast %cst_5 : f32 to vector<1x512xf32>
    %10 = arith.maximumf %8, %9 : vector<1x512xf32>
    %11 = vector.broadcast %3 : vector<1x512xf32> to vector<8x512xf32>
    %12 = arith.subf %0, %11 : vector<8x512xf32>
    %cst_6 = arith.constant 9.99999974E-6 : f32
    %13 = vector.broadcast %cst_6 : f32 to vector<1x512xf32>
    %14 = arith.addf %10, %13 : vector<1x512xf32>
    %15 = math.rsqrt %14 : vector<1x512xf32>
    %16 = vector.broadcast %15 : vector<1x512xf32> to vector<8x512xf32>
    %17 = arith.mulf %12, %16 : vector<8x512xf32>
    %c0_7 = arith.constant 0 : index
    %c0_8 = arith.constant 0 : index
    %18 = vector.load %arg3[%c0_7, %c0_8] : memref<1x512xf32, #tpu.memory_space<vmem>>, vector<1x512xf32>
    %19 = vector.broadcast %18 : vector<1x512xf32> to vector<8x512xf32>
    %20 = arith.mulf %17, %19 : vector<8x512xf32>
    %c0_9 = arith.constant 0 : index
    %c0_10 = arith.constant 0 : index
    %21 = vector.load %arg4[%c0_9, %c0_10] : memref<1x512xf32, #tpu.memory_space<vmem>>, vector<1x512xf32>
    %22 = vector.broadcast %21 : vector<1x512xf32> to vector<8x512xf32>
    %23 = arith.addf %20, %22 : vector<8x512xf32>
    %cst_11 = arith.constant 0.000000e+00 : f32
    %24 = vector.broadcast %cst_11 : f32 to vector<8x512xf32>
    %25 = arith.maximumf %23, %24 : vector<8x512xf32>
    %26 = arith.truncf %25 : vector<8x512xf32> to vector<8x512xbf16>
    %c0_12 = arith.constant 0 : index
    %c0_13 = arith.constant 0 : index
    %27 = vector.load %arg5[%c0_12, %c0_13] : memref<8x512xbf16, #tpu.memory_space<vmem>>, vector<8x512xbf16>
    tpu.vector_store %arg5[%c0_12, %c0_13], %26 {strides = array<i32>} : memref<8x512xbf16, #tpu.memory_space<vmem>>, vector<8x512xbf16>,
    return
  }
  func.func @transform_0(%arg0: i32) -> (i32, i32) {
    %c0_i32 = arith.constant 0 : i32
    %c0_i32_0 = arith.constant 0 : i32
    return %arg0, %c0_i32 : i32, i32
  }
  func.func @transform_1(%arg0: i32) -> (i32, i32) {
    %c0_i32 = arith.constant 0 : i32
    %c0_i32_0 = arith.constant 0 : i32
    %c0_i32_1 = arith.constant 0 : i32
    return %c0_i32, %c0_i32_0 : i32, i32
  }
  func.func @transform_2(%arg0: i32) -> (i32, i32) {
    %c0_i32 = arith.constant 0 : i32
    %c0_i32_0 = arith.constant 0 : i32
    %c0_i32_1 = arith.constant 0 : i32
    return %c0_i32, %c0_i32_0 : i32, i32
  }
  func.func @transform_3(%arg0: i32) -> (i32, i32) {
    %c0_i32 = arith.constant 0 : i32
    %c0_i32_0 = arith.constant 0 : i32
    %c0_i32_1 = arith.constant 0 : i32
    return %c0_i32, %c0_i32_0 : i32, i32
  }
  func.func @transform_4(%arg0: i32) -> (i32, i32) {
    %c0_i32 = arith.constant 0 : i32
    %c0_i32_0 = arith.constant 0 : i32
    return %arg0, %c0_i32 : i32, i32
  }
}

module attributes {stable_mosaic.version = 11 : i64} {
  func.func @_matmul_stats_kernel(%arg0: i32, %arg1: i32, %arg2: memref<8x256xbf16, #tpu.memory_space<vmem>>, %arg3: memref<256x512xbf16, #tpu.memory_space<vmem>>, %arg4: memref<8x512xf32, #tpu.memory_space<vmem>>, %arg5: memref<2x512xf32, #tpu.memory_space<vmem>>, %arg6: memref<8x512xf32, #tpu.memory_space<vmem>>) attributes {dimension_semantics = [#tpu.dimension_semantics<arbitrary>, #tpu.dimension_semantics<arbitrary>], iteration_bounds = array<i64: 1, 9>, scalar_prefetch = 0 : i64, scratch_operands = 1 : i64, tpu.core_type = #tpu.core_type<tc>, window_params = [{transform_indices = @transform_0, window_bounds = array<i64: 8, 256>}, {transform_indices = @transform_1, window_bounds = array<i64: 256, 512>}, {transform_indices = @transform_2, window_bounds = array<i64: 8, 512>}, {pipeline_mode = #tpu.pipeline_mode<synchronous>, transform_indices = @transform_3, window_bounds = array<i64: 2, 512>}]} {
    %c0_i32 = arith.constant 0 : i32
    %0 = arith.cmpi eq, %arg0, %c0_i32 : i32
    %c0_i32_0 = arith.constant 0 : i32
    %1 = arith.cmpi eq, %arg1, %c0_i32_0 : i32
    %2 = arith.andi %0, %1 : i1
    %3 = arith.extui %2 : i1 to i32
    %c0_i32_1 = arith.constant 0 : i32
    %4 = arith.cmpi ne, %3, %c0_i32_1 : i32
    scf.if %4 {
      %cst_12 = arith.constant 0.000000e+00 : f32
      %17 = vector.broadcast %cst_12 : f32 to vector<2x512xf32>
      %c0_13 = arith.constant 0 : index
      %c0_14 = arith.constant 0 : index
      %18 = vector.load %arg5[%c0_13, %c0_14] : memref<2x512xf32, #tpu.memory_space<vmem>>, vector<2x512xf32>
      tpu.vector_store %arg5[%c0_13, %c0_14], %17 {strides = array<i32>} : memref<2x512xf32, #tpu.memory_space<vmem>>, vector<2x512xf32>,
    } else {
    }
    %c0_i32_2 = arith.constant 0 : i32
    %5 = arith.cmpi eq, %arg1, %c0_i32_2 : i32
    %6 = arith.extui %5 : i1 to i32
    %c0_i32_3 = arith.constant 0 : i32
    %7 = arith.cmpi ne, %6, %c0_i32_3 : i32
    scf.if %7 {
      %cst_12 = arith.constant 0.000000e+00 : f32
      %17 = vector.broadcast %cst_12 : f32 to vector<8x512xf32>
      %c0_13 = arith.constant 0 : index
      %c0_14 = arith.constant 0 : index
      %18 = vector.load %arg6[%c0_13, %c0_14] : memref<8x512xf32, #tpu.memory_space<vmem>>, vector<8x512xf32>
      tpu.vector_store %arg6[%c0_13, %c0_14], %17 {strides = array<i32>} : memref<8x512xf32, #tpu.memory_space<vmem>>, vector<8x512xf32>,
    } else {
    }
    %c0 = arith.constant 0 : index
    %c0_4 = arith.constant 0 : index
    %8 = vector.load %arg6[%c0, %c0_4] : memref<8x512xf32, #tpu.memory_space<vmem>>, vector<8x512xf32>
    %c0_5 = arith.constant 0 : index
    %c0_6 = arith.constant 0 : index
    %9 = vector.load %arg2[%c0_5, %c0_6] : memref<8x256xbf16, #tpu.memory_space<vmem>>, vector<8x256xbf16>
    %c0_7 = arith.constant 0 : index
    %c0_8 = arith.constant 0 : index
    %10 = vector.load %arg3[%c0_7, %c0_8] : memref<256x512xbf16, #tpu.memory_space<vmem>>, vector<256x512xbf16>
    %cst = arith.constant dense<0.000000e+00> : vector<8x512xf32>
    %11 = tpu.matmul %9, %10, %cst {dimension_numbers = #tpu.dot_dimension_numbers<[1], [0], [0], [1], [0, 0, 1, 1], [], []>} : vector<8x256xbf16>, vector<256x512xbf16>, vector<8x512xf32> -> vector<8x512xf32>
    %12 = arith.addf %8, %11 : vector<8x512xf32>
    %c0_9 = arith.constant 0 : index
    %c0_10 = arith.constant 0 : index
    %13 = vector.load %arg6[%c0_9, %c0_10] : memref<8x512xf32, #tpu.memory_space<vmem>>, vector<8x512xf32>
    tpu.vector_store %arg6[%c0_9, %c0_10], %12 {strides = array<i32>} : memref<8x512xf32, #tpu.memory_space<vmem>>, vector<8x512xf32>,
    %c8_i32 = arith.constant 8 : i32
    %14 = arith.cmpi eq, %arg1, %c8_i32 : i32
    %15 = arith.extui %14 : i1 to i32
    %c0_i32_11 = arith.constant 0 : i32
    %16 = arith.cmpi ne, %15, %c0_i32_11 : i32
    scf.if %16 {
      %c0_12 = arith.constant 0 : index
      %c0_13 = arith.constant 0 : index
      %17 = vector.load %arg6[%c0_12, %c0_13] : memref<8x512xf32, #tpu.memory_space<vmem>>, vector<8x512xf32>
      %c0_14 = arith.constant 0 : index
      %c0_15 = arith.constant 0 : index
      %18 = vector.load %arg4[%c0_14, %c0_15] : memref<8x512xf32, #tpu.memory_space<vmem>>, vector<8x512xf32>
      tpu.vector_store %arg4[%c0_14, %c0_15], %17 {strides = array<i32>} : memref<8x512xf32, #tpu.memory_space<vmem>>, vector<8x512xf32>,
      %c0_16 = arith.constant 0 : index
      %c0_17 = arith.constant 0 : index
      %19 = vector.load %arg5[%c0_16, %c0_17] : memref<2x512xf32, #tpu.memory_space<vmem>>, vector<2x512xf32>
      %cst_18 = arith.constant dense<0.000000e+00> : vector<512xf32>
      %20 = vector.multi_reduction <add>, %17, %cst_18 [0] : vector<8x512xf32> to vector<512xf32>
      %21 = vector.shape_cast %20 : vector<512xf32> to vector<1x512xf32>
      %22 = arith.mulf %17, %17 : vector<8x512xf32>
      %cst_19 = arith.constant dense<0.000000e+00> : vector<512xf32>
      %23 = vector.multi_reduction <add>, %22, %cst_19 [0] : vector<8x512xf32> to vector<512xf32>
      %24 = vector.shape_cast %23 : vector<512xf32> to vector<1x512xf32>
      %25 = tpu.concatenate %21, %24 in 0 : vector<1x512xf32>, vector<1x512xf32> -> vector<2x512xf32>
      %26 = arith.addf %19, %25 : vector<2x512xf32>
      %c0_20 = arith.constant 0 : index
      %c0_21 = arith.constant 0 : index
      %27 = vector.load %arg5[%c0_20, %c0_21] : memref<2x512xf32, #tpu.memory_space<vmem>>, vector<2x512xf32>
      tpu.vector_store %arg5[%c0_20, %c0_21], %26 {strides = array<i32>} : memref<2x512xf32, #tpu.memory_space<vmem>>, vector<2x512xf32>,
    } else {
    }
    return
  }
  func.func @transform_0(%arg0: i32, %arg1: i32) -> (i32, i32) {
    %c0_i32 = arith.constant 0 : i32
    return %arg0, %arg1 : i32, i32
  }
  func.func @transform_1(%arg0: i32, %arg1: i32) -> (i32, i32) {
    %c0_i32 = arith.constant 0 : i32
    %c0_i32_0 = arith.constant 0 : i32
    return %arg1, %c0_i32 : i32, i32
  }
  func.func @transform_2(%arg0: i32, %arg1: i32) -> (i32, i32) {
    %c0_i32 = arith.constant 0 : i32
    %c0_i32_0 = arith.constant 0 : i32
    return %arg0, %c0_i32 : i32, i32
  }
  func.func @transform_3(%arg0: i32, %arg1: i32) -> (i32, i32) {
    %c0_i32 = arith.constant 0 : i32
    %c0_i32_0 = arith.constant 0 : i32
    %c0_i32_1 = arith.constant 0 : i32
    return %c0_i32, %c0_i32_0 : i32, i32
  }
}

module attributes {stable_mosaic.version = 11 : i64} {
  func.func @_matmul_stats_kernel(%arg0: i32, %arg1: i32, %arg2: memref<8x512xbf16, #tpu.memory_space<vmem>>, %arg3: memref<512x512xbf16, #tpu.memory_space<vmem>>, %arg4: memref<8x512xf32, #tpu.memory_space<vmem>>, %arg5: memref<2x512xf32, #tpu.memory_space<vmem>>, %arg6: memref<8x512xf32, #tpu.memory_space<vmem>>) attributes {dimension_semantics = [#tpu.dimension_semantics<arbitrary>, #tpu.dimension_semantics<arbitrary>], iteration_bounds = array<i64: 1, 9>, scalar_prefetch = 0 : i64, scratch_operands = 1 : i64, tpu.core_type = #tpu.core_type<tc>, window_params = [{transform_indices = @transform_0, window_bounds = array<i64: 8, 512>}, {transform_indices = @transform_1, window_bounds = array<i64: 512, 512>}, {transform_indices = @transform_2, window_bounds = array<i64: 8, 512>}, {pipeline_mode = #tpu.pipeline_mode<synchronous>, transform_indices = @transform_3, window_bounds = array<i64: 2, 512>}]} {
    %c0_i32 = arith.constant 0 : i32
    %0 = arith.cmpi eq, %arg0, %c0_i32 : i32
    %c0_i32_0 = arith.constant 0 : i32
    %1 = arith.cmpi eq, %arg1, %c0_i32_0 : i32
    %2 = arith.andi %0, %1 : i1
    %3 = arith.extui %2 : i1 to i32
    %c0_i32_1 = arith.constant 0 : i32
    %4 = arith.cmpi ne, %3, %c0_i32_1 : i32
    scf.if %4 {
      %cst_12 = arith.constant 0.000000e+00 : f32
      %17 = vector.broadcast %cst_12 : f32 to vector<2x512xf32>
      %c0_13 = arith.constant 0 : index
      %c0_14 = arith.constant 0 : index
      %18 = vector.load %arg5[%c0_13, %c0_14] : memref<2x512xf32, #tpu.memory_space<vmem>>, vector<2x512xf32>
      tpu.vector_store %arg5[%c0_13, %c0_14], %17 {strides = array<i32>} : memref<2x512xf32, #tpu.memory_space<vmem>>, vector<2x512xf32>,
    } else {
    }
    %c0_i32_2 = arith.constant 0 : i32
    %5 = arith.cmpi eq, %arg1, %c0_i32_2 : i32
    %6 = arith.extui %5 : i1 to i32
    %c0_i32_3 = arith.constant 0 : i32
    %7 = arith.cmpi ne, %6, %c0_i32_3 : i32
    scf.if %7 {
      %cst_12 = arith.constant 0.000000e+00 : f32
      %17 = vector.broadcast %cst_12 : f32 to vector<8x512xf32>
      %c0_13 = arith.constant 0 : index
      %c0_14 = arith.constant 0 : index
      %18 = vector.load %arg6[%c0_13, %c0_14] : memref<8x512xf32, #tpu.memory_space<vmem>>, vector<8x512xf32>
      tpu.vector_store %arg6[%c0_13, %c0_14], %17 {strides = array<i32>} : memref<8x512xf32, #tpu.memory_space<vmem>>, vector<8x512xf32>,
    } else {
    }
    %c0 = arith.constant 0 : index
    %c0_4 = arith.constant 0 : index
    %8 = vector.load %arg6[%c0, %c0_4] : memref<8x512xf32, #tpu.memory_space<vmem>>, vector<8x512xf32>
    %c0_5 = arith.constant 0 : index
    %c0_6 = arith.constant 0 : index
    %9 = vector.load %arg2[%c0_5, %c0_6] : memref<8x512xbf16, #tpu.memory_space<vmem>>, vector<8x512xbf16>
    %c0_7 = arith.constant 0 : index
    %c0_8 = arith.constant 0 : index
    %10 = vector.load %arg3[%c0_7, %c0_8] : memref<512x512xbf16, #tpu.memory_space<vmem>>, vector<512x512xbf16>
    %cst = arith.constant dense<0.000000e+00> : vector<8x512xf32>
    %11 = tpu.matmul %9, %10, %cst {dimension_numbers = #tpu.dot_dimension_numbers<[1], [0], [0], [1], [0, 0, 1, 1], [], []>} : vector<8x512xbf16>, vector<512x512xbf16>, vector<8x512xf32> -> vector<8x512xf32>
    %12 = arith.addf %8, %11 : vector<8x512xf32>
    %c0_9 = arith.constant 0 : index
    %c0_10 = arith.constant 0 : index
    %13 = vector.load %arg6[%c0_9, %c0_10] : memref<8x512xf32, #tpu.memory_space<vmem>>, vector<8x512xf32>
    tpu.vector_store %arg6[%c0_9, %c0_10], %12 {strides = array<i32>} : memref<8x512xf32, #tpu.memory_space<vmem>>, vector<8x512xf32>,
    %c8_i32 = arith.constant 8 : i32
    %14 = arith.cmpi eq, %arg1, %c8_i32 : i32
    %15 = arith.extui %14 : i1 to i32
    %c0_i32_11 = arith.constant 0 : i32
    %16 = arith.cmpi ne, %15, %c0_i32_11 : i32
    scf.if %16 {
      %c0_12 = arith.constant 0 : index
      %c0_13 = arith.constant 0 : index
      %17 = vector.load %arg6[%c0_12, %c0_13] : memref<8x512xf32, #tpu.memory_space<vmem>>, vector<8x512xf32>
      %c0_14 = arith.constant 0 : index
      %c0_15 = arith.constant 0 : index
      %18 = vector.load %arg4[%c0_14, %c0_15] : memref<8x512xf32, #tpu.memory_space<vmem>>, vector<8x512xf32>
      tpu.vector_store %arg4[%c0_14, %c0_15], %17 {strides = array<i32>} : memref<8x512xf32, #tpu.memory_space<vmem>>, vector<8x512xf32>,
      %c0_16 = arith.constant 0 : index
      %c0_17 = arith.constant 0 : index
      %19 = vector.load %arg5[%c0_16, %c0_17] : memref<2x512xf32, #tpu.memory_space<vmem>>, vector<2x512xf32>
      %cst_18 = arith.constant dense<0.000000e+00> : vector<512xf32>
      %20 = vector.multi_reduction <add>, %17, %cst_18 [0] : vector<8x512xf32> to vector<512xf32>
      %21 = vector.shape_cast %20 : vector<512xf32> to vector<1x512xf32>
      %22 = arith.mulf %17, %17 : vector<8x512xf32>
      %cst_19 = arith.constant dense<0.000000e+00> : vector<512xf32>
      %23 = vector.multi_reduction <add>, %22, %cst_19 [0] : vector<8x512xf32> to vector<512xf32>
      %24 = vector.shape_cast %23 : vector<512xf32> to vector<1x512xf32>
      %25 = tpu.concatenate %21, %24 in 0 : vector<1x512xf32>, vector<1x512xf32> -> vector<2x512xf32>
      %26 = arith.addf %19, %25 : vector<2x512xf32>
      %c0_20 = arith.constant 0 : index
      %c0_21 = arith.constant 0 : index
      %27 = vector.load %arg5[%c0_20, %c0_21] : memref<2x512xf32, #tpu.memory_space<vmem>>, vector<2x512xf32>
      tpu.vector_store %arg5[%c0_20, %c0_21], %26 {strides = array<i32>} : memref<2x512xf32, #tpu.memory_space<vmem>>, vector<2x512xf32>,
    } else {
    }
    return
  }
  func.func @transform_0(%arg0: i32, %arg1: i32) -> (i32, i32) {
    %c0_i32 = arith.constant 0 : i32
    return %arg0, %arg1 : i32, i32
  }
  func.func @transform_1(%arg0: i32, %arg1: i32) -> (i32, i32) {
    %c0_i32 = arith.constant 0 : i32
    %c0_i32_0 = arith.constant 0 : i32
    return %arg1, %c0_i32 : i32, i32
  }
  func.func @transform_2(%arg0: i32, %arg1: i32) -> (i32, i32) {
    %c0_i32 = arith.constant 0 : i32
    %c0_i32_0 = arith.constant 0 : i32
    return %arg0, %c0_i32 : i32, i32
  }
  func.func @transform_3(%arg0: i32, %arg1: i32) -> (i32, i32) {
    %c0_i32 = arith.constant 0 : i32
    %c0_i32_0 = arith.constant 0 : i32
    %c0_i32_1 = arith.constant 0 : i32
    return %c0_i32, %c0_i32_0 : i32, i32
  }
}

module attributes {stable_mosaic.version = 11 : i64} {
  func.func @_bn_add_relu_kernel(%arg0: i32, %arg1: memref<8x512xf32, #tpu.memory_space<vmem>>, %arg2: memref<8x512xbf16, #tpu.memory_space<vmem>>, %arg3: memref<2x512xf32, #tpu.memory_space<vmem>>, %arg4: memref<1x512xf32, #tpu.memory_space<vmem>>, %arg5: memref<1x512xf32, #tpu.memory_space<vmem>>, %arg6: memref<8x512xbf16, #tpu.memory_space<vmem>>) attributes {dimension_semantics = [#tpu.dimension_semantics<parallel>], iteration_bounds = array<i64: 1>, scalar_prefetch = 0 : i64, scratch_operands = 0 : i64, tpu.core_type = #tpu.core_type<tc>, window_params = [{transform_indices = @transform_0, window_bounds = array<i64: 8, 512>}, {transform_indices = @transform_1, window_bounds = array<i64: 8, 512>}, {pipeline_mode = #tpu.pipeline_mode<synchronous>, transform_indices = @transform_2, window_bounds = array<i64: 2, 512>}, {pipeline_mode = #tpu.pipeline_mode<synchronous>, transform_indices = @transform_3, window_bounds = array<i64: 1, 512>}, {pipeline_mode = #tpu.pipeline_mode<synchronous>, transform_indices = @transform_4, window_bounds = array<i64: 1, 512>}, {transform_indices = @transform_5, window_bounds = array<i64: 8, 512>}]} {
    %c0 = arith.constant 0 : index
    %c0_0 = arith.constant 0 : index
    %0 = vector.load %arg1[%c0, %c0_0] : memref<8x512xf32, #tpu.memory_space<vmem>>, vector<8x512xf32>
    %c0_1 = arith.constant 0 : index
    %c0_2 = arith.constant 0 : index
    %1 = vector.load %arg3[%c0_1, %c0_2] : memref<2x512xf32, #tpu.memory_space<vmem>>, vector<1x512xf32>
    %cst = arith.constant 5.000000e-01 : f32
    %2 = vector.broadcast %cst : f32 to vector<1x512xf32>
    %3 = arith.mulf %1, %2 : vector<1x512xf32>
    %c1 = arith.constant 1 : index
    %c0_3 = arith.constant 0 : index
    %4 = vector.load %arg3[%c1, %c0_3] : memref<2x512xf32, #tpu.memory_space<vmem>>, vector<1x512xf32>
    %cst_4 = arith.constant 5.000000e-01 : f32
    %5 = vector.broadcast %cst_4 : f32 to vector<1x512xf32>
    %6 = arith.mulf %4, %5 : vector<1x512xf32>
    %7 = arith.mulf %3, %3 : vector<1x512xf32>
    %8 = arith.subf %6, %7 : vector<1x512xf32>
    %cst_5 = arith.constant 0.000000e+00 : f32
    %9 = vector.broadcast %cst_5 : f32 to vector<1x512xf32>
    %10 = arith.maximumf %8, %9 : vector<1x512xf32>
    %11 = vector.broadcast %3 : vector<1x512xf32> to vector<8x512xf32>
    %12 = arith.subf %0, %11 : vector<8x512xf32>
    %cst_6 = arith.constant 9.99999974E-6 : f32
    %13 = vector.broadcast %cst_6 : f32 to vector<1x512xf32>
    %14 = arith.addf %10, %13 : vector<1x512xf32>
    %15 = math.rsqrt %14 : vector<1x512xf32>
    %16 = vector.broadcast %15 : vector<1x512xf32> to vector<8x512xf32>
    %17 = arith.mulf %12, %16 : vector<8x512xf32>
    %c0_7 = arith.constant 0 : index
    %c0_8 = arith.constant 0 : index
    %18 = vector.load %arg4[%c0_7, %c0_8] : memref<1x512xf32, #tpu.memory_space<vmem>>, vector<1x512xf32>
    %19 = vector.broadcast %18 : vector<1x512xf32> to vector<8x512xf32>
    %20 = arith.mulf %17, %19 : vector<8x512xf32>
    %c0_9 = arith.constant 0 : index
    %c0_10 = arith.constant 0 : index
    %21 = vector.load %arg5[%c0_9, %c0_10] : memref<1x512xf32, #tpu.memory_space<vmem>>, vector<1x512xf32>
    %22 = vector.broadcast %21 : vector<1x512xf32> to vector<8x512xf32>
    %23 = arith.addf %20, %22 : vector<8x512xf32>
    %c0_11 = arith.constant 0 : index
    %c0_12 = arith.constant 0 : index
    %24 = vector.load %arg2[%c0_11, %c0_12] : memref<8x512xbf16, #tpu.memory_space<vmem>>, vector<8x512xbf16>
    %25 = arith.extf %24 : vector<8x512xbf16> to vector<8x512xf32>
    %26 = arith.addf %23, %25 : vector<8x512xf32>
    %cst_13 = arith.constant 0.000000e+00 : f32
    %27 = vector.broadcast %cst_13 : f32 to vector<8x512xf32>
    %28 = arith.maximumf %26, %27 : vector<8x512xf32>
    %29 = arith.truncf %28 : vector<8x512xf32> to vector<8x512xbf16>
    %c0_14 = arith.constant 0 : index
    %c0_15 = arith.constant 0 : index
    %30 = vector.load %arg6[%c0_14, %c0_15] : memref<8x512xbf16, #tpu.memory_space<vmem>>, vector<8x512xbf16>
    tpu.vector_store %arg6[%c0_14, %c0_15], %29 {strides = array<i32>} : memref<8x512xbf16, #tpu.memory_space<vmem>>, vector<8x512xbf16>,
    return
  }
  func.func @transform_0(%arg0: i32) -> (i32, i32) {
    %c0_i32 = arith.constant 0 : i32
    %c0_i32_0 = arith.constant 0 : i32
    return %arg0, %c0_i32 : i32, i32
  }
  func.func @transform_1(%arg0: i32) -> (i32, i32) {
    %c0_i32 = arith.constant 0 : i32
    %c0_i32_0 = arith.constant 0 : i32
    return %arg0, %c0_i32 : i32, i32
  }
  func.func @transform_2(%arg0: i32) -> (i32, i32) {
    %c0_i32 = arith.constant 0 : i32
    %c0_i32_0 = arith.constant 0 : i32
    %c0_i32_1 = arith.constant 0 : i32
    return %c0_i32, %c0_i32_0 : i32, i32
  }
  func.func @transform_3(%arg0: i32) -> (i32, i32) {
    %c0_i32 = arith.constant 0 : i32
    %c0_i32_0 = arith.constant 0 : i32
    %c0_i32_1 = arith.constant 0 : i32
    return %c0_i32, %c0_i32_0 : i32, i32
  }
  func.func @transform_4(%arg0: i32) -> (i32, i32) {
    %c0_i32 = arith.constant 0 : i32
    %c0_i32_0 = arith.constant 0 : i32
    %c0_i32_1 = arith.constant 0 : i32
    return %c0_i32, %c0_i32_0 : i32, i32
  }
  func.func @transform_5(%arg0: i32) -> (i32, i32) {
    %c0_i32 = arith.constant 0 : i32
    %c0_i32_0 = arith.constant 0 : i32
    return %arg0, %c0_i32 : i32, i32
  }
}

module attributes {stable_mosaic.version = 11 : i64} {
  func.func @_mean_kernel(%arg0: i32, %arg1: memref<2x1x512xbf16, #tpu.memory_space<vmem>>, %arg2: memref<2x512xf32, #tpu.memory_space<vmem>>) attributes {dimension_semantics = [#tpu.dimension_semantics<arbitrary>], iteration_bounds = array<i64: 1>, scalar_prefetch = 0 : i64, scratch_operands = 0 : i64, tpu.core_type = #tpu.core_type<tc>, window_params = [{pipeline_mode = #tpu.pipeline_mode<synchronous>, transform_indices = @transform_0, window_bounds = array<i64: 2, 1, 512>}, {pipeline_mode = #tpu.pipeline_mode<synchronous>, transform_indices = @transform_1, window_bounds = array<i64: 2, 512>}]} {
    %c0 = arith.constant 0 : index
    %c0_0 = arith.constant 0 : index
    %c0_1 = arith.constant 0 : index
    %0 = vector.load %arg1[%c0, %c0_0, %c0_1] : memref<2x1x512xbf16, #tpu.memory_space<vmem>>, vector<2x1x512xbf16>
    %1 = arith.extf %0 : vector<2x1x512xbf16> to vector<2x1x512xf32>
    %cst = arith.constant dense<0.000000e+00> : vector<2x512xf32>
    %2 = vector.multi_reduction <add>, %1, %cst [1] : vector<2x1x512xf32> to vector<2x512xf32>
    %cst_2 = arith.constant 1.000000e+00 : f32
    %3 = vector.broadcast %cst_2 : f32 to vector<2x512xf32>
    %4 = arith.mulf %2, %3 : vector<2x512xf32>
    %c0_3 = arith.constant 0 : index
    %c0_4 = arith.constant 0 : index
    %5 = vector.load %arg2[%c0_3, %c0_4] : memref<2x512xf32, #tpu.memory_space<vmem>>, vector<2x512xf32>
    tpu.vector_store %arg2[%c0_3, %c0_4], %4 {strides = array<i32>} : memref<2x512xf32, #tpu.memory_space<vmem>>, vector<2x512xf32>,
    return
  }
  func.func @transform_0(%arg0: i32) -> (i32, i32, i32) {
    %c0_i32 = arith.constant 0 : i32
    %c0_i32_0 = arith.constant 0 : i32
    %c0_i32_1 = arith.constant 0 : i32
    %c0_i32_2 = arith.constant 0 : i32
    return %c0_i32, %c0_i32_0, %c0_i32_1 : i32, i32, i32
  }
  func.func @transform_1(%arg0: i32) -> (i32, i32) {
    %c0_i32 = arith.constant 0 : i32
    %c0_i32_0 = arith.constant 0 : i32
    %c0_i32_1 = arith.constant 0 : i32
    return %c0_i32, %c0_i32_0 : i32, i32
  }
}

</mosaic_0001>

<llo_original>
// kernel: resnet34_forward.75
$region0: #{resnet34_forward.75}
  #allocation0 [shape = 'u32[]', space=smem, size = 0x4, offset = 0x4, fixed_abs, tag = 'smem constant byte address 0x4 - core index']
  #allocation1 [shape = 'u32[144,128]{1,0:T(1,128)}', space=vmem, size = 0x12000, scoped, tag = 'internal scratch']
  %s0 = inlined_call_operand.vmem [shape: f32[128,64], index: 0, kind: input, shape index: {}]
  %s1 = inlined_call_operand.vmem [shape: f32[2,64], index: 1, kind: input, shape index: {}]
  %s2 = inlined_call_operand.hbm [shape: f32[1,64], index: 2, kind: input, shape index: {}]
  %s3 = inlined_call_operand.hbm [shape: f32[1,64], index: 3, kind: input, shape index: {}]
  %s4 = inlined_call_operand.vmem [shape: bf16[128,64], index: 4, kind: output, shape index: {}]
  %s5 = sld [smem:[#allocation0]]
  $region34: #{resnet34_forward.75} parent=0
    _
  %s7 = ssub.s32 1, %s5
  %s8 = scalar_select 0, %s7, %s5
  $region1: #{resnet34_forward.75} parent=0
    #allocation2 [shape = 'u8[512]{0}', space=vmem, size = 0x400, scoped, tag = 'input window, operand 2, single buffered']
    #allocation3 [shape = 's32[1]{0}', space=sflag, size = 0x4, scoped, tag = 'scoped memory for resnet34_forward.75']
    #allocation4 [shape = 'u8[512]{0}', space=vmem, size = 0x400, scoped, tag = 'input window, operand 3, single buffered']
    #allocation5 [shape = 's32[1]{0}', space=sflag, size = 0x4, scoped, tag = 'scoped memory for resnet34_forward.75']
    %9 = vsyncpa [#allocation3], 0
    %10 = vsyncpa [#allocation5], 0
    // Predicated region
    $region2: #{resnet34_forward.75} parent=1 // pred_check
      _
    $region3: #{resnet34_forward.75} parent=1 // pred_check_branch
      %12 = sbr.rel (0) target = $region5
    $region4: #{resnet34_forward.75} parent=1 // pred_region
      _
    $region5: #{resnet34_forward.75} parent=1 // pred_fallthru
      _
    // Predicated region
    $region6: #{resnet34_forward.75} parent=1 // pred_check
      _
    $region7: #{resnet34_forward.75} parent=1 // pred_check_branch
      %14 = sbr.rel (0) target = $region9
    $region8: #{resnet34_forward.75} parent=1 // pred_region
      _
    $region9: #{resnet34_forward.75} parent=1 // pred_fallthru
      _
    // Predicated region
    $region10: #{resnet34_forward.75} parent=1 // pred_check
      _
    $region11: #{resnet34_forward.75} parent=1 // pred_check_branch
      %16 = sbr.rel (0) target = $region13
    $region12: #{resnet34_forward.75} parent=1 // pred_region
      %s18 = ssub.s32 16, 16
      %19 = vsyncadd [#allocation3], %s18
      %s21 = sshll.u32 [#allocation2], 4
      %s22 = int_to_ptr.vmem [resolvable:$true] %s21
      %24 = dma.hbm_to_vmem [thread:$0]  %s2, 16, %s22, [#allocation3]
    $region13: #{resnet34_forward.75} parent=1 // pred_fallthru
      _
    // Predicated region
    $region14: #{resnet34_forward.75} parent=1 // pred_check
      _
    $region15: #{resnet34_forward.75} parent=1 // pred_check_branch
      %26 = sbr.rel (0) target = $region17
    $region16: #{resnet34_forward.75} parent=1 // pred_region
      %s28 = ssub.s32 16, 16
      %29 = vsyncadd [#allocation5], %s28
      %s31 = sshll.u32 [#allocation4], 4
      %s32 = int_to_ptr.vmem [resolvable:$true] %s31
      %34 = dma.hbm_to_vmem [thread:$0]  %s3, 16, %s32, [#allocation5]
    $region17: #{resnet34_forward.75} parent=1 // pred_fallthru
      _
    // Predicated region
    $region18: #{resnet34_forward.75} parent=1 // pred_check
      _
    $region19: #{resnet34_forward.75} parent=1 // pred_check_branch
      %36 = sbr.rel (0) target = $region21
    $region20: #{resnet34_forward.75} parent=1 // pred_region
      %37 = dma.done [#allocation3], 16
    $region21: #{resnet34_forward.75} parent=1 // pred_fallthru
      _
    // Predicated region
    $region22: #{resnet34_forward.75} parent=1 // pred_check
      _
    $region23: #{resnet34_forward.75} parent=1 // pred_check_branch
      %39 = sbr.rel (0) target = $region25
    $region24: #{resnet34_forward.75} parent=1 // pred_region
      %40 = dma.done [#allocation5], 16
    $region25: #{resnet34_forward.75} parent=1 // pred_fallthru
      _
    %v41 = vld [vmem:[%s0] sm:$0xff]
    %v42 = vld [vmem:[%s0 + $0x8] sm:$0xff]
    %v43 = vld [vmem:[%s0 + $0x10] sm:$0xff]
    %v44 = vld [vmem:[%s0 + $0x18] sm:$0xff]
    %v45 = vld [vmem:[%s0 + $0x20] sm:$0xff]
    %v46 = vld [vmem:[%s0 + $0x28] sm:$0xff]
    %v47 = vld [vmem:[%s0 + $0x30] sm:$0xff]
    %v48 = vld [vmem:[%s0 + $0x38] sm:$0xff]
    %v49 = vld [vmem:[%s0 + $0x40] sm:$0xff]
    %v50 = vld [vmem:[%s0 + $0x48] sm:$0xff]
    %v51 = vld [vmem:[%s0 + $0x50] sm:$0xff]
    %v52 = vld [vmem:[%s0 + $0x58] sm:$0xff]
    %v53 = vld [vmem:[%s0 + $0x60] sm:$0xff]
    %v54 = vld [vmem:[%s0 + $0x68] sm:$0xff]
    %v55 = vld [vmem:[%s0 + $0x70] sm:$0xff]
    %v56 = vld [vmem:[%s0 + $0x78] sm:$0xff]
    %v57 = vld [vmem:[%s1] sm:$0x1]
    %v58 = vmul.f32 %v57, 0.0078125
    %v59 = vld [vmem:[%s1 + $0x1] sm:$0x1]
    %v60 = vmul.f32 %v59, 0.0078125
    %v61 = vmul.f32 %v58, %v58
    %v62 = vsub.f32 %v60, %v61
    %v63 = vmax.f32 %v62, 0.0
    %v64 = vlaneseq
    %v65 = vshrl.u32 %v64, 7
    %v66 = vsub.s32 0, %v65
    %v67 = vrot.slane %v58, %v66
    %v68 = vsub.f32 %v41, %v67
    %v69 = vsub.f32 %v42, %v67
    %v70 = vsub.f32 %v43, %v67
    %v71 = vsub.f32 %v44, %v67
    %v72 = vsub.f32 %v45, %v67
    %v73 = vsub.f32 %v46, %v67
    %v74 = vsub.f32 %v47, %v67
    %v75 = vsub.f32 %v48, %v67
    %v76 = vsub.f32 %v49, %v67
    %v77 = vsub.f32 %v50, %v67
    %v78 = vsub.f32 %v51, %v67
    %v79 = vsub.f32 %v52, %v67
    %v80 = vsub.f32 %v53, %v67
    %v81 = vsub.f32 %v54, %v67
    %v82 = vsub.f32 %v55, %v67
    %v83 = vsub.f32 %v56, %v67
    %v84 = vadd.f32 %v63, 1e-05
    %v85 = vrsqrt.pop %v84
    %v86 = vlaneseq
    %v87 = vshrl.u32 %v86, 7
    %v88 = vsub.s32 0, %v87
    %v89 = vrot.slane %v85, %v88
    %v90 = vmul.f32 %v68, %v89
    %v91 = vmul.f32 %v69, %v89
    %v92 = vmul.f32 %v70, %v89
    %v93 = vmul.f32 %v71, %v89
    %v94 = vmul.f32 %v72, %v89
    %v95 = vmul.f32 %v73, %v89
    %v96 = vmul.f32 %v74, %v89
    %v97 = vmul.f32 %v75, %v89
    %v98 = vmul.f32 %v76, %v89
    %v99 = vmul.f32 %v77, %v89
    %v100 = vmul.f32 %v78, %v89
    %v101 = vmul.f32 %v79, %v89
    %v102 = vmul.f32 %v80, %v89
    %v103 = vmul.f32 %v81, %v89
    %v104 = vmul.f32 %v82, %v89
    %v105 = vmul.f32 %v83, %v89
    %v106 = vld [vmem:[#allocation2] sm:$0x1]
    %v108 = vlaneseq
    %v109 = vshrl.u32 %v108, 7
    %v110 = vsub.s32 0, %v109
    %v111 = vrot.slane %v106, %v110
    %v113 = vmul.f32 %v90, %v111
    %v114 = vmul.f32 %v91, %v111
    %v115 = vmul.f32 %v92, %v111
    %v116 = vmul.f32 %v93, %v111
    %v117 = vmul.f32 %v94, %v111
    %v118 = vmul.f32 %v95, %v111
    %v119 = vmul.f32 %v96, %v111
    %v120 = vmul.f32 %v97, %v111
    %v121 = vmul.f32 %v98, %v111
    %v122 = vmul.f32 %v99, %v111
    %v123 = vmul.f32 %v100, %v111
    %v124 = vmul.f32 %v101, %v111
    %v125 = vmul.f32 %v102, %v111
    %v126 = vmul.f32 %v103, %v111
    %v127 = vmul.f32 %v104, %v111
    %v128 = vmul.f32 %v105, %v111
    %v129 = vld [vmem:[#allocation4] sm:$0x1]
    %v131 = vlaneseq
    %v132 = vshrl.u32 %v131, 7
    %v133 = vsub.s32 0, %v132
    %v134 = vrot.slane %v129, %v133
    %v136 = vadd.f32 %v113, %v134
    %v137 = vadd.f32 %v114, %v134
    %v138 = vadd.f32 %v115, %v134
    %v139 = vadd.f32 %v116, %v134
    %v140 = vadd.f32 %v117, %v134
    %v141 = vadd.f32 %v118, %v134
    %v142 = vadd.f32 %v119, %v134
    %v143 = vadd.f32 %v120, %v134
    %v144 = vadd.f32 %v121, %v134
    %v145 = vadd.f32 %v122, %v134
    %v146 = vadd.f32 %v123, %v134
    %v147 = vadd.f32 %v124, %v134
    %v148 = vadd.f32 %v125, %v134
    %v149 = vadd.f32 %v126, %v134
    %v150 = vadd.f32 %v127, %v134
    %v151 = vadd.f32 %v128, %v134
    %v152 = vmax.f32 %v136, 0.0
    %v153 = vmax.f32 %v137, 0.0
    %v154 = vmax.f32 %v138, 0.0
    %v155 = vmax.f32 %v139, 0.0
    %v156 = vmax.f32 %v140, 0.0
    %v157 = vmax.f32 %v141, 0.0
    %v158 = vmax.f32 %v142, 0.0
    %v159 = vmax.f32 %v143, 0.0
    %v160 = vmax.f32 %v144, 0.0
    %v161 = vmax.f32 %v145, 0.0
    %v162 = vmax.f32 %v146, 0.0
    %v163 = vmax.f32 %v147, 0.0
    %v164 = vmax.f32 %v148, 0.0
    %v165 = vmax.f32 %v149, 0.0
    %v166 = vmax.f32 %v150, 0.0
    %v167 = vmax.f32 %v151, 0.0
    %v168 = vpack.c.bf16 %v153, %v152
    %v169 = vpack.c.bf16 %v155, %v154
    %v170 = vpack.c.bf16 %v157, %v156
    %v171 = vpack.c.bf16 %v159, %v158
    %v172 = vpack.c.bf16 %v161, %v160
    %v173 = vpack.c.bf16 %v163, %v162
    %v174 = vpack.c.bf16 %v165, %v164
    %v175 = vpack.c.bf16 %v167, %v166
    %v184 = vunpack.c.l.b16 %v168
    %v185 = vunpack.c.h.b16 %v168
    %v186 = vunpack.c.l.b16 %v169
    %v187 = vunpack.c.h.b16 %v169
    %v188 = vunpack.c.l.b16 %v170
    %v189 = vunpack.c.h.b16 %v170
    %v190 = vunpack.c.l.b16 %v171
    %v191 = vunpack.c.h.b16 %v171
    %v192 = vunpack.c.l.b16 %v172
    %v193 = vunpack.c.h.b16 %v172
    %v194 = vunpack.c.l.b16 %v173
    %v195 = vunpack.c.h.b16 %v173
    %v196 = vunpack.c.l.b16 %v174
    %v197 = vunpack.c.h.b16 %v174
    %v198 = vunpack.c.l.b16 %v175
    %v199 = vunpack.c.h.b16 %v175
    %v200 = vpack.c.b16 %v184, %v184
    %v201 = vpack.c.b16 %v185, %v185
    %v202 = vpack.c.b16 %v186, %v186
    %v203 = vpack.c.b16 %v187, %v187
    %v204 = vpack.c.b16 %v188, %v188
    %v205 = vpack.c.b16 %v189, %v189
    %v206 = vpack.c.b16 %v190, %v190
    %v207 = vpack.c.b16 %v191, %v191
    %v208 = vpack.c.b16 %v192, %v192
    %v209 = vpack.c.b16 %v193, %v193
    %v210 = vpack.c.b16 %v194, %v194
    %v211 = vpack.c.b16 %v195, %v195
    %v212 = vpack.c.b16 %v196, %v196
    %v213 = vpack.c.b16 %v197, %v197
    %v214 = vpack.c.b16 %v198, %v198
    %v215 = vpack.c.b16 %v199, %v199
    %vm232 = vcmask 519168
    %233 = vst.msk [vmem:[%s4] sm:$0xf] %vm232, %v200
    %234 = vst.msk [vmem:[%s4 + $0x4] sm:$0xf] %vm232, %v201
    %235 = vst.msk [vmem:[%s4 + $0x8] sm:$0xf] %vm232, %v202
    %236 = vst.msk [vmem:[%s4 + $0xc] sm:$0xf] %vm232, %v203
    %237 = vst.msk [vmem:[%s4 + $0x10] sm:$0xf] %vm232, %v204
    %238 = vst.msk [vmem:[%s4 + $0x14] sm:$0xf] %vm232, %v205
    %239 = vst.msk [vmem:[%s4 + $0x18] sm:$0xf] %vm232, %v206
    %240 = vst.msk [vmem:[%s4 + $0x1c] sm:$0xf] %vm232, %v207
    %241 = vst.msk [vmem:[%s4 + $0x20] sm:$0xf] %vm232, %v208
    %242 = vst.msk [vmem:[%s4 + $0x24] sm:$0xf] %vm232, %v209
    %243 = vst.msk [vmem:[%s4 + $0x28] sm:$0xf] %vm232, %v210
    %244 = vst.msk [vmem:[%s4 + $0x2c] sm:$0xf] %vm232, %v211
    %245 = vst.msk [vmem:[%s4 + $0x30] sm:$0xf] %vm232, %v212
    %246 = vst.msk [vmem:[%s4 + $0x34] sm:$0xf] %vm232, %v213
    %247 = vst.msk [vmem:[%s4 + $0x38] sm:$0xf] %vm232, %v214
    %248 = vst.msk [vmem:[%s4 + $0x3c] sm:$0xf] %vm232, %v215
    // Predicated region
    $region26: #{resnet34_forward.75} parent=1 // pred_check
      _
    $region27: #{resnet34_forward.75} parent=1 // pred_check_branch
      %250 = sbr.rel (0) target = $region29
    $region28: #{resnet34_forward.75} parent=1 // pred_region
      _
    $region29: #{resnet34_forward.75} parent=1 // pred_fallthru
      _
    // Predicated region
    $region30: #{resnet34_forward.75} parent=1 // pred_check
      _
    $region31: #{resnet34_forward.75} parent=1 // pred_check_branch
      %252 = sbr.rel (0) target = $region33
    $region32: #{resnet34_forward.75} parent=1 // pred_region
      _
    $region33: #{resnet34_forward.75} parent=1 // pred_fallthru
      _
    %253 = vsyncpa [#allocation3], 1
    %254 = vsyncpa [#allocation5], 1

// kernel: resnet34_forward.74
$region0: #{resnet34_forward.74}
  #allocation0 [shape = 'u32[]', space=smem, size = 0x4, offset = 0x4, fixed_abs, tag = 'smem constant byte address 0x4 - core index']
  #allocation1 [shape = 'u32[144,128]{1,0:T(1,128)}', space=vmem, size = 0x12000, scoped, tag = 'internal scratch']
  #allocation2 [shape = 'f32[128,64]{1,0:T(8,128)}', space=vmem, size = 0x10000, scoped, tag = 'scratch operand']
  %s0 = inlined_call_operand.vmem [shape: bf16[128,49], index: 0, kind: input, shape index: {}]
  %s1 = inlined_call_operand.vmem [shape: bf16[49,64], index: 1, kind: input, shape index: {}]
  %s2 = inlined_call_operand.vmem [shape: f32[128,64], index: 2, kind: output, shape index: {0}]
  %s3 = inlined_call_operand.vmem [shape: f32[2,64], index: 3, kind: output, shape index: {1}]
  %4 = xla_tuple %s2, %s3
  %s5 = sld [smem:[#allocation0]]
  $region38: #{resnet34_forward.74} parent=0
    _
  %s7 = ssub.s32 1, %s5
  %s8 = scalar_select 0, %s7, %s5
  // Predicated region
  $region2: #{resnet34_forward.74} parent=0 // pred_check
    _
  $region3: #{resnet34_forward.74} parent=0 // pred_check_branch
    %10 = sbr.rel (0) target = $region5
  $region4: #{resnet34_forward.74} parent=0 // pred_region
    _
  $region5: #{resnet34_forward.74} parent=0 // pred_fallthru
    _
  // Predicated region
  $region6: #{resnet34_forward.74} parent=0 // pred_check
    _
  $region7: #{resnet34_forward.74} parent=0 // pred_check_branch
    %12 = sbr.rel (0) target = $region9
  $region8: #{resnet34_forward.74} parent=0 // pred_region
    _
  $region9: #{resnet34_forward.74} parent=0 // pred_fallthru
    _
  %p14 = scmp.eq.s32.totalorder 0, 0
  %p15 = scmp.eq.s32.totalorder 0, 0
  %p16 = pnand %p14, %p15
  %p17 = pneg %p16
  // Predicated region
  $region10: #{resnet34_forward.74} parent=0 // pred_check
    _
  $region11: #{resnet34_forward.74} parent=0 // pred_check_branch
    %19 = sbr.rel (%p16) target = $region13
  $region12: #{resnet34_forward.74} parent=0 // pred_region
    %vm20 = vcmask 517120
    %21 = vst.msk [vmem:[%s3] sm:$0x3] %vm20, 0.0
  $region13: #{resnet34_forward.74} parent=0 // pred_fallthru
    _
  // Predicated region
  $region14: #{resnet34_forward.74} parent=0 // pred_check
    %p22 = pneg %p15
  $region15: #{resnet34_forward.74} parent=0 // pred_check_branch
    %24 = sbr.rel (%p22) target = $region17
  $region16: #{resnet34_forward.74} parent=0 // pred_region
    %vm25 = vcmask 523264
    %26 = vst.msk [vmem:[#allocation2] sm:$0xff] %vm25, 0.0
    %27 = vst.msk [vmem:[#allocation2 + $0x8] sm:$0xff] %vm25, 0.0
    %28 = vst.msk [vmem:[#allocation2 + $0x10] sm:$0xff] %vm25, 0.0
    %29 = vst.msk [vmem:[#allocation2 + $0x18] sm:$0xff] %vm25, 0.0
    %30 = vst.msk [vmem:[#allocation2 + $0x20] sm:$0xff] %vm25, 0.0
    %31 = vst.msk [vmem:[#allocation2 + $0x28] sm:$0xff] %vm25, 0.0
    %32 = vst.msk [vmem:[#allocation2 + $0x30] sm:$0xff] %vm25, 0.0
    %33 = vst.msk [vmem:[#allocation2 + $0x38] sm:$0xff] %vm25, 0.0
    %34 = vst.msk [vmem:[#allocation2 + $0x40] sm:$0xff] %vm25, 0.0
    %35 = vst.msk [vmem:[#allocation2 + $0x48] sm:$0xff] %vm25, 0.0
    %36 = vst.msk [vmem:[#allocation2 + $0x50] sm:$0xff] %vm25, 0.0
    %37 = vst.msk [vmem:[#allocation2 + $0x58] sm:$0xff] %vm25, 0.0
    %38 = vst.msk [vmem:[#allocation2 + $0x60] sm:$0xff] %vm25, 0.0
    %39 = vst.msk [vmem:[#allocation2 + $0x68] sm:$0xff] %vm25, 0.0
    %40 = vst.msk [vmem:[#allocation2 + $0x70] sm:$0xff] %vm25, 0.0
    %41 = vst.msk [vmem:[#allocation2 + $0x78] sm:$0xff] %vm25, 0.0
  $region17: #{resnet34_forward.74} parent=0 // pred_fallthru
    _
  %v42 = vld [vmem:[#allocation2] sm:$0xff]
  %v43 = vld [vmem:[#allocation2 + $0x8] sm:$0xff]
  %v44 = vld [vmem:[#allocation2 + $0x10] sm:$0xff]
  %v45 = vld [vmem:[#allocation2 + $0x18] sm:$0xff]
  %v46 = vld [vmem:[#allocation2 + $0x20] sm:$0xff]
  %v47 = vld [vmem:[#allocation2 + $0x28] sm:$0xff]
  %v48 = vld [vmem:[#allocation2 + $0x30] sm:$0xff]
  %v49 = vld [vmem:[#allocation2 + $0x38] sm:$0xff]
  %v50 = vld [vmem:[#allocation2 + $0x40] sm:$0xff]
  %v51 = vld [vmem:[#allocation2 + $0x48] sm:$0xff]
  %v52 = vld [vmem:[#allocation2 + $0x50] sm:$0xff]
  %v53 = vld [vmem:[#allocation2 + $0x58] sm:$0xff]
  %v54 = vld [vmem:[#allocation2 + $0x60] sm:$0xff]
  %v55 = vld [vmem:[#allocation2 + $0x68] sm:$0xff]
  %v56 = vld [vmem:[#allocation2 + $0x70] sm:$0xff]
  %v57 = vld [vmem:[#allocation2 + $0x78] sm:$0xff]
  %v58 = vld [vmem:[%s0] sm:$0xf]
  %v59 = vld [vmem:[%s0 + $0x4] sm:$0xf]
  %v60 = vld [vmem:[%s0 + $0x8] sm:$0xf]
  %v61 = vld [vmem:[%s0 + $0xc] sm:$0xf]
  %v62 = vld [vmem:[%s0 + $0x10] sm:$0xf]
  %v63 = vld [vmem:[%s0 + $0x14] sm:$0xf]
  %v64 = vld [vmem:[%s0 + $0x18] sm:$0xf]
  %v65 = vld [vmem:[%s0 + $0x1c] sm:$0xf]
  %v66 = vld [vmem:[%s0 + $0x20] sm:$0xf]
  %v67 = vld [vmem:[%s0 + $0x24] sm:$0xf]
  %v68 = vld [vmem:[%s0 + $0x28] sm:$0xf]
  %v69 = vld [vmem:[%s0 + $0x2c] sm:$0xf]
  %v70 = vld [vmem:[%s0 + $0x30] sm:$0xf]
  %v71 = vld [vmem:[%s0 + $0x34] sm:$0xf]
  %v72 = vld [vmem:[%s0 + $0x38] sm:$0xf]
  %v73 = vld [vmem:[%s0 + $0x3c] sm:$0xf]
  %v74 = vld [vmem:[%s1] sm:$0xf]
  %v75 = vld [vmem:[%s1 + $0x4] sm:$0xf]
  %v76 = vld [vmem:[%s1 + $0x8] sm:$0xf]
  %v77 = vld [vmem:[%s1 + $0xc] sm:$0xf]
  %v78 = vld [vmem:[%s1 + $0x10] sm:$0xf]
  %v79 = vld [vmem:[%s1 + $0x14] sm:$0xf]
  %v80 = vld [vmem:[%s1 + $0x18] sm:$0x1]
  %v97 = vunpack.c.l.b16 %v58
  %v98 = vunpack.c.l.b16 %v59
  %v99 = vunpack.c.l.b16 %v60
  %v100 = vunpack.c.l.b16 %v61
  %v101 = vunpack.c.l.b16 %v62
  %v102 = vunpack.c.l.b16 %v63
  %v103 = vunpack.c.l.b16 %v64
  %v104 = vunpack.c.l.b16 %v65
  %v105 = vunpack.c.l.b16 %v66
  %v106 = vunpack.c.l.b16 %v67
  %v107 = vunpack.c.l.b16 %v68
  %v108 = vunpack.c.l.b16 %v69
  %v109 = vunpack.c.l.b16 %v70
  %v110 = vunpack.c.l.b16 %v71
  %v111 = vunpack.c.l.b16 %v72
  %v112 = vunpack.c.l.b16 %v73
  %v113 = vpack.c.b16 %v98, %v97
  %v114 = vpack.c.b16 %v100, %v99
  %v115 = vpack.c.b16 %v102, %v101
  %v116 = vpack.c.b16 %v104, %v103
  %v117 = vpack.c.b16 %v106, %v105
  %v118 = vpack.c.b16 %v108, %v107
  %v119 = vpack.c.b16 %v110, %v109
  %v120 = vpack.c.b16 %v112, %v111
  %v128 = vunpack.c.l.b16 %v74
  %v129 = vunpack.c.l.b16 %v75
  %v130 = vunpack.c.l.b16 %v76
  %v131 = vunpack.c.l.b16 %v77
  %v132 = vunpack.c.l.b16 %v78
  %v133 = vunpack.c.l.b16 %v79
  %v134 = vunpack.c.l.b16 %v80
  %v135 = vpack.c.b16 %v129, %v128
  %v136 = vpack.c.b16 %v131, %v130
  %v137 = vpack.c.b16 %v133, %v132
  %v138 = vpack.c.b16 %v134, %v134
  %vm142 = vcmask 400384
  %v144 = vsel %vm142, %v113, 0
  %v147 = vsel %vm142, %v114, 0
  %v150 = vsel %vm142, %v115, 0
  %v153 = vsel %vm142, %v116, 0
  %v156 = vsel %vm142, %v117, 0
  %v159 = vsel %vm142, %v118, 0
  %v162 = vsel %vm142, %v119, 0
  %v165 = vsel %vm142, %v120, 0
  %vm167 = vcmask 1040384
  %v168 = vsel 0, 4294967295, 65535
  %v169 = vsel %vm167, %v168, 0
  %v171 = vand.u32 %v138, %v169
  %173 = vmatprep.subr.bf16.mxu0 0
  %174 = vmatpush1.bf16.msra.mxu0 0
  %175 = vmatprep.subr.bf16.mxu0 0
  %176 = vmatpush1.bf16.msra.mxu0 0
  %177 = vmatprep.subr.bf16.mxu0 0
  %178 = vmatpush1.bf16.msra.mxu0 0
  %179 = vmatprep.subr.bf16.mxu0 0
  %180 = vmatpush1.bf16.msra.mxu0 0
  %181 = vmatprep.subr.bf16.mxu0 0
  %182 = vmatpush1.bf16.msra.mxu0 %v171
  %183 = vmatprep.subr.bf16.mxu0 0
  %184 = vmatpush1.bf16.msra.mxu0 %v137
  %185 = vmatprep.subr.bf16.mxu0 0
  %186 = vmatpush1.bf16.msra.mxu0 %v136
  %187 = vmatprep.subr.bf16.mxu0 0
  %188 = vmatpush1.bf16.msra.mxu0 %v135
  %189 = vmatprep.subr.bf16.mxu0 0
  %190 = vmatpush2.bf16.msra.mxu0 0
  %191 = vmatprep.subr.bf16.mxu0 0
  %192 = vmatpush2.bf16.msra.mxu0 0
  %193 = vmatprep.subr.bf16.mxu0 0
  %194 = vmatpush2.bf16.msra.mxu0 0
  %195 = vmatprep.subr.bf16.mxu0 0
  %196 = vmatpush2.bf16.msra.mxu0 0
  %197 = vmatprep.subr.bf16.mxu0 0
  %198 = vmatpush2.bf16.msra.mxu0 0
  %199 = vmatprep.subr.bf16.mxu0 0
  %200 = vmatpush2.bf16.msra.mxu0 0
  %201 = vmatprep.subr.bf16.mxu0 0
  %202 = vmatpush2.bf16.msra.mxu0 0
  %203 = vmatprep.subr.bf16.mxu0 0
  %204 = vmatpush2.bf16.msra.mxu0 0
  %205 = vmatprep.mubr.bf16.mxu0 0
  %206 = vmatmul.mubr.bf16.gmra.mxu0 %v144
  %v207 = vpop.f32.mrf.mxu0
  %v208 = vadd.f32 0.0, %v207
  %v209 = vpop.f32.mrf.mxu0
  %v210 = vpop.f32.mrf.mxu0
  %v211 = vadd.f32 0.0, %v210
  %v212 = vpop.f32.mrf.mxu0
  %213 = vmatprep.mubr.bf16.mxu0 0
  %214 = vmatmul.mubr.bf16.gmra.mxu0 %v147
  %v215 = vpop.f32.mrf.mxu0
  %v216 = vadd.f32 0.0, %v215
  %v217 = vpop.f32.mrf.mxu0
  %v218 = vpop.f32.mrf.mxu0
  %v219 = vadd.f32 0.0, %v218
  %v220 = vpop.f32.mrf.mxu0
  %221 = vmatprep.mubr.bf16.mxu0 0
  %222 = vmatmul.mubr.bf16.gmra.mxu0 %v150
  %v223 = vpop.f32.mrf.mxu0
  %v224 = vadd.f32 0.0, %v223
  %v225 = vpop.f32.mrf.mxu0
  %v226 = vpop.f32.mrf.mxu0
  %v227 = vadd.f32 0.0, %v226
  %v228 = vpop.f32.mrf.mxu0
  %229 = vmatprep.mubr.bf16.mxu0 0
  %230 = vmatmul.mubr.bf16.gmra.mxu0 %v153
  %v231 = vpop.f32.mrf.mxu0
  %v232 = vadd.f32 0.0, %v231
  %v233 = vpop.f32.mrf.mxu0
  %v234 = vpop.f32.mrf.mxu0
  %v235 = vadd.f32 0.0, %v234
  %v236 = vpop.f32.mrf.mxu0
  %237 = vmatprep.mubr.bf16.mxu0 0
  %238 = vmatmul.mubr.bf16.gmra.mxu0 %v156
  %v239 = vpop.f32.mrf.mxu0
  %v240 = vadd.f32 0.0, %v239
  %v241 = vpop.f32.mrf.mxu0
  %v242 = vpop.f32.mrf.mxu0
  %v243 = vadd.f32 0.0, %v242
  %v244 = vpop.f32.mrf.mxu0
  %245 = vmatprep.mubr.bf16.mxu0 0
  %246 = vmatmul.mubr.bf16.gmra.mxu0 %v159
  %v247 = vpop.f32.mrf.mxu0
  %v248 = vadd.f32 0.0, %v247
  %v249 = vpop.f32.mrf.mxu0
  %v250 = vpop.f32.mrf.mxu0
  %v251 = vadd.f32 0.0, %v250
  %v252 = vpop.f32.mrf.mxu0
  %253 = vmatprep.mubr.bf16.mxu0 0
  %254 = vmatmul.mubr.bf16.gmra.mxu0 %v162
  %v255 = vpop.f32.mrf.mxu0
  %v256 = vadd.f32 0.0, %v255
  %v257 = vpop.f32.mrf.mxu0
  %v258 = vpop.f32.mrf.mxu0
  %v259 = vadd.f32 0.0, %v258
  %v260 = vpop.f32.mrf.mxu0
  %261 = vmatprep.mubr.bf16.mxu0 0
  %262 = vmatmul.mubr.bf16.gmra.mxu0 %v165
  %v263 = vpop.f32.mrf.mxu0
  %v264 = vadd.f32 0.0, %v263
  %v265 = vpop.f32.mrf.mxu0
  %v266 = vpop.f32.mrf.mxu0
  %v267 = vadd.f32 0.0, %v266
  %v268 = vpop.f32.mrf.mxu0
  %269 = vdwg.mxu0
  %v270 = vadd.f32 %v42, %v208
  %v271 = vadd.f32 %v43, %v211
  %v272 = vadd.f32 %v44, %v216
  %v273 = vadd.f32 %v45, %v219
  %v274 = vadd.f32 %v46, %v224
  %v275 = vadd.f32 %v47, %v227
  %v276 = vadd.f32 %v48, %v232
  %v277 = vadd.f32 %v49, %v235
  %v278 = vadd.f32 %v50, %v240
  %v279 = vadd.f32 %v51, %v243
  %v280 = vadd.f32 %v52, %v248
  %v281 = vadd.f32 %v53, %v251
  %v282 = vadd.f32 %v54, %v256
  %v283 = vadd.f32 %v55, %v259
  %v284 = vadd.f32 %v56, %v264
  %v285 = vadd.f32 %v57, %v267
  %vm286 = vcmask 523264
  %287 = vst.msk [vmem:[#allocation2] sm:$0xff] %vm286, %v270
  %288 = vst.msk [vmem:[#allocation2 + $0x8] sm:$0xff] %vm286, %v271
  %289 = vst.msk [vmem:[#allocation2 + $0x10] sm:$0xff] %vm286, %v272
  %290 = vst.msk [vmem:[#allocation2 + $0x18] sm:$0xff] %vm286, %v273
  %291 = vst.msk [vmem:[#allocation2 + $0x20] sm:$0xff] %vm286, %v274
  %292 = vst.msk [vmem:[#allocation2 + $0x28] sm:$0xff] %vm286, %v275
  %293 = vst.msk [vmem:[#allocation2 + $0x30] sm:$0xff] %vm286, %v276
  %294 = vst.msk [vmem:[#allocation2 + $0x38] sm:$0xff] %vm286, %v277
  %295 = vst.msk [vmem:[#allocation2 + $0x40] sm:$0xff] %vm286, %v278
  %296 = vst.msk [vmem:[#allocation2 + $0x48] sm:$0xff] %vm286, %v279
  %297 = vst.msk [vmem:[#allocation2 + $0x50] sm:$0xff] %vm286, %v280
  %298 = vst.msk [vmem:[#allocation2 + $0x58] sm:$0xff] %vm286, %v281
  %299 = vst.msk [vmem:[#allocation2 + $0x60] sm:$0xff] %vm286, %v282
  %300 = vst.msk [vmem:[#allocation2 + $0x68] sm:$0xff] %vm286, %v283
  %301 = vst.msk [vmem:[#allocation2 + $0x70] sm:$0xff] %vm286, %v284
  %302 = vst.msk [vmem:[#allocation2 + $0x78] sm:$0xff] %vm286, %v285
  // Predicated region
  $region18: #{resnet34_forward.74} parent=0 // pred_check
    %p303 = pneg %p15
  $region19: #{resnet34_forward.74} parent=0 // pred_check_branch
    %305 = sbr.rel (%p303) target = $region21
  $region20: #{resnet34_forward.74} parent=0 // pred_region
    %v306 = vld [vmem:[#allocation2] sm:$0xff]
    %v307 = vld [vmem:[#allocation2 + $0x8] sm:$0xff]
    %v308 = vld [vmem:[#allocation2 + $0x10] sm:$0xff]
    %v309 = vld [vmem:[#allocation2 + $0x18] sm:$0xff]
    %v310 = vld [vmem:[#allocation2 + $0x20] sm:$0xff]
    %v311 = vld [vmem:[#allocation2 + $0x28] sm:$0xff]
    %v312 = vld [vmem:[#allocation2 + $0x30] sm:$0xff]
    %v313 = vld [vmem:[#allocation2 + $0x38] sm:$0xff]
    %v314 = vld [vmem:[#allocation2 + $0x40] sm:$0xff]
    %v315 = vld [vmem:[#allocation2 + $0x48] sm:$0xff]
    %v316 = vld [vmem:[#allocation2 + $0x50] sm:$0xff]
    %v317 = vld [vmem:[#allocation2 + $0x58] sm:$0xff]
    %v318 = vld [vmem:[#allocation2 + $0x60] sm:$0xff]
    %v319 = vld [vmem:[#allocation2 + $0x68] sm:$0xff]
    %v320 = vld [vmem:[#allocation2 + $0x70] sm:$0xff]
    %v321 = vld [vmem:[#allocation2 + $0x78] sm:$0xff]
    %322 = vst.msk [vmem:[%s2] sm:$0xff] %vm286, %v306
    %323 = vst.msk [vmem:[%s2 + $0x8] sm:$0xff] %vm286, %v307
    %324 = vst.msk [vmem:[%s2 + $0x10] sm:$0xff] %vm286, %v308
    %325 = vst.msk [vmem:[%s2 + $0x18] sm:$0xff] %vm286, %v309
    %326 = vst.msk [vmem:[%s2 + $0x20] sm:$0xff] %vm286, %v310
    %327 = vst.msk [vmem:[%s2 + $0x28] sm:$0xff] %vm286, %v311
    %328 = vst.msk [vmem:[%s2 + $0x30] sm:$0xff] %vm286, %v312
    %329 = vst.msk [vmem:[%s2 + $0x38] sm:$0xff] %vm286, %v313
    %330 = vst.msk [vmem:[%s2 + $0x40] sm:$0xff] %vm286, %v314
    %331 = vst.msk [vmem:[%s2 + $0x48] sm:$0xff] %vm286, %v315
    %332 = vst.msk [vmem:[%s2 + $0x50] sm:$0xff] %vm286, %v316
    %333 = vst.msk [vmem:[%s2 + $0x58] sm:$0xff] %vm286, %v317
    %334 = vst.msk [vmem:[%s2 + $0x60] sm:$0xff] %vm286, %v318
    %335 = vst.msk [vmem:[%s2 + $0x68] sm:$0xff] %vm286, %v319
    %336 = vst.msk [vmem:[%s2 + $0x70] sm:$0xff] %vm286, %v320
    %337 = vst.msk [vmem:[%s2 + $0x78] sm:$0xff] %vm286, %v321
    %v338 = vld [vmem:[%s3] sm:$0x3]
    %v339 = vsel %vm286, %v306, 0.0
    %v340 = vsel %vm286, %v307, 0.0
    %v341 = vadd.f32 %v339, %v340
    %v342 = vsel %vm286, %v308, 0.0
    %v343 = vadd.f32 %v341, %v342
    %v344 = vsel %vm286, %v309, 0.0
    %v345 = vadd.f32 %v343, %v344
    %v346 = vsel %vm286, %v310, 0.0
    %v347 = vadd.f32 %v345, %v346
    %v348 = vsel %vm286, %v311, 0.0
    %v349 = vadd.f32 %v347, %v348
    %v350 = vsel %vm286, %v312, 0.0
    %v351 = vadd.f32 %v349, %v350
    %v352 = vsel %vm286, %v313, 0.0
    %v353 = vadd.f32 %v351, %v352
    %v354 = vsel %vm286, %v314, 0.0
    %v355 = vadd.f32 %v353, %v354
    %v356 = vsel %vm286, %v315, 0.0
    %v357 = vadd.f32 %v355, %v356
    %v358 = vsel %vm286, %v316, 0.0
    %v359 = vadd.f32 %v357, %v358
    %v360 = vsel %vm286, %v317, 0.0
    %v361 = vadd.f32 %v359, %v360
    %v362 = vsel %vm286, %v318, 0.0
    %v363 = vadd.f32 %v361, %v362
    %v364 = vsel %vm286, %v319, 0.0
    %v365 = vadd.f32 %v363, %v364
    %v366 = vsel %vm286, %v320, 0.0
    %v367 = vadd.f32 %v365, %v366
    %v368 = vsel %vm286, %v321, 0.0
    %v369 = vadd.f32 %v367, %v368
    %v370 = vrot.slane %v369, 4
    %v371 = vadd.f32 %v369, %v370
    %v372 = vrot.slane %v371, 2
    %v373 = vadd.f32 %v371, %v372
    %v374 = vrot.slane %v373, 1
    %v375 = vadd.f32 %v373, %v374
    %v376 = vmul.f32 %v306, %v306
    %v377 = vmul.f32 %v307, %v307
    %v378 = vmul.f32 %v308, %v308
    %v379 = vmul.f32 %v309, %v309
    %v380 = vmul.f32 %v310, %v310
    %v381 = vmul.f32 %v311, %v311
    %v382 = vmul.f32 %v312, %v312
    %v383 = vmul.f32 %v313, %v313
    %v384 = vmul.f32 %v314, %v314
    %v385 = vmul.f32 %v315, %v315
    %v386 = vmul.f32 %v316, %v316
    %v387 = vmul.f32 %v317, %v317
    %v388 = vmul.f32 %v318, %v318
    %v389 = vmul.f32 %v319, %v319
    %v390 = vmul.f32 %v320, %v320
    %v391 = vmul.f32 %v321, %v321
    %v392 = vsel %vm286, %v376, 0.0
    %v393 = vsel %vm286, %v377, 0.0
    %v394 = vadd.f32 %v392, %v393
    %v395 = vsel %vm286, %v378, 0.0
    %v396 = vadd.f32 %v394, %v395
    %v397 = vsel %vm286, %v379, 0.0
    %v398 = vadd.f32 %v396, %v397
    %v399 = vsel %vm286, %v380, 0.0
    %v400 = vadd.f32 %v398, %v399
    %v401 = vsel %vm286, %v381, 0.0
    %v402 = vadd.f32 %v400, %v401
    %v403 = vsel %vm286, %v382, 0.0
    %v404 = vadd.f32 %v402, %v403
    %v405 = vsel %vm286, %v383, 0.0
    %v406 = vadd.f32 %v404, %v405
    %v407 = vsel %vm286, %v384, 0.0
    %v408 = vadd.f32 %v406, %v407
    %v409 = vsel %vm286, %v385, 0.0
    %v410 = vadd.f32 %v408, %v409
    %v411 = vsel %vm286, %v386, 0.0
    %v412 = vadd.f32 %v410, %v411
    %v413 = vsel %vm286, %v387, 0.0
    %v414 = vadd.f32 %v412, %v413
    %v415 = vsel %vm286, %v388, 0.0
    %v416 = vadd.f32 %v414, %v415
    %v417 = vsel %vm286, %v389, 0.0
    %v418 = vadd.f32 %v416, %v417
    %v419 = vsel %vm286, %v390, 0.0
    %v420 = vadd.f32 %v418, %v419
    %v421 = vsel %vm286, %v391, 0.0
    %v422 = vadd.f32 %v420, %v421
    %v423 = vrot.slane %v422, 4
    %v424 = vadd.f32 %v422, %v423
    %v425 = vrot.slane %v424, 2
    %v426 = vadd.f32 %v424, %v425
    %v427 = vrot.slane %v426, 1
    %v428 = vadd.f32 %v426, %v427
    %v429 = vsel %vm167, %v375, %v428
    %v430 = vadd.f32 %v338, %v429
    %vm431 = vcmask 517120
    %432 = vst.msk [vmem:[%s3] sm:$0x3] %vm431, %v430
  $region21: #{resnet34_forward.74} parent=0 // pred_fallthru
    _
  // Predicated region
  $region22: #{resnet34_forward.74} parent=0 // pred_check
    _
  $region23: #{resnet34_forward.74} parent=0 // pred_check_branch
    %434 = sbr.rel (0) target = $region25
  $region24: #{resnet34_forward.74} parent=0 // pred_region
    _
  $region25: #{resnet34_forward.74} parent=0 // pred_fallthru
    _
  // Predicated region
  $region26: #{resnet34_forward.74} parent=0 // pred_check
    _
  $region27: #{resnet34_forward.74} parent=0 // pred_check_branch
    %436 = sbr.rel (0) target = $region29
  $region28: #{resnet34_forward.74} parent=0 // pred_region
    _
  $region29: #{resnet34_forward.74} parent=0 // pred_fallthru
    _
  // Predicated region
  $region30: #{resnet34_forward.74} parent=0 // pred_check
    _
  $region31: #{resnet34_forward.74} parent=0 // pred_check_branch
    %438 = sbr.rel (0) target = $region33
  $region32: #{resnet34_forward.74} parent=0 // pred_region
    _
  $region33: #{resnet34_forward.74} parent=0 // pred_fallthru
    _
  // Predicated region
  $region34: #{resnet34_forward.74} parent=0 // pred_check
    _
  $region35: #{resnet34_forward.74} parent=0 // pred_check_branch
    %440 = sbr.rel (0) target = $region37
  $region36: #{resnet34_forward.74} parent=0 // pred_region
    _
  $region37: #{resnet34_forward.74} parent=0 // pred_fallthru
    _

// kernel: resnet34_forward.78
$region0: #{resnet34_forward.78}
  #allocation0 [shape = 'u32[]', space=smem, size = 0x4, offset = 0x4, fixed_abs, tag = 'smem constant byte address 0x4 - core index']
  #allocation1 [shape = 'u32[144,128]{1,0:T(1,128)}', space=vmem, size = 0x12000, scoped, tag = 'internal scratch']
  %s0 = inlined_call_operand.vmem [shape: f32[32,64], index: 0, kind: input, shape index: {}]
  %s1 = inlined_call_operand.vmem [shape: f32[2,64], index: 1, kind: input, shape index: {}]
  %s2 = inlined_call_operand.vmem [shape: f32[1,64], index: 2, kind: input, shape index: {}]
  %s3 = inlined_call_operand.vmem [shape: f32[1,64], index: 3, kind: input, shape index: {}]
  %s4 = inlined_call_operand.vmem [shape: bf16[32,64], index: 4, kind: output, shape index: {}]
  %s5 = sld [smem:[#allocation0]]
  $region26: #{resnet34_forward.78} parent=0
    _
  %s7 = ssub.s32 1, %s5
  %s8 = scalar_select 0, %s7, %s5
  // Predicated region
  $region2: #{resnet34_forward.78} parent=0 // pred_check
    _
  $region3: #{resnet34_forward.78} parent=0 // pred_check_branch
    %10 = sbr.rel (0) target = $region5
  $region4: #{resnet34_forward.78} parent=0 // pred_region
    _
  $region5: #{resnet34_forward.78} parent=0 // pred_fallthru
    _
  // Predicated region
  $region6: #{resnet34_forward.78} parent=0 // pred_check
    _
  $region7: #{resnet34_forward.78} parent=0 // pred_check_branch
    %12 = sbr.rel (0) target = $region9
  $region8: #{resnet34_forward.78} parent=0 // pred_region
    _
  $region9: #{resnet34_forward.78} parent=0 // pred_fallthru
    _
  // Predicated region
  $region10: #{resnet34_forward.78} parent=0 // pred_check
    _
  $region11: #{resnet34_forward.78} parent=0 // pred_check_branch
    %14 = sbr.rel (0) target = $region13
  $region12: #{resnet34_forward.78} parent=0 // pred_region
    _
  $region13: #{resnet34_forward.78} parent=0 // pred_fallthru
    _
  // Predicated region
  $region14: #{resnet34_forward.78} parent=0 // pred_check
    _
  $region15: #{resnet34_forward.78} parent=0 // pred_check_branch
    %16 = sbr.rel (0) target = $region17
  $region16: #{resnet34_forward.78} parent=0 // pred_region
    _
  $region17: #{resnet34_forward.78} parent=0 // pred_fallthru
    _
  %v17 = vld [vmem:[%s0] sm:$0xff]
  %v18 = vld [vmem:[%s0 + $0x8] sm:$0xff]
  %v19 = vld [vmem:[%s0 + $0x10] sm:$0xff]
  %v20 = vld [vmem:[%s0 + $0x18] sm:$0xff]
  %v21 = vld [vmem:[%s1] sm:$0x1]
  %v22 = vmul.f32 %v21, 0.03125
  %v23 = vld [vmem:[%s1 + $0x1] sm:$0x1]
  %v24 = vmul.f32 %v23, 0.03125
  %v25 = vmul.f32 %v22, %v22
  %v26 = vsub.f32 %v24, %v25
  %v27 = vmax.f32 %v26, 0.0
  %v28 = vlaneseq
  %v29 = vshrl.u32 %v28, 7
  %v30 = vsub.s32 0, %v29
  %v31 = vrot.slane %v22, %v30
  %v32 = vsub.f32 %v17, %v31
  %v33 = vsub.f32 %v18, %v31
  %v34 = vsub.f32 %v19, %v31
  %v35 = vsub.f32 %v20, %v31
  %v36 = vadd.f32 %v27, 1e-05
  %v37 = vrsqrt.pop %v36
  %v38 = vlaneseq
  %v39 = vshrl.u32 %v38, 7
  %v40 = vsub.s32 0, %v39
  %v41 = vrot.slane %v37, %v40
  %v42 = vmul.f32 %v32, %v41
  %v43 = vmul.f32 %v33, %v41
  %v44 = vmul.f32 %v34, %v41
  %v45 = vmul.f32 %v35, %v41
  %v46 = vld [vmem:[%s2] sm:$0x1]
  %v48 = vlaneseq
  %v49 = vshrl.u32 %v48, 7
  %v50 = vsub.s32 0, %v49
  %v51 = vrot.slane %v46, %v50
  %v53 = vmul.f32 %v42, %v51
  %v54 = vmul.f32 %v43, %v51
  %v55 = vmul.f32 %v44, %v51
  %v56 = vmul.f32 %v45, %v51
  %v57 = vld [vmem:[%s3] sm:$0x1]
  %v59 = vlaneseq
  %v60 = vshrl.u32 %v59, 7
  %v61 = vsub.s32 0, %v60
  %v62 = vrot.slane %v57, %v61
  %v64 = vadd.f32 %v53, %v62
  %v65 = vadd.f32 %v54, %v62
  %v66 = vadd.f32 %v55, %v62
  %v67 = vadd.f32 %v56, %v62
  %v68 = vmax.f32 %v64, 0.0
  %v69 = vmax.f32 %v65, 0.0
  %v70 = vmax.f32 %v66, 0.0
  %v71 = vmax.f32 %v67, 0.0
  %v72 = vpack.c.bf16 %v69, %v68
  %v73 = vpack.c.bf16 %v71, %v70
  %v76 = vunpack.c.l.b16 %v72
  %v77 = vunpack.c.h.b16 %v72
  %v78 = vunpack.c.l.b16 %v73
  %v79 = vunpack.c.h.b16 %v73
  %v80 = vpack.c.b16 %v76, %v76
  %v81 = vpack.c.b16 %v77, %v77
  %v82 = vpack.c.b16 %v78, %v78
  %v83 = vpack.c.b16 %v79, %v79
  %vm88 = vcmask 519168
  %89 = vst.msk [vmem:[%s4] sm:$0xf] %vm88, %v80
  %90 = vst.msk [vmem:[%s4 + $0x4] sm:$0xf] %vm88, %v81
  %91 = vst.msk [vmem:[%s4 + $0x8] sm:$0xf] %vm88, %v82
  %92 = vst.msk [vmem:[%s4 + $0xc] sm:$0xf] %vm88, %v83
  // Predicated region
  $region18: #{resnet34_forward.78} parent=0 // pred_check
    _
  $region19: #{resnet34_forward.78} parent=0 // pred_check_branch
    %94 = sbr.rel (0) target = $region21
  $region20: #{resnet34_forward.78} parent=0 // pred_region
    _
  $region21: #{resnet34_forward.78} parent=0 // pred_fallthru
    _
  // Predicated region
  $region22: #{resnet34_forward.78} parent=0 // pred_check
    _
  $region23: #{resnet34_forward.78} parent=0 // pred_check_branch
    %96 = sbr.rel (0) target = $region25
  $region24: #{resnet34_forward.78} parent=0 // pred_region
    _
  $region25: #{resnet34_forward.78} parent=0 // pred_fallthru
    _

// kernel: resnet34_forward.76
$region0: #{resnet34_forward.76}
  #allocation0 [shape = 'u32[]', space=smem, size = 0x4, offset = 0x4, fixed_abs, tag = 'smem constant byte address 0x4 - core index']
  #allocation1 [shape = 'u32[144,128]{1,0:T(1,128)}', space=vmem, size = 0x12000, scoped, tag = 'internal scratch']
  %s0 = inlined_call_operand.vmem [shape: bf16[9,32,64], index: 0, kind: input, shape index: {}]
  %s1 = inlined_call_operand.vmem [shape: bf16[32,64], index: 1, kind: output, shape index: {}]
  %s2 = sld [smem:[#allocation0]]
  $region14: #{resnet34_forward.76} parent=0
    _
  %s4 = ssub.s32 1, %s2
  %s5 = scalar_select 0, %s4, %s2
  // Predicated region
  $region2: #{resnet34_forward.76} parent=0 // pred_check
    _
  $region3: #{resnet34_forward.76} parent=0 // pred_check_branch
    %7 = sbr.rel (0) target = $region5
  $region4: #{resnet34_forward.76} parent=0 // pred_region
    _
  $region5: #{resnet34_forward.76} parent=0 // pred_fallthru
    _
  %v9 = vld [vmem:[%s0] sm:$0xf]
  %v10 = vld [vmem:[%s0 + $0x4] sm:$0xf]
  %v11 = vld [vmem:[%s0 + $0x8] sm:$0xf]
  %v12 = vld [vmem:[%s0 + $0xc] sm:$0xf]
  %v13 = vld [vmem:[%s0 + $0x10] sm:$0xf]
  %v14 = vld [vmem:[%s0 + $0x14] sm:$0xf]
  %v15 = vld [vmem:[%s0 + $0x18] sm:$0xf]
  %v16 = vld [vmem:[%s0 + $0x1c] sm:$0xf]
  %v17 = vld [vmem:[%s0 + $0x20] sm:$0xf]
  %v18 = vld [vmem:[%s0 + $0x24] sm:$0xf]
  %v19 = vld [vmem:[%s0 + $0x28] sm:$0xf]
  %v20 = vld [vmem:[%s0 + $0x2c] sm:$0xf]
  %v21 = vld [vmem:[%s0 + $0x30] sm:$0xf]
  %v22 = vld [vmem:[%s0 + $0x34] sm:$0xf]
  %v23 = vld [vmem:[%s0 + $0x38] sm:$0xf]
  %v24 = vld [vmem:[%s0 + $0x3c] sm:$0xf]
  %v25 = vld [vmem:[%s0 + $0x40] sm:$0xf]
  %v26 = vld [vmem:[%s0 + $0x44] sm:$0xf]
  %v27 = vld [vmem:[%s0 + $0x48] sm:$0xf]
  %v28 = vld [vmem:[%s0 + $0x4c] sm:$0xf]
  %v29 = vld [vmem:[%s0 + $0x50] sm:$0xf]
  %v30 = vld [vmem:[%s0 + $0x54] sm:$0xf]
  %v31 = vld [vmem:[%s0 + $0x58] sm:$0xf]
  %v32 = vld [vmem:[%s0 + $0x5c] sm:$0xf]
  %v33 = vld [vmem:[%s0 + $0x60] sm:$0xf]
  %v34 = vld [vmem:[%s0 + $0x64] sm:$0xf]
  %v35 = vld [vmem:[%s0 + $0x68] sm:$0xf]
  %v36 = vld [vmem:[%s0 + $0x6c] sm:$0xf]
  %v37 = vld [vmem:[%s0 + $0x70] sm:$0xf]
  %v38 = vld [vmem:[%s0 + $0x74] sm:$0xf]
  %v39 = vld [vmem:[%s0 + $0x78] sm:$0xf]
  %v40 = vld [vmem:[%s0 + $0x7c] sm:$0xf]
  %v41 = vld [vmem:[%s0 + $0x80] sm:$0xf]
  %v42 = vld [vmem:[%s0 + $0x84] sm:$0xf]
  %v43 = vld [vmem:[%s0 + $0x88] sm:$0xf]
  %v44 = vld [vmem:[%s0 + $0x8c] sm:$0xf]
  %vm45 = vcmask 519168
  %v48 = vsel %vm45, %v9, 4286644096
  %v51 = vsel %vm45, %v13, 4286644096
  %v53 = vmax.bf16 %v48, %v51
  %v55 = vsel %vm45, %v17, 4286644096
  %v57 = vmax.bf16 %v53, %v55
  %v59 = vsel %vm45, %v21, 4286644096
  %v61 = vmax.bf16 %v57, %v59
  %v63 = vsel %vm45, %v25, 4286644096
  %v65 = vmax.bf16 %v61, %v63
  %v67 = vsel %vm45, %v29, 4286644096
  %v69 = vmax.bf16 %v65, %v67
  %v71 = vsel %vm45, %v33, 4286644096
  %v73 = vmax.bf16 %v69, %v71
  %v75 = vsel %vm45, %v37, 4286644096
  %v77 = vmax.bf16 %v73, %v75
  %v79 = vsel %vm45, %v41, 4286644096
  %v81 = vmax.bf16 %v77, %v79
  %v83 = vsel %vm45, %v10, 4286644096
  %v86 = vsel %vm45, %v14, 4286644096
  %v88 = vmax.bf16 %v83, %v86
  %v90 = vsel %vm45, %v18, 4286644096
  %v92 = vmax.bf16 %v88, %v90
  %v94 = vsel %vm45, %v22, 4286644096
  %v96 = vmax.bf16 %v92, %v94
  %v98 = vsel %vm45, %v26, 4286644096
  %v100 = vmax.bf16 %v96, %v98
  %v102 = vsel %vm45, %v30, 4286644096
  %v104 = vmax.bf16 %v100, %v102
  %v106 = vsel %vm45, %v34, 4286644096
  %v108 = vmax.bf16 %v104, %v106
  %v110 = vsel %vm45, %v38, 4286644096
  %v112 = vmax.bf16 %v108, %v110
  %v114 = vsel %vm45, %v42, 4286644096
  %v116 = vmax.bf16 %v112, %v114
  %v118 = vsel %vm45, %v11, 4286644096
  %v121 = vsel %vm45, %v15, 4286644096
  %v123 = vmax.bf16 %v118, %v121
  %v125 = vsel %vm45, %v19, 4286644096
  %v127 = vmax.bf16 %v123, %v125
  %v129 = vsel %vm45, %v23, 4286644096
  %v131 = vmax.bf16 %v127, %v129
  %v133 = vsel %vm45, %v27, 4286644096
  %v135 = vmax.bf16 %v131, %v133
  %v137 = vsel %vm45, %v31, 4286644096
  %v139 = vmax.bf16 %v135, %v137
  %v141 = vsel %vm45, %v35, 4286644096
  %v143 = vmax.bf16 %v139, %v141
  %v145 = vsel %vm45, %v39, 4286644096
  %v147 = vmax.bf16 %v143, %v145
  %v149 = vsel %vm45, %v43, 4286644096
  %v151 = vmax.bf16 %v147, %v149
  %v153 = vsel %vm45, %v12, 4286644096
  %v156 = vsel %vm45, %v16, 4286644096
  %v158 = vmax.bf16 %v153, %v156
  %v160 = vsel %vm45, %v20, 4286644096
  %v162 = vmax.bf16 %v158, %v160
  %v164 = vsel %vm45, %v24, 4286644096
  %v166 = vmax.bf16 %v162, %v164
  %v168 = vsel %vm45, %v28, 4286644096
  %v170 = vmax.bf16 %v166, %v168
  %v172 = vsel %vm45, %v32, 4286644096
  %v174 = vmax.bf16 %v170, %v172
  %v176 = vsel %vm45, %v36, 4286644096
  %v178 = vmax.bf16 %v174, %v176
  %v180 = vsel %vm45, %v40, 4286644096
  %v182 = vmax.bf16 %v178, %v180
  %v184 = vsel %vm45, %v44, 4286644096
  %v186 = vmax.bf16 %v182, %v184
  %187 = vst.msk [vmem:[%s1] sm:$0xf] %vm45, %v81
  %188 = vst.msk [vmem:[%s1 + $0x4] sm:$0xf] %vm45, %v116
  %189 = vst.msk [vmem:[%s1 + $0x8] sm:$0xf] %vm45, %v151
  %190 = vst.msk [vmem:[%s1 + $0xc] sm:$0xf] %vm45, %v186
  // Predicated region
  $region6: #{resnet34_forward.76} parent=0 // pred_check
    _
  $region7: #{resnet34_forward.76} parent=0 // pred_check_branch
    %192 = sbr.rel (0) target = $region9
  $region8: #{resnet34_forward.76} parent=0 // pred_region
    _
  $region9: #{resnet34_forward.76} parent=0 // pred_fallthru
    _
  // Predicated region
  $region10: #{resnet34_forward.76} parent=0 // pred_check
    _
  $region11: #{resnet34_forward.76} parent=0 // pred_check_branch
    %194 = sbr.rel (0) target = $region13
  $region12: #{resnet34_forward.76} parent=0 // pred_region
    _
  $region13: #{resnet34_forward.76} parent=0 // pred_fallthru
    _

// kernel: resnet34_forward.93
$region0: #{resnet34_forward.93}
  #allocation0 [shape = 'u32[]', space=smem, size = 0x4, offset = 0x4, fixed_abs, tag = 'smem constant byte address 0x4 - core index']
  #allocation1 [shape = 'u32[144,128]{1,0:T(1,128)}', space=vmem, size = 0x12000, scoped, tag = 'internal scratch']
  %s0 = inlined_call_operand.vmem [shape: f32[8,128], index: 0, kind: input, shape index: {}]
  %s1 = inlined_call_operand.vmem [shape: f32[2,128], index: 1, kind: input, shape index: {}]
  %s2 = inlined_call_operand.vmem [shape: f32[1,128], index: 2, kind: input, shape index: {}]
  %s3 = inlined_call_operand.vmem [shape: f32[1,128], index: 3, kind: input, shape index: {}]
  %s4 = inlined_call_operand.vmem [shape: bf16[8,128], index: 4, kind: output, shape index: {}]
  %s5 = sld [smem:[#allocation0]]
  $region26: #{resnet34_forward.93} parent=0
    _
  %s7 = ssub.s32 1, %s5
  %s8 = scalar_select 0, %s7, %s5
  // Predicated region
  $region2: #{resnet34_forward.93} parent=0 // pred_check
    _
  $region3: #{resnet34_forward.93} parent=0 // pred_check_branch
    %10 = sbr.rel (0) target = $region5
  $region4: #{resnet34_forward.93} parent=0 // pred_region
    _
  $region5: #{resnet34_forward.93} parent=0 // pred_fallthru
    _
  // Predicated region
  $region6: #{resnet34_forward.93} parent=0 // pred_check
    _
  $region7: #{resnet34_forward.93} parent=0 // pred_check_branch
    %12 = sbr.rel (0) target = $region9
  $region8: #{resnet34_forward.93} parent=0 // pred_region
    _
  $region9: #{resnet34_forward.93} parent=0 // pred_fallthru
    _
  // Predicated region
  $region10: #{resnet34_forward.93} parent=0 // pred_check
    _
  $region11: #{resnet34_forward.93} parent=0 // pred_check_branch
    %14 = sbr.rel (0) target = $region13
  $region12: #{resnet34_forward.93} parent=0 // pred_region
    _
  $region13: #{resnet34_forward.93} parent=0 // pred_fallthru
    _
  // Predicated region
  $region14: #{resnet34_forward.93} parent=0 // pred_check
    _
  $region15: #{resnet34_forward.93} parent=0 // pred_check_branch
    %16 = sbr.rel (0) target = $region17
  $region16: #{resnet34_forward.93} parent=0 // pred_region
    _
  $region17: #{resnet34_forward.93} parent=0 // pred_fallthru
    _
  %v17 = vld [vmem:[%s0] sm:$0xff]
  %v18 = vld [vmem:[%s1] sm:$0x1]
  %v19 = vmul.f32 %v18, 0.125
  %v20 = vld [vmem:[%s1 + $0x1] sm:$0x1]
  %v21 = vmul.f32 %v20, 0.125
  %v22 = vmul.f32 %v19, %v19
  %v23 = vsub.f32 %v21, %v22
  %v24 = vmax.f32 %v23, 0.0
  %v25 = vlaneseq
  %v26 = vshrl.u32 %v25, 7
  %v27 = vsub.s32 0, %v26
  %v28 = vrot.slane %v19, %v27
  %v29 = vsub.f32 %v17, %v28
  %v30 = vadd.f32 %v24, 1e-05
  %v31 = vrsqrt.pop %v30
  %v32 = vlaneseq
  %v33 = vshrl.u32 %v32, 7
  %v34 = vsub.s32 0, %v33
  %v35 = vrot.slane %v31, %v34
  %v36 = vmul.f32 %v29, %v35
  %v37 = vld [vmem:[%s2] sm:$0x1]
  %v39 = vlaneseq
  %v40 = vshrl.u32 %v39, 7
  %v41 = vsub.s32 0, %v40
  %v42 = vrot.slane %v37, %v41
  %v44 = vmul.f32 %v36, %v42
  %v45 = vld [vmem:[%s3] sm:$0x1]
  %v47 = vlaneseq
  %v48 = vshrl.u32 %v47, 7
  %v49 = vsub.s32 0, %v48
  %v50 = vrot.slane %v45, %v49
  %v52 = vadd.f32 %v44, %v50
  %v53 = vpack.c.bf16 %v52, %v52
  %54 = vst [vmem:[%s4] sm:$0xf] %v53
  // Predicated region
  $region18: #{resnet34_forward.93} parent=0 // pred_check
    _
  $region19: #{resnet34_forward.93} parent=0 // pred_check_branch
    %56 = sbr.rel (0) target = $region21
  $region20: #{resnet34_forward.93} parent=0 // pred_region
    _
  $region21: #{resnet34_forward.93} parent=0 // pred_fallthru
    _
  // Predicated region
  $region22: #{resnet34_forward.93} parent=0 // pred_check
    _
  $region23: #{resnet34_forward.93} parent=0 // pred_check_branch
    %58 = sbr.rel (0) target = $region25
  $region24: #{resnet34_forward.93} parent=0 // pred_region
    _
  $region25: #{resnet34_forward.93} parent=0 // pred_fallthru
    _

// kernel: resnet34_forward.92
$region0: #{resnet34_forward.92}
  #allocation0 [shape = 'u32[]', space=smem, size = 0x4, offset = 0x4, fixed_abs, tag = 'smem constant byte address 0x4 - core index']
  #allocation1 [shape = 'u32[144,128]{1,0:T(1,128)}', space=vmem, size = 0x12000, scoped, tag = 'internal scratch']
  #allocation2 [shape = 'f32[8,128]{1,0:T(8,128)}', space=vmem, size = 0x1000, scoped, tag = 'scratch operand']
  %s0 = inlined_call_operand.vmem [shape: bf16[8,64], index: 0, kind: input, shape index: {}]
  %s1 = inlined_call_operand.vmem [shape: bf16[64,128], index: 1, kind: input, shape index: {}]
  %s2 = inlined_call_operand.vmem [shape: f32[8,128], index: 2, kind: output, shape index: {0}]
  %s3 = inlined_call_operand.vmem [shape: f32[2,128], index: 3, kind: output, shape index: {1}]
  %4 = xla_tuple %s2, %s3
  %s5 = sld [smem:[#allocation0]]
  $region38: #{resnet34_forward.92} parent=0
    _
  %s7 = ssub.s32 1, %s5
  %s8 = scalar_select 0, %s7, %s5
  // Predicated region
  $region2: #{resnet34_forward.92} parent=0 // pred_check
    _
  $region3: #{resnet34_forward.92} parent=0 // pred_check_branch
    %10 = sbr.rel (0) target = $region5
  $region4: #{resnet34_forward.92} parent=0 // pred_region
    _
  $region5: #{resnet34_forward.92} parent=0 // pred_fallthru
    _
  // Predicated region
  $region6: #{resnet34_forward.92} parent=0 // pred_check
    _
  $region7: #{resnet34_forward.92} parent=0 // pred_check_branch
    %12 = sbr.rel (0) target = $region9
  $region8: #{resnet34_forward.92} parent=0 // pred_region
    _
  $region9: #{resnet34_forward.92} parent=0 // pred_fallthru
    _
  %p14 = scmp.eq.s32.totalorder 0, 0
  %p15 = scmp.eq.s32.totalorder 0, 0
  %p16 = pnand %p14, %p15
  %p17 = pneg %p16
  // Predicated region
  $region10: #{resnet34_forward.92} parent=0 // pred_check
    _
  $region11: #{resnet34_forward.92} parent=0 // pred_check_branch
    %19 = sbr.rel (%p16) target = $region13
  $region12: #{resnet34_forward.92} parent=0 // pred_region
    %20 = vst [vmem:[%s3] sm:$0x3] 0.0
  $region13: #{resnet34_forward.92} parent=0 // pred_fallthru
    _
  // Predicated region
  $region14: #{resnet34_forward.92} parent=0 // pred_check
    %p21 = pneg %p15
  $region15: #{resnet34_forward.92} parent=0 // pred_check_branch
    %23 = sbr.rel (%p21) target = $region17
  $region16: #{resnet34_forward.92} parent=0 // pred_region
    %24 = vst [vmem:[#allocation2] sm:$0xff] 0.0
  $region17: #{resnet34_forward.92} parent=0 // pred_fallthru
    _
  %v25 = vld [vmem:[#allocation2] sm:$0xff]
  %v26 = vld [vmem:[%s0] sm:$0xf]
  %v27 = vld [vmem:[%s1] sm:$0xf]
  %v28 = vld [vmem:[%s1 + $0x4] sm:$0xf]
  %v29 = vld [vmem:[%s1 + $0x8] sm:$0xf]
  %v30 = vld [vmem:[%s1 + $0xc] sm:$0xf]
  %v31 = vld [vmem:[%s1 + $0x10] sm:$0xf]
  %v32 = vld [vmem:[%s1 + $0x14] sm:$0xf]
  %v33 = vld [vmem:[%s1 + $0x18] sm:$0xf]
  %v34 = vld [vmem:[%s1 + $0x1c] sm:$0xf]
  %v43 = vunpack.c.l.b16 %v27
  %v44 = vunpack.c.l.b16 %v28
  %v45 = vunpack.c.l.b16 %v29
  %v46 = vunpack.c.l.b16 %v30
  %v47 = vunpack.c.l.b16 %v31
  %v48 = vunpack.c.l.b16 %v32
  %v49 = vunpack.c.l.b16 %v33
  %v50 = vunpack.c.l.b16 %v34
  %v51 = vpack.c.b16 %v44, %v43
  %v52 = vpack.c.b16 %v46, %v45
  %v53 = vpack.c.b16 %v48, %v47
  %v54 = vpack.c.b16 %v50, %v49
  %vm59 = vcmask 523264
  %v61 = vsel %vm59, %v26, 0
  %63 = vmatprep.subr.bf16.mxu0 0
  %64 = vmatpush1.bf16.msra.mxu0 0
  %65 = vmatprep.subr.bf16.mxu0 0
  %66 = vmatpush1.bf16.msra.mxu0 0
  %67 = vmatprep.subr.bf16.mxu0 0
  %68 = vmatpush1.bf16.msra.mxu0 0
  %69 = vmatprep.subr.bf16.mxu0 0
  %70 = vmatpush1.bf16.msra.mxu0 0
  %71 = vmatprep.subr.bf16.mxu0 0
  %72 = vmatpush1.bf16.msra.mxu0 %v54
  %73 = vmatprep.subr.bf16.mxu0 0
  %74 = vmatpush1.bf16.msra.mxu0 %v53
  %75 = vmatprep.subr.bf16.mxu0 0
  %76 = vmatpush1.bf16.msra.mxu0 %v52
  %77 = vmatprep.subr.bf16.mxu0 0
  %78 = vmatpush1.bf16.msra.mxu0 %v51
  %79 = vmatprep.subr.bf16.mxu0 0
  %80 = vmatpush2.bf16.msra.mxu0 0
  %81 = vmatprep.subr.bf16.mxu0 0
  %82 = vmatpush2.bf16.msra.mxu0 0
  %83 = vmatprep.subr.bf16.mxu0 0
  %84 = vmatpush2.bf16.msra.mxu0 0
  %85 = vmatprep.subr.bf16.mxu0 0
  %86 = vmatpush2.bf16.msra.mxu0 0
  %87 = vmatprep.subr.bf16.mxu0 0
  %88 = vmatpush2.bf16.msra.mxu0 0
  %89 = vmatprep.subr.bf16.mxu0 0
  %90 = vmatpush2.bf16.msra.mxu0 0
  %91 = vmatprep.subr.bf16.mxu0 0
  %92 = vmatpush2.bf16.msra.mxu0 0
  %93 = vmatprep.subr.bf16.mxu0 0
  %94 = vmatpush2.bf16.msra.mxu0 0
  %95 = vmatprep.mubr.bf16.mxu0 0
  %96 = vmatmul.mubr.bf16.gmra.mxu0 %v61
  %v97 = vpop.f32.mrf.mxu0
  %v98 = vadd.f32 0.0, %v97
  %v99 = vpop.f32.mrf.mxu0
  %v100 = vpop.f32.mrf.mxu0
  %v101 = vpop.f32.mrf.mxu0
  %102 = vdwg.mxu0
  %v103 = vadd.f32 %v25, %v98
  %104 = vst [vmem:[#allocation2] sm:$0xff] %v103
  // Predicated region
  $region18: #{resnet34_forward.92} parent=0 // pred_check
    %p105 = pneg %p15
  $region19: #{resnet34_forward.92} parent=0 // pred_check_branch
    %107 = sbr.rel (%p105) target = $region21
  $region20: #{resnet34_forward.92} parent=0 // pred_region
    %v108 = vld [vmem:[#allocation2] sm:$0xff]
    %109 = vst [vmem:[%s2] sm:$0xff] %v108
    %v110 = vld [vmem:[%s3] sm:$0x3]
    %v111 = vrot.slane %v108, 4
    %v112 = vadd.f32 %v108, %v111
    %v113 = vrot.slane %v112, 2
    %v114 = vadd.f32 %v112, %v113
    %v115 = vrot.slane %v114, 1
    %v116 = vadd.f32 %v114, %v115
    %v117 = vmul.f32 %v108, %v108
    %v118 = vrot.slane %v117, 4
    %v119 = vadd.f32 %v117, %v118
    %v120 = vrot.slane %v119, 2
    %v121 = vadd.f32 %v119, %v120
    %v122 = vrot.slane %v121, 1
    %v123 = vadd.f32 %v121, %v122
    %vm124 = vcmask 1040384
    %v125 = vsel %vm124, %v116, %v123
    %v126 = vadd.f32 %v110, %v125
    %127 = vst [vmem:[%s3] sm:$0x3] %v126
  $region21: #{resnet34_forward.92} parent=0 // pred_fallthru
    _
  // Predicated region
  $region22: #{resnet34_forward.92} parent=0 // pred_check
    _
  $region23: #{resnet34_forward.92} parent=0 // pred_check_branch
    %129 = sbr.rel (0) target = $region25
  $region24: #{resnet34_forward.92} parent=0 // pred_region
    _
  $region25: #{resnet34_forward.92} parent=0 // pred_fallthru
    _
  // Predicated region
  $region26: #{resnet34_forward.92} parent=0 // pred_check
    _
  $region27: #{resnet34_forward.92} parent=0 // pred_check_branch
    %131 = sbr.rel (0) target = $region29
  $region28: #{resnet34_forward.92} parent=0 // pred_region
    _
  $region29: #{resnet34_forward.92} parent=0 // pred_fallthru
    _
  // Predicated region
  $region30: #{resnet34_forward.92} parent=0 // pred_check
    _
  $region31: #{resnet34_forward.92} parent=0 // pred_check_branch
    %133 = sbr.rel (0) target = $region33
  $region32: #{resnet34_forward.92} parent=0 // pred_region
    _
  $region33: #{resnet34_forward.92} parent=0 // pred_fallthru
    _
  // Predicated region
  $region34: #{resnet34_forward.92} parent=0 // pred_check
    _
  $region35: #{resnet34_forward.92} parent=0 // pred_check_branch
    %135 = sbr.rel (0) target = $region37
  $region36: #{resnet34_forward.92} parent=0 // pred_region
    _
  $region37: #{resnet34_forward.92} parent=0 // pred_fallthru
    _

// kernel: resnet34_forward.77
$region0: #{resnet34_forward.77}
  #allocation0 [shape = 'u32[]', space=smem, size = 0x4, offset = 0x4, fixed_abs, tag = 'smem constant byte address 0x4 - core index']
  #allocation1 [shape = 'u32[144,128]{1,0:T(1,128)}', space=vmem, size = 0x12000, scoped, tag = 'internal scratch']
  #allocation2 [shape = 'f32[32,64]{1,0:T(8,128)}', space=vmem, size = 0x4000, scoped, tag = 'scratch operand']
  %s0 = inlined_call_operand.vmem [shape: bf16[32,576], index: 0, kind: input, shape index: {}]
  %s1 = inlined_call_operand.vmem [shape: bf16[576,64], index: 1, kind: input, shape index: {}]
  %s2 = inlined_call_operand.vmem [shape: f32[32,64], index: 2, kind: output, shape index: {0}]
  %s3 = inlined_call_operand.vmem [shape: f32[2,64], index: 3, kind: output, shape index: {1}]
  %4 = xla_tuple %s2, %s3
  %s5 = sld [smem:[#allocation0]]
  $region38: #{resnet34_forward.77} parent=0
    _
  %s7 = ssub.s32 1, %s5
  %s8 = scalar_select 0, %s7, %s5
  // Predicated region
  $region2: #{resnet34_forward.77} parent=0 // pred_check
    _
  $region3: #{resnet34_forward.77} parent=0 // pred_check_branch
    %10 = sbr.rel (0) target = $region5
  $region4: #{resnet34_forward.77} parent=0 // pred_region
    _
  $region5: #{resnet34_forward.77} parent=0 // pred_fallthru
    _
  // Predicated region
  $region6: #{resnet34_forward.77} parent=0 // pred_check
    _
  $region7: #{resnet34_forward.77} parent=0 // pred_check_branch
    %12 = sbr.rel (0) target = $region9
  $region8: #{resnet34_forward.77} parent=0 // pred_region
    _
  $region9: #{resnet34_forward.77} parent=0 // pred_fallthru
    _
  %p14 = scmp.eq.s32.totalorder 0, 0
  %p15 = scmp.eq.s32.totalorder 0, 0
  %p16 = pnand %p14, %p15
  %p17 = pneg %p16
  // Predicated region
  $region10: #{resnet34_forward.77} parent=0 // pred_check
    _
  $region11: #{resnet34_forward.77} parent=0 // pred_check_branch
    %19 = sbr.rel (%p16) target = $region13
  $region12: #{resnet34_forward.77} parent=0 // pred_region
    %vm20 = vcmask 517120
    %21 = vst.msk [vmem:[%s3] sm:$0x3] %vm20, 0.0
  $region13: #{resnet34_forward.77} parent=0 // pred_fallthru
    _
  // Predicated region
  $region14: #{resnet34_forward.77} parent=0 // pred_check
    %p22 = pneg %p15
  $region15: #{resnet34_forward.77} parent=0 // pred_check_branch
    %24 = sbr.rel (%p22) target = $region17
  $region16: #{resnet34_forward.77} parent=0 // pred_region
    %vm25 = vcmask 523264
    %26 = vst.msk [vmem:[#allocation2] sm:$0xff] %vm25, 0.0
    %27 = vst.msk [vmem:[#allocation2 + $0x8] sm:$0xff] %vm25, 0.0
    %28 = vst.msk [vmem:[#allocation2 + $0x10] sm:$0xff] %vm25, 0.0
    %29 = vst.msk [vmem:[#allocation2 + $0x18] sm:$0xff] %vm25, 0.0
  $region17: #{resnet34_forward.77} parent=0 // pred_fallthru
    _
  %v30 = vld [vmem:[#allocation2] sm:$0xff]
  %v31 = vld [vmem:[#allocation2 + $0x8] sm:$0xff]
  %v32 = vld [vmem:[#allocation2 + $0x10] sm:$0xff]
  %v33 = vld [vmem:[#allocation2 + $0x18] sm:$0xff]
  %v34 = vld [vmem:[%s0] sm:$0xff]
  %v35 = vld [vmem:[%s0 + $0x8] sm:$0xff]
  %v36 = vld [vmem:[%s0 + $0x10] sm:$0xf]
  %v37 = vld [vmem:[%s0 + $0x14] sm:$0xff]
  %v38 = vld [vmem:[%s0 + $0x1c] sm:$0xff]
  %v39 = vld [vmem:[%s0 + $0x24] sm:$0xf]
  %v40 = vld [vmem:[%s0 + $0x28] sm:$0xff]
  %v41 = vld [vmem:[%s0 + $0x30] sm:$0xff]
  %v42 = vld [vmem:[%s0 + $0x38] sm:$0xf]
  %v43 = vld [vmem:[%s0 + $0x3c] sm:$0xff]
  %v44 = vld [vmem:[%s0 + $0x44] sm:$0xff]
  %v45 = vld [vmem:[%s0 + $0x4c] sm:$0xf]
  %v46 = vld [vmem:[%s1] sm:$0xf]
  %v47 = vld [vmem:[%s1 + $0x4] sm:$0xf]
  %v48 = vld [vmem:[%s1 + $0x8] sm:$0xf]
  %v49 = vld [vmem:[%s1 + $0xc] sm:$0xf]
  %v50 = vld [vmem:[%s1 + $0x10] sm:$0xf]
  %v51 = vld [vmem:[%s1 + $0x14] sm:$0xf]
  %v52 = vld [vmem:[%s1 + $0x18] sm:$0xf]
  %v53 = vld [vmem:[%s1 + $0x1c] sm:$0xf]
  %v54 = vld [vmem:[%s1 + $0x20] sm:$0xf]
  %v55 = vld [vmem:[%s1 + $0x24] sm:$0xf]
  %v56 = vld [vmem:[%s1 + $0x28] sm:$0xf]
  %v57 = vld [vmem:[%s1 + $0x2c] sm:$0xf]
  %v58 = vld [vmem:[%s1 + $0x30] sm:$0xf]
  %v59 = vld [vmem:[%s1 + $0x34] sm:$0xf]
  %v60 = vld [vmem:[%s1 + $0x38] sm:$0xf]
  %v61 = vld [vmem:[%s1 + $0x3c] sm:$0xf]
  %v62 = vld [vmem:[%s1 + $0x40] sm:$0xf]
  %v63 = vld [vmem:[%s1 + $0x44] sm:$0xf]
  %v64 = vld [vmem:[%s1 + $0x48] sm:$0xf]
  %v65 = vld [vmem:[%s1 + $0x4c] sm:$0xf]
  %v66 = vld [vmem:[%s1 + $0x50] sm:$0xf]
  %v67 = vld [vmem:[%s1 + $0x54] sm:$0xf]
  %v68 = vld [vmem:[%s1 + $0x58] sm:$0xf]
  %v69 = vld [vmem:[%s1 + $0x5c] sm:$0xf]
  %v70 = vld [vmem:[%s1 + $0x60] sm:$0xf]
  %v71 = vld [vmem:[%s1 + $0x64] sm:$0xf]
  %v72 = vld [vmem:[%s1 + $0x68] sm:$0xf]
  %v73 = vld [vmem:[%s1 + $0x6c] sm:$0xf]
  %v74 = vld [vmem:[%s1 + $0x70] sm:$0xf]
  %v75 = vld [vmem:[%s1 + $0x74] sm:$0xf]
  %v76 = vld [vmem:[%s1 + $0x78] sm:$0xf]
  %v77 = vld [vmem:[%s1 + $0x7c] sm:$0xf]
  %v78 = vld [vmem:[%s1 + $0x80] sm:$0xf]
  %v79 = vld [vmem:[%s1 + $0x84] sm:$0xf]
  %v80 = vld [vmem:[%s1 + $0x88] sm:$0xf]
  %v81 = vld [vmem:[%s1 + $0x8c] sm:$0xf]
  %v82 = vld [vmem:[%s1 + $0x90] sm:$0xf]
  %v83 = vld [vmem:[%s1 + $0x94] sm:$0xf]
  %v84 = vld [vmem:[%s1 + $0x98] sm:$0xf]
  %v85 = vld [vmem:[%s1 + $0x9c] sm:$0xf]
  %v86 = vld [vmem:[%s1 + $0xa0] sm:$0xf]
  %v87 = vld [vmem:[%s1 + $0xa4] sm:$0xf]
  %v88 = vld [vmem:[%s1 + $0xa8] sm:$0xf]
  %v89 = vld [vmem:[%s1 + $0xac] sm:$0xf]
  %v90 = vld [vmem:[%s1 + $0xb0] sm:$0xf]
  %v91 = vld [vmem:[%s1 + $0xb4] sm:$0xf]
  %v92 = vld [vmem:[%s1 + $0xb8] sm:$0xf]
  %v93 = vld [vmem:[%s1 + $0xbc] sm:$0xf]
  %v94 = vld [vmem:[%s1 + $0xc0] sm:$0xf]
  %v95 = vld [vmem:[%s1 + $0xc4] sm:$0xf]
  %v96 = vld [vmem:[%s1 + $0xc8] sm:$0xf]
  %v97 = vld [vmem:[%s1 + $0xcc] sm:$0xf]
  %v98 = vld [vmem:[%s1 + $0xd0] sm:$0xf]
  %v99 = vld [vmem:[%s1 + $0xd4] sm:$0xf]
  %v100 = vld [vmem:[%s1 + $0xd8] sm:$0xf]
  %v101 = vld [vmem:[%s1 + $0xdc] sm:$0xf]
  %v102 = vld [vmem:[%s1 + $0xe0] sm:$0xf]
  %v103 = vld [vmem:[%s1 + $0xe4] sm:$0xf]
  %v104 = vld [vmem:[%s1 + $0xe8] sm:$0xf]
  %v105 = vld [vmem:[%s1 + $0xec] sm:$0xf]
  %v106 = vld [vmem:[%s1 + $0xf0] sm:$0xf]
  %v107 = vld [vmem:[%s1 + $0xf4] sm:$0xf]
  %v108 = vld [vmem:[%s1 + $0xf8] sm:$0xf]
  %v109 = vld [vmem:[%s1 + $0xfc] sm:$0xf]
  %v110 = vld [vmem:[%s1 + $0x100] sm:$0xf]
  %v111 = vld [vmem:[%s1 + $0x104] sm:$0xf]
  %v112 = vld [vmem:[%s1 + $0x108] sm:$0xf]
  %v113 = vld [vmem:[%s1 + $0x10c] sm:$0xf]
  %v114 = vld [vmem:[%s1 + $0x110] sm:$0xf]
  %v115 = vld [vmem:[%s1 + $0x114] sm:$0xf]
  %v116 = vld [vmem:[%s1 + $0x118] sm:$0xf]
  %v117 = vld [vmem:[%s1 + $0x11c] sm:$0xf]
  %v130 = vunpack.c.l.b16 %v34
  %v131 = vunpack.c.h.b16 %v34
  %v132 = vunpack.c.l.b16 %v35
  %v133 = vunpack.c.h.b16 %v35
  %v134 = vunpack.c.l.b16 %v36
  %v135 = vunpack.c.l.b16 %v37
  %v136 = vunpack.c.h.b16 %v37
  %v137 = vunpack.c.l.b16 %v38
  %v138 = vunpack.c.h.b16 %v38
  %v139 = vunpack.c.l.b16 %v39
  %v140 = vunpack.c.l.b16 %v40
  %v141 = vunpack.c.h.b16 %v40
  %v142 = vunpack.c.l.b16 %v41
  %v143 = vunpack.c.h.b16 %v41
  %v144 = vunpack.c.l.b16 %v42
  %v145 = vunpack.c.l.b16 %v43
  %v146 = vunpack.c.h.b16 %v43
  %v147 = vunpack.c.l.b16 %v44
  %v148 = vunpack.c.h.b16 %v44
  %v149 = vunpack.c.l.b16 %v45
  %v150 = vpack.c.b16 %v135, %v130
  %v151 = vpack.c.b16 %v136, %v131
  %v152 = vpack.c.b16 %v137, %v132
  %v153 = vpack.c.b16 %v138, %v133
  %v154 = vpack.c.b16 %v139, %v134
  %v155 = vpack.c.b16 %v145, %v140
  %v156 = vpack.c.b16 %v146, %v141
  %v157 = vpack.c.b16 %v147, %v142
  %v158 = vpack.c.b16 %v148, %v143
  %v159 = vpack.c.b16 %v149, %v144
  %v240 = vunpack.c.l.b16 %v46
  %v241 = vunpack.c.l.b16 %v47
  %v242 = vunpack.c.l.b16 %v48
  %v243 = vunpack.c.l.b16 %v49
  %v244 = vunpack.c.l.b16 %v50
  %v245 = vunpack.c.l.b16 %v51
  %v246 = vunpack.c.l.b16 %v52
  %v247 = vunpack.c.l.b16 %v53
  %v248 = vunpack.c.l.b16 %v54
  %v249 = vunpack.c.l.b16 %v55
  %v250 = vunpack.c.l.b16 %v56
  %v251 = vunpack.c.l.b16 %v57
  %v252 = vunpack.c.l.b16 %v58
  %v253 = vunpack.c.l.b16 %v59
  %v254 = vunpack.c.l.b16 %v60
  %v255 = vunpack.c.l.b16 %v61
  %v256 = vunpack.c.l.b16 %v62
  %v257 = vunpack.c.l.b16 %v63
  %v258 = vunpack.c.l.b16 %v64
  %v259 = vunpack.c.l.b16 %v65
  %v260 = vunpack.c.l.b16 %v66
  %v261 = vunpack.c.l.b16 %v67
  %v262 = vunpack.c.l.b16 %v68
  %v263 = vunpack.c.l.b16 %v69
  %v264 = vunpack.c.l.b16 %v70
  %v265 = vunpack.c.l.b16 %v71
  %v266 = vunpack.c.l.b16 %v72
  %v267 = vunpack.c.l.b16 %v73
  %v268 = vunpack.c.l.b16 %v74
  %v269 = vunpack.c.l.b16 %v75
  %v270 = vunpack.c.l.b16 %v76
  %v271 = vunpack.c.l.b16 %v77
  %v272 = vunpack.c.l.b16 %v78
  %v273 = vunpack.c.l.b16 %v79
  %v274 = vunpack.c.l.b16 %v80
  %v275 = vunpack.c.l.b16 %v81
  %v276 = vunpack.c.l.b16 %v82
  %v277 = vunpack.c.l.b16 %v83
  %v278 = vunpack.c.l.b16 %v84
  %v279 = vunpack.c.l.b16 %v85
  %v280 = vunpack.c.l.b16 %v86
  %v281 = vunpack.c.l.b16 %v87
  %v282 = vunpack.c.l.b16 %v88
  %v283 = vunpack.c.l.b16 %v89
  %v284 = vunpack.c.l.b16 %v90
  %v285 = vunpack.c.l.b16 %v91
  %v286 = vunpack.c.l.b16 %v92
  %v287 = vunpack.c.l.b16 %v93
  %v288 = vunpack.c.l.b16 %v94
  %v289 = vunpack.c.l.b16 %v95
  %v290 = vunpack.c.l.b16 %v96
  %v291 = vunpack.c.l.b16 %v97
  %v292 = vunpack.c.l.b16 %v98
  %v293 = vunpack.c.l.b16 %v99
  %v294 = vunpack.c.l.b16 %v100
  %v295 = vunpack.c.l.b16 %v101
  %v296 = vunpack.c.l.b16 %v102
  %v297 = vunpack.c.l.b16 %v103
  %v298 = vunpack.c.l.b16 %v104
  %v299 = vunpack.c.l.b16 %v105
  %v300 = vunpack.c.l.b16 %v106
  %v301 = vunpack.c.l.b16 %v107
  %v302 = vunpack.c.l.b16 %v108
  %v303 = vunpack.c.l.b16 %v109
  %v304 = vunpack.c.l.b16 %v110
  %v305 = vunpack.c.l.b16 %v111
  %v306 = vunpack.c.l.b16 %v112
  %v307 = vunpack.c.l.b16 %v113
  %v308 = vunpack.c.l.b16 %v114
  %v309 = vunpack.c.l.b16 %v115
  %v310 = vunpack.c.l.b16 %v116
  %v311 = vunpack.c.l.b16 %v117
  %v312 = vpack.c.b16 %v241, %v240
  %v313 = vpack.c.b16 %v243, %v242
  %v314 = vpack.c.b16 %v245, %v244
  %v315 = vpack.c.b16 %v247, %v246
  %v316 = vpack.c.b16 %v249, %v248
  %v317 = vpack.c.b16 %v251, %v250
  %v318 = vpack.c.b16 %v253, %v252
  %v319 = vpack.c.b16 %v255, %v254
  %v320 = vpack.c.b16 %v257, %v256
  %v321 = vpack.c.b16 %v259, %v258
  %v322 = vpack.c.b16 %v261, %v260
  %v323 = vpack.c.b16 %v263, %v262
  %v324 = vpack.c.b16 %v265, %v264
  %v325 = vpack.c.b16 %v267, %v266
  %v326 = vpack.c.b16 %v269, %v268
  %v327 = vpack.c.b16 %v271, %v270
  %v328 = vpack.c.b16 %v273, %v272
  %v329 = vpack.c.b16 %v275, %v274
  %v330 = vpack.c.b16 %v277, %v276
  %v331 = vpack.c.b16 %v279, %v278
  %v332 = vpack.c.b16 %v281, %v280
  %v333 = vpack.c.b16 %v283, %v282
  %v334 = vpack.c.b16 %v285, %v284
  %v335 = vpack.c.b16 %v287, %v286
  %v336 = vpack.c.b16 %v289, %v288
  %v337 = vpack.c.b16 %v291, %v290
  %v338 = vpack.c.b16 %v293, %v292
  %v339 = vpack.c.b16 %v295, %v294
  %v340 = vpack.c.b16 %v297, %v296
  %v341 = vpack.c.b16 %v299, %v298
  %v342 = vpack.c.b16 %v301, %v300
  %v343 = vpack.c.b16 %v303, %v302
  %v344 = vpack.c.b16 %v305, %v304
  %v345 = vpack.c.b16 %v307, %v306
  %v346 = vpack.c.b16 %v309, %v308
  %v347 = vpack.c.b16 %v311, %v310
  %vm384 = vcmask 523264
  %v386 = vsel %vm384, %v154, 0
  %v389 = vsel %vm384, %v159, 0
  %391 = vmatprep.subr.bf16.mxu0 0
  %392 = vmatpush1.bf16.msra.mxu0 %v319
  %393 = vmatprep.subr.bf16.mxu0 0
  %394 = vmatpush1.bf16.msra.mxu0 %v318
  %395 = vmatprep.subr.bf16.mxu0 0
  %396 = vmatpush1.bf16.msra.mxu0 %v317
  %397 = vmatprep.subr.bf16.mxu0 0
  %398 = vmatpush1.bf16.msra.mxu0 %v316
  %399 = vmatprep.subr.bf16.mxu0 0
  %400 = vmatpush1.bf16.msra.mxu0 %v315
  %401 = vmatprep.subr.bf16.mxu0 0
  %402 = vmatpush1.bf16.msra.mxu0 %v314
  %403 = vmatprep.subr.bf16.mxu0 0
  %404 = vmatpush1.bf16.msra.mxu0 %v313
  %405 = vmatprep.subr.bf16.mxu0 0
  %406 = vmatpush1.bf16.msra.mxu0 %v312
  %407 = vmatprep.subr.bf16.mxu0 0
  %408 = vmatpush2.bf16.msra.mxu0 %v327
  %409 = vmatprep.subr.bf16.mxu0 0
  %410 = vmatpush2.bf16.msra.mxu0 %v326
  %411 = vmatprep.subr.bf16.mxu0 0
  %412 = vmatpush2.bf16.msra.mxu0 %v325
  %413 = vmatprep.subr.bf16.mxu0 0
  %414 = vmatpush2.bf16.msra.mxu0 %v324
  %415 = vmatprep.subr.bf16.mxu0 0
  %416 = vmatpush2.bf16.msra.mxu0 %v323
  %417 = vmatprep.subr.bf16.mxu0 0
  %418 = vmatpush2.bf16.msra.mxu0 %v322
  %419 = vmatprep.subr.bf16.mxu0 0
  %420 = vmatpush2.bf16.msra.mxu0 %v321
  %421 = vmatprep.subr.bf16.mxu0 0
  %422 = vmatpush2.bf16.msra.mxu0 %v320
  %423 = vmatprep.mubr.bf16.mxu0 %v151
  %424 = vmatmul.mubr.bf16.gmra.mxu0 %v150
  %v425 = vpop.f32.mrf.mxu0
  %v426 = vadd.f32 0.0, %v425
  %v427 = vpop.f32.mrf.mxu0
  %v428 = vpop.f32.mrf.mxu0
  %v429 = vadd.f32 0.0, %v428
  %v430 = vpop.f32.mrf.mxu0
  %431 = vmatprep.mubr.bf16.mxu0 %v156
  %432 = vmatmul.mubr.bf16.gmra.mxu0 %v155
  %v433 = vpop.f32.mrf.mxu0
  %v434 = vadd.f32 0.0, %v433
  %v435 = vpop.f32.mrf.mxu0
  %v436 = vpop.f32.mrf.mxu0
  %v437 = vadd.f32 0.0, %v436
  %v438 = vpop.f32.mrf.mxu0
  %439 = vdwg.mxu0
  %440 = vmatprep.subr.bf16.mxu0 0
  %441 = vmatpush1.bf16.msra.mxu0 %v335
  %442 = vmatprep.subr.bf16.mxu0 0
  %443 = vmatpush1.bf16.msra.mxu0 %v334
  %444 = vmatprep.subr.bf16.mxu0 0
  %445 = vmatpush1.bf16.msra.mxu0 %v333
  %446 = vmatprep.subr.bf16.mxu0 0
  %447 = vmatpush1.bf16.msra.mxu0 %v332
  %448 = vmatprep.subr.bf16.mxu0 0
  %449 = vmatpush1.bf16.msra.mxu0 %v331
  %450 = vmatprep.subr.bf16.mxu0 0
  %451 = vmatpush1.bf16.msra.mxu0 %v330
  %452 = vmatprep.subr.bf16.mxu0 0
  %453 = vmatpush1.bf16.msra.mxu0 %v329
  %454 = vmatprep.subr.bf16.mxu0 0
  %455 = vmatpush1.bf16.msra.mxu0 %v328
  %456 = vmatprep.subr.bf16.mxu0 0
  %457 = vmatpush2.bf16.msra.mxu0 %v343
  %458 = vmatprep.subr.bf16.mxu0 0
  %459 = vmatpush2.bf16.msra.mxu0 %v342
  %460 = vmatprep.subr.bf16.mxu0 0
  %461 = vmatpush2.bf16.msra.mxu0 %v341
  %462 = vmatprep.subr.bf16.mxu0 0
  %463 = vmatpush2.bf16.msra.mxu0 %v340
  %464 = vmatprep.subr.bf16.mxu0 0
  %465 = vmatpush2.bf16.msra.mxu0 %v339
  %466 = vmatprep.subr.bf16.mxu0 0
  %467 = vmatpush2.bf16.msra.mxu0 %v338
  %468 = vmatprep.subr.bf16.mxu0 0
  %469 = vmatpush2.bf16.msra.mxu0 %v337
  %470 = vmatprep.subr.bf16.mxu0 0
  %471 = vmatpush2.bf16.msra.mxu0 %v336
  %472 = vmatprep.mubr.bf16.mxu0 %v153
  %473 = vmatmul.mubr.bf16.gmra.mxu0 %v152
  %v474 = vpop.f32.mrf.mxu0
  %v475 = vadd.f32 %v426, %v474
  %v476 = vpop.f32.mrf.mxu0
  %v477 = vpop.f32.mrf.mxu0
  %v478 = vadd.f32 %v429, %v477
  %v479 = vpop.f32.mrf.mxu0
  %480 = vmatprep.mubr.bf16.mxu0 %v158
  %481 = vmatmul.mubr.bf16.gmra.mxu0 %v157
  %v482 = vpop.f32.mrf.mxu0
  %v483 = vadd.f32 %v434, %v482
  %v484 = vpop.f32.mrf.mxu0
  %v485 = vpop.f32.mrf.mxu0
  %v486 = vadd.f32 %v437, %v485
  %v487 = vpop.f32.mrf.mxu0
  %488 = vdwg.mxu0
  %489 = vmatprep.subr.bf16.mxu0 0
  %490 = vmatpush1.bf16.msra.mxu0 0
  %491 = vmatprep.subr.bf16.mxu0 0
  %492 = vmatpush1.bf16.msra.mxu0 0
  %493 = vmatprep.subr.bf16.mxu0 0
  %494 = vmatpush1.bf16.msra.mxu0 0
  %495 = vmatprep.subr.bf16.mxu0 0
  %496 = vmatpush1.bf16.msra.mxu0 0
  %497 = vmatprep.subr.bf16.mxu0 0
  %498 = vmatpush1.bf16.msra.mxu0 %v347
  %499 = vmatprep.subr.bf16.mxu0 0
  %500 = vmatpush1.bf16.msra.mxu0 %v346
  %501 = vmatprep.subr.bf16.mxu0 0
  %502 = vmatpush1.bf16.msra.mxu0 %v345
  %503 = vmatprep.subr.bf16.mxu0 0
  %504 = vmatpush1.bf16.msra.mxu0 %v344
  %505 = vmatprep.subr.bf16.mxu0 0
  %506 = vmatpush2.bf16.msra.mxu0 0
  %507 = vmatprep.subr.bf16.mxu0 0
  %508 = vmatpush2.bf16.msra.mxu0 0
  %509 = vmatprep.subr.bf16.mxu0 0
  %510 = vmatpush2.bf16.msra.mxu0 0
  %511 = vmatprep.subr.bf16.mxu0 0
  %512 = vmatpush2.bf16.msra.mxu0 0
  %513 = vmatprep.subr.bf16.mxu0 0
  %514 = vmatpush2.bf16.msra.mxu0 0
  %515 = vmatprep.subr.bf16.mxu0 0
  %516 = vmatpush2.bf16.msra.mxu0 0
  %517 = vmatprep.subr.bf16.mxu0 0
  %518 = vmatpush2.bf16.msra.mxu0 0
  %519 = vmatprep.subr.bf16.mxu0 0
  %520 = vmatpush2.bf16.msra.mxu0 0
  %521 = vmatprep.mubr.bf16.mxu0 0
  %522 = vmatmul.mubr.bf16.gmra.mxu0 %v386
  %v523 = vpop.f32.mrf.mxu0
  %v524 = vadd.f32 %v475, %v523
  %v525 = vpop.f32.mrf.mxu0
  %v526 = vpop.f32.mrf.mxu0
  %v527 = vadd.f32 %v478, %v526
  %v528 = vpop.f32.mrf.mxu0
  %529 = vmatprep.mubr.bf16.mxu0 0
  %530 = vmatmul.mubr.bf16.gmra.mxu0 %v389
  %v531 = vpop.f32.mrf.mxu0
  %v532 = vadd.f32 %v483, %v531
  %v533 = vpop.f32.mrf.mxu0
  %v534 = vpop.f32.mrf.mxu0
  %v535 = vadd.f32 %v486, %v534
  %v536 = vpop.f32.mrf.mxu0
  %537 = vdwg.mxu0
  %v538 = vadd.f32 %v30, %v524
  %v539 = vadd.f32 %v31, %v527
  %v540 = vadd.f32 %v32, %v532
  %v541 = vadd.f32 %v33, %v535
  %542 = vst.msk [vmem:[#allocation2] sm:$0xff] %vm384, %v538
  %543 = vst.msk [vmem:[#allocation2 + $0x8] sm:$0xff] %vm384, %v539
  %544 = vst.msk [vmem:[#allocation2 + $0x10] sm:$0xff] %vm384, %v540
  %545 = vst.msk [vmem:[#allocation2 + $0x18] sm:$0xff] %vm384, %v541
  // Predicated region
  $region18: #{resnet34_forward.77} parent=0 // pred_check
    %p546 = pneg %p15
  $region19: #{resnet34_forward.77} parent=0 // pred_check_branch
    %548 = sbr.rel (%p546) target = $region21
  $region20: #{resnet34_forward.77} parent=0 // pred_region
    %v549 = vld [vmem:[#allocation2] sm:$0xff]
    %v550 = vld [vmem:[#allocation2 + $0x8] sm:$0xff]
    %v551 = vld [vmem:[#allocation2 + $0x10] sm:$0xff]
    %v552 = vld [vmem:[#allocation2 + $0x18] sm:$0xff]
    %553 = vst.msk [vmem:[%s2] sm:$0xff] %vm384, %v549
    %554 = vst.msk [vmem:[%s2 + $0x8] sm:$0xff] %vm384, %v550
    %555 = vst.msk [vmem:[%s2 + $0x10] sm:$0xff] %vm384, %v551
    %556 = vst.msk [vmem:[%s2 + $0x18] sm:$0xff] %vm384, %v552
    %v557 = vld [vmem:[%s3] sm:$0x3]
    %v558 = vsel %vm384, %v549, 0.0
    %v559 = vsel %vm384, %v550, 0.0
    %v560 = vadd.f32 %v558, %v559
    %v561 = vsel %vm384, %v551, 0.0
    %v562 = vadd.f32 %v560, %v561
    %v563 = vsel %vm384, %v552, 0.0
    %v564 = vadd.f32 %v562, %v563
    %v565 = vrot.slane %v564, 4
    %v566 = vadd.f32 %v564, %v565
    %v567 = vrot.slane %v566, 2
    %v568 = vadd.f32 %v566, %v567
    %v569 = vrot.slane %v568, 1
    %v570 = vadd.f32 %v568, %v569
    %v571 = vmul.f32 %v549, %v549
    %v572 = vmul.f32 %v550, %v550
    %v573 = vmul.f32 %v551, %v551
    %v574 = vmul.f32 %v552, %v552
    %v575 = vsel %vm384, %v571, 0.0
    %v576 = vsel %vm384, %v572, 0.0
    %v577 = vadd.f32 %v575, %v576
    %v578 = vsel %vm384, %v573, 0.0
    %v579 = vadd.f32 %v577, %v578
    %v580 = vsel %vm384, %v574, 0.0
    %v581 = vadd.f32 %v579, %v580
    %v582 = vrot.slane %v581, 4
    %v583 = vadd.f32 %v581, %v582
    %v584 = vrot.slane %v583, 2
    %v585 = vadd.f32 %v583, %v584
    %v586 = vrot.slane %v585, 1
    %v587 = vadd.f32 %v585, %v586
    %vm588 = vcmask 1040384
    %v589 = vsel %vm588, %v570, %v587
    %v590 = vadd.f32 %v557, %v589
    %vm591 = vcmask 517120
    %592 = vst.msk [vmem:[%s3] sm:$0x3] %vm591, %v590
  $region21: #{resnet34_forward.77} parent=0 // pred_fallthru
    _
  // Predicated region
  $region22: #{resnet34_forward.77} parent=0 // pred_check
    _
  $region23: #{resnet34_forward.77} parent=0 // pred_check_branch
    %594 = sbr.rel (0) target = $region25
  $region24: #{resnet34_forward.77} parent=0 // pred_region
    _
  $region25: #{resnet34_forward.77} parent=0 // pred_fallthru
    _
  // Predicated region
  $region26: #{resnet34_forward.77} parent=0 // pred_check
    _
  $region27: #{resnet34_forward.77} parent=0 // pred_check_branch
    %596 = sbr.rel (0) target = $region29
  $region28: #{resnet34_forward.77} parent=0 // pred_region
    _
  $region29: #{resnet34_forward.77} parent=0 // pred_fallthru
    _
  // Predicated region
  $region30: #{resnet34_forward.77} parent=0 // pred_check
    _
  $region31: #{resnet34_forward.77} parent=0 // pred_check_branch
    %598 = sbr.rel (0) target = $region33
  $region32: #{resnet34_forward.77} parent=0 // pred_region
    _
  $region33: #{resnet34_forward.77} parent=0 // pred_fallthru
    _
  // Predicated region
  $region34: #{resnet34_forward.77} parent=0 // pred_check
    _
  $region35: #{resnet34_forward.77} parent=0 // pred_check_branch
    %600 = sbr.rel (0) target = $region37
  $region36: #{resnet34_forward.77} parent=0 // pred_region
    _
  $region37: #{resnet34_forward.77} parent=0 // pred_fallthru
    _

// kernel: resnet34_forward.80
$region0: #{resnet34_forward.80}
  #allocation0 [shape = 'u32[]', space=smem, size = 0x4, offset = 0x4, fixed_abs, tag = 'smem constant byte address 0x4 - core index']
  #allocation1 [shape = 'u32[144,128]{1,0:T(1,128)}', space=vmem, size = 0x12000, scoped, tag = 'internal scratch']
  %s0 = inlined_call_operand.vmem [shape: f32[32,64], index: 0, kind: input, shape index: {}]
  %s1 = inlined_call_operand.vmem [shape: bf16[32,64], index: 1, kind: input, shape index: {}]
  %s2 = inlined_call_operand.vmem [shape: f32[2,64], index: 2, kind: input, shape index: {}]
  %s3 = inlined_call_operand.vmem [shape: f32[1,64], index: 3, kind: input, shape index: {}]
  %s4 = inlined_call_operand.vmem [shape: f32[1,64], index: 4, kind: input, shape index: {}]
  %s5 = inlined_call_operand.vmem [shape: bf16[32,64], index: 5, kind: output, shape index: {}]
  %s6 = sld [smem:[#allocation0]]
  $region30: #{resnet34_forward.80} parent=0
    _
  %s8 = ssub.s32 1, %s6
  %s9 = scalar_select 0, %s8, %s6
  // Predicated region
  $region2: #{resnet34_forward.80} parent=0 // pred_check
    _
  $region3: #{resnet34_forward.80} parent=0 // pred_check_branch
    %11 = sbr.rel (0) target = $region5
  $region4: #{resnet34_forward.80} parent=0 // pred_region
    _
  $region5: #{resnet34_forward.80} parent=0 // pred_fallthru
    _
  // Predicated region
  $region6: #{resnet34_forward.80} parent=0 // pred_check
    _
  $region7: #{resnet34_forward.80} parent=0 // pred_check_branch
    %13 = sbr.rel (0) target = $region9
  $region8: #{resnet34_forward.80} parent=0 // pred_region
    _
  $region9: #{resnet34_forward.80} parent=0 // pred_fallthru
    _
  // Predicated region
  $region10: #{resnet34_forward.80} parent=0 // pred_check
    _
  $region11: #{resnet34_forward.80} parent=0 // pred_check_branch
    %15 = sbr.rel (0) target = $region13
  $region12: #{resnet34_forward.80} parent=0 // pred_region
    _
  $region13: #{resnet34_forward.80} parent=0 // pred_fallthru
    _
  // Predicated region
  $region14: #{resnet34_forward.80} parent=0 // pred_check
    _
  $region15: #{resnet34_forward.80} parent=0 // pred_check_branch
    %17 = sbr.rel (0) target = $region17
  $region16: #{resnet34_forward.80} parent=0 // pred_region
    _
  $region17: #{resnet34_forward.80} parent=0 // pred_fallthru
    _
  // Predicated region
  $region18: #{resnet34_forward.80} parent=0 // pred_check
    _
  $region19: #{resnet34_forward.80} parent=0 // pred_check_branch
    %19 = sbr.rel (0) target = $region21
  $region20: #{resnet34_forward.80} parent=0 // pred_region
    _
  $region21: #{resnet34_forward.80} parent=0 // pred_fallthru
    _
  %v20 = vld [vmem:[%s0] sm:$0xff]
  %v21 = vld [vmem:[%s0 + $0x8] sm:$0xff]
  %v22 = vld [vmem:[%s0 + $0x10] sm:$0xff]
  %v23 = vld [vmem:[%s0 + $0x18] sm:$0xff]
  %v24 = vld [vmem:[%s2] sm:$0x1]
  %v25 = vmul.f32 %v24, 0.03125
  %v26 = vld [vmem:[%s2 + $0x1] sm:$0x1]
  %v27 = vmul.f32 %v26, 0.03125
  %v28 = vmul.f32 %v25, %v25
  %v29 = vsub.f32 %v27, %v28
  %v30 = vmax.f32 %v29, 0.0
  %v31 = vlaneseq
  %v32 = vshrl.u32 %v31, 7
  %v33 = vsub.s32 0, %v32
  %v34 = vrot.slane %v25, %v33
  %v35 = vsub.f32 %v20, %v34
  %v36 = vsub.f32 %v21, %v34
  %v37 = vsub.f32 %v22, %v34
  %v38 = vsub.f32 %v23, %v34
  %v39 = vadd.f32 %v30, 1e-05
  %v40 = vrsqrt.pop %v39
  %v41 = vlaneseq
  %v42 = vshrl.u32 %v41, 7
  %v43 = vsub.s32 0, %v42
  %v44 = vrot.slane %v40, %v43
  %v45 = vmul.f32 %v35, %v44
  %v46 = vmul.f32 %v36, %v44
  %v47 = vmul.f32 %v37, %v44
  %v48 = vmul.f32 %v38, %v44
  %v49 = vld [vmem:[%s3] sm:$0x1]
  %v51 = vlaneseq
  %v52 = vshrl.u32 %v51, 7
  %v53 = vsub.s32 0, %v52
  %v54 = vrot.slane %v49, %v53
  %v56 = vmul.f32 %v45, %v54
  %v57 = vmul.f32 %v46, %v54
  %v58 = vmul.f32 %v47, %v54
  %v59 = vmul.f32 %v48, %v54
  %v60 = vld [vmem:[%s4] sm:$0x1]
  %v62 = vlaneseq
  %v63 = vshrl.u32 %v62, 7
  %v64 = vsub.s32 0, %v63
  %v65 = vrot.slane %v60, %v64
  %v67 = vadd.f32 %v56, %v65
  %v68 = vadd.f32 %v57, %v65
  %v69 = vadd.f32 %v58, %v65
  %v70 = vadd.f32 %v59, %v65
  %v71 = vld [vmem:[%s1] sm:$0xf]
  %v72 = vld [vmem:[%s1 + $0x4] sm:$0xf]
  %v73 = vld [vmem:[%s1 + $0x8] sm:$0xf]
  %v74 = vld [vmem:[%s1 + $0xc] sm:$0xf]
  %v75 = vunpack.c.l.bf16 %v71
  %v76 = vunpack.c.l.bf16 %v72
  %v77 = vunpack.c.l.bf16 %v73
  %v78 = vunpack.c.l.bf16 %v74
  %v79 = vadd.f32 %v67, %v75
  %v80 = vadd.f32 %v68, %v76
  %v81 = vadd.f32 %v69, %v77
  %v82 = vadd.f32 %v70, %v78
  %v83 = vmax.f32 %v79, 0.0
  %v84 = vmax.f32 %v80, 0.0
  %v85 = vmax.f32 %v81, 0.0
  %v86 = vmax.f32 %v82, 0.0
  %v87 = vpack.c.bf16 %v84, %v83
  %v88 = vpack.c.bf16 %v86, %v85
  %v91 = vunpack.c.l.b16 %v87
  %v92 = vunpack.c.h.b16 %v87
  %v93 = vunpack.c.l.b16 %v88
  %v94 = vunpack.c.h.b16 %v88
  %v95 = vpack.c.b16 %v91, %v91
  %v96 = vpack.c.b16 %v92, %v92
  %v97 = vpack.c.b16 %v93, %v93
  %v98 = vpack.c.b16 %v94, %v94
  %vm103 = vcmask 519168
  %104 = vst.msk [vmem:[%s5] sm:$0xf] %vm103, %v95
  %105 = vst.msk [vmem:[%s5 + $0x4] sm:$0xf] %vm103, %v96
  %106 = vst.msk [vmem:[%s5 + $0x8] sm:$0xf] %vm103, %v97
  %107 = vst.msk [vmem:[%s5 + $0xc] sm:$0xf] %vm103, %v98
  // Predicated region
  $region22: #{resnet34_forward.80} parent=0 // pred_check
    _
  $region23: #{resnet34_forward.80} parent=0 // pred_check_branch
    %109 = sbr.rel (0) target = $region25
  $region24: #{resnet34_forward.80} parent=0 // pred_region
    _
  $region25: #{resnet34_forward.80} parent=0 // pred_fallthru
    _
  // Predicated region
  $region26: #{resnet34_forward.80} parent=0 // pred_check
    _
  $region27: #{resnet34_forward.80} parent=0 // pred_check_branch
    %111 = sbr.rel (0) target = $region29
  $region28: #{resnet34_forward.80} parent=0 // pred_region
    _
  $region29: #{resnet34_forward.80} parent=0 // pred_fallthru
    _

// kernel: resnet34_forward.89
$region0: #{resnet34_forward.89}
  #allocation0 [shape = 'u32[]', space=smem, size = 0x4, offset = 0x4, fixed_abs, tag = 'smem constant byte address 0x4 - core index']
  #allocation1 [shape = 'u32[144,128]{1,0:T(1,128)}', space=vmem, size = 0x12000, scoped, tag = 'internal scratch']
  #allocation2 [shape = 'f32[8,128]{1,0:T(8,128)}', space=vmem, size = 0x1000, scoped, tag = 'scratch operand']
  %s0 = inlined_call_operand.vmem [shape: bf16[8,576], index: 0, kind: input, shape index: {}]
  %s1 = inlined_call_operand.vmem [shape: bf16[576,128], index: 1, kind: input, shape index: {}]
  %s2 = inlined_call_operand.vmem [shape: f32[8,128], index: 2, kind: output, shape index: {0}]
  %s3 = inlined_call_operand.vmem [shape: f32[2,128], index: 3, kind: output, shape index: {1}]
  %4 = xla_tuple %s2, %s3
  %s5 = sld [smem:[#allocation0]]
  $region38: #{resnet34_forward.89} parent=0
    _
  %s7 = ssub.s32 1, %s5
  %s8 = scalar_select 0, %s7, %s5
  // Predicated region
  $region2: #{resnet34_forward.89} parent=0 // pred_check
    _
  $region3: #{resnet34_forward.89} parent=0 // pred_check_branch
    %10 = sbr.rel (0) target = $region5
  $region4: #{resnet34_forward.89} parent=0 // pred_region
    _
  $region5: #{resnet34_forward.89} parent=0 // pred_fallthru
    _
  // Predicated region
  $region6: #{resnet34_forward.89} parent=0 // pred_check
    _
  $region7: #{resnet34_forward.89} parent=0 // pred_check_branch
    %12 = sbr.rel (0) target = $region9
  $region8: #{resnet34_forward.89} parent=0 // pred_region
    _
  $region9: #{resnet34_forward.89} parent=0 // pred_fallthru
    _
  %p14 = scmp.eq.s32.totalorder 0, 0
  %p15 = scmp.eq.s32.totalorder 0, 0
  %p16 = pnand %p14, %p15
  %p17 = pneg %p16
  // Predicated region
  $region10: #{resnet34_forward.89} parent=0 // pred_check
    _
  $region11: #{resnet34_forward.89} parent=0 // pred_check_branch
    %19 = sbr.rel (%p16) target = $region13
  $region12: #{resnet34_forward.89} parent=0 // pred_region
    %20 = vst [vmem:[%s3] sm:$0x3] 0.0
  $region13: #{resnet34_forward.89} parent=0 // pred_fallthru
    _
  // Predicated region
  $region14: #{resnet34_forward.89} parent=0 // pred_check
    %p21 = pneg %p15
  $region15: #{resnet34_forward.89} parent=0 // pred_check_branch
    %23 = sbr.rel (%p21) target = $region17
  $region16: #{resnet34_forward.89} parent=0 // pred_region
    %24 = vst [vmem:[#allocation2] sm:$0xff] 0.0
  $region17: #{resnet34_forward.89} parent=0 // pred_fallthru
    _
  %v25 = vld [vmem:[#allocation2] sm:$0xff]
  %v26 = vld [vmem:[%s0] sm:$0xff]
  %v27 = vld [vmem:[%s0 + $0x8] sm:$0xff]
  %v28 = vld [vmem:[%s0 + $0x10] sm:$0xf]
  %v29 = vld [vmem:[%s1] sm:$0xf]
  %v30 = vld [vmem:[%s1 + $0x4] sm:$0xf]
  %v31 = vld [vmem:[%s1 + $0x8] sm:$0xf]
  %v32 = vld [vmem:[%s1 + $0xc] sm:$0xf]
  %v33 = vld [vmem:[%s1 + $0x10] sm:$0xf]
  %v34 = vld [vmem:[%s1 + $0x14] sm:$0xf]
  %v35 = vld [vmem:[%s1 + $0x18] sm:$0xf]
  %v36 = vld [vmem:[%s1 + $0x1c] sm:$0xf]
  %v37 = vld [vmem:[%s1 + $0x20] sm:$0xf]
  %v38 = vld [vmem:[%s1 + $0x24] sm:$0xf]
  %v39 = vld [vmem:[%s1 + $0x28] sm:$0xf]
  %v40 = vld [vmem:[%s1 + $0x2c] sm:$0xf]
  %v41 = vld [vmem:[%s1 + $0x30] sm:$0xf]
  %v42 = vld [vmem:[%s1 + $0x34] sm:$0xf]
  %v43 = vld [vmem:[%s1 + $0x38] sm:$0xf]
  %v44 = vld [vmem:[%s1 + $0x3c] sm:$0xf]
  %v45 = vld [vmem:[%s1 + $0x40] sm:$0xf]
  %v46 = vld [vmem:[%s1 + $0x44] sm:$0xf]
  %v47 = vld [vmem:[%s1 + $0x48] sm:$0xf]
  %v48 = vld [vmem:[%s1 + $0x4c] sm:$0xf]
  %v49 = vld [vmem:[%s1 + $0x50] sm:$0xf]
  %v50 = vld [vmem:[%s1 + $0x54] sm:$0xf]
  %v51 = vld [vmem:[%s1 + $0x58] sm:$0xf]
  %v52 = vld [vmem:[%s1 + $0x5c] sm:$0xf]
  %v53 = vld [vmem:[%s1 + $0x60] sm:$0xf]
  %v54 = vld [vmem:[%s1 + $0x64] sm:$0xf]
  %v55 = vld [vmem:[%s1 + $0x68] sm:$0xf]
  %v56 = vld [vmem:[%s1 + $0x6c] sm:$0xf]
  %v57 = vld [vmem:[%s1 + $0x70] sm:$0xf]
  %v58 = vld [vmem:[%s1 + $0x74] sm:$0xf]
  %v59 = vld [vmem:[%s1 + $0x78] sm:$0xf]
  %v60 = vld [vmem:[%s1 + $0x7c] sm:$0xf]
  %v61 = vld [vmem:[%s1 + $0x80] sm:$0xf]
  %v62 = vld [vmem:[%s1 + $0x84] sm:$0xf]
  %v63 = vld [vmem:[%s1 + $0x88] sm:$0xf]
  %v64 = vld [vmem:[%s1 + $0x8c] sm:$0xf]
  %v65 = vld [vmem:[%s1 + $0x90] sm:$0xf]
  %v66 = vld [vmem:[%s1 + $0x94] sm:$0xf]
  %v67 = vld [vmem:[%s1 + $0x98] sm:$0xf]
  %v68 = vld [vmem:[%s1 + $0x9c] sm:$0xf]
  %v69 = vld [vmem:[%s1 + $0xa0] sm:$0xf]
  %v70 = vld [vmem:[%s1 + $0xa4] sm:$0xf]
  %v71 = vld [vmem:[%s1 + $0xa8] sm:$0xf]
  %v72 = vld [vmem:[%s1 + $0xac] sm:$0xf]
  %v73 = vld [vmem:[%s1 + $0xb0] sm:$0xf]
  %v74 = vld [vmem:[%s1 + $0xb4] sm:$0xf]
  %v75 = vld [vmem:[%s1 + $0xb8] sm:$0xf]
  %v76 = vld [vmem:[%s1 + $0xbc] sm:$0xf]
  %v77 = vld [vmem:[%s1 + $0xc0] sm:$0xf]
  %v78 = vld [vmem:[%s1 + $0xc4] sm:$0xf]
  %v79 = vld [vmem:[%s1 + $0xc8] sm:$0xf]
  %v80 = vld [vmem:[%s1 + $0xcc] sm:$0xf]
  %v81 = vld [vmem:[%s1 + $0xd0] sm:$0xf]
  %v82 = vld [vmem:[%s1 + $0xd4] sm:$0xf]
  %v83 = vld [vmem:[%s1 + $0xd8] sm:$0xf]
  %v84 = vld [vmem:[%s1 + $0xdc] sm:$0xf]
  %v85 = vld [vmem:[%s1 + $0xe0] sm:$0xf]
  %v86 = vld [vmem:[%s1 + $0xe4] sm:$0xf]
  %v87 = vld [vmem:[%s1 + $0xe8] sm:$0xf]
  %v88 = vld [vmem:[%s1 + $0xec] sm:$0xf]
  %v89 = vld [vmem:[%s1 + $0xf0] sm:$0xf]
  %v90 = vld [vmem:[%s1 + $0xf4] sm:$0xf]
  %v91 = vld [vmem:[%s1 + $0xf8] sm:$0xf]
  %v92 = vld [vmem:[%s1 + $0xfc] sm:$0xf]
  %v93 = vld [vmem:[%s1 + $0x100] sm:$0xf]
  %v94 = vld [vmem:[%s1 + $0x104] sm:$0xf]
  %v95 = vld [vmem:[%s1 + $0x108] sm:$0xf]
  %v96 = vld [vmem:[%s1 + $0x10c] sm:$0xf]
  %v97 = vld [vmem:[%s1 + $0x110] sm:$0xf]
  %v98 = vld [vmem:[%s1 + $0x114] sm:$0xf]
  %v99 = vld [vmem:[%s1 + $0x118] sm:$0xf]
  %v100 = vld [vmem:[%s1 + $0x11c] sm:$0xf]
  %v104 = vunpack.c.l.b16 %v26
  %v105 = vunpack.c.h.b16 %v26
  %v106 = vunpack.c.l.b16 %v27
  %v107 = vunpack.c.h.b16 %v27
  %v108 = vunpack.c.l.b16 %v28
  %v109 = vpack.c.b16 %v104, %v104
  %v110 = vpack.c.b16 %v105, %v105
  %v111 = vpack.c.b16 %v106, %v106
  %v112 = vpack.c.b16 %v107, %v107
  %v113 = vpack.c.b16 %v108, %v108
  %v190 = vunpack.c.l.b16 %v29
  %v191 = vunpack.c.l.b16 %v30
  %v192 = vunpack.c.l.b16 %v31
  %v193 = vunpack.c.l.b16 %v32
  %v194 = vunpack.c.l.b16 %v33
  %v195 = vunpack.c.l.b16 %v34
  %v196 = vunpack.c.l.b16 %v35
  %v197 = vunpack.c.l.b16 %v36
  %v198 = vunpack.c.l.b16 %v37
  %v199 = vunpack.c.l.b16 %v38
  %v200 = vunpack.c.l.b16 %v39
  %v201 = vunpack.c.l.b16 %v40
  %v202 = vunpack.c.l.b16 %v41
  %v203 = vunpack.c.l.b16 %v42
  %v204 = vunpack.c.l.b16 %v43
  %v205 = vunpack.c.l.b16 %v44
  %v206 = vunpack.c.l.b16 %v45
  %v207 = vunpack.c.l.b16 %v46
  %v208 = vunpack.c.l.b16 %v47
  %v209 = vunpack.c.l.b16 %v48
  %v210 = vunpack.c.l.b16 %v49
  %v211 = vunpack.c.l.b16 %v50
  %v212 = vunpack.c.l.b16 %v51
  %v213 = vunpack.c.l.b16 %v52
  %v214 = vunpack.c.l.b16 %v53
  %v215 = vunpack.c.l.b16 %v54
  %v216 = vunpack.c.l.b16 %v55
  %v217 = vunpack.c.l.b16 %v56
  %v218 = vunpack.c.l.b16 %v57
  %v219 = vunpack.c.l.b16 %v58
  %v220 = vunpack.c.l.b16 %v59
  %v221 = vunpack.c.l.b16 %v60
  %v222 = vunpack.c.l.b16 %v61
  %v223 = vunpack.c.l.b16 %v62
  %v224 = vunpack.c.l.b16 %v63
  %v225 = vunpack.c.l.b16 %v64
  %v226 = vunpack.c.l.b16 %v65
  %v227 = vunpack.c.l.b16 %v66
  %v228 = vunpack.c.l.b16 %v67
  %v229 = vunpack.c.l.b16 %v68
  %v230 = vunpack.c.l.b16 %v69
  %v231 = vunpack.c.l.b16 %v70
  %v232 = vunpack.c.l.b16 %v71
  %v233 = vunpack.c.l.b16 %v72
  %v234 = vunpack.c.l.b16 %v73
  %v235 = vunpack.c.l.b16 %v74
  %v236 = vunpack.c.l.b16 %v75
  %v237 = vunpack.c.l.b16 %v76
  %v238 = vunpack.c.l.b16 %v77
  %v239 = vunpack.c.l.b16 %v78
  %v240 = vunpack.c.l.b16 %v79
  %v241 = vunpack.c.l.b16 %v80
  %v242 = vunpack.c.l.b16 %v81
  %v243 = vunpack.c.l.b16 %v82
  %v244 = vunpack.c.l.b16 %v83
  %v245 = vunpack.c.l.b16 %v84
  %v246 = vunpack.c.l.b16 %v85
  %v247 = vunpack.c.l.b16 %v86
  %v248 = vunpack.c.l.b16 %v87
  %v249 = vunpack.c.l.b16 %v88
  %v250 = vunpack.c.l.b16 %v89
  %v251 = vunpack.c.l.b16 %v90
  %v252 = vunpack.c.l.b16 %v91
  %v253 = vunpack.c.l.b16 %v92
  %v254 = vunpack.c.l.b16 %v93
  %v255 = vunpack.c.l.b16 %v94
  %v256 = vunpack.c.l.b16 %v95
  %v257 = vunpack.c.l.b16 %v96
  %v258 = vunpack.c.l.b16 %v97
  %v259 = vunpack.c.l.b16 %v98
  %v260 = vunpack.c.l.b16 %v99
  %v261 = vunpack.c.l.b16 %v100
  %v262 = vpack.c.b16 %v191, %v190
  %v263 = vpack.c.b16 %v193, %v192
  %v264 = vpack.c.b16 %v195, %v194
  %v265 = vpack.c.b16 %v197, %v196
  %v266 = vpack.c.b16 %v199, %v198
  %v267 = vpack.c.b16 %v201, %v200
  %v268 = vpack.c.b16 %v203, %v202
  %v269 = vpack.c.b16 %v205, %v204
  %v270 = vpack.c.b16 %v207, %v206
  %v271 = vpack.c.b16 %v209, %v208
  %v272 = vpack.c.b16 %v211, %v210
  %v273 = vpack.c.b16 %v213, %v212
  %v274 = vpack.c.b16 %v215, %v214
  %v275 = vpack.c.b16 %v217, %v216
  %v276 = vpack.c.b16 %v219, %v218
  %v277 = vpack.c.b16 %v221, %v220
  %v278 = vpack.c.b16 %v223, %v222
  %v279 = vpack.c.b16 %v225, %v224
  %v280 = vpack.c.b16 %v227, %v226
  %v281 = vpack.c.b16 %v229, %v228
  %v282 = vpack.c.b16 %v231, %v230
  %v283 = vpack.c.b16 %v233, %v232
  %v284 = vpack.c.b16 %v235, %v234
  %v285 = vpack.c.b16 %v237, %v236
  %v286 = vpack.c.b16 %v239, %v238
  %v287 = vpack.c.b16 %v241, %v240
  %v288 = vpack.c.b16 %v243, %v242
  %v289 = vpack.c.b16 %v245, %v244
  %v290 = vpack.c.b16 %v247, %v246
  %v291 = vpack.c.b16 %v249, %v248
  %v292 = vpack.c.b16 %v251, %v250
  %v293 = vpack.c.b16 %v253, %v252
  %v294 = vpack.c.b16 %v255, %v254
  %v295 = vpack.c.b16 %v257, %v256
  %v296 = vpack.c.b16 %v259, %v258
  %v297 = vpack.c.b16 %v261, %v260
  %vm334 = vcmask 523264
  %v336 = vsel %vm334, %v113, 0
  %338 = vmatprep.subr.bf16.mxu0 0
  %339 = vmatpush1.bf16.msra.mxu0 %v269
  %340 = vmatprep.subr.bf16.mxu0 0
  %341 = vmatpush1.bf16.msra.mxu0 %v268
  %342 = vmatprep.subr.bf16.mxu0 0
  %343 = vmatpush1.bf16.msra.mxu0 %v267
  %344 = vmatprep.subr.bf16.mxu0 0
  %345 = vmatpush1.bf16.msra.mxu0 %v266
  %346 = vmatprep.subr.bf16.mxu0 0
  %347 = vmatpush1.bf16.msra.mxu0 %v265
  %348 = vmatprep.subr.bf16.mxu0 0
  %349 = vmatpush1.bf16.msra.mxu0 %v264
  %350 = vmatprep.subr.bf16.mxu0 0
  %351 = vmatpush1.bf16.msra.mxu0 %v263
  %352 = vmatprep.subr.bf16.mxu0 0
  %353 = vmatpush1.bf16.msra.mxu0 %v262
  %354 = vmatprep.subr.bf16.mxu0 0
  %355 = vmatpush2.bf16.msra.mxu0 %v277
  %356 = vmatprep.subr.bf16.mxu0 0
  %357 = vmatpush2.bf16.msra.mxu0 %v276
  %358 = vmatprep.subr.bf16.mxu0 0
  %359 = vmatpush2.bf16.msra.mxu0 %v275
  %360 = vmatprep.subr.bf16.mxu0 0
  %361 = vmatpush2.bf16.msra.mxu0 %v274
  %362 = vmatprep.subr.bf16.mxu0 0
  %363 = vmatpush2.bf16.msra.mxu0 %v273
  %364 = vmatprep.subr.bf16.mxu0 0
  %365 = vmatpush2.bf16.msra.mxu0 %v272
  %366 = vmatprep.subr.bf16.mxu0 0
  %367 = vmatpush2.bf16.msra.mxu0 %v271
  %368 = vmatprep.subr.bf16.mxu0 0
  %369 = vmatpush2.bf16.msra.mxu0 %v270
  %370 = vmatprep.mubr.bf16.mxu0 %v110
  %371 = vmatmul.mubr.bf16.gmra.mxu0 %v109
  %v372 = vpop.f32.mrf.mxu0
  %v373 = vadd.f32 0.0, %v372
  %v374 = vpop.f32.mrf.mxu0
  %v375 = vpop.f32.mrf.mxu0
  %v376 = vpop.f32.mrf.mxu0
  %377 = vdwg.mxu0
  %378 = vmatprep.subr.bf16.mxu0 0
  %379 = vmatpush1.bf16.msra.mxu0 %v285
  %380 = vmatprep.subr.bf16.mxu0 0
  %381 = vmatpush1.bf16.msra.mxu0 %v284
  %382 = vmatprep.subr.bf16.mxu0 0
  %383 = vmatpush1.bf16.msra.mxu0 %v283
  %384 = vmatprep.subr.bf16.mxu0 0
  %385 = vmatpush1.bf16.msra.mxu0 %v282
  %386 = vmatprep.subr.bf16.mxu0 0
  %387 = vmatpush1.bf16.msra.mxu0 %v281
  %388 = vmatprep.subr.bf16.mxu0 0
  %389 = vmatpush1.bf16.msra.mxu0 %v280
  %390 = vmatprep.subr.bf16.mxu0 0
  %391 = vmatpush1.bf16.msra.mxu0 %v279
  %392 = vmatprep.subr.bf16.mxu0 0
  %393 = vmatpush1.bf16.msra.mxu0 %v278
  %394 = vmatprep.subr.bf16.mxu0 0
  %395 = vmatpush2.bf16.msra.mxu0 %v293
  %396 = vmatprep.subr.bf16.mxu0 0
  %397 = vmatpush2.bf16.msra.mxu0 %v292
  %398 = vmatprep.subr.bf16.mxu0 0
  %399 = vmatpush2.bf16.msra.mxu0 %v291
  %400 = vmatprep.subr.bf16.mxu0 0
  %401 = vmatpush2.bf16.msra.mxu0 %v290
  %402 = vmatprep.subr.bf16.mxu0 0
  %403 = vmatpush2.bf16.msra.mxu0 %v289
  %404 = vmatprep.subr.bf16.mxu0 0
  %405 = vmatpush2.bf16.msra.mxu0 %v288
  %406 = vmatprep.subr.bf16.mxu0 0
  %407 = vmatpush2.bf16.msra.mxu0 %v287
  %408 = vmatprep.subr.bf16.mxu0 0
  %409 = vmatpush2.bf16.msra.mxu0 %v286
  %410 = vmatprep.mubr.bf16.mxu0 %v112
  %411 = vmatmul.mubr.bf16.gmra.mxu0 %v111
  %v412 = vpop.f32.mrf.mxu0
  %v413 = vadd.f32 %v373, %v412
  %v414 = vpop.f32.mrf.mxu0
  %v415 = vpop.f32.mrf.mxu0
  %v416 = vpop.f32.mrf.mxu0
  %417 = vdwg.mxu0
  %418 = vmatprep.subr.bf16.mxu0 0
  %419 = vmatpush1.bf16.msra.mxu0 0
  %420 = vmatprep.subr.bf16.mxu0 0
  %421 = vmatpush1.bf16.msra.mxu0 0
  %422 = vmatprep.subr.bf16.mxu0 0
  %423 = vmatpush1.bf16.msra.mxu0 0
  %424 = vmatprep.subr.bf16.mxu0 0
  %425 = vmatpush1.bf16.msra.mxu0 0
  %426 = vmatprep.subr.bf16.mxu0 0
  %427 = vmatpush1.bf16.msra.mxu0 %v297
  %428 = vmatprep.subr.bf16.mxu0 0
  %429 = vmatpush1.bf16.msra.mxu0 %v296
  %430 = vmatprep.subr.bf16.mxu0 0
  %431 = vmatpush1.bf16.msra.mxu0 %v295
  %432 = vmatprep.subr.bf16.mxu0 0
  %433 = vmatpush1.bf16.msra.mxu0 %v294
  %434 = vmatprep.subr.bf16.mxu0 0
  %435 = vmatpush2.bf16.msra.mxu0 0
  %436 = vmatprep.subr.bf16.mxu0 0
  %437 = vmatpush2.bf16.msra.mxu0 0
  %438 = vmatprep.subr.bf16.mxu0 0
  %439 = vmatpush2.bf16.msra.mxu0 0
  %440 = vmatprep.subr.bf16.mxu0 0
  %441 = vmatpush2.bf16.msra.mxu0 0
  %442 = vmatprep.subr.bf16.mxu0 0
  %443 = vmatpush2.bf16.msra.mxu0 0
  %444 = vmatprep.subr.bf16.mxu0 0
  %445 = vmatpush2.bf16.msra.mxu0 0
  %446 = vmatprep.subr.bf16.mxu0 0
  %447 = vmatpush2.bf16.msra.mxu0 0
  %448 = vmatprep.subr.bf16.mxu0 0
  %449 = vmatpush2.bf16.msra.mxu0 0
  %450 = vmatprep.mubr.bf16.mxu0 0
  %451 = vmatmul.mubr.bf16.gmra.mxu0 %v336
  %v452 = vpop.f32.mrf.mxu0
  %v453 = vadd.f32 %v413, %v452
  %v454 = vpop.f32.mrf.mxu0
  %v455 = vpop.f32.mrf.mxu0
  %v456 = vpop.f32.mrf.mxu0
  %457 = vdwg.mxu0
  %v458 = vadd.f32 %v25, %v453
  %459 = vst [vmem:[#allocation2] sm:$0xff] %v458
  // Predicated region
  $region18: #{resnet34_forward.89} parent=0 // pred_check
    %p460 = pneg %p15
  $region19: #{resnet34_forward.89} parent=0 // pred_check_branch
    %462 = sbr.rel (%p460) target = $region21
  $region20: #{resnet34_forward.89} parent=0 // pred_region
    %v463 = vld [vmem:[#allocation2] sm:$0xff]
    %464 = vst [vmem:[%s2] sm:$0xff] %v463
    %v465 = vld [vmem:[%s3] sm:$0x3]
    %v466 = vrot.slane %v463, 4
    %v467 = vadd.f32 %v463, %v466
    %v468 = vrot.slane %v467, 2
    %v469 = vadd.f32 %v467, %v468
    %v470 = vrot.slane %v469, 1
    %v471 = vadd.f32 %v469, %v470
    %v472 = vmul.f32 %v463, %v463
    %v473 = vrot.slane %v472, 4
    %v474 = vadd.f32 %v472, %v473
    %v475 = vrot.slane %v474, 2
    %v476 = vadd.f32 %v474, %v475
    %v477 = vrot.slane %v476, 1
    %v478 = vadd.f32 %v476, %v477
    %vm479 = vcmask 1040384
    %v480 = vsel %vm479, %v471, %v478
    %v481 = vadd.f32 %v465, %v480
    %482 = vst [vmem:[%s3] sm:$0x3] %v481
  $region21: #{resnet34_forward.89} parent=0 // pred_fallthru
    _
  // Predicated region
  $region22: #{resnet34_forward.89} parent=0 // pred_check
    _
  $region23: #{resnet34_forward.89} parent=0 // pred_check_branch
    %484 = sbr.rel (0) target = $region25
  $region24: #{resnet34_forward.89} parent=0 // pred_region
    _
  $region25: #{resnet34_forward.89} parent=0 // pred_fallthru
    _
  // Predicated region
  $region26: #{resnet34_forward.89} parent=0 // pred_check
    _
  $region27: #{resnet34_forward.89} parent=0 // pred_check_branch
    %486 = sbr.rel (0) target = $region29
  $region28: #{resnet34_forward.89} parent=0 // pred_region
    _
  $region29: #{resnet34_forward.89} parent=0 // pred_fallthru
    _
  // Predicated region
  $region30: #{resnet34_forward.89} parent=0 // pred_check
    _
  $region31: #{resnet34_forward.89} parent=0 // pred_check_branch
    %488 = sbr.rel (0) target = $region33
  $region32: #{resnet34_forward.89} parent=0 // pred_region
    _
  $region33: #{resnet34_forward.89} parent=0 // pred_fallthru
    _
  // Predicated region
  $region34: #{resnet34_forward.89} parent=0 // pred_check
    _
  $region35: #{resnet34_forward.89} parent=0 // pred_check_branch
    %490 = sbr.rel (0) target = $region37
  $region36: #{resnet34_forward.89} parent=0 // pred_region
    _
  $region37: #{resnet34_forward.89} parent=0 // pred_fallthru
    _

// kernel: resnet34_forward.91
$region0: #{resnet34_forward.91}
  #allocation0 [shape = 'u32[]', space=smem, size = 0x4, offset = 0x4, fixed_abs, tag = 'smem constant byte address 0x4 - core index']
  #allocation1 [shape = 'u32[144,128]{1,0:T(1,128)}', space=vmem, size = 0x12000, scoped, tag = 'internal scratch']
  #allocation2 [shape = 'f32[8,128]{1,0:T(8,128)}', space=vmem, size = 0x1000, scoped, tag = 'scratch operand']
  %s0 = inlined_call_operand.vmem [shape: bf16[8,1152], index: 0, kind: input, shape index: {}]
  %s1 = inlined_call_operand.vmem [shape: bf16[1152,128], index: 1, kind: input, shape index: {}]
  %s2 = inlined_call_operand.vmem [shape: f32[8,128], index: 2, kind: output, shape index: {0}]
  %s3 = inlined_call_operand.vmem [shape: f32[2,128], index: 3, kind: output, shape index: {1}]
  %4 = xla_tuple %s2, %s3
  %s5 = sld [smem:[#allocation0]]
  $region61: #{resnet34_forward.91} parent=0
    _
  %s7 = ssub.s32 1, %s5
  %s8 = scalar_select 0, %s7, %s5
  loop: start=0, step=1, limit=11
  $region2: #{resnet34_forward.91} parent=0 // loop_pre_header
    _
  $region3: #{resnet34_forward.91} parent=0 // loop_header
    %s10 = sphi 0, %s14
    %p11 = scmp.ge.s32.totalorder %s10, 11
    %s17 = sphi 0, %s29
    %s18 = sphi 0, %s25
    %s19 = sphi 0, %s17
    %s20 = sphi 0, %s18
    %s21 = sphi 0, %s19
    %s22 = sphi 0, %s20
    %s34 = sphi 0, %s36
    %s37 = sphi 0, %s34
    %s38 = sphi 0, %s37
    %s54 = sphi 0, %s38
    %s60 = sphi 0, %s62
    %s63 = sphi 0, %s60
    %s64 = sphi 0, %s63
    %s80 = sphi 0, %s64
    %s86 = sphi 0, %s88
    %s89 = sphi 0, %s86
    %s90 = sphi 0, %s89
    %s106 = sphi 0, %s90
    %s110 = sphi 0, %s110
    %s112 = sphi 0, %s110
    %s113 = sphi 0, %s112
    %s127 = sphi 0, %s113
  $region4: #{resnet34_forward.91} parent=0 // loop_header_branch
    %13 = sbr.rel (%p11) target = $region8
  $region5: #{resnet34_forward.91} parent=0 // loop_body
    %s15 = ssub.s32 %s10, 1
    %s16 = ssub.s32 %s10, 2
    %s23 = sadd.s32 1, %s18
    %p24 = scmp.ge.s32.totalorder %s23, 9
    %s25 = scalar_select %p24, 0, %s23
    %s26 = sadd.s32 1, %s17
    %s27 = scalar_select %p24, %s26, %s17
    %p28 = scmp.ge.s32.totalorder %s27, 1
    %s29 = scalar_select %p28, 0, %s27
    %s30 = ssub.s32 %s17, %s29
    %s31 = ssub.s32 %s18, %s25
    %s32 = sor.u32 %s30, %s31
    %p33 = scmp.eq.s32.totalorder %s32, 0
    %s35 = sadd.s32 %s34, 1
    %s36 = scalar_select %p33, %s34, %s35
    %p39 = pneg %p33
    %p40 = scmp.eq.s32.totalorder %s10, 8
    %p41 = por %p39, %p40
    %p42 = scmp.ne.s32.totalorder %s34, %s37
    %p43 = scmp.eq.s32.totalorder %s10, 0
    %p44 = por %p42, %p43
    %p45 = scmp.ne.s32.totalorder %s34, %s37
    %p46 = scmp.eq.s32.totalorder %s15, 8
    %p47 = por %p45, %p46
    %p48 = scmp.ne.s32.totalorder %s37, %s38
    %p49 = scmp.eq.s32.totalorder %s15, 0
    %p50 = por %p48, %p49
    %p51 = scmp.ne.s32.totalorder %s37, %s38
    %p52 = scmp.eq.s32.totalorder %s16, 8
    %p53 = por %p51, %p52
    %p55 = scmp.ne.s32.totalorder %s38, %s54
    %p56 = scmp.eq.s32.totalorder %s16, 0
    %p57 = por %p55, %p56
    %s58 = ssub.s32 %s18, %s25
    %p59 = scmp.eq.s32.totalorder %s58, 0
    %s61 = sadd.s32 %s60, 1
    %s62 = scalar_select %p59, %s60, %s61
    %p65 = pneg %p59
    %p66 = scmp.eq.s32.totalorder %s10, 8
    %p67 = por %p65, %p66
    %p68 = scmp.ne.s32.totalorder %s60, %s63
    %p69 = scmp.eq.s32.totalorder %s10, 0
    %p70 = por %p68, %p69
    %p71 = scmp.ne.s32.totalorder %s60, %s63
    %p72 = scmp.eq.s32.totalorder %s15, 8
    %p73 = por %p71, %p72
    %p74 = scmp.ne.s32.totalorder %s63, %s64
    %p75 = scmp.eq.s32.totalorder %s15, 0
    %p76 = por %p74, %p75
    %p77 = scmp.ne.s32.totalorder %s63, %s64
    %p78 = scmp.eq.s32.totalorder %s16, 8
    %p79 = por %p77, %p78
    %p81 = scmp.ne.s32.totalorder %s64, %s80
    %p82 = scmp.eq.s32.totalorder %s16, 0
    %p83 = por %p81, %p82
    %s84 = ssub.s32 %s17, %s29
    %p85 = scmp.eq.s32.totalorder %s84, 0
    %s87 = sadd.s32 %s86, 1
    %s88 = scalar_select %p85, %s86, %s87
    %p91 = pneg %p85
    %p92 = scmp.eq.s32.totalorder %s10, 8
    %p93 = por %p91, %p92
    %p94 = scmp.ne.s32.totalorder %s86, %s89
    %p95 = scmp.eq.s32.totalorder %s10, 0
    %p96 = por %p94, %p95
    %p97 = scmp.ne.s32.totalorder %s86, %s89
    %p98 = scmp.eq.s32.totalorder %s15, 8
    %p99 = por %p97, %p98
    %p100 = scmp.ne.s32.totalorder %s89, %s90
    %p101 = scmp.eq.s32.totalorder %s15, 0
    %p102 = por %p100, %p101
    %p103 = scmp.ne.s32.totalorder %s89, %s90
    %p104 = scmp.eq.s32.totalorder %s16, 8
    %p105 = por %p103, %p104
    %p107 = scmp.ne.s32.totalorder %s90, %s106
    %p108 = scmp.eq.s32.totalorder %s16, 0
    %p109 = por %p107, %p108
    %s111 = sadd.s32 %s110, 1
    %p114 = scmp.eq.s32.totalorder %s10, 8
    %p115 = scmp.ne.s32.totalorder %s110, %s112
    %p116 = scmp.eq.s32.totalorder %s10, 0
    %p117 = por %p115, %p116
    %p118 = scmp.ne.s32.totalorder %s110, %s112
    %p119 = scmp.eq.s32.totalorder %s15, 8
    %p120 = por %p118, %p119
    %p121 = scmp.ne.s32.totalorder %s112, %s113
    %p122 = scmp.eq.s32.totalorder %s15, 0
    %p123 = por %p121, %p122
    %p124 = scmp.ne.s32.totalorder %s112, %s113
    %p125 = scmp.eq.s32.totalorder %s16, 8
    %p126 = por %p124, %p125
    %p128 = scmp.ne.s32.totalorder %s113, %s127
    %p129 = scmp.eq.s32.totalorder %s16, 0
    %p130 = por %p128, %p129
    %p131 = scmp.le.s32.totalorder 1, %s10
    %p132 = scmp.lt.s32.totalorder %s10, 10
    %p133 = pnand %p131, %p132
    %p134 = pneg %p133
    // Predicated region
    $region9: #{resnet34_forward.91} parent=5 // pred_check
      _
    $region10: #{resnet34_forward.91} parent=5 // pred_check_branch
      %136 = sbr.rel (%p133) target = $region12
    $region11: #{resnet34_forward.91} parent=5 // pred_region
      %s137 = ssub.s32 %s10, 1
    $region12: #{resnet34_forward.91} parent=5 // pred_fallthru
      _
    %p138 = scmp.lt.s32.totalorder %s10, 9
    // Predicated region
    $region13: #{resnet34_forward.91} parent=5 // pred_check
      %p139 = pneg %p138
    $region14: #{resnet34_forward.91} parent=5 // pred_check_branch
      %141 = sbr.rel (%p139) target = $region16
    $region15: #{resnet34_forward.91} parent=5 // pred_region
      // Predicated region
      $region17: #{resnet34_forward.91} parent=15 // pred_check
        %p142 = pneg %p44
      $region18: #{resnet34_forward.91} parent=15 // pred_check_branch
        %144 = sbr.rel (%p142) target = $region20
      $region19: #{resnet34_forward.91} parent=15 // pred_region
        %p145 = scmp.lt.s32.totalorder %s17, 0
        %s146 = scalar_select %p145, %s17, 0
        %p147 = scmp.lt.s32.totalorder %s18, 8
        %s148 = scalar_select %p147, %s18, 8
        %s149 = smul.addr %s146, 9
        %s150 = sadd.s32 %s148, %s149
        %s151 = smul.addr %s150, 4
        %s152 = scalar_lea.vmem %s0, %s151
      $region20: #{resnet34_forward.91} parent=15 // pred_fallthru
        _
      // Predicated region
      $region21: #{resnet34_forward.91} parent=15 // pred_check
        %p153 = pneg %p70
      $region22: #{resnet34_forward.91} parent=15 // pred_check_branch
        %155 = sbr.rel (%p153) target = $region24
      $region23: #{resnet34_forward.91} parent=15 // pred_region
        %s156 = smul.u32 16, %s18
        %p157 = scmp.lt.s32.totalorder %s156, 143
        %s158 = scalar_select %p157, %s156, 143
        %s159 = smul.addr %s158, 4
        %s160 = scalar_lea.vmem %s1, %s159
        %s161 = smul.u32 16, %s18
      $region24: #{resnet34_forward.91} parent=15 // pred_fallthru
        _
    $region16: #{resnet34_forward.91} parent=5 // pred_fallthru
      _
    %p162 = scmp.le.s32.totalorder 1, %s10
    %p163 = scmp.lt.s32.totalorder %s10, 10
    %p164 = pnand %p162, %p163
    %p165 = pneg %p164
    // Predicated region
    $region25: #{resnet34_forward.91} parent=5 // pred_check
      _
    $region26: #{resnet34_forward.91} parent=5 // pred_check_branch
      %167 = sbr.rel (%p164) target = $region28
    $region27: #{resnet34_forward.91} parent=5 // pred_region
      %s168 = ssub.s32 %s10, 1
      %p169 = scmp.lt.s32.totalorder %s19, 0
      %s170 = scalar_select %p169, %s19, 0
      %p171 = scmp.lt.s32.totalorder %s20, 8
      %s172 = scalar_select %p171, %s20, 8
      %s173 = smul.addr %s170, 9
      %s174 = sadd.s32 %s172, %s173
      %s175 = smul.addr %s174, 4
      %s176 = scalar_lea.vmem %s0, %s175
      %p177 = pneg %p50
      %p178 = pneg %p47
      %s179 = smul.u32 16, %s20
      %p180 = scmp.lt.s32.totalorder %s179, 143
      %s181 = scalar_select %p180, %s179, 143
      %s182 = smul.addr %s181, 4
      %s183 = scalar_lea.vmem %s1, %s182
      %p184 = pneg %p76
      %p185 = pneg %p73
      %p186 = pneg %p102
      %p187 = pneg %p99
      %p188 = scmp.lt.s32.totalorder %s19, 0
      %s189 = scalar_select %p188, %s19, 0
      %s190 = smul.addr %s189, 8
      %s191 = scalar_lea.vmem %s2, %s190
      %p192 = pneg %p123
      %p193 = pneg %p120
      %p194 = scmp.lt.s32.totalorder %s19, 0
      %s195 = scalar_select %p194, %s19, 0
      %p196 = scmp.lt.s32.totalorder %s20, 8
      %s197 = scalar_select %p196, %s20, 8
      %s198 = smul.addr %s195, 9
      %s199 = sadd.s32 %s197, %s198
      %s200 = smul.addr %s199, 4
      %s201 = scalar_lea.vmem %s0, %s200
      %s202 = smul.u32 16, %s20
      %p203 = scmp.lt.s32.totalorder %s202, 143
      %s204 = scalar_select %p203, %s202, 143
      %s205 = smul.addr %s204, 4
      %s206 = scalar_lea.vmem %s1, %s205
      %s207 = smul.u32 16, %s20
      %p208 = scmp.lt.s32.totalorder %s19, 0
      %s209 = scalar_select %p208, %s19, 0
      %s210 = smul.addr %s209, 8
      %s211 = scalar_lea.vmem %s2, %s210
      %p213 = scmp.eq.s32.totalorder %s19, 0
      %p214 = scmp.eq.s32.totalorder %s20, 0
      %p215 = pnand %p213, %p214
      %p216 = pneg %p215
      // Predicated region
      $region29: #{resnet34_forward.91} parent=27 // pred_check
        _
      $region30: #{resnet34_forward.91} parent=27 // pred_check_branch
        %218 = sbr.rel (%p215) target = $region32
      $region31: #{resnet34_forward.91} parent=27 // pred_region
        %219 = vst [vmem:[%s3] sm:$0x3] 0.0
      $region32: #{resnet34_forward.91} parent=27 // pred_fallthru
        _
      // Predicated region
      $region33: #{resnet34_forward.91} parent=27 // pred_check
        %p220 = pneg %p214
      $region34: #{resnet34_forward.91} parent=27 // pred_check_branch
        %222 = sbr.rel (%p220) target = $region36
      $region35: #{resnet34_forward.91} parent=27 // pred_region
        %223 = vst [vmem:[#allocation2] sm:$0xff] 0.0
      $region36: #{resnet34_forward.91} parent=27 // pred_fallthru
        _
      %v224 = vld [vmem:[#allocation2] sm:$0xff]
      %v225 = vld [vmem:[%s201] sm:$0xf]
      %v226 = vld [vmem:[%s206] sm:$0xf]
      %v227 = vld [vmem:[%s206 + $0x4] sm:$0xf]
      %v228 = vld [vmem:[%s206 + $0x8] sm:$0xf]
      %v229 = vld [vmem:[%s206 + $0xc] sm:$0xf]
      %v230 = vld [vmem:[%s206 + $0x10] sm:$0xf]
      %v231 = vld [vmem:[%s206 + $0x14] sm:$0xf]
      %v232 = vld [vmem:[%s206 + $0x18] sm:$0xf]
      %v233 = vld [vmem:[%s206 + $0x1c] sm:$0xf]
      %v234 = vld [vmem:[%s206 + $0x20] sm:$0xf]
      %v235 = vld [vmem:[%s206 + $0x24] sm:$0xf]
      %v236 = vld [vmem:[%s206 + $0x28] sm:$0xf]
      %v237 = vld [vmem:[%s206 + $0x2c] sm:$0xf]
      %v238 = vld [vmem:[%s206 + $0x30] sm:$0xf]
      %v239 = vld [vmem:[%s206 + $0x34] sm:$0xf]
      %v240 = vld [vmem:[%s206 + $0x38] sm:$0xf]
      %v241 = vld [vmem:[%s206 + $0x3c] sm:$0xf]
      %v258 = vunpack.c.l.b16 %v226
      %v259 = vunpack.c.l.b16 %v227
      %v260 = vunpack.c.l.b16 %v228
      %v261 = vunpack.c.l.b16 %v229
      %v262 = vunpack.c.l.b16 %v230
      %v263 = vunpack.c.l.b16 %v231
      %v264 = vunpack.c.l.b16 %v232
      %v265 = vunpack.c.l.b16 %v233
      %v266 = vunpack.c.l.b16 %v234
      %v267 = vunpack.c.l.b16 %v235
      %v268 = vunpack.c.l.b16 %v236
      %v269 = vunpack.c.l.b16 %v237
      %v270 = vunpack.c.l.b16 %v238
      %v271 = vunpack.c.l.b16 %v239
      %v272 = vunpack.c.l.b16 %v240
      %v273 = vunpack.c.l.b16 %v241
      %v274 = vpack.c.b16 %v259, %v258
      %v275 = vpack.c.b16 %v261, %v260
      %v276 = vpack.c.b16 %v263, %v262
      %v277 = vpack.c.b16 %v265, %v264
      %v278 = vpack.c.b16 %v267, %v266
      %v279 = vpack.c.b16 %v269, %v268
      %v280 = vpack.c.b16 %v271, %v270
      %v281 = vpack.c.b16 %v273, %v272
      %290 = vmatprep.subr.bf16.mxu0 0
      %291 = vmatpush1.bf16.msra.mxu0 %v281
      %292 = vmatprep.subr.bf16.mxu0 0
      %293 = vmatpush1.bf16.msra.mxu0 %v280
      %294 = vmatprep.subr.bf16.mxu0 0
      %295 = vmatpush1.bf16.msra.mxu0 %v279
      %296 = vmatprep.subr.bf16.mxu0 0
      %297 = vmatpush1.bf16.msra.mxu0 %v278
      %298 = vmatprep.subr.bf16.mxu0 0
      %299 = vmatpush1.bf16.msra.mxu0 %v277
      %300 = vmatprep.subr.bf16.mxu0 0
      %301 = vmatpush1.bf16.msra.mxu0 %v276
      %302 = vmatprep.subr.bf16.mxu0 0
      %303 = vmatpush1.bf16.msra.mxu0 %v275
      %304 = vmatprep.subr.bf16.mxu0 0
      %305 = vmatpush1.bf16.msra.mxu0 %v274
      %306 = vmatprep.subr.bf16.mxu0 0
      %307 = vmatpush2.bf16.msra.mxu0 0
      %308 = vmatprep.subr.bf16.mxu0 0
      %309 = vmatpush2.bf16.msra.mxu0 0
      %310 = vmatprep.subr.bf16.mxu0 0
      %311 = vmatpush2.bf16.msra.mxu0 0
      %312 = vmatprep.subr.bf16.mxu0 0
      %313 = vmatpush2.bf16.msra.mxu0 0
      %314 = vmatprep.subr.bf16.mxu0 0
      %315 = vmatpush2.bf16.msra.mxu0 0
      %316 = vmatprep.subr.bf16.mxu0 0
      %317 = vmatpush2.bf16.msra.mxu0 0
      %318 = vmatprep.subr.bf16.mxu0 0
      %319 = vmatpush2.bf16.msra.mxu0 0
      %320 = vmatprep.subr.bf16.mxu0 0
      %321 = vmatpush2.bf16.msra.mxu0 0
      %322 = vmatprep.mubr.bf16.mxu0 0
      %323 = vmatmul.mubr.bf16.gmra.mxu0 %v225
      %v324 = vpop.f32.mrf.mxu0
      %v325 = vadd.f32 0.0, %v324
      %v326 = vpop.f32.mrf.mxu0
      %v327 = vpop.f32.mrf.mxu0
      %v328 = vpop.f32.mrf.mxu0
      %329 = vdwg.mxu0
      %v330 = vadd.f32 %v224, %v325
      %331 = vst [vmem:[#allocation2] sm:$0xff] %v330
      %p332 = scmp.eq.s32.totalorder %s20, 8
      // Predicated region
      $region37: #{resnet34_forward.91} parent=27 // pred_check
        %p333 = pneg %p332
      $region38: #{resnet34_forward.91} parent=27 // pred_check_branch
        %335 = sbr.rel (%p333) target = $region40
      $region39: #{resnet34_forward.91} parent=27 // pred_region
        %v336 = vld [vmem:[#allocation2] sm:$0xff]
        %337 = vst [vmem:[%s211] sm:$0xff] %v336
        %v338 = vld [vmem:[%s3] sm:$0x3]
        %v339 = vrot.slane %v336, 4
        %v340 = vadd.f32 %v336, %v339
        %v341 = vrot.slane %v340, 2
        %v342 = vadd.f32 %v340, %v341
        %v343 = vrot.slane %v342, 1
        %v344 = vadd.f32 %v342, %v343
        %v345 = vmul.f32 %v336, %v336
        %v346 = vrot.slane %v345, 4
        %v347 = vadd.f32 %v345, %v346
        %v348 = vrot.slane %v347, 2
        %v349 = vadd.f32 %v347, %v348
        %v350 = vrot.slane %v349, 1
        %v351 = vadd.f32 %v349, %v350
        %vm352 = vcmask 1040384
        %v353 = vsel %vm352, %v344, %v351
        %v354 = vadd.f32 %v338, %v353
        %355 = vst [vmem:[%s3] sm:$0x3] %v354
      $region40: #{resnet34_forward.91} parent=27 // pred_fallthru
        _
      %p356 = scmp.lt.s32.totalorder %s19, 0
      %s357 = scalar_select %p356, %s19, 0
      %s358 = smul.addr %s357, 8
      %s359 = scalar_lea.vmem %s2, %s358
      // Predicated region
      $region41: #{resnet34_forward.91} parent=27 // pred_check
        %p360 = pneg %p99
      $region42: #{resnet34_forward.91} parent=27 // pred_check_branch
        %362 = sbr.rel (%p360) target = $region44
      $region43: #{resnet34_forward.91} parent=27 // pred_region
        _
      $region44: #{resnet34_forward.91} parent=27 // pred_fallthru
        _
      // Predicated region
      $region45: #{resnet34_forward.91} parent=27 // pred_check
        %p363 = pneg %p120
      $region46: #{resnet34_forward.91} parent=27 // pred_check_branch
        %365 = sbr.rel (%p363) target = $region48
      $region47: #{resnet34_forward.91} parent=27 // pred_region
        _
      $region48: #{resnet34_forward.91} parent=27 // pred_fallthru
        _
      // Predicated region
      $region49: #{resnet34_forward.91} parent=27 // pred_check
        %p366 = pneg %p99
      $region50: #{resnet34_forward.91} parent=27 // pred_check_branch
        %368 = sbr.rel (%p366) target = $region52
      $region51: #{resnet34_forward.91} parent=27 // pred_region
        %p369 = scmp.lt.s32.totalorder %s19, 0
        %s370 = scalar_select %p369, %s19, 0
        %s371 = smul.addr %s370, 8
        %s372 = scalar_lea.vmem %s2, %s371
      $region52: #{resnet34_forward.91} parent=27 // pred_fallthru
        _
      // Predicated region
      $region53: #{resnet34_forward.91} parent=27 // pred_check
        %p373 = pneg %p120
      $region54: #{resnet34_forward.91} parent=27 // pred_check_branch
        %375 = sbr.rel (%p373) target = $region56
      $region55: #{resnet34_forward.91} parent=27 // pred_region
        _
      $region56: #{resnet34_forward.91} parent=27 // pred_fallthru
        _
    $region28: #{resnet34_forward.91} parent=5 // pred_fallthru
      _
    %p376 = scmp.le.s32.totalorder 2, %s10
    // Predicated region
    $region57: #{resnet34_forward.91} parent=5 // pred_check
      %p377 = pneg %p376
    $region58: #{resnet34_forward.91} parent=5 // pred_check_branch
      %379 = sbr.rel (%p377) target = $region60
    $region59: #{resnet34_forward.91} parent=5 // pred_region
      %s380 = ssub.s32 %s10, 2
    $region60: #{resnet34_forward.91} parent=5 // pred_fallthru
      _
  $region6: #{resnet34_forward.91} parent=0 // loop_footer
    %s14 = sadd.s32 1, %s10
  $region7: #{resnet34_forward.91} parent=0 // loop_footer_branch
    %9 = sbr.rel target = $region3
  $region8: #{resnet34_forward.91} parent=0 // loop_exit
    _

// kernel: resnet34_forward.90
$region0: #{resnet34_forward.90}
  #allocation0 [shape = 'u32[]', space=smem, size = 0x4, offset = 0x4, fixed_abs, tag = 'smem constant byte address 0x4 - core index']
  #allocation1 [shape = 'u32[144,128]{1,0:T(1,128)}', space=vmem, size = 0x12000, scoped, tag = 'internal scratch']
  %s0 = inlined_call_operand.vmem [shape: f32[8,128], index: 0, kind: input, shape index: {}]
  %s1 = inlined_call_operand.vmem [shape: f32[2,128], index: 1, kind: input, shape index: {}]
  %s2 = inlined_call_operand.vmem [shape: f32[1,128], index: 2, kind: input, shape index: {}]
  %s3 = inlined_call_operand.vmem [shape: f32[1,128], index: 3, kind: input, shape index: {}]
  %s4 = inlined_call_operand.vmem [shape: bf16[8,128], index: 4, kind: output, shape index: {}]
  %s5 = sld [smem:[#allocation0]]
  $region26: #{resnet34_forward.90} parent=0
    _
  %s7 = ssub.s32 1, %s5
  %s8 = scalar_select 0, %s7, %s5
  // Predicated region
  $region2: #{resnet34_forward.90} parent=0 // pred_check
    _
  $region3: #{resnet34_forward.90} parent=0 // pred_check_branch
    %10 = sbr.rel (0) target = $region5
  $region4: #{resnet34_forward.90} parent=0 // pred_region
    _
  $region5: #{resnet34_forward.90} parent=0 // pred_fallthru
    _
  // Predicated region
  $region6: #{resnet34_forward.90} parent=0 // pred_check
    _
  $region7: #{resnet34_forward.90} parent=0 // pred_check_branch
    %12 = sbr.rel (0) target = $region9
  $region8: #{resnet34_forward.90} parent=0 // pred_region
    _
  $region9: #{resnet34_forward.90} parent=0 // pred_fallthru
    _
  // Predicated region
  $region10: #{resnet34_forward.90} parent=0 // pred_check
    _
  $region11: #{resnet34_forward.90} parent=0 // pred_check_branch
    %14 = sbr.rel (0) target = $region13
  $region12: #{resnet34_forward.90} parent=0 // pred_region
    _
  $region13: #{resnet34_forward.90} parent=0 // pred_fallthru
    _
  // Predicated region
  $region14: #{resnet34_forward.90} parent=0 // pred_check
    _
  $region15: #{resnet34_forward.90} parent=0 // pred_check_branch
    %16 = sbr.rel (0) target = $region17
  $region16: #{resnet34_forward.90} parent=0 // pred_region
    _
  $region17: #{resnet34_forward.90} parent=0 // pred_fallthru
    _
  %v17 = vld [vmem:[%s0] sm:$0xff]
  %v18 = vld [vmem:[%s1] sm:$0x1]
  %v19 = vmul.f32 %v18, 0.125
  %v20 = vld [vmem:[%s1 + $0x1] sm:$0x1]
  %v21 = vmul.f32 %v20, 0.125
  %v22 = vmul.f32 %v19, %v19
  %v23 = vsub.f32 %v21, %v22
  %v24 = vmax.f32 %v23, 0.0
  %v25 = vlaneseq
  %v26 = vshrl.u32 %v25, 7
  %v27 = vsub.s32 0, %v26
  %v28 = vrot.slane %v19, %v27
  %v29 = vsub.f32 %v17, %v28
  %v30 = vadd.f32 %v24, 1e-05
  %v31 = vrsqrt.pop %v30
  %v32 = vlaneseq
  %v33 = vshrl.u32 %v32, 7
  %v34 = vsub.s32 0, %v33
  %v35 = vrot.slane %v31, %v34
  %v36 = vmul.f32 %v29, %v35
  %v37 = vld [vmem:[%s2] sm:$0x1]
  %v39 = vlaneseq
  %v40 = vshrl.u32 %v39, 7
  %v41 = vsub.s32 0, %v40
  %v42 = vrot.slane %v37, %v41
  %v44 = vmul.f32 %v36, %v42
  %v45 = vld [vmem:[%s3] sm:$0x1]
  %v47 = vlaneseq
  %v48 = vshrl.u32 %v47, 7
  %v49 = vsub.s32 0, %v48
  %v50 = vrot.slane %v45, %v49
  %v52 = vadd.f32 %v44, %v50
  %v53 = vmax.f32 %v52, 0.0
  %v54 = vpack.c.bf16 %v53, %v53
  %55 = vst [vmem:[%s4] sm:$0xf] %v54
  // Predicated region
  $region18: #{resnet34_forward.90} parent=0 // pred_check
    _
  $region19: #{resnet34_forward.90} parent=0 // pred_check_branch
    %57 = sbr.rel (0) target = $region21
  $region20: #{resnet34_forward.90} parent=0 // pred_region
    _
  $region21: #{resnet34_forward.90} parent=0 // pred_fallthru
    _
  // Predicated region
  $region22: #{resnet34_forward.90} parent=0 // pred_check
    _
  $region23: #{resnet34_forward.90} parent=0 // pred_check_branch
    %59 = sbr.rel (0) target = $region25
  $region24: #{resnet34_forward.90} parent=0 // pred_region
    _
  $region25: #{resnet34_forward.90} parent=0 // pred_fallthru
    _

// kernel: resnet34_forward.94
$region0: #{resnet34_forward.94}
  #allocation0 [shape = 'u32[]', space=smem, size = 0x4, offset = 0x4, fixed_abs, tag = 'smem constant byte address 0x4 - core index']
  #allocation1 [shape = 'u32[144,128]{1,0:T(1,128)}', space=vmem, size = 0x12000, scoped, tag = 'internal scratch']
  %s0 = inlined_call_operand.vmem [shape: f32[8,128], index: 0, kind: input, shape index: {}]
  %s1 = inlined_call_operand.vmem [shape: bf16[8,128], index: 1, kind: input, shape index: {}]
  %s2 = inlined_call_operand.vmem [shape: f32[2,128], index: 2, kind: input, shape index: {}]
  %s3 = inlined_call_operand.vmem [shape: f32[1,128], index: 3, kind: input, shape index: {}]
  %s4 = inlined_call_operand.vmem [shape: f32[1,128], index: 4, kind: input, shape index: {}]
  %s5 = inlined_call_operand.vmem [shape: bf16[8,128], index: 5, kind: output, shape index: {}]
  %s6 = sld [smem:[#allocation0]]
  $region30: #{resnet34_forward.94} parent=0
    _
  %s8 = ssub.s32 1, %s6
  %s9 = scalar_select 0, %s8, %s6
  // Predicated region
  $region2: #{resnet34_forward.94} parent=0 // pred_check
    _
  $region3: #{resnet34_forward.94} parent=0 // pred_check_branch
    %11 = sbr.rel (0) target = $region5
  $region4: #{resnet34_forward.94} parent=0 // pred_region
    _
  $region5: #{resnet34_forward.94} parent=0 // pred_fallthru
    _
  // Predicated region
  $region6: #{resnet34_forward.94} parent=0 // pred_check
    _
  $region7: #{resnet34_forward.94} parent=0 // pred_check_branch
    %13 = sbr.rel (0) target = $region9
  $region8: #{resnet34_forward.94} parent=0 // pred_region
    _
  $region9: #{resnet34_forward.94} parent=0 // pred_fallthru
    _
  // Predicated region
  $region10: #{resnet34_forward.94} parent=0 // pred_check
    _
  $region11: #{resnet34_forward.94} parent=0 // pred_check_branch
    %15 = sbr.rel (0) target = $region13
  $region12: #{resnet34_forward.94} parent=0 // pred_region
    _
  $region13: #{resnet34_forward.94} parent=0 // pred_fallthru
    _
  // Predicated region
  $region14: #{resnet34_forward.94} parent=0 // pred_check
    _
  $region15: #{resnet34_forward.94} parent=0 // pred_check_branch
    %17 = sbr.rel (0) target = $region17
  $region16: #{resnet34_forward.94} parent=0 // pred_region
    _
  $region17: #{resnet34_forward.94} parent=0 // pred_fallthru
    _
  // Predicated region
  $region18: #{resnet34_forward.94} parent=0 // pred_check
    _
  $region19: #{resnet34_forward.94} parent=0 // pred_check_branch
    %19 = sbr.rel (0) target = $region21
  $region20: #{resnet34_forward.94} parent=0 // pred_region
    _
  $region21: #{resnet34_forward.94} parent=0 // pred_fallthru
    _
  %v20 = vld [vmem:[%s0] sm:$0xff]
  %v21 = vld [vmem:[%s2] sm:$0x1]
  %v22 = vmul.f32 %v21, 0.125
  %v23 = vld [vmem:[%s2 + $0x1] sm:$0x1]
  %v24 = vmul.f32 %v23, 0.125
  %v25 = vmul.f32 %v22, %v22
  %v26 = vsub.f32 %v24, %v25
  %v27 = vmax.f32 %v26, 0.0
  %v28 = vlaneseq
  %v29 = vshrl.u32 %v28, 7
  %v30 = vsub.s32 0, %v29
  %v31 = vrot.slane %v22, %v30
  %v32 = vsub.f32 %v20, %v31
  %v33 = vadd.f32 %v27, 1e-05
  %v34 = vrsqrt.pop %v33
  %v35 = vlaneseq
  %v36 = vshrl.u32 %v35, 7
  %v37 = vsub.s32 0, %v36
  %v38 = vrot.slane %v34, %v37
  %v39 = vmul.f32 %v32, %v38
  %v40 = vld [vmem:[%s3] sm:$0x1]
  %v42 = vlaneseq
  %v43 = vshrl.u32 %v42, 7
  %v44 = vsub.s32 0, %v43
  %v45 = vrot.slane %v40, %v44
  %v47 = vmul.f32 %v39, %v45
  %v48 = vld [vmem:[%s4] sm:$0x1]
  %v50 = vlaneseq
  %v51 = vshrl.u32 %v50, 7
  %v52 = vsub.s32 0, %v51
  %v53 = vrot.slane %v48, %v52
  %v55 = vadd.f32 %v47, %v53
  %v56 = vld [vmem:[%s1] sm:$0xf]
  %v57 = vunpack.c.l.bf16 %v56
  %v58 = vadd.f32 %v55, %v57
  %v59 = vmax.f32 %v58, 0.0
  %v60 = vpack.c.bf16 %v59, %v59
  %61 = vst [vmem:[%s5] sm:$0xf] %v60
  // Predicated region
  $region22: #{resnet34_forward.94} parent=0 // pred_check
    _
  $region23: #{resnet34_forward.94} parent=0 // pred_check_branch
    %63 = sbr.rel (0) target = $region25
  $region24: #{resnet34_forward.94} parent=0 // pred_region
    _
  $region25: #{resnet34_forward.94} parent=0 // pred_fallthru
    _
  // Predicated region
  $region26: #{resnet34_forward.94} parent=0 // pred_check
    _
  $region27: #{resnet34_forward.94} parent=0 // pred_check_branch
    %65 = sbr.rel (0) target = $region29
  $region28: #{resnet34_forward.94} parent=0 // pred_region
    _
  $region29: #{resnet34_forward.94} parent=0 // pred_fallthru
    _

// kernel: resnet34_forward.110
$region0: #{resnet34_forward.110}
  #allocation0 [shape = 'u32[]', space=smem, size = 0x4, offset = 0x4, fixed_abs, tag = 'smem constant byte address 0x4 - core index']
  #allocation1 [shape = 'u32[144,128]{1,0:T(1,128)}', space=vmem, size = 0x12000, scoped, tag = 'internal scratch']
  #allocation2 [shape = 'f32[8,256]{1,0:T(8,128)}', space=vmem, size = 0x2000, scoped, tag = 'scratch operand']
  %s0 = inlined_call_operand.vmem [shape: bf16[8,128], index: 0, kind: input, shape index: {}]
  %s1 = inlined_call_operand.vmem [shape: bf16[128,256], index: 1, kind: input, shape index: {}]
  %s2 = inlined_call_operand.vmem [shape: f32[8,256], index: 2, kind: output, shape index: {0}]
  %s3 = inlined_call_operand.vmem [shape: f32[2,256], index: 3, kind: output, shape index: {1}]
  %4 = xla_tuple %s2, %s3
  %s5 = sld [smem:[#allocation0]]
  $region38: #{resnet34_forward.110} parent=0
    _
  %s7 = ssub.s32 1, %s5
  %s8 = scalar_select 0, %s7, %s5
  // Predicated region
  $region2: #{resnet34_forward.110} parent=0 // pred_check
    _
  $region3: #{resnet34_forward.110} parent=0 // pred_check_branch
    %10 = sbr.rel (0) target = $region5
  $region4: #{resnet34_forward.110} parent=0 // pred_region
    _
  $region5: #{resnet34_forward.110} parent=0 // pred_fallthru
    _
  // Predicated region
  $region6: #{resnet34_forward.110} parent=0 // pred_check
    _
  $region7: #{resnet34_forward.110} parent=0 // pred_check_branch
    %12 = sbr.rel (0) target = $region9
  $region8: #{resnet34_forward.110} parent=0 // pred_region
    _
  $region9: #{resnet34_forward.110} parent=0 // pred_fallthru
    _
  %p14 = scmp.eq.s32.totalorder 0, 0
  %p15 = scmp.eq.s32.totalorder 0, 0
  %p16 = pnand %p14, %p15
  %p17 = pneg %p16
  // Predicated region
  $region10: #{resnet34_forward.110} parent=0 // pred_check
    _
  $region11: #{resnet34_forward.110} parent=0 // pred_check_branch
    %19 = sbr.rel (%p16) target = $region13
  $region12: #{resnet34_forward.110} parent=0 // pred_region
    %20 = vst [vmem:[%s3] sm:$0xf] 0.0
  $region13: #{resnet34_forward.110} parent=0 // pred_fallthru
    _
  // Predicated region
  $region14: #{resnet34_forward.110} parent=0 // pred_check
    %p21 = pneg %p15
  $region15: #{resnet34_forward.110} parent=0 // pred_check_branch
    %23 = sbr.rel (%p21) target = $region17
  $region16: #{resnet34_forward.110} parent=0 // pred_region
    %24 = vst [vmem:[#allocation2] sm:$0xff] 0.0
    %25 = vst [vmem:[#allocation2 + $0x8] sm:$0xff] 0.0
  $region17: #{resnet34_forward.110} parent=0 // pred_fallthru
    _
  %v26 = vld [vmem:[#allocation2] sm:$0xff]
  %v27 = vld [vmem:[#allocation2 + $0x8] sm:$0xff]
  %v28 = vld [vmem:[%s0] sm:$0xf]
  %v29 = vld [vmem:[%s1] sm:$0xff]
  %v30 = vld [vmem:[%s1 + $0x8] sm:$0xff]
  %v31 = vld [vmem:[%s1 + $0x10] sm:$0xff]
  %v32 = vld [vmem:[%s1 + $0x18] sm:$0xff]
  %v33 = vld [vmem:[%s1 + $0x20] sm:$0xff]
  %v34 = vld [vmem:[%s1 + $0x28] sm:$0xff]
  %v35 = vld [vmem:[%s1 + $0x30] sm:$0xff]
  %v36 = vld [vmem:[%s1 + $0x38] sm:$0xff]
  %v37 = vld [vmem:[%s1 + $0x40] sm:$0xff]
  %v38 = vld [vmem:[%s1 + $0x48] sm:$0xff]
  %v39 = vld [vmem:[%s1 + $0x50] sm:$0xff]
  %v40 = vld [vmem:[%s1 + $0x58] sm:$0xff]
  %v41 = vld [vmem:[%s1 + $0x60] sm:$0xff]
  %v42 = vld [vmem:[%s1 + $0x68] sm:$0xff]
  %v43 = vld [vmem:[%s1 + $0x70] sm:$0xff]
  %v44 = vld [vmem:[%s1 + $0x78] sm:$0xff]
  %v61 = vunpack.c.l.b16 %v29
  %v62 = vunpack.c.h.b16 %v29
  %v63 = vunpack.c.l.b16 %v30
  %v64 = vunpack.c.h.b16 %v30
  %v65 = vunpack.c.l.b16 %v31
  %v66 = vunpack.c.h.b16 %v31
  %v67 = vunpack.c.l.b16 %v32
  %v68 = vunpack.c.h.b16 %v32
  %v69 = vunpack.c.l.b16 %v33
  %v70 = vunpack.c.h.b16 %v33
  %v71 = vunpack.c.l.b16 %v34
  %v72 = vunpack.c.h.b16 %v34
  %v73 = vunpack.c.l.b16 %v35
  %v74 = vunpack.c.h.b16 %v35
  %v75 = vunpack.c.l.b16 %v36
  %v76 = vunpack.c.h.b16 %v36
  %v77 = vunpack.c.l.b16 %v37
  %v78 = vunpack.c.h.b16 %v37
  %v79 = vunpack.c.l.b16 %v38
  %v80 = vunpack.c.h.b16 %v38
  %v81 = vunpack.c.l.b16 %v39
  %v82 = vunpack.c.h.b16 %v39
  %v83 = vunpack.c.l.b16 %v40
  %v84 = vunpack.c.h.b16 %v40
  %v85 = vunpack.c.l.b16 %v41
  %v86 = vunpack.c.h.b16 %v41
  %v87 = vunpack.c.l.b16 %v42
  %v88 = vunpack.c.h.b16 %v42
  %v89 = vunpack.c.l.b16 %v43
  %v90 = vunpack.c.h.b16 %v43
  %v91 = vunpack.c.l.b16 %v44
  %v92 = vunpack.c.h.b16 %v44
  %v93 = vpack.c.b16 %v63, %v61
  %v94 = vpack.c.b16 %v64, %v62
  %v95 = vpack.c.b16 %v67, %v65
  %v96 = vpack.c.b16 %v68, %v66
  %v97 = vpack.c.b16 %v71, %v69
  %v98 = vpack.c.b16 %v72, %v70
  %v99 = vpack.c.b16 %v75, %v73
  %v100 = vpack.c.b16 %v76, %v74
  %v101 = vpack.c.b16 %v79, %v77
  %v102 = vpack.c.b16 %v80, %v78
  %v103 = vpack.c.b16 %v83, %v81
  %v104 = vpack.c.b16 %v84, %v82
  %v105 = vpack.c.b16 %v87, %v85
  %v106 = vpack.c.b16 %v88, %v86
  %v107 = vpack.c.b16 %v91, %v89
  %v108 = vpack.c.b16 %v92, %v90
  %125 = vmatprep.subr.bf16.mxu0 %v108
  %126 = vmatpush1.bf16.msra.mxu0 %v107
  %127 = vmatprep.subr.bf16.mxu0 %v106
  %128 = vmatpush1.bf16.msra.mxu0 %v105
  %129 = vmatprep.subr.bf16.mxu0 %v104
  %130 = vmatpush1.bf16.msra.mxu0 %v103
  %131 = vmatprep.subr.bf16.mxu0 %v102
  %132 = vmatpush1.bf16.msra.mxu0 %v101
  %133 = vmatprep.subr.bf16.mxu0 %v100
  %134 = vmatpush1.bf16.msra.mxu0 %v99
  %135 = vmatprep.subr.bf16.mxu0 %v98
  %136 = vmatpush1.bf16.msra.mxu0 %v97
  %137 = vmatprep.subr.bf16.mxu0 %v96
  %138 = vmatpush1.bf16.msra.mxu0 %v95
  %139 = vmatprep.subr.bf16.mxu0 %v94
  %140 = vmatpush1.bf16.msra.mxu0 %v93
  %141 = vmatprep.subr.bf16.mxu0 0
  %142 = vmatpush2.bf16.msra.mxu0 0
  %143 = vmatprep.subr.bf16.mxu0 0
  %144 = vmatpush2.bf16.msra.mxu0 0
  %145 = vmatprep.subr.bf16.mxu0 0
  %146 = vmatpush2.bf16.msra.mxu0 0
  %147 = vmatprep.subr.bf16.mxu0 0
  %148 = vmatpush2.bf16.msra.mxu0 0
  %149 = vmatprep.subr.bf16.mxu0 0
  %150 = vmatpush2.bf16.msra.mxu0 0
  %151 = vmatprep.subr.bf16.mxu0 0
  %152 = vmatpush2.bf16.msra.mxu0 0
  %153 = vmatprep.subr.bf16.mxu0 0
  %154 = vmatpush2.bf16.msra.mxu0 0
  %155 = vmatprep.subr.bf16.mxu0 0
  %156 = vmatpush2.bf16.msra.mxu0 0
  %157 = vmatprep.mubr.bf16.mxu0 0
  %158 = vmatmul.mubr.bf16.gmra.mxu0 %v28
  %v159 = vpop.f32.mrf.mxu0
  %v160 = vadd.f32 0.0, %v159
  %v161 = vpop.f32.mrf.mxu0
  %v162 = vadd.f32 0.0, %v161
  %v163 = vpop.f32.mrf.mxu0
  %v164 = vpop.f32.mrf.mxu0
  %165 = vdwg.mxu0
  %v166 = vadd.f32 %v26, %v160
  %v167 = vadd.f32 %v27, %v162
  %168 = vst [vmem:[#allocation2] sm:$0xff] %v166
  %169 = vst [vmem:[#allocation2 + $0x8] sm:$0xff] %v167
  // Predicated region
  $region18: #{resnet34_forward.110} parent=0 // pred_check
    %p170 = pneg %p15
  $region19: #{resnet34_forward.110} parent=0 // pred_check_branch
    %172 = sbr.rel (%p170) target = $region21
  $region20: #{resnet34_forward.110} parent=0 // pred_region
    %v173 = vld [vmem:[#allocation2] sm:$0xff]
    %v174 = vld [vmem:[#allocation2 + $0x8] sm:$0xff]
    %175 = vst [vmem:[%s2] sm:$0xff] %v173
    %176 = vst [vmem:[%s2 + $0x8] sm:$0xff] %v174
    %v177 = vld [vmem:[%s3] sm:$0xf]
    %v178 = vrot.slane %v173, 4
    %v179 = vadd.f32 %v173, %v178
    %v180 = vrot.slane %v179, 2
    %v181 = vadd.f32 %v179, %v180
    %v182 = vrot.slane %v181, 1
    %v183 = vadd.f32 %v181, %v182
    %v184 = vrot.slane %v174, 4
    %v185 = vadd.f32 %v174, %v184
    %v186 = vrot.slane %v185, 2
    %v187 = vadd.f32 %v185, %v186
    %v188 = vrot.slane %v187, 1
    %v189 = vadd.f32 %v187, %v188
    %v190 = vmul.f32 %v173, %v173
    %v191 = vmul.f32 %v174, %v174
    %v192 = vrot.slane %v190, 4
    %v193 = vadd.f32 %v190, %v192
    %v194 = vrot.slane %v193, 2
    %v195 = vadd.f32 %v193, %v194
    %v196 = vrot.slane %v195, 1
    %v197 = vadd.f32 %v195, %v196
    %v198 = vrot.slane %v191, 4
    %v199 = vadd.f32 %v191, %v198
    %v200 = vrot.slane %v199, 2
    %v201 = vadd.f32 %v199, %v200
    %v202 = vrot.slane %v201, 1
    %v203 = vadd.f32 %v201, %v202
    %vm204 = vcmask 1040384
    %v205 = vsel %vm204, %v183, %v197
    %v206 = vsel %vm204, %v189, %v203
    %v209 = vcombine.low %v205, %v206
    %v211 = vunpack.c.l.s4 1983009808
    %v212 = vunpack.c.0.s8 %v211
    %v213 = vlaneseq
    %v214 = vshrl.u32 %v213, 7
    %v215 = vsub.s32 %v212, %v214
    %v216 = vrot.slane %v209, %v215
    %v218 = vadd.f32 %v177, %v216
    %219 = vst [vmem:[%s3] sm:$0xf] %v218
  $region21: #{resnet34_forward.110} parent=0 // pred_fallthru
    _
  // Predicated region
  $region22: #{resnet34_forward.110} parent=0 // pred_check
    _
  $region23: #{resnet34_forward.110} parent=0 // pred_check_branch
    %221 = sbr.rel (0) target = $region25
  $region24: #{resnet34_forward.110} parent=0 // pred_region
    _
  $region25: #{resnet34_forward.110} parent=0 // pred_fallthru
    _
  // Predicated region
  $region26: #{resnet34_forward.110} parent=0 // pred_check
    _
  $region27: #{resnet34_forward.110} parent=0 // pred_check_branch
    %223 = sbr.rel (0) target = $region29
  $region28: #{resnet34_forward.110} parent=0 // pred_region
    _
  $region29: #{resnet34_forward.110} parent=0 // pred_fallthru
    _
  // Predicated region
  $region30: #{resnet34_forward.110} parent=0 // pred_check
    _
  $region31: #{resnet34_forward.110} parent=0 // pred_check_branch
    %225 = sbr.rel (0) target = $region33
  $region32: #{resnet34_forward.110} parent=0 // pred_region
    _
  $region33: #{resnet34_forward.110} parent=0 // pred_fallthru
    _
  // Predicated region
  $region34: #{resnet34_forward.110} parent=0 // pred_check
    _
  $region35: #{resnet34_forward.110} parent=0 // pred_check_branch
    %227 = sbr.rel (0) target = $region37
  $region36: #{resnet34_forward.110} parent=0 // pred_region
    _
  $region37: #{resnet34_forward.110} parent=0 // pred_fallthru
    _

// kernel: resnet34_forward.111
$region0: #{resnet34_forward.111}
  #allocation0 [shape = 'u32[]', space=smem, size = 0x4, offset = 0x4, fixed_abs, tag = 'smem constant byte address 0x4 - core index']
  #allocation1 [shape = 'u32[144,128]{1,0:T(1,128)}', space=vmem, size = 0x12000, scoped, tag = 'internal scratch']
  %s0 = inlined_call_operand.vmem [shape: f32[8,256], index: 0, kind: input, shape index: {}]
  %s1 = inlined_call_operand.vmem [shape: f32[2,256], index: 1, kind: input, shape index: {}]
  %s2 = inlined_call_operand.vmem [shape: f32[1,256], index: 2, kind: input, shape index: {}]
  %s3 = inlined_call_operand.vmem [shape: f32[1,256], index: 3, kind: input, shape index: {}]
  %s4 = inlined_call_operand.vmem [shape: bf16[8,256], index: 4, kind: output, shape index: {}]
  %s5 = sld [smem:[#allocation0]]
  $region26: #{resnet34_forward.111} parent=0
    _
  %s7 = ssub.s32 1, %s5
  %s8 = scalar_select 0, %s7, %s5
  // Predicated region
  $region2: #{resnet34_forward.111} parent=0 // pred_check
    _
  $region3: #{resnet34_forward.111} parent=0 // pred_check_branch
    %10 = sbr.rel (0) target = $region5
  $region4: #{resnet34_forward.111} parent=0 // pred_region
    _
  $region5: #{resnet34_forward.111} parent=0 // pred_fallthru
    _
  // Predicated region
  $region6: #{resnet34_forward.111} parent=0 // pred_check
    _
  $region7: #{resnet34_forward.111} parent=0 // pred_check_branch
    %12 = sbr.rel (0) target = $region9
  $region8: #{resnet34_forward.111} parent=0 // pred_region
    _
  $region9: #{resnet34_forward.111} parent=0 // pred_fallthru
    _
  // Predicated region
  $region10: #{resnet34_forward.111} parent=0 // pred_check
    _
  $region11: #{resnet34_forward.111} parent=0 // pred_check_branch
    %14 = sbr.rel (0) target = $region13
  $region12: #{resnet34_forward.111} parent=0 // pred_region
    _
  $region13: #{resnet34_forward.111} parent=0 // pred_fallthru
    _
  // Predicated region
  $region14: #{resnet34_forward.111} parent=0 // pred_check
    _
  $region15: #{resnet34_forward.111} parent=0 // pred_check_branch
    %16 = sbr.rel (0) target = $region17
  $region16: #{resnet34_forward.111} parent=0 // pred_region
    _
  $region17: #{resnet34_forward.111} parent=0 // pred_fallthru
    _
  %v17 = vld [vmem:[%s0] sm:$0xff]
  %v18 = vld [vmem:[%s0 + $0x8] sm:$0xff]
  %v19 = vld [vmem:[%s1] ss:$2 sm:$0x3]
  %v20 = vmul.f32 %v19, 0.5
  %s21 = scalar_lea.vmem %s1, 1
  %v22 = vld [vmem:[%s21] ss:$2 sm:$0x3]
  %v23 = vmul.f32 %v22, 0.5
  %v24 = vmul.f32 %v20, %v20
  %v25 = vsub.f32 %v23, %v24
  %v26 = vmax.f32 %v25, 0.0
  %v28 = vlaneseq
  %v29 = vshrl.u32 %v28, 7
  %v30 = vsub.s32 0, %v29
  %v31 = vrot.slane %v20, %v30
  %v32 = vlaneseq
  %v33 = vshrl.u32 %v32, 7
  %v34 = vsub.s32 1, %v33
  %v35 = vrot.slane %v20, %v34
  %v38 = vsub.f32 %v17, %v31
  %v39 = vsub.f32 %v18, %v35
  %v40 = vadd.f32 %v26, 1e-05
  %v41 = vrsqrt.pop %v40
  %v43 = vlaneseq
  %v44 = vshrl.u32 %v43, 7
  %v45 = vsub.s32 0, %v44
  %v46 = vrot.slane %v41, %v45
  %v47 = vlaneseq
  %v48 = vshrl.u32 %v47, 7
  %v49 = vsub.s32 1, %v48
  %v50 = vrot.slane %v41, %v49
  %v53 = vmul.f32 %v38, %v46
  %v54 = vmul.f32 %v39, %v50
  %v55 = vld [vmem:[%s2] sm:$0x3]
  %v57 = vlaneseq
  %v58 = vshrl.u32 %v57, 7
  %v59 = vsub.s32 0, %v58
  %v60 = vrot.slane %v55, %v59
  %v61 = vlaneseq
  %v62 = vshrl.u32 %v61, 7
  %v63 = vsub.s32 1, %v62
  %v64 = vrot.slane %v55, %v63
  %v67 = vmul.f32 %v53, %v60
  %v68 = vmul.f32 %v54, %v64
  %v69 = vld [vmem:[%s3] sm:$0x3]
  %v71 = vlaneseq
  %v72 = vshrl.u32 %v71, 7
  %v73 = vsub.s32 0, %v72
  %v74 = vrot.slane %v69, %v73
  %v75 = vlaneseq
  %v76 = vshrl.u32 %v75, 7
  %v77 = vsub.s32 1, %v76
  %v78 = vrot.slane %v69, %v77
  %v81 = vadd.f32 %v67, %v74
  %v82 = vadd.f32 %v68, %v78
  %v83 = vpack.c.bf16 %v81, %v81
  %v84 = vpack.c.bf16 %v82, %v82
  %v87 = vunpack.c.l.b16 %v83
  %v88 = vunpack.c.l.b16 %v84
  %v89 = vpack.c.b16 %v88, %v87
  %91 = vst [vmem:[%s4] sm:$0xff] %v89
  // Predicated region
  $region18: #{resnet34_forward.111} parent=0 // pred_check
    _
  $region19: #{resnet34_forward.111} parent=0 // pred_check_branch
    %93 = sbr.rel (0) target = $region21
  $region20: #{resnet34_forward.111} parent=0 // pred_region
    _
  $region21: #{resnet34_forward.111} parent=0 // pred_fallthru
    _
  // Predicated region
  $region22: #{resnet34_forward.111} parent=0 // pred_check
    _
  $region23: #{resnet34_forward.111} parent=0 // pred_check_branch
    %95 = sbr.rel (0) target = $region25
  $region24: #{resnet34_forward.111} parent=0 // pred_region
    _
  $region25: #{resnet34_forward.111} parent=0 // pred_fallthru
    _

// kernel: resnet34_forward.108
$region0: #{resnet34_forward.108}
  #allocation0 [shape = 'u32[]', space=smem, size = 0x4, offset = 0x4, fixed_abs, tag = 'smem constant byte address 0x4 - core index']
  #allocation1 [shape = 'u32[144,128]{1,0:T(1,128)}', space=vmem, size = 0x12000, scoped, tag = 'internal scratch']
  %s0 = inlined_call_operand.vmem [shape: f32[8,256], index: 0, kind: input, shape index: {}]
  %s1 = inlined_call_operand.vmem [shape: f32[2,256], index: 1, kind: input, shape index: {}]
  %s2 = inlined_call_operand.vmem [shape: f32[1,256], index: 2, kind: input, shape index: {}]
  %s3 = inlined_call_operand.vmem [shape: f32[1,256], index: 3, kind: input, shape index: {}]
  %s4 = inlined_call_operand.vmem [shape: bf16[8,256], index: 4, kind: output, shape index: {}]
  %s5 = sld [smem:[#allocation0]]
  $region26: #{resnet34_forward.108} parent=0
    _
  %s7 = ssub.s32 1, %s5
  %s8 = scalar_select 0, %s7, %s5
  // Predicated region
  $region2: #{resnet34_forward.108} parent=0 // pred_check
    _
  $region3: #{resnet34_forward.108} parent=0 // pred_check_branch
    %10 = sbr.rel (0) target = $region5
  $region4: #{resnet34_forward.108} parent=0 // pred_region
    _
  $region5: #{resnet34_forward.108} parent=0 // pred_fallthru
    _
  // Predicated region
  $region6: #{resnet34_forward.108} parent=0 // pred_check
    _
  $region7: #{resnet34_forward.108} parent=0 // pred_check_branch
    %12 = sbr.rel (0) target = $region9
  $region8: #{resnet34_forward.108} parent=0 // pred_region
    _
  $region9: #{resnet34_forward.108} parent=0 // pred_fallthru
    _
  // Predicated region
  $region10: #{resnet34_forward.108} parent=0 // pred_check
    _
  $region11: #{resnet34_forward.108} parent=0 // pred_check_branch
    %14 = sbr.rel (0) target = $region13
  $region12: #{resnet34_forward.108} parent=0 // pred_region
    _
  $region13: #{resnet34_forward.108} parent=0 // pred_fallthru
    _
  // Predicated region
  $region14: #{resnet34_forward.108} parent=0 // pred_check
    _
  $region15: #{resnet34_forward.108} parent=0 // pred_check_branch
    %16 = sbr.rel (0) target = $region17
  $region16: #{resnet34_forward.108} parent=0 // pred_region
    _
  $region17: #{resnet34_forward.108} parent=0 // pred_fallthru
    _
  %v17 = vld [vmem:[%s0] sm:$0xff]
  %v18 = vld [vmem:[%s0 + $0x8] sm:$0xff]
  %v19 = vld [vmem:[%s1] ss:$2 sm:$0x3]
  %v20 = vmul.f32 %v19, 0.5
  %s21 = scalar_lea.vmem %s1, 1
  %v22 = vld [vmem:[%s21] ss:$2 sm:$0x3]
  %v23 = vmul.f32 %v22, 0.5
  %v24 = vmul.f32 %v20, %v20
  %v25 = vsub.f32 %v23, %v24
  %v26 = vmax.f32 %v25, 0.0
  %v28 = vlaneseq
  %v29 = vshrl.u32 %v28, 7
  %v30 = vsub.s32 0, %v29
  %v31 = vrot.slane %v20, %v30
  %v32 = vlaneseq
  %v33 = vshrl.u32 %v32, 7
  %v34 = vsub.s32 1, %v33
  %v35 = vrot.slane %v20, %v34
  %v38 = vsub.f32 %v17, %v31
  %v39 = vsub.f32 %v18, %v35
  %v40 = vadd.f32 %v26, 1e-05
  %v41 = vrsqrt.pop %v40
  %v43 = vlaneseq
  %v44 = vshrl.u32 %v43, 7
  %v45 = vsub.s32 0, %v44
  %v46 = vrot.slane %v41, %v45
  %v47 = vlaneseq
  %v48 = vshrl.u32 %v47, 7
  %v49 = vsub.s32 1, %v48
  %v50 = vrot.slane %v41, %v49
  %v53 = vmul.f32 %v38, %v46
  %v54 = vmul.f32 %v39, %v50
  %v55 = vld [vmem:[%s2] sm:$0x3]
  %v57 = vlaneseq
  %v58 = vshrl.u32 %v57, 7
  %v59 = vsub.s32 0, %v58
  %v60 = vrot.slane %v55, %v59
  %v61 = vlaneseq
  %v62 = vshrl.u32 %v61, 7
  %v63 = vsub.s32 1, %v62
  %v64 = vrot.slane %v55, %v63
  %v67 = vmul.f32 %v53, %v60
  %v68 = vmul.f32 %v54, %v64
  %v69 = vld [vmem:[%s3] sm:$0x3]
  %v71 = vlaneseq
  %v72 = vshrl.u32 %v71, 7
  %v73 = vsub.s32 0, %v72
  %v74 = vrot.slane %v69, %v73
  %v75 = vlaneseq
  %v76 = vshrl.u32 %v75, 7
  %v77 = vsub.s32 1, %v76
  %v78 = vrot.slane %v69, %v77
  %v81 = vadd.f32 %v67, %v74
  %v82 = vadd.f32 %v68, %v78
  %v83 = vmax.f32 %v81, 0.0
  %v84 = vmax.f32 %v82, 0.0
  %v85 = vpack.c.bf16 %v83, %v83
  %v86 = vpack.c.bf16 %v84, %v84
  %v89 = vunpack.c.l.b16 %v85
  %v90 = vunpack.c.l.b16 %v86
  %v91 = vpack.c.b16 %v90, %v89
  %93 = vst [vmem:[%s4] sm:$0xff] %v91
  // Predicated region
  $region18: #{resnet34_forward.108} parent=0 // pred_check
    _
  $region19: #{resnet34_forward.108} parent=0 // pred_check_branch
    %95 = sbr.rel (0) target = $region21
  $region20: #{resnet34_forward.108} parent=0 // pred_region
    _
  $region21: #{resnet34_forward.108} parent=0 // pred_fallthru
    _
  // Predicated region
  $region22: #{resnet34_forward.108} parent=0 // pred_check
    _
  $region23: #{resnet34_forward.108} parent=0 // pred_check_branch
    %97 = sbr.rel (0) target = $region25
  $region24: #{resnet34_forward.108} parent=0 // pred_region
    _
  $region25: #{resnet34_forward.108} parent=0 // pred_fallthru
    _

// kernel: resnet34_forward.107
$region0: #{resnet34_forward.107}
  #allocation0 [shape = 'u32[]', space=smem, size = 0x4, offset = 0x4, fixed_abs, tag = 'smem constant byte address 0x4 - core index']
  #allocation1 [shape = 'u32[144,128]{1,0:T(1,128)}', space=vmem, size = 0x12000, scoped, tag = 'internal scratch']
  #allocation2 [shape = 'f32[8,256]{1,0:T(8,128)}', space=vmem, size = 0x2000, scoped, tag = 'scratch operand']
  %s0 = inlined_call_operand.vmem [shape: bf16[8,1152], index: 0, kind: input, shape index: {}]
  %s1 = inlined_call_operand.vmem [shape: bf16[1152,256], index: 1, kind: input, shape index: {}]
  %s2 = inlined_call_operand.vmem [shape: f32[8,256], index: 2, kind: output, shape index: {0}]
  %s3 = inlined_call_operand.vmem [shape: f32[2,256], index: 3, kind: output, shape index: {1}]
  %4 = xla_tuple %s2, %s3
  %s5 = sld [smem:[#allocation0]]
  $region61: #{resnet34_forward.107} parent=0
    _
  %s7 = ssub.s32 1, %s5
  %s8 = scalar_select 0, %s7, %s5
  loop: start=0, step=1, limit=11
  $region2: #{resnet34_forward.107} parent=0 // loop_pre_header
    _
  $region3: #{resnet34_forward.107} parent=0 // loop_header
    %s10 = sphi 0, %s14
    %p11 = scmp.ge.s32.totalorder %s10, 11
    %s17 = sphi 0, %s29
    %s18 = sphi 0, %s25
    %s19 = sphi 0, %s17
    %s20 = sphi 0, %s18
    %s21 = sphi 0, %s19
    %s22 = sphi 0, %s20
    %s34 = sphi 0, %s36
    %s37 = sphi 0, %s34
    %s38 = sphi 0, %s37
    %s54 = sphi 0, %s38
    %s60 = sphi 0, %s62
    %s63 = sphi 0, %s60
    %s64 = sphi 0, %s63
    %s80 = sphi 0, %s64
    %s86 = sphi 0, %s88
    %s89 = sphi 0, %s86
    %s90 = sphi 0, %s89
    %s106 = sphi 0, %s90
    %s110 = sphi 0, %s110
    %s112 = sphi 0, %s110
    %s113 = sphi 0, %s112
    %s127 = sphi 0, %s113
  $region4: #{resnet34_forward.107} parent=0 // loop_header_branch
    %13 = sbr.rel (%p11) target = $region8
  $region5: #{resnet34_forward.107} parent=0 // loop_body
    %s15 = ssub.s32 %s10, 1
    %s16 = ssub.s32 %s10, 2
    %s23 = sadd.s32 1, %s18
    %p24 = scmp.ge.s32.totalorder %s23, 9
    %s25 = scalar_select %p24, 0, %s23
    %s26 = sadd.s32 1, %s17
    %s27 = scalar_select %p24, %s26, %s17
    %p28 = scmp.ge.s32.totalorder %s27, 1
    %s29 = scalar_select %p28, 0, %s27
    %s30 = ssub.s32 %s17, %s29
    %s31 = ssub.s32 %s18, %s25
    %s32 = sor.u32 %s30, %s31
    %p33 = scmp.eq.s32.totalorder %s32, 0
    %s35 = sadd.s32 %s34, 1
    %s36 = scalar_select %p33, %s34, %s35
    %p39 = pneg %p33
    %p40 = scmp.eq.s32.totalorder %s10, 8
    %p41 = por %p39, %p40
    %p42 = scmp.ne.s32.totalorder %s34, %s37
    %p43 = scmp.eq.s32.totalorder %s10, 0
    %p44 = por %p42, %p43
    %p45 = scmp.ne.s32.totalorder %s34, %s37
    %p46 = scmp.eq.s32.totalorder %s15, 8
    %p47 = por %p45, %p46
    %p48 = scmp.ne.s32.totalorder %s37, %s38
    %p49 = scmp.eq.s32.totalorder %s15, 0
    %p50 = por %p48, %p49
    %p51 = scmp.ne.s32.totalorder %s37, %s38
    %p52 = scmp.eq.s32.totalorder %s16, 8
    %p53 = por %p51, %p52
    %p55 = scmp.ne.s32.totalorder %s38, %s54
    %p56 = scmp.eq.s32.totalorder %s16, 0
    %p57 = por %p55, %p56
    %s58 = ssub.s32 %s18, %s25
    %p59 = scmp.eq.s32.totalorder %s58, 0
    %s61 = sadd.s32 %s60, 1
    %s62 = scalar_select %p59, %s60, %s61
    %p65 = pneg %p59
    %p66 = scmp.eq.s32.totalorder %s10, 8
    %p67 = por %p65, %p66
    %p68 = scmp.ne.s32.totalorder %s60, %s63
    %p69 = scmp.eq.s32.totalorder %s10, 0
    %p70 = por %p68, %p69
    %p71 = scmp.ne.s32.totalorder %s60, %s63
    %p72 = scmp.eq.s32.totalorder %s15, 8
    %p73 = por %p71, %p72
    %p74 = scmp.ne.s32.totalorder %s63, %s64
    %p75 = scmp.eq.s32.totalorder %s15, 0
    %p76 = por %p74, %p75
    %p77 = scmp.ne.s32.totalorder %s63, %s64
    %p78 = scmp.eq.s32.totalorder %s16, 8
    %p79 = por %p77, %p78
    %p81 = scmp.ne.s32.totalorder %s64, %s80
    %p82 = scmp.eq.s32.totalorder %s16, 0
    %p83 = por %p81, %p82
    %s84 = ssub.s32 %s17, %s29
    %p85 = scmp.eq.s32.totalorder %s84, 0
    %s87 = sadd.s32 %s86, 1
    %s88 = scalar_select %p85, %s86, %s87
    %p91 = pneg %p85
    %p92 = scmp.eq.s32.totalorder %s10, 8
    %p93 = por %p91, %p92
    %p94 = scmp.ne.s32.totalorder %s86, %s89
    %p95 = scmp.eq.s32.totalorder %s10, 0
    %p96 = por %p94, %p95
    %p97 = scmp.ne.s32.totalorder %s86, %s89
    %p98 = scmp.eq.s32.totalorder %s15, 8
    %p99 = por %p97, %p98
    %p100 = scmp.ne.s32.totalorder %s89, %s90
    %p101 = scmp.eq.s32.totalorder %s15, 0
    %p102 = por %p100, %p101
    %p103 = scmp.ne.s32.totalorder %s89, %s90
    %p104 = scmp.eq.s32.totalorder %s16, 8
    %p105 = por %p103, %p104
    %p107 = scmp.ne.s32.totalorder %s90, %s106
    %p108 = scmp.eq.s32.totalorder %s16, 0
    %p109 = por %p107, %p108
    %s111 = sadd.s32 %s110, 1
    %p114 = scmp.eq.s32.totalorder %s10, 8
    %p115 = scmp.ne.s32.totalorder %s110, %s112
    %p116 = scmp.eq.s32.totalorder %s10, 0
    %p117 = por %p115, %p116
    %p118 = scmp.ne.s32.totalorder %s110, %s112
    %p119 = scmp.eq.s32.totalorder %s15, 8
    %p120 = por %p118, %p119
    %p121 = scmp.ne.s32.totalorder %s112, %s113
    %p122 = scmp.eq.s32.totalorder %s15, 0
    %p123 = por %p121, %p122
    %p124 = scmp.ne.s32.totalorder %s112, %s113
    %p125 = scmp.eq.s32.totalorder %s16, 8
    %p126 = por %p124, %p125
    %p128 = scmp.ne.s32.totalorder %s113, %s127
    %p129 = scmp.eq.s32.totalorder %s16, 0
    %p130 = por %p128, %p129
    %p131 = scmp.le.s32.totalorder 1, %s10
    %p132 = scmp.lt.s32.totalorder %s10, 10
    %p133 = pnand %p131, %p132
    %p134 = pneg %p133
    // Predicated region
    $region9: #{resnet34_forward.107} parent=5 // pred_check
      _
    $region10: #{resnet34_forward.107} parent=5 // pred_check_branch
      %136 = sbr.rel (%p133) target = $region12
    $region11: #{resnet34_forward.107} parent=5 // pred_region
      %s137 = ssub.s32 %s10, 1
    $region12: #{resnet34_forward.107} parent=5 // pred_fallthru
      _
    %p138 = scmp.lt.s32.totalorder %s10, 9
    // Predicated region
    $region13: #{resnet34_forward.107} parent=5 // pred_check
      %p139 = pneg %p138
    $region14: #{resnet34_forward.107} parent=5 // pred_check_branch
      %141 = sbr.rel (%p139) target = $region16
    $region15: #{resnet34_forward.107} parent=5 // pred_region
      // Predicated region
      $region17: #{resnet34_forward.107} parent=15 // pred_check
        %p142 = pneg %p44
      $region18: #{resnet34_forward.107} parent=15 // pred_check_branch
        %144 = sbr.rel (%p142) target = $region20
      $region19: #{resnet34_forward.107} parent=15 // pred_region
        %p145 = scmp.lt.s32.totalorder %s17, 0
        %s146 = scalar_select %p145, %s17, 0
        %p147 = scmp.lt.s32.totalorder %s18, 8
        %s148 = scalar_select %p147, %s18, 8
        %s149 = smul.addr %s146, 9
        %s150 = sadd.s32 %s148, %s149
        %s151 = smul.addr %s150, 4
        %s152 = scalar_lea.vmem %s0, %s151
      $region20: #{resnet34_forward.107} parent=15 // pred_fallthru
        _
      // Predicated region
      $region21: #{resnet34_forward.107} parent=15 // pred_check
        %p153 = pneg %p70
      $region22: #{resnet34_forward.107} parent=15 // pred_check_branch
        %155 = sbr.rel (%p153) target = $region24
      $region23: #{resnet34_forward.107} parent=15 // pred_region
        %s156 = smul.u32 16, %s18
        %p157 = scmp.lt.s32.totalorder %s156, 143
        %s158 = scalar_select %p157, %s156, 143
        %s159 = smul.addr %s158, 2
        %s160 = smul.addr %s159, 4
        %s161 = scalar_lea.vmem %s1, %s160
        %s162 = smul.u32 16, %s18
      $region24: #{resnet34_forward.107} parent=15 // pred_fallthru
        _
    $region16: #{resnet34_forward.107} parent=5 // pred_fallthru
      _
    %p163 = scmp.le.s32.totalorder 1, %s10
    %p164 = scmp.lt.s32.totalorder %s10, 10
    %p165 = pnand %p163, %p164
    %p166 = pneg %p165
    // Predicated region
    $region25: #{resnet34_forward.107} parent=5 // pred_check
      _
    $region26: #{resnet34_forward.107} parent=5 // pred_check_branch
      %168 = sbr.rel (%p165) target = $region28
    $region27: #{resnet34_forward.107} parent=5 // pred_region
      %s169 = ssub.s32 %s10, 1
      %p170 = scmp.lt.s32.totalorder %s19, 0
      %s171 = scalar_select %p170, %s19, 0
      %p172 = scmp.lt.s32.totalorder %s20, 8
      %s173 = scalar_select %p172, %s20, 8
      %s174 = smul.addr %s171, 9
      %s175 = sadd.s32 %s173, %s174
      %s176 = smul.addr %s175, 4
      %s177 = scalar_lea.vmem %s0, %s176
      %p178 = pneg %p50
      %p179 = pneg %p47
      %s180 = smul.u32 16, %s20
      %p181 = scmp.lt.s32.totalorder %s180, 143
      %s182 = scalar_select %p181, %s180, 143
      %s183 = smul.addr %s182, 2
      %s184 = smul.addr %s183, 4
      %s185 = scalar_lea.vmem %s1, %s184
      %p186 = pneg %p76
      %p187 = pneg %p73
      %p188 = pneg %p102
      %p189 = pneg %p99
      %p190 = scmp.lt.s32.totalorder %s19, 0
      %s191 = scalar_select %p190, %s19, 0
      %s192 = smul.addr %s191, 2
      %s193 = smul.addr %s192, 8
      %s194 = scalar_lea.vmem %s2, %s193
      %p195 = pneg %p123
      %p196 = pneg %p120
      %p197 = scmp.lt.s32.totalorder %s19, 0
      %s198 = scalar_select %p197, %s19, 0
      %p199 = scmp.lt.s32.totalorder %s20, 8
      %s200 = scalar_select %p199, %s20, 8
      %s201 = smul.addr %s198, 9
      %s202 = sadd.s32 %s200, %s201
      %s203 = smul.addr %s202, 4
      %s204 = scalar_lea.vmem %s0, %s203
      %s205 = smul.u32 16, %s20
      %p206 = scmp.lt.s32.totalorder %s205, 143
      %s207 = scalar_select %p206, %s205, 143
      %s208 = smul.addr %s207, 2
      %s209 = smul.addr %s208, 4
      %s210 = scalar_lea.vmem %s1, %s209
      %s211 = smul.u32 16, %s20
      %p212 = scmp.lt.s32.totalorder %s19, 0
      %s213 = scalar_select %p212, %s19, 0
      %s214 = smul.addr %s213, 2
      %s215 = smul.addr %s214, 8
      %s216 = scalar_lea.vmem %s2, %s215
      %p218 = scmp.eq.s32.totalorder %s19, 0
      %p219 = scmp.eq.s32.totalorder %s20, 0
      %p220 = pnand %p218, %p219
      %p221 = pneg %p220
      // Predicated region
      $region29: #{resnet34_forward.107} parent=27 // pred_check
        _
      $region30: #{resnet34_forward.107} parent=27 // pred_check_branch
        %223 = sbr.rel (%p220) target = $region32
      $region31: #{resnet34_forward.107} parent=27 // pred_region
        %224 = vst [vmem:[%s3] sm:$0xf] 0.0
      $region32: #{resnet34_forward.107} parent=27 // pred_fallthru
        _
      // Predicated region
      $region33: #{resnet34_forward.107} parent=27 // pred_check
        %p225 = pneg %p219
      $region34: #{resnet34_forward.107} parent=27 // pred_check_branch
        %227 = sbr.rel (%p225) target = $region36
      $region35: #{resnet34_forward.107} parent=27 // pred_region
        %228 = vst [vmem:[#allocation2] sm:$0xff] 0.0
        %229 = vst [vmem:[#allocation2 + $0x8] sm:$0xff] 0.0
      $region36: #{resnet34_forward.107} parent=27 // pred_fallthru
        _
      %v230 = vld [vmem:[#allocation2] sm:$0xff]
      %v231 = vld [vmem:[#allocation2 + $0x8] sm:$0xff]
      %v232 = vld [vmem:[%s204] sm:$0xf]
      %v233 = vld [vmem:[%s210] sm:$0xff]
      %v234 = vld [vmem:[%s210 + $0x8] sm:$0xff]
      %v235 = vld [vmem:[%s210 + $0x10] sm:$0xff]
      %v236 = vld [vmem:[%s210 + $0x18] sm:$0xff]
      %v237 = vld [vmem:[%s210 + $0x20] sm:$0xff]
      %v238 = vld [vmem:[%s210 + $0x28] sm:$0xff]
      %v239 = vld [vmem:[%s210 + $0x30] sm:$0xff]
      %v240 = vld [vmem:[%s210 + $0x38] sm:$0xff]
      %v241 = vld [vmem:[%s210 + $0x40] sm:$0xff]
      %v242 = vld [vmem:[%s210 + $0x48] sm:$0xff]
      %v243 = vld [vmem:[%s210 + $0x50] sm:$0xff]
      %v244 = vld [vmem:[%s210 + $0x58] sm:$0xff]
      %v245 = vld [vmem:[%s210 + $0x60] sm:$0xff]
      %v246 = vld [vmem:[%s210 + $0x68] sm:$0xff]
      %v247 = vld [vmem:[%s210 + $0x70] sm:$0xff]
      %v248 = vld [vmem:[%s210 + $0x78] sm:$0xff]
      %v265 = vunpack.c.l.b16 %v233
      %v266 = vunpack.c.h.b16 %v233
      %v267 = vunpack.c.l.b16 %v234
      %v268 = vunpack.c.h.b16 %v234
      %v269 = vunpack.c.l.b16 %v235
      %v270 = vunpack.c.h.b16 %v235
      %v271 = vunpack.c.l.b16 %v236
      %v272 = vunpack.c.h.b16 %v236
      %v273 = vunpack.c.l.b16 %v237
      %v274 = vunpack.c.h.b16 %v237
      %v275 = vunpack.c.l.b16 %v238
      %v276 = vunpack.c.h.b16 %v238
      %v277 = vunpack.c.l.b16 %v239
      %v278 = vunpack.c.h.b16 %v239
      %v279 = vunpack.c.l.b16 %v240
      %v280 = vunpack.c.h.b16 %v240
      %v281 = vunpack.c.l.b16 %v241
      %v282 = vunpack.c.h.b16 %v241
      %v283 = vunpack.c.l.b16 %v242
      %v284 = vunpack.c.h.b16 %v242
      %v285 = vunpack.c.l.b16 %v243
      %v286 = vunpack.c.h.b16 %v243
      %v287 = vunpack.c.l.b16 %v244
      %v288 = vunpack.c.h.b16 %v244
      %v289 = vunpack.c.l.b16 %v245
      %v290 = vunpack.c.h.b16 %v245
      %v291 = vunpack.c.l.b16 %v246
      %v292 = vunpack.c.h.b16 %v246
      %v293 = vunpack.c.l.b16 %v247
      %v294 = vunpack.c.h.b16 %v247
      %v295 = vunpack.c.l.b16 %v248
      %v296 = vunpack.c.h.b16 %v248
      %v297 = vpack.c.b16 %v267, %v265
      %v298 = vpack.c.b16 %v268, %v266
      %v299 = vpack.c.b16 %v271, %v269
      %v300 = vpack.c.b16 %v272, %v270
      %v301 = vpack.c.b16 %v275, %v273
      %v302 = vpack.c.b16 %v276, %v274
      %v303 = vpack.c.b16 %v279, %v277
      %v304 = vpack.c.b16 %v280, %v278
      %v305 = vpack.c.b16 %v283, %v281
      %v306 = vpack.c.b16 %v284, %v282
      %v307 = vpack.c.b16 %v287, %v285
      %v308 = vpack.c.b16 %v288, %v286
      %v309 = vpack.c.b16 %v291, %v289
      %v310 = vpack.c.b16 %v292, %v290
      %v311 = vpack.c.b16 %v295, %v293
      %v312 = vpack.c.b16 %v296, %v294
      %329 = vmatprep.subr.bf16.mxu0 %v312
      %330 = vmatpush1.bf16.msra.mxu0 %v311
      %331 = vmatprep.subr.bf16.mxu0 %v310
      %332 = vmatpush1.bf16.msra.mxu0 %v309
      %333 = vmatprep.subr.bf16.mxu0 %v308
      %334 = vmatpush1.bf16.msra.mxu0 %v307
      %335 = vmatprep.subr.bf16.mxu0 %v306
      %336 = vmatpush1.bf16.msra.mxu0 %v305
      %337 = vmatprep.subr.bf16.mxu0 %v304
      %338 = vmatpush1.bf16.msra.mxu0 %v303
      %339 = vmatprep.subr.bf16.mxu0 %v302
      %340 = vmatpush1.bf16.msra.mxu0 %v301
      %341 = vmatprep.subr.bf16.mxu0 %v300
      %342 = vmatpush1.bf16.msra.mxu0 %v299
      %343 = vmatprep.subr.bf16.mxu0 %v298
      %344 = vmatpush1.bf16.msra.mxu0 %v297
      %345 = vmatprep.subr.bf16.mxu0 0
      %346 = vmatpush2.bf16.msra.mxu0 0
      %347 = vmatprep.subr.bf16.mxu0 0
      %348 = vmatpush2.bf16.msra.mxu0 0
      %349 = vmatprep.subr.bf16.mxu0 0
      %350 = vmatpush2.bf16.msra.mxu0 0
      %351 = vmatprep.subr.bf16.mxu0 0
      %352 = vmatpush2.bf16.msra.mxu0 0
      %353 = vmatprep.subr.bf16.mxu0 0
      %354 = vmatpush2.bf16.msra.mxu0 0
      %355 = vmatprep.subr.bf16.mxu0 0
      %356 = vmatpush2.bf16.msra.mxu0 0
      %357 = vmatprep.subr.bf16.mxu0 0
      %358 = vmatpush2.bf16.msra.mxu0 0
      %359 = vmatprep.subr.bf16.mxu0 0
      %360 = vmatpush2.bf16.msra.mxu0 0
      %361 = vmatprep.mubr.bf16.mxu0 0
      %362 = vmatmul.mubr.bf16.gmra.mxu0 %v232
      %v363 = vpop.f32.mrf.mxu0
      %v364 = vadd.f32 0.0, %v363
      %v365 = vpop.f32.mrf.mxu0
      %v366 = vadd.f32 0.0, %v365
      %v367 = vpop.f32.mrf.mxu0
      %v368 = vpop.f32.mrf.mxu0
      %369 = vdwg.mxu0
      %v370 = vadd.f32 %v230, %v364
      %v371 = vadd.f32 %v231, %v366
      %372 = vst [vmem:[#allocation2] sm:$0xff] %v370
      %373 = vst [vmem:[#allocation2 + $0x8] sm:$0xff] %v371
      %p374 = scmp.eq.s32.totalorder %s20, 8
      // Predicated region
      $region37: #{resnet34_forward.107} parent=27 // pred_check
        %p375 = pneg %p374
      $region38: #{resnet34_forward.107} parent=27 // pred_check_branch
        %377 = sbr.rel (%p375) target = $region40
      $region39: #{resnet34_forward.107} parent=27 // pred_region
        %v378 = vld [vmem:[#allocation2] sm:$0xff]
        %v379 = vld [vmem:[#allocation2 + $0x8] sm:$0xff]
        %380 = vst [vmem:[%s216] sm:$0xff] %v378
        %381 = vst [vmem:[%s216 + $0x8] sm:$0xff] %v379
        %v382 = vld [vmem:[%s3] sm:$0xf]
        %v383 = vrot.slane %v378, 4
        %v384 = vadd.f32 %v378, %v383
        %v385 = vrot.slane %v384, 2
        %v386 = vadd.f32 %v384, %v385
        %v387 = vrot.slane %v386, 1
        %v388 = vadd.f32 %v386, %v387
        %v389 = vrot.slane %v379, 4
        %v390 = vadd.f32 %v379, %v389
        %v391 = vrot.slane %v390, 2
        %v392 = vadd.f32 %v390, %v391
        %v393 = vrot.slane %v392, 1
        %v394 = vadd.f32 %v392, %v393
        %v395 = vmul.f32 %v378, %v378
        %v396 = vmul.f32 %v379, %v379
        %v397 = vrot.slane %v395, 4
        %v398 = vadd.f32 %v395, %v397
        %v399 = vrot.slane %v398, 2
        %v400 = vadd.f32 %v398, %v399
        %v401 = vrot.slane %v400, 1
        %v402 = vadd.f32 %v400, %v401
        %v403 = vrot.slane %v396, 4
        %v404 = vadd.f32 %v396, %v403
        %v405 = vrot.slane %v404, 2
        %v406 = vadd.f32 %v404, %v405
        %v407 = vrot.slane %v406, 1
        %v408 = vadd.f32 %v406, %v407
        %vm409 = vcmask 1040384
        %v410 = vsel %vm409, %v388, %v402
        %v411 = vsel %vm409, %v394, %v408
        %v414 = vcombine.low %v410, %v411
        %v416 = vunpack.c.l.s4 1983009808
        %v417 = vunpack.c.0.s8 %v416
        %v418 = vlaneseq
        %v419 = vshrl.u32 %v418, 7
        %v420 = vsub.s32 %v417, %v419
        %v421 = vrot.slane %v414, %v420
        %v423 = vadd.f32 %v382, %v421
        %424 = vst [vmem:[%s3] sm:$0xf] %v423
      $region40: #{resnet34_forward.107} parent=27 // pred_fallthru
        _
      %p425 = scmp.lt.s32.totalorder %s19, 0
      %s426 = scalar_select %p425, %s19, 0
      %s427 = smul.addr %s426, 2
      %s428 = smul.addr %s427, 8
      %s429 = scalar_lea.vmem %s2, %s428
      // Predicated region
      $region41: #{resnet34_forward.107} parent=27 // pred_check
        %p430 = pneg %p99
      $region42: #{resnet34_forward.107} parent=27 // pred_check_branch
        %432 = sbr.rel (%p430) target = $region44
      $region43: #{resnet34_forward.107} parent=27 // pred_region
        _
      $region44: #{resnet34_forward.107} parent=27 // pred_fallthru
        _
      // Predicated region
      $region45: #{resnet34_forward.107} parent=27 // pred_check
        %p433 = pneg %p120
      $region46: #{resnet34_forward.107} parent=27 // pred_check_branch
        %435 = sbr.rel (%p433) target = $region48
      $region47: #{resnet34_forward.107} parent=27 // pred_region
        _
      $region48: #{resnet34_forward.107} parent=27 // pred_fallthru
        _
      // Predicated region
      $region49: #{resnet34_forward.107} parent=27 // pred_check
        %p436 = pneg %p99
      $region50: #{resnet34_forward.107} parent=27 // pred_check_branch
        %438 = sbr.rel (%p436) target = $region52
      $region51: #{resnet34_forward.107} parent=27 // pred_region
        %p439 = scmp.lt.s32.totalorder %s19, 0
        %s440 = scalar_select %p439, %s19, 0
        %s441 = smul.addr %s440, 2
        %s442 = smul.addr %s441, 8
        %s443 = scalar_lea.vmem %s2, %s442
      $region52: #{resnet34_forward.107} parent=27 // pred_fallthru
        _
      // Predicated region
      $region53: #{resnet34_forward.107} parent=27 // pred_check
        %p444 = pneg %p120
      $region54: #{resnet34_forward.107} parent=27 // pred_check_branch
        %446 = sbr.rel (%p444) target = $region56
      $region55: #{resnet34_forward.107} parent=27 // pred_region
        _
      $region56: #{resnet34_forward.107} parent=27 // pred_fallthru
        _
    $region28: #{resnet34_forward.107} parent=5 // pred_fallthru
      _
    %p447 = scmp.le.s32.totalorder 2, %s10
    // Predicated region
    $region57: #{resnet34_forward.107} parent=5 // pred_check
      %p448 = pneg %p447
    $region58: #{resnet34_forward.107} parent=5 // pred_check_branch
      %450 = sbr.rel (%p448) target = $region60
    $region59: #{resnet34_forward.107} parent=5 // pred_region
      %s451 = ssub.s32 %s10, 2
    $region60: #{resnet34_forward.107} parent=5 // pred_fallthru
      _
  $region6: #{resnet34_forward.107} parent=0 // loop_footer
    %s14 = sadd.s32 1, %s10
  $region7: #{resnet34_forward.107} parent=0 // loop_footer_branch
    %9 = sbr.rel target = $region3
  $region8: #{resnet34_forward.107} parent=0 // loop_exit
    _

// kernel: resnet34_forward.109
$region0: #{resnet34_forward.109}
  #allocation0 [shape = 'u32[]', space=smem, size = 0x4, offset = 0x4, fixed_abs, tag = 'smem constant byte address 0x4 - core index']
  #allocation1 [shape = 'u32[144,128]{1,0:T(1,128)}', space=vmem, size = 0x12000, scoped, tag = 'internal scratch']
  #allocation2 [shape = 'f32[8,256]{1,0:T(8,128)}', space=vmem, size = 0x2000, scoped, tag = 'scratch operand']
  %s0 = inlined_call_operand.vmem [shape: bf16[8,2304], index: 0, kind: input, shape index: {}]
  %s1 = inlined_call_operand.vmem [shape: bf16[2304,256], index: 1, kind: input, shape index: {}]
  %s2 = inlined_call_operand.vmem [shape: f32[8,256], index: 2, kind: output, shape index: {0}]
  %s3 = inlined_call_operand.vmem [shape: f32[2,256], index: 3, kind: output, shape index: {1}]
  %4 = xla_tuple %s2, %s3
  %s5 = sld [smem:[#allocation0]]
  $region61: #{resnet34_forward.109} parent=0
    _
  %s7 = ssub.s32 1, %s5
  %s8 = scalar_select 0, %s7, %s5
  loop: start=0, step=1, limit=11
  $region2: #{resnet34_forward.109} parent=0 // loop_pre_header
    _
  $region3: #{resnet34_forward.109} parent=0 // loop_header
    %s10 = sphi 0, %s14
    %p11 = scmp.ge.s32.totalorder %s10, 11
    %s17 = sphi 0, %s29
    %s18 = sphi 0, %s25
    %s19 = sphi 0, %s17
    %s20 = sphi 0, %s18
    %s21 = sphi 0, %s19
    %s22 = sphi 0, %s20
    %s34 = sphi 0, %s36
    %s37 = sphi 0, %s34
    %s38 = sphi 0, %s37
    %s54 = sphi 0, %s38
    %s60 = sphi 0, %s62
    %s63 = sphi 0, %s60
    %s64 = sphi 0, %s63
    %s80 = sphi 0, %s64
    %s86 = sphi 0, %s88
    %s89 = sphi 0, %s86
    %s90 = sphi 0, %s89
    %s106 = sphi 0, %s90
    %s110 = sphi 0, %s110
    %s112 = sphi 0, %s110
    %s113 = sphi 0, %s112
    %s127 = sphi 0, %s113
  $region4: #{resnet34_forward.109} parent=0 // loop_header_branch
    %13 = sbr.rel (%p11) target = $region8
  $region5: #{resnet34_forward.109} parent=0 // loop_body
    %s15 = ssub.s32 %s10, 1
    %s16 = ssub.s32 %s10, 2
    %s23 = sadd.s32 1, %s18
    %p24 = scmp.ge.s32.totalorder %s23, 9
    %s25 = scalar_select %p24, 0, %s23
    %s26 = sadd.s32 1, %s17
    %s27 = scalar_select %p24, %s26, %s17
    %p28 = scmp.ge.s32.totalorder %s27, 1
    %s29 = scalar_select %p28, 0, %s27
    %s30 = ssub.s32 %s17, %s29
    %s31 = ssub.s32 %s18, %s25
    %s32 = sor.u32 %s30, %s31
    %p33 = scmp.eq.s32.totalorder %s32, 0
    %s35 = sadd.s32 %s34, 1
    %s36 = scalar_select %p33, %s34, %s35
    %p39 = pneg %p33
    %p40 = scmp.eq.s32.totalorder %s10, 8
    %p41 = por %p39, %p40
    %p42 = scmp.ne.s32.totalorder %s34, %s37
    %p43 = scmp.eq.s32.totalorder %s10, 0
    %p44 = por %p42, %p43
    %p45 = scmp.ne.s32.totalorder %s34, %s37
    %p46 = scmp.eq.s32.totalorder %s15, 8
    %p47 = por %p45, %p46
    %p48 = scmp.ne.s32.totalorder %s37, %s38
    %p49 = scmp.eq.s32.totalorder %s15, 0
    %p50 = por %p48, %p49
    %p51 = scmp.ne.s32.totalorder %s37, %s38
    %p52 = scmp.eq.s32.totalorder %s16, 8
    %p53 = por %p51, %p52
    %p55 = scmp.ne.s32.totalorder %s38, %s54
    %p56 = scmp.eq.s32.totalorder %s16, 0
    %p57 = por %p55, %p56
    %s58 = ssub.s32 %s18, %s25
    %p59 = scmp.eq.s32.totalorder %s58, 0
    %s61 = sadd.s32 %s60, 1
    %s62 = scalar_select %p59, %s60, %s61
    %p65 = pneg %p59
    %p66 = scmp.eq.s32.totalorder %s10, 8
    %p67 = por %p65, %p66
    %p68 = scmp.ne.s32.totalorder %s60, %s63
    %p69 = scmp.eq.s32.totalorder %s10, 0
    %p70 = por %p68, %p69
    %p71 = scmp.ne.s32.totalorder %s60, %s63
    %p72 = scmp.eq.s32.totalorder %s15, 8
    %p73 = por %p71, %p72
    %p74 = scmp.ne.s32.totalorder %s63, %s64
    %p75 = scmp.eq.s32.totalorder %s15, 0
    %p76 = por %p74, %p75
    %p77 = scmp.ne.s32.totalorder %s63, %s64
    %p78 = scmp.eq.s32.totalorder %s16, 8
    %p79 = por %p77, %p78
    %p81 = scmp.ne.s32.totalorder %s64, %s80
    %p82 = scmp.eq.s32.totalorder %s16, 0
    %p83 = por %p81, %p82
    %s84 = ssub.s32 %s17, %s29
    %p85 = scmp.eq.s32.totalorder %s84, 0
    %s87 = sadd.s32 %s86, 1
    %s88 = scalar_select %p85, %s86, %s87
    %p91 = pneg %p85
    %p92 = scmp.eq.s32.totalorder %s10, 8
    %p93 = por %p91, %p92
    %p94 = scmp.ne.s32.totalorder %s86, %s89
    %p95 = scmp.eq.s32.totalorder %s10, 0
    %p96 = por %p94, %p95
    %p97 = scmp.ne.s32.totalorder %s86, %s89
    %p98 = scmp.eq.s32.totalorder %s15, 8
    %p99 = por %p97, %p98
    %p100 = scmp.ne.s32.totalorder %s89, %s90
    %p101 = scmp.eq.s32.totalorder %s15, 0
    %p102 = por %p100, %p101
    %p103 = scmp.ne.s32.totalorder %s89, %s90
    %p104 = scmp.eq.s32.totalorder %s16, 8
    %p105 = por %p103, %p104
    %p107 = scmp.ne.s32.totalorder %s90, %s106
    %p108 = scmp.eq.s32.totalorder %s16, 0
    %p109 = por %p107, %p108
    %s111 = sadd.s32 %s110, 1
    %p114 = scmp.eq.s32.totalorder %s10, 8
    %p115 = scmp.ne.s32.totalorder %s110, %s112
    %p116 = scmp.eq.s32.totalorder %s10, 0
    %p117 = por %p115, %p116
    %p118 = scmp.ne.s32.totalorder %s110, %s112
    %p119 = scmp.eq.s32.totalorder %s15, 8
    %p120 = por %p118, %p119
    %p121 = scmp.ne.s32.totalorder %s112, %s113
    %p122 = scmp.eq.s32.totalorder %s15, 0
    %p123 = por %p121, %p122
    %p124 = scmp.ne.s32.totalorder %s112, %s113
    %p125 = scmp.eq.s32.totalorder %s16, 8
    %p126 = por %p124, %p125
    %p128 = scmp.ne.s32.totalorder %s113, %s127
    %p129 = scmp.eq.s32.totalorder %s16, 0
    %p130 = por %p128, %p129
    %p131 = scmp.le.s32.totalorder 1, %s10
    %p132 = scmp.lt.s32.totalorder %s10, 10
    %p133 = pnand %p131, %p132
    %p134 = pneg %p133
    // Predicated region
    $region9: #{resnet34_forward.109} parent=5 // pred_check
      _
    $region10: #{resnet34_forward.109} parent=5 // pred_check_branch
      %136 = sbr.rel (%p133) target = $region12
    $region11: #{resnet34_forward.109} parent=5 // pred_region
      %s137 = ssub.s32 %s10, 1
    $region12: #{resnet34_forward.109} parent=5 // pred_fallthru
      _
    %p138 = scmp.lt.s32.totalorder %s10, 9
    // Predicated region
    $region13: #{resnet34_forward.109} parent=5 // pred_check
      %p139 = pneg %p138
    $region14: #{resnet34_forward.109} parent=5 // pred_check_branch
      %141 = sbr.rel (%p139) target = $region16
    $region15: #{resnet34_forward.109} parent=5 // pred_region
      // Predicated region
      $region17: #{resnet34_forward.109} parent=15 // pred_check
        %p142 = pneg %p44
      $region18: #{resnet34_forward.109} parent=15 // pred_check_branch
        %144 = sbr.rel (%p142) target = $region20
      $region19: #{resnet34_forward.109} parent=15 // pred_region
        %s145 = smul.u32 2, %s18
        %p146 = scmp.lt.s32.totalorder %s17, 0
        %s147 = scalar_select %p146, %s17, 0
        %p148 = scmp.lt.s32.totalorder %s145, 17
        %s149 = scalar_select %p148, %s145, 17
        %s150 = smul.addr %s147, 18
        %s151 = sadd.s32 %s149, %s150
        %s152 = smul.addr %s151, 4
        %s153 = scalar_lea.vmem %s0, %s152
        %s154 = smul.u32 2, %s18
      $region20: #{resnet34_forward.109} parent=15 // pred_fallthru
        _
      // Predicated region
      $region21: #{resnet34_forward.109} parent=15 // pred_check
        %p155 = pneg %p70
      $region22: #{resnet34_forward.109} parent=15 // pred_check_branch
        %157 = sbr.rel (%p155) target = $region24
      $region23: #{resnet34_forward.109} parent=15 // pred_region
        %s158 = smul.u32 32, %s18
        %p159 = scmp.lt.s32.totalorder %s158, 287
        %s160 = scalar_select %p159, %s158, 287
        %s161 = smul.addr %s160, 2
        %s162 = smul.addr %s161, 4
        %s163 = scalar_lea.vmem %s1, %s162
        %s164 = smul.u32 32, %s18
      $region24: #{resnet34_forward.109} parent=15 // pred_fallthru
        _
    $region16: #{resnet34_forward.109} parent=5 // pred_fallthru
      _
    %p165 = scmp.le.s32.totalorder 1, %s10
    %p166 = scmp.lt.s32.totalorder %s10, 10
    %p167 = pnand %p165, %p166
    %p168 = pneg %p167
    // Predicated region
    $region25: #{resnet34_forward.109} parent=5 // pred_check
      _
    $region26: #{resnet34_forward.109} parent=5 // pred_check_branch
      %170 = sbr.rel (%p167) target = $region28
    $region27: #{resnet34_forward.109} parent=5 // pred_region
      %s171 = ssub.s32 %s10, 1
      %s172 = smul.u32 2, %s20
      %p173 = scmp.lt.s32.totalorder %s19, 0
      %s174 = scalar_select %p173, %s19, 0
      %p175 = scmp.lt.s32.totalorder %s172, 17
      %s176 = scalar_select %p175, %s172, 17
      %s177 = smul.addr %s174, 18
      %s178 = sadd.s32 %s176, %s177
      %s179 = smul.addr %s178, 4
      %s180 = scalar_lea.vmem %s0, %s179
      %p181 = pneg %p50
      %p182 = pneg %p47
      %s183 = smul.u32 32, %s20
      %p184 = scmp.lt.s32.totalorder %s183, 287
      %s185 = scalar_select %p184, %s183, 287
      %s186 = smul.addr %s185, 2
      %s187 = smul.addr %s186, 4
      %s188 = scalar_lea.vmem %s1, %s187
      %p189 = pneg %p76
      %p190 = pneg %p73
      %p191 = pneg %p102
      %p192 = pneg %p99
      %p193 = scmp.lt.s32.totalorder %s19, 0
      %s194 = scalar_select %p193, %s19, 0
      %s195 = smul.addr %s194, 2
      %s196 = smul.addr %s195, 8
      %s197 = scalar_lea.vmem %s2, %s196
      %p198 = pneg %p123
      %p199 = pneg %p120
      %s200 = smul.u32 2, %s20
      %p201 = scmp.lt.s32.totalorder %s19, 0
      %s202 = scalar_select %p201, %s19, 0
      %p203 = scmp.lt.s32.totalorder %s200, 17
      %s204 = scalar_select %p203, %s200, 17
      %s205 = smul.addr %s202, 18
      %s206 = sadd.s32 %s204, %s205
      %s207 = smul.addr %s206, 4
      %s208 = scalar_lea.vmem %s0, %s207
      %s209 = smul.u32 2, %s20
      %s210 = smul.u32 32, %s20
      %p211 = scmp.lt.s32.totalorder %s210, 287
      %s212 = scalar_select %p211, %s210, 287
      %s213 = smul.addr %s212, 2
      %s214 = smul.addr %s213, 4
      %s215 = scalar_lea.vmem %s1, %s214
      %s216 = smul.u32 32, %s20
      %p217 = scmp.lt.s32.totalorder %s19, 0
      %s218 = scalar_select %p217, %s19, 0
      %s219 = smul.addr %s218, 2
      %s220 = smul.addr %s219, 8
      %s221 = scalar_lea.vmem %s2, %s220
      %p222 = scmp.eq.s32.totalorder %s19, 0
      %p223 = scmp.eq.s32.totalorder %s20, 0
      %p224 = pnand %p222, %p223
      %p225 = pneg %p224
      // Predicated region
      $region29: #{resnet34_forward.109} parent=27 // pred_check
        _
      $region30: #{resnet34_forward.109} parent=27 // pred_check_branch
        %227 = sbr.rel (%p224) target = $region32
      $region31: #{resnet34_forward.109} parent=27 // pred_region
        %228 = vst [vmem:[%s3] sm:$0xf] 0.0
      $region32: #{resnet34_forward.109} parent=27 // pred_fallthru
        _
      // Predicated region
      $region33: #{resnet34_forward.109} parent=27 // pred_check
        %p229 = pneg %p223
      $region34: #{resnet34_forward.109} parent=27 // pred_check_branch
        %231 = sbr.rel (%p229) target = $region36
      $region35: #{resnet34_forward.109} parent=27 // pred_region
        %232 = vst [vmem:[#allocation2] sm:$0xff] 0.0
        %233 = vst [vmem:[#allocation2 + $0x8] sm:$0xff] 0.0
      $region36: #{resnet34_forward.109} parent=27 // pred_fallthru
        _
      %v234 = vld [vmem:[#allocation2] sm:$0xff]
      %v235 = vld [vmem:[#allocation2 + $0x8] sm:$0xff]
      %v236 = vld [vmem:[%s208] sm:$0xff]
      %v237 = vld [vmem:[%s215] sm:$0xff]
      %v238 = vld [vmem:[%s215 + $0x8] sm:$0xff]
      %v239 = vld [vmem:[%s215 + $0x10] sm:$0xff]
      %v240 = vld [vmem:[%s215 + $0x18] sm:$0xff]
      %v241 = vld [vmem:[%s215 + $0x20] sm:$0xff]
      %v242 = vld [vmem:[%s215 + $0x28] sm:$0xff]
      %v243 = vld [vmem:[%s215 + $0x30] sm:$0xff]
      %v244 = vld [vmem:[%s215 + $0x38] sm:$0xff]
      %v245 = vld [vmem:[%s215 + $0x40] sm:$0xff]
      %v246 = vld [vmem:[%s215 + $0x48] sm:$0xff]
      %v247 = vld [vmem:[%s215 + $0x50] sm:$0xff]
      %v248 = vld [vmem:[%s215 + $0x58] sm:$0xff]
      %v249 = vld [vmem:[%s215 + $0x60] sm:$0xff]
      %v250 = vld [vmem:[%s215 + $0x68] sm:$0xff]
      %v251 = vld [vmem:[%s215 + $0x70] sm:$0xff]
      %v252 = vld [vmem:[%s215 + $0x78] sm:$0xff]
      %v253 = vld [vmem:[%s215 + $0x80] sm:$0xff]
      %v254 = vld [vmem:[%s215 + $0x88] sm:$0xff]
      %v255 = vld [vmem:[%s215 + $0x90] sm:$0xff]
      %v256 = vld [vmem:[%s215 + $0x98] sm:$0xff]
      %v257 = vld [vmem:[%s215 + $0xa0] sm:$0xff]
      %v258 = vld [vmem:[%s215 + $0xa8] sm:$0xff]
      %v259 = vld [vmem:[%s215 + $0xb0] sm:$0xff]
      %v260 = vld [vmem:[%s215 + $0xb8] sm:$0xff]
      %v261 = vld [vmem:[%s215 + $0xc0] sm:$0xff]
      %v262 = vld [vmem:[%s215 + $0xc8] sm:$0xff]
      %v263 = vld [vmem:[%s215 + $0xd0] sm:$0xff]
      %v264 = vld [vmem:[%s215 + $0xd8] sm:$0xff]
      %v265 = vld [vmem:[%s215 + $0xe0] sm:$0xff]
      %v266 = vld [vmem:[%s215 + $0xe8] sm:$0xff]
      %v267 = vld [vmem:[%s215 + $0xf0] sm:$0xff]
      %v268 = vld [vmem:[%s215 + $0xf8] sm:$0xff]
      %v270 = vunpack.c.l.b16 %v236
      %v271 = vunpack.c.h.b16 %v236
      %v272 = vpack.c.b16 %v270, %v270
      %v273 = vpack.c.b16 %v271, %v271
      %v308 = vunpack.c.l.b16 %v237
      %v309 = vunpack.c.h.b16 %v237
      %v310 = vunpack.c.l.b16 %v238
      %v311 = vunpack.c.h.b16 %v238
      %v312 = vunpack.c.l.b16 %v239
      %v313 = vunpack.c.h.b16 %v239
      %v314 = vunpack.c.l.b16 %v240
      %v315 = vunpack.c.h.b16 %v240
      %v316 = vunpack.c.l.b16 %v241
      %v317 = vunpack.c.h.b16 %v241
      %v318 = vunpack.c.l.b16 %v242
      %v319 = vunpack.c.h.b16 %v242
      %v320 = vunpack.c.l.b16 %v243
      %v321 = vunpack.c.h.b16 %v243
      %v322 = vunpack.c.l.b16 %v244
      %v323 = vunpack.c.h.b16 %v244
      %v324 = vunpack.c.l.b16 %v245
      %v325 = vunpack.c.h.b16 %v245
      %v326 = vunpack.c.l.b16 %v246
      %v327 = vunpack.c.h.b16 %v246
      %v328 = vunpack.c.l.b16 %v247
      %v329 = vunpack.c.h.b16 %v247
      %v330 = vunpack.c.l.b16 %v248
      %v331 = vunpack.c.h.b16 %v248
      %v332 = vunpack.c.l.b16 %v249
      %v333 = vunpack.c.h.b16 %v249
      %v334 = vunpack.c.l.b16 %v250
      %v335 = vunpack.c.h.b16 %v250
      %v336 = vunpack.c.l.b16 %v251
      %v337 = vunpack.c.h.b16 %v251
      %v338 = vunpack.c.l.b16 %v252
      %v339 = vunpack.c.h.b16 %v252
      %v340 = vunpack.c.l.b16 %v253
      %v341 = vunpack.c.h.b16 %v253
      %v342 = vunpack.c.l.b16 %v254
      %v343 = vunpack.c.h.b16 %v254
      %v344 = vunpack.c.l.b16 %v255
      %v345 = vunpack.c.h.b16 %v255
      %v346 = vunpack.c.l.b16 %v256
      %v347 = vunpack.c.h.b16 %v256
      %v348 = vunpack.c.l.b16 %v257
      %v349 = vunpack.c.h.b16 %v257
      %v350 = vunpack.c.l.b16 %v258
      %v351 = vunpack.c.h.b16 %v258
      %v352 = vunpack.c.l.b16 %v259
      %v353 = vunpack.c.h.b16 %v259
      %v354 = vunpack.c.l.b16 %v260
      %v355 = vunpack.c.h.b16 %v260
      %v356 = vunpack.c.l.b16 %v261
      %v357 = vunpack.c.h.b16 %v261
      %v358 = vunpack.c.l.b16 %v262
      %v359 = vunpack.c.h.b16 %v262
      %v360 = vunpack.c.l.b16 %v263
      %v361 = vunpack.c.h.b16 %v263
      %v362 = vunpack.c.l.b16 %v264
      %v363 = vunpack.c.h.b16 %v264
      %v364 = vunpack.c.l.b16 %v265
      %v365 = vunpack.c.h.b16 %v265
      %v366 = vunpack.c.l.b16 %v266
      %v367 = vunpack.c.h.b16 %v266
      %v368 = vunpack.c.l.b16 %v267
      %v369 = vunpack.c.h.b16 %v267
      %v370 = vunpack.c.l.b16 %v268
      %v371 = vunpack.c.h.b16 %v268
      %v372 = vpack.c.b16 %v310, %v308
      %v373 = vpack.c.b16 %v311, %v309
      %v374 = vpack.c.b16 %v314, %v312
      %v375 = vpack.c.b16 %v315, %v313
      %v376 = vpack.c.b16 %v318, %v316
      %v377 = vpack.c.b16 %v319, %v317
      %v378 = vpack.c.b16 %v322, %v320
      %v379 = vpack.c.b16 %v323, %v321
      %v380 = vpack.c.b16 %v326, %v324
      %v381 = vpack.c.b16 %v327, %v325
      %v382 = vpack.c.b16 %v330, %v328
      %v383 = vpack.c.b16 %v331, %v329
      %v384 = vpack.c.b16 %v334, %v332
      %v385 = vpack.c.b16 %v335, %v333
      %v386 = vpack.c.b16 %v338, %v336
      %v387 = vpack.c.b16 %v339, %v337
      %v388 = vpack.c.b16 %v342, %v340
      %v389 = vpack.c.b16 %v343, %v341
      %v390 = vpack.c.b16 %v346, %v344
      %v391 = vpack.c.b16 %v347, %v345
      %v392 = vpack.c.b16 %v350, %v348
      %v393 = vpack.c.b16 %v351, %v349
      %v394 = vpack.c.b16 %v354, %v352
      %v395 = vpack.c.b16 %v355, %v353
      %v396 = vpack.c.b16 %v358, %v356
      %v397 = vpack.c.b16 %v359, %v357
      %v398 = vpack.c.b16 %v362, %v360
      %v399 = vpack.c.b16 %v363, %v361
      %v400 = vpack.c.b16 %v366, %v364
      %v401 = vpack.c.b16 %v367, %v365
      %v402 = vpack.c.b16 %v370, %v368
      %v403 = vpack.c.b16 %v371, %v369
      %436 = vmatprep.subr.bf16.mxu0 %v387
      %437 = vmatpush1.bf16.msra.mxu0 %v386
      %438 = vmatprep.subr.bf16.mxu0 %v385
      %439 = vmatpush1.bf16.msra.mxu0 %v384
      %440 = vmatprep.subr.bf16.mxu0 %v383
      %441 = vmatpush1.bf16.msra.mxu0 %v382
      %442 = vmatprep.subr.bf16.mxu0 %v381
      %443 = vmatpush1.bf16.msra.mxu0 %v380
      %444 = vmatprep.subr.bf16.mxu0 %v379
      %445 = vmatpush1.bf16.msra.mxu0 %v378
      %446 = vmatprep.subr.bf16.mxu0 %v377
      %447 = vmatpush1.bf16.msra.mxu0 %v376
      %448 = vmatprep.subr.bf16.mxu0 %v375
      %449 = vmatpush1.bf16.msra.mxu0 %v374
      %450 = vmatprep.subr.bf16.mxu0 %v373
      %451 = vmatpush1.bf16.msra.mxu0 %v372
      %452 = vmatprep.subr.bf16.mxu0 %v403
      %453 = vmatpush2.bf16.msra.mxu0 %v402
      %454 = vmatprep.subr.bf16.mxu0 %v401
      %455 = vmatpush2.bf16.msra.mxu0 %v400
      %456 = vmatprep.subr.bf16.mxu0 %v399
      %457 = vmatpush2.bf16.msra.mxu0 %v398
      %458 = vmatprep.subr.bf16.mxu0 %v397
      %459 = vmatpush2.bf16.msra.mxu0 %v396
      %460 = vmatprep.subr.bf16.mxu0 %v395
      %461 = vmatpush2.bf16.msra.mxu0 %v394
      %462 = vmatprep.subr.bf16.mxu0 %v393
      %463 = vmatpush2.bf16.msra.mxu0 %v392
      %464 = vmatprep.subr.bf16.mxu0 %v391
      %465 = vmatpush2.bf16.msra.mxu0 %v390
      %466 = vmatprep.subr.bf16.mxu0 %v389
      %467 = vmatpush2.bf16.msra.mxu0 %v388
      %468 = vmatprep.mubr.bf16.mxu0 %v273
      %469 = vmatmul.mubr.bf16.gmra.mxu0 %v272
      %v470 = vpop.f32.mrf.mxu0
      %v471 = vadd.f32 0.0, %v470
      %v472 = vpop.f32.mrf.mxu0
      %v473 = vadd.f32 0.0, %v472
      %v474 = vpop.f32.mrf.mxu0
      %v475 = vpop.f32.mrf.mxu0
      %476 = vdwg.mxu0
      %v477 = vadd.f32 %v234, %v471
      %v478 = vadd.f32 %v235, %v473
      %479 = vst [vmem:[#allocation2] sm:$0xff] %v477
      %480 = vst [vmem:[#allocation2 + $0x8] sm:$0xff] %v478
      %p481 = scmp.eq.s32.totalorder %s20, 8
      // Predicated region
      $region37: #{resnet34_forward.109} parent=27 // pred_check
        %p482 = pneg %p481
      $region38: #{resnet34_forward.109} parent=27 // pred_check_branch
        %484 = sbr.rel (%p482) target = $region40
      $region39: #{resnet34_forward.109} parent=27 // pred_region
        %v485 = vld [vmem:[#allocation2] sm:$0xff]
        %v486 = vld [vmem:[#allocation2 + $0x8] sm:$0xff]
        %487 = vst [vmem:[%s221] sm:$0xff] %v485
        %488 = vst [vmem:[%s221 + $0x8] sm:$0xff] %v486
        %v489 = vld [vmem:[%s3] sm:$0xf]
        %v490 = vrot.slane %v485, 4
        %v491 = vadd.f32 %v485, %v490
        %v492 = vrot.slane %v491, 2
        %v493 = vadd.f32 %v491, %v492
        %v494 = vrot.slane %v493, 1
        %v495 = vadd.f32 %v493, %v494
        %v496 = vrot.slane %v486, 4
        %v497 = vadd.f32 %v486, %v496
        %v498 = vrot.slane %v497, 2
        %v499 = vadd.f32 %v497, %v498
        %v500 = vrot.slane %v499, 1
        %v501 = vadd.f32 %v499, %v500
        %v502 = vmul.f32 %v485, %v485
        %v503 = vmul.f32 %v486, %v486
        %v504 = vrot.slane %v502, 4
        %v505 = vadd.f32 %v502, %v504
        %v506 = vrot.slane %v505, 2
        %v507 = vadd.f32 %v505, %v506
        %v508 = vrot.slane %v507, 1
        %v509 = vadd.f32 %v507, %v508
        %v510 = vrot.slane %v503, 4
        %v511 = vadd.f32 %v503, %v510
        %v512 = vrot.slane %v511, 2
        %v513 = vadd.f32 %v511, %v512
        %v514 = vrot.slane %v513, 1
        %v515 = vadd.f32 %v513, %v514
        %vm516 = vcmask 1040384
        %v517 = vsel %vm516, %v495, %v509
        %v518 = vsel %vm516, %v501, %v515
        %v521 = vcombine.low %v517, %v518
        %v523 = vunpack.c.l.s4 1983009808
        %v524 = vunpack.c.0.s8 %v523
        %v525 = vlaneseq
        %v526 = vshrl.u32 %v525, 7
        %v527 = vsub.s32 %v524, %v526
        %v528 = vrot.slane %v521, %v527
        %v530 = vadd.f32 %v489, %v528
        %531 = vst [vmem:[%s3] sm:$0xf] %v530
      $region40: #{resnet34_forward.109} parent=27 // pred_fallthru
        _
      %p532 = scmp.lt.s32.totalorder %s19, 0
      %s533 = scalar_select %p532, %s19, 0
      %s534 = smul.addr %s533, 2
      %s535 = smul.addr %s534, 8
      %s536 = scalar_lea.vmem %s2, %s535
      // Predicated region
      $region41: #{resnet34_forward.109} parent=27 // pred_check
        %p537 = pneg %p99
      $region42: #{resnet34_forward.109} parent=27 // pred_check_branch
        %539 = sbr.rel (%p537) target = $region44
      $region43: #{resnet34_forward.109} parent=27 // pred_region
        _
      $region44: #{resnet34_forward.109} parent=27 // pred_fallthru
        _
      // Predicated region
      $region45: #{resnet34_forward.109} parent=27 // pred_check
        %p540 = pneg %p120
      $region46: #{resnet34_forward.109} parent=27 // pred_check_branch
        %542 = sbr.rel (%p540) target = $region48
      $region47: #{resnet34_forward.109} parent=27 // pred_region
        _
      $region48: #{resnet34_forward.109} parent=27 // pred_fallthru
        _
      // Predicated region
      $region49: #{resnet34_forward.109} parent=27 // pred_check
        %p543 = pneg %p99
      $region50: #{resnet34_forward.109} parent=27 // pred_check_branch
        %545 = sbr.rel (%p543) target = $region52
      $region51: #{resnet34_forward.109} parent=27 // pred_region
        %p546 = scmp.lt.s32.totalorder %s19, 0
        %s547 = scalar_select %p546, %s19, 0
        %s548 = smul.addr %s547, 2
        %s549 = smul.addr %s548, 8
        %s550 = scalar_lea.vmem %s2, %s549
      $region52: #{resnet34_forward.109} parent=27 // pred_fallthru
        _
      // Predicated region
      $region53: #{resnet34_forward.109} parent=27 // pred_check
        %p551 = pneg %p120
      $region54: #{resnet34_forward.109} parent=27 // pred_check_branch
        %553 = sbr.rel (%p551) target = $region56
      $region55: #{resnet34_forward.109} parent=27 // pred_region
        _
      $region56: #{resnet34_forward.109} parent=27 // pred_fallthru
        _
    $region28: #{resnet34_forward.109} parent=5 // pred_fallthru
      _
    %p554 = scmp.le.s32.totalorder 2, %s10
    // Predicated region
    $region57: #{resnet34_forward.109} parent=5 // pred_check
      %p555 = pneg %p554
    $region58: #{resnet34_forward.109} parent=5 // pred_check_branch
      %557 = sbr.rel (%p555) target = $region60
    $region59: #{resnet34_forward.109} parent=5 // pred_region
      %s558 = ssub.s32 %s10, 2
    $region60: #{resnet34_forward.109} parent=5 // pred_fallthru
      _
  $region6: #{resnet34_forward.109} parent=0 // loop_footer
    %s14 = sadd.s32 1, %s10
  $region7: #{resnet34_forward.109} parent=0 // loop_footer_branch
    %9 = sbr.rel target = $region3
  $region8: #{resnet34_forward.109} parent=0 // loop_exit
    _

// kernel: resnet34_forward.112
$region0: #{resnet34_forward.112}
  #allocation0 [shape = 'u32[]', space=smem, size = 0x4, offset = 0x4, fixed_abs, tag = 'smem constant byte address 0x4 - core index']
  #allocation1 [shape = 'u32[144,128]{1,0:T(1,128)}', space=vmem, size = 0x12000, scoped, tag = 'internal scratch']
  %s0 = inlined_call_operand.vmem [shape: f32[8,256], index: 0, kind: input, shape index: {}]
  %s1 = inlined_call_operand.vmem [shape: bf16[8,256], index: 1, kind: input, shape index: {}]
  %s2 = inlined_call_operand.vmem [shape: f32[2,256], index: 2, kind: input, shape index: {}]
  %s3 = inlined_call_operand.vmem [shape: f32[1,256], index: 3, kind: input, shape index: {}]
  %s4 = inlined_call_operand.vmem [shape: f32[1,256], index: 4, kind: input, shape index: {}]
  %s5 = inlined_call_operand.vmem [shape: bf16[8,256], index: 5, kind: output, shape index: {}]
  %s6 = sld [smem:[#allocation0]]
  $region30: #{resnet34_forward.112} parent=0
    _
  %s8 = ssub.s32 1, %s6
  %s9 = scalar_select 0, %s8, %s6
  // Predicated region
  $region2: #{resnet34_forward.112} parent=0 // pred_check
    _
  $region3: #{resnet34_forward.112} parent=0 // pred_check_branch
    %11 = sbr.rel (0) target = $region5
  $region4: #{resnet34_forward.112} parent=0 // pred_region
    _
  $region5: #{resnet34_forward.112} parent=0 // pred_fallthru
    _
  // Predicated region
  $region6: #{resnet34_forward.112} parent=0 // pred_check
    _
  $region7: #{resnet34_forward.112} parent=0 // pred_check_branch
    %13 = sbr.rel (0) target = $region9
  $region8: #{resnet34_forward.112} parent=0 // pred_region
    _
  $region9: #{resnet34_forward.112} parent=0 // pred_fallthru
    _
  // Predicated region
  $region10: #{resnet34_forward.112} parent=0 // pred_check
    _
  $region11: #{resnet34_forward.112} parent=0 // pred_check_branch
    %15 = sbr.rel (0) target = $region13
  $region12: #{resnet34_forward.112} parent=0 // pred_region
    _
  $region13: #{resnet34_forward.112} parent=0 // pred_fallthru
    _
  // Predicated region
  $region14: #{resnet34_forward.112} parent=0 // pred_check
    _
  $region15: #{resnet34_forward.112} parent=0 // pred_check_branch
    %17 = sbr.rel (0) target = $region17
  $region16: #{resnet34_forward.112} parent=0 // pred_region
    _
  $region17: #{resnet34_forward.112} parent=0 // pred_fallthru
    _
  // Predicated region
  $region18: #{resnet34_forward.112} parent=0 // pred_check
    _
  $region19: #{resnet34_forward.112} parent=0 // pred_check_branch
    %19 = sbr.rel (0) target = $region21
  $region20: #{resnet34_forward.112} parent=0 // pred_region
    _
  $region21: #{resnet34_forward.112} parent=0 // pred_fallthru
    _
  %v20 = vld [vmem:[%s0] sm:$0xff]
  %v21 = vld [vmem:[%s0 + $0x8] sm:$0xff]
  %v22 = vld [vmem:[%s2] ss:$2 sm:$0x3]
  %v23 = vmul.f32 %v22, 0.5
  %s24 = scalar_lea.vmem %s2, 1
  %v25 = vld [vmem:[%s24] ss:$2 sm:$0x3]
  %v26 = vmul.f32 %v25, 0.5
  %v27 = vmul.f32 %v23, %v23
  %v28 = vsub.f32 %v26, %v27
  %v29 = vmax.f32 %v28, 0.0
  %v31 = vlaneseq
  %v32 = vshrl.u32 %v31, 7
  %v33 = vsub.s32 0, %v32
  %v34 = vrot.slane %v23, %v33
  %v35 = vlaneseq
  %v36 = vshrl.u32 %v35, 7
  %v37 = vsub.s32 1, %v36
  %v38 = vrot.slane %v23, %v37
  %v41 = vsub.f32 %v20, %v34
  %v42 = vsub.f32 %v21, %v38
  %v43 = vadd.f32 %v29, 1e-05
  %v44 = vrsqrt.pop %v43
  %v46 = vlaneseq
  %v47 = vshrl.u32 %v46, 7
  %v48 = vsub.s32 0, %v47
  %v49 = vrot.slane %v44, %v48
  %v50 = vlaneseq
  %v51 = vshrl.u32 %v50, 7
  %v52 = vsub.s32 1, %v51
  %v53 = vrot.slane %v44, %v52
  %v56 = vmul.f32 %v41, %v49
  %v57 = vmul.f32 %v42, %v53
  %v58 = vld [vmem:[%s3] sm:$0x3]
  %v60 = vlaneseq
  %v61 = vshrl.u32 %v60, 7
  %v62 = vsub.s32 0, %v61
  %v63 = vrot.slane %v58, %v62
  %v64 = vlaneseq
  %v65 = vshrl.u32 %v64, 7
  %v66 = vsub.s32 1, %v65
  %v67 = vrot.slane %v58, %v66
  %v70 = vmul.f32 %v56, %v63
  %v71 = vmul.f32 %v57, %v67
  %v72 = vld [vmem:[%s4] sm:$0x3]
  %v74 = vlaneseq
  %v75 = vshrl.u32 %v74, 7
  %v76 = vsub.s32 0, %v75
  %v77 = vrot.slane %v72, %v76
  %v78 = vlaneseq
  %v79 = vshrl.u32 %v78, 7
  %v80 = vsub.s32 1, %v79
  %v81 = vrot.slane %v72, %v80
  %v84 = vadd.f32 %v70, %v77
  %v85 = vadd.f32 %v71, %v81
  %v86 = vld [vmem:[%s1] sm:$0xff]
  %v87 = vunpack.c.l.bf16 %v86
  %v88 = vunpack.c.h.bf16 %v86
  %v89 = vadd.f32 %v84, %v87
  %v90 = vadd.f32 %v85, %v88
  %v91 = vmax.f32 %v89, 0.0
  %v92 = vmax.f32 %v90, 0.0
  %v93 = vpack.c.bf16 %v91, %v91
  %v94 = vpack.c.bf16 %v92, %v92
  %v97 = vunpack.c.l.b16 %v93
  %v98 = vunpack.c.l.b16 %v94
  %v99 = vpack.c.b16 %v98, %v97
  %101 = vst [vmem:[%s5] sm:$0xff] %v99
  // Predicated region
  $region22: #{resnet34_forward.112} parent=0 // pred_check
    _
  $region23: #{resnet34_forward.112} parent=0 // pred_check_branch
    %103 = sbr.rel (0) target = $region25
  $region24: #{resnet34_forward.112} parent=0 // pred_region
    _
  $region25: #{resnet34_forward.112} parent=0 // pred_fallthru
    _
  // Predicated region
  $region26: #{resnet34_forward.112} parent=0 // pred_check
    _
  $region27: #{resnet34_forward.112} parent=0 // pred_check_branch
    %105 = sbr.rel (0) target = $region29
  $region28: #{resnet34_forward.112} parent=0 // pred_region
    _
  $region29: #{resnet34_forward.112} parent=0 // pred_fallthru
    _

// kernel: resnet34_forward.137
$region0: #{resnet34_forward.137}
  #allocation0 [shape = 'u32[]', space=smem, size = 0x4, offset = 0x4, fixed_abs, tag = 'smem constant byte address 0x4 - core index']
  #allocation1 [shape = 'u32[144,128]{1,0:T(1,128)}', space=vmem, size = 0x12000, scoped, tag = 'internal scratch']
  %s0 = inlined_call_operand.vmem [shape: f32[8,512], index: 0, kind: input, shape index: {}]
  %s1 = inlined_call_operand.vmem [shape: f32[2,512], index: 1, kind: input, shape index: {}]
  %s2 = inlined_call_operand.vmem [shape: f32[1,512], index: 2, kind: input, shape index: {}]
  %s3 = inlined_call_operand.vmem [shape: f32[1,512], index: 3, kind: input, shape index: {}]
  %s4 = inlined_call_operand.vmem [shape: bf16[8,512], index: 4, kind: output, shape index: {}]
  %s5 = sld [smem:[#allocation0]]
  $region26: #{resnet34_forward.137} parent=0
    _
  %s7 = ssub.s32 1, %s5
  %s8 = scalar_select 0, %s7, %s5
  // Predicated region
  $region2: #{resnet34_forward.137} parent=0 // pred_check
    _
  $region3: #{resnet34_forward.137} parent=0 // pred_check_branch
    %10 = sbr.rel (0) target = $region5
  $region4: #{resnet34_forward.137} parent=0 // pred_region
    _
  $region5: #{resnet34_forward.137} parent=0 // pred_fallthru
    _
  // Predicated region
  $region6: #{resnet34_forward.137} parent=0 // pred_check
    _
  $region7: #{resnet34_forward.137} parent=0 // pred_check_branch
    %12 = sbr.rel (0) target = $region9
  $region8: #{resnet34_forward.137} parent=0 // pred_region
    _
  $region9: #{resnet34_forward.137} parent=0 // pred_fallthru
    _
  // Predicated region
  $region10: #{resnet34_forward.137} parent=0 // pred_check
    _
  $region11: #{resnet34_forward.137} parent=0 // pred_check_branch
    %14 = sbr.rel (0) target = $region13
  $region12: #{resnet34_forward.137} parent=0 // pred_region
    _
  $region13: #{resnet34_forward.137} parent=0 // pred_fallthru
    _
  // Predicated region
  $region14: #{resnet34_forward.137} parent=0 // pred_check
    _
  $region15: #{resnet34_forward.137} parent=0 // pred_check_branch
    %16 = sbr.rel (0) target = $region17
  $region16: #{resnet34_forward.137} parent=0 // pred_region
    _
  $region17: #{resnet34_forward.137} parent=0 // pred_fallthru
    _
  %v17 = vld [vmem:[%s0] sm:$0xff]
  %v18 = vld [vmem:[%s0 + $0x8] sm:$0xff]
  %v19 = vld [vmem:[%s0 + $0x10] sm:$0xff]
  %v20 = vld [vmem:[%s0 + $0x18] sm:$0xff]
  %v21 = vld [vmem:[%s1] ss:$2 sm:$0xf]
  %v22 = vmul.f32 %v21, 0.5
  %s23 = scalar_lea.vmem %s1, 1
  %v24 = vld [vmem:[%s23] ss:$2 sm:$0xf]
  %v25 = vmul.f32 %v24, 0.5
  %v26 = vmul.f32 %v22, %v22
  %v27 = vsub.f32 %v25, %v26
  %v28 = vmax.f32 %v27, 0.0
  %v30 = vlaneseq
  %v31 = vshrl.u32 %v30, 7
  %v32 = vsub.s32 0, %v31
  %v33 = vrot.slane %v22, %v32
  %v34 = vlaneseq
  %v35 = vshrl.u32 %v34, 7
  %v36 = vsub.s32 1, %v35
  %v37 = vrot.slane %v22, %v36
  %v38 = vlaneseq
  %v39 = vshrl.u32 %v38, 7
  %v40 = vsub.s32 2, %v39
  %v41 = vrot.slane %v22, %v40
  %v42 = vlaneseq
  %v43 = vshrl.u32 %v42, 7
  %v44 = vsub.s32 3, %v43
  %v45 = vrot.slane %v22, %v44
  %v50 = vsub.f32 %v17, %v33
  %v51 = vsub.f32 %v18, %v37
  %v52 = vsub.f32 %v19, %v41
  %v53 = vsub.f32 %v20, %v45
  %v54 = vadd.f32 %v28, 1e-05
  %v55 = vrsqrt.pop %v54
  %v57 = vlaneseq
  %v58 = vshrl.u32 %v57, 7
  %v59 = vsub.s32 0, %v58
  %v60 = vrot.slane %v55, %v59
  %v61 = vlaneseq
  %v62 = vshrl.u32 %v61, 7
  %v63 = vsub.s32 1, %v62
  %v64 = vrot.slane %v55, %v63
  %v65 = vlaneseq
  %v66 = vshrl.u32 %v65, 7
  %v67 = vsub.s32 2, %v66
  %v68 = vrot.slane %v55, %v67
  %v69 = vlaneseq
  %v70 = vshrl.u32 %v69, 7
  %v71 = vsub.s32 3, %v70
  %v72 = vrot.slane %v55, %v71
  %v77 = vmul.f32 %v50, %v60
  %v78 = vmul.f32 %v51, %v64
  %v79 = vmul.f32 %v52, %v68
  %v80 = vmul.f32 %v53, %v72
  %v81 = vld [vmem:[%s2] sm:$0xf]
  %v83 = vlaneseq
  %v84 = vshrl.u32 %v83, 7
  %v85 = vsub.s32 0, %v84
  %v86 = vrot.slane %v81, %v85
  %v87 = vlaneseq
  %v88 = vshrl.u32 %v87, 7
  %v89 = vsub.s32 1, %v88
  %v90 = vrot.slane %v81, %v89
  %v91 = vlaneseq
  %v92 = vshrl.u32 %v91, 7
  %v93 = vsub.s32 2, %v92
  %v94 = vrot.slane %v81, %v93
  %v95 = vlaneseq
  %v96 = vshrl.u32 %v95, 7
  %v97 = vsub.s32 3, %v96
  %v98 = vrot.slane %v81, %v97
  %v103 = vmul.f32 %v77, %v86
  %v104 = vmul.f32 %v78, %v90
  %v105 = vmul.f32 %v79, %v94
  %v106 = vmul.f32 %v80, %v98
  %v107 = vld [vmem:[%s3] sm:$0xf]
  %v109 = vlaneseq
  %v110 = vshrl.u32 %v109, 7
  %v111 = vsub.s32 0, %v110
  %v112 = vrot.slane %v107, %v111
  %v113 = vlaneseq
  %v114 = vshrl.u32 %v113, 7
  %v115 = vsub.s32 1, %v114
  %v116 = vrot.slane %v107, %v115
  %v117 = vlaneseq
  %v118 = vshrl.u32 %v117, 7
  %v119 = vsub.s32 2, %v118
  %v120 = vrot.slane %v107, %v119
  %v121 = vlaneseq
  %v122 = vshrl.u32 %v121, 7
  %v123 = vsub.s32 3, %v122
  %v124 = vrot.slane %v107, %v123
  %v129 = vadd.f32 %v103, %v112
  %v130 = vadd.f32 %v104, %v116
  %v131 = vadd.f32 %v105, %v120
  %v132 = vadd.f32 %v106, %v124
  %v133 = vpack.c.bf16 %v129, %v129
  %v134 = vpack.c.bf16 %v130, %v130
  %v135 = vpack.c.bf16 %v131, %v131
  %v136 = vpack.c.bf16 %v132, %v132
  %v141 = vunpack.c.l.b16 %v133
  %v142 = vunpack.c.l.b16 %v134
  %v143 = vunpack.c.l.b16 %v135
  %v144 = vunpack.c.l.b16 %v136
  %v145 = vpack.c.b16 %v142, %v141
  %v146 = vpack.c.b16 %v144, %v143
  %149 = vst [vmem:[%s4] sm:$0xff] %v145
  %150 = vst [vmem:[%s4 + $0x8] sm:$0xff] %v146
  // Predicated region
  $region18: #{resnet34_forward.137} parent=0 // pred_check
    _
  $region19: #{resnet34_forward.137} parent=0 // pred_check_branch
    %152 = sbr.rel (0) target = $region21
  $region20: #{resnet34_forward.137} parent=0 // pred_region
    _
  $region21: #{resnet34_forward.137} parent=0 // pred_fallthru
    _
  // Predicated region
  $region22: #{resnet34_forward.137} parent=0 // pred_check
    _
  $region23: #{resnet34_forward.137} parent=0 // pred_check_branch
    %154 = sbr.rel (0) target = $region25
  $region24: #{resnet34_forward.137} parent=0 // pred_region
    _
  $region25: #{resnet34_forward.137} parent=0 // pred_fallthru
    _

// kernel: resnet34_forward.136
$region0: #{resnet34_forward.136}
  #allocation0 [shape = 'u32[]', space=smem, size = 0x4, offset = 0x4, fixed_abs, tag = 'smem constant byte address 0x4 - core index']
  #allocation1 [shape = 'u32[144,128]{1,0:T(1,128)}', space=vmem, size = 0x12000, scoped, tag = 'internal scratch']
  #allocation2 [shape = 'f32[8,512]{1,0:T(8,128)}', space=vmem, size = 0x4000, scoped, tag = 'scratch operand']
  %s0 = inlined_call_operand.vmem [shape: bf16[8,256], index: 0, kind: input, shape index: {}]
  %s1 = inlined_call_operand.vmem [shape: bf16[256,512], index: 1, kind: input, shape index: {}]
  %s2 = inlined_call_operand.vmem [shape: f32[8,512], index: 2, kind: output, shape index: {0}]
  %s3 = inlined_call_operand.vmem [shape: f32[2,512], index: 3, kind: output, shape index: {1}]
  %4 = xla_tuple %s2, %s3
  %s5 = sld [smem:[#allocation0]]
  $region38: #{resnet34_forward.136} parent=0
    _
  %s7 = ssub.s32 1, %s5
  %s8 = scalar_select 0, %s7, %s5
  // Predicated region
  $region2: #{resnet34_forward.136} parent=0 // pred_check
    _
  $region3: #{resnet34_forward.136} parent=0 // pred_check_branch
    %10 = sbr.rel (0) target = $region5
  $region4: #{resnet34_forward.136} parent=0 // pred_region
    _
  $region5: #{resnet34_forward.136} parent=0 // pred_fallthru
    _
  // Predicated region
  $region6: #{resnet34_forward.136} parent=0 // pred_check
    _
  $region7: #{resnet34_forward.136} parent=0 // pred_check_branch
    %12 = sbr.rel (0) target = $region9
  $region8: #{resnet34_forward.136} parent=0 // pred_region
    _
  $region9: #{resnet34_forward.136} parent=0 // pred_fallthru
    _
  %p13 = scmp.eq.s32.totalorder 0, 0
  %p14 = scmp.eq.s32.totalorder 0, 0
  %p15 = pnand %p13, %p14
  %p16 = pneg %p15
  // Predicated region
  $region10: #{resnet34_forward.136} parent=0 // pred_check
    _
  $region11: #{resnet34_forward.136} parent=0 // pred_check_branch
    %18 = sbr.rel (%p15) target = $region13
  $region12: #{resnet34_forward.136} parent=0 // pred_region
    %19 = vst [vmem:[%s3] sm:$0xff] 0.0
  $region13: #{resnet34_forward.136} parent=0 // pred_fallthru
    _
  // Predicated region
  $region14: #{resnet34_forward.136} parent=0 // pred_check
    %p20 = pneg %p14
  $region15: #{resnet34_forward.136} parent=0 // pred_check_branch
    %22 = sbr.rel (%p20) target = $region17
  $region16: #{resnet34_forward.136} parent=0 // pred_region
    %23 = vst [vmem:[#allocation2] sm:$0xff] 0.0
    %24 = vst [vmem:[#allocation2 + $0x8] sm:$0xff] 0.0
    %25 = vst [vmem:[#allocation2 + $0x10] sm:$0xff] 0.0
    %26 = vst [vmem:[#allocation2 + $0x18] sm:$0xff] 0.0
  $region17: #{resnet34_forward.136} parent=0 // pred_fallthru
    _
  %v27 = vld [vmem:[#allocation2] sm:$0xff]
  %v28 = vld [vmem:[#allocation2 + $0x8] sm:$0xff]
  %v29 = vld [vmem:[#allocation2 + $0x10] sm:$0xff]
  %v30 = vld [vmem:[#allocation2 + $0x18] sm:$0xff]
  %v31 = vld [vmem:[%s0] sm:$0xff]
  %v32 = vld [vmem:[%s1] sm:$0xff]
  %v33 = vld [vmem:[%s1 + $0x8] sm:$0xff]
  %v34 = vld [vmem:[%s1 + $0x10] sm:$0xff]
  %v35 = vld [vmem:[%s1 + $0x18] sm:$0xff]
  %v36 = vld [vmem:[%s1 + $0x20] sm:$0xff]
  %v37 = vld [vmem:[%s1 + $0x28] sm:$0xff]
  %v38 = vld [vmem:[%s1 + $0x30] sm:$0xff]
  %v39 = vld [vmem:[%s1 + $0x38] sm:$0xff]
  %v40 = vld [vmem:[%s1 + $0x40] sm:$0xff]
  %v41 = vld [vmem:[%s1 + $0x48] sm:$0xff]
  %v42 = vld [vmem:[%s1 + $0x50] sm:$0xff]
  %v43 = vld [vmem:[%s1 + $0x58] sm:$0xff]
  %v44 = vld [vmem:[%s1 + $0x60] sm:$0xff]
  %v45 = vld [vmem:[%s1 + $0x68] sm:$0xff]
  %v46 = vld [vmem:[%s1 + $0x70] sm:$0xff]
  %v47 = vld [vmem:[%s1 + $0x78] sm:$0xff]
  %v48 = vld [vmem:[%s1 + $0x80] sm:$0xff]
  %v49 = vld [vmem:[%s1 + $0x88] sm:$0xff]
  %v50 = vld [vmem:[%s1 + $0x90] sm:$0xff]
  %v51 = vld [vmem:[%s1 + $0x98] sm:$0xff]
  %v52 = vld [vmem:[%s1 + $0xa0] sm:$0xff]
  %v53 = vld [vmem:[%s1 + $0xa8] sm:$0xff]
  %v54 = vld [vmem:[%s1 + $0xb0] sm:$0xff]
  %v55 = vld [vmem:[%s1 + $0xb8] sm:$0xff]
  %v56 = vld [vmem:[%s1 + $0xc0] sm:$0xff]
  %v57 = vld [vmem:[%s1 + $0xc8] sm:$0xff]
  %v58 = vld [vmem:[%s1 + $0xd0] sm:$0xff]
  %v59 = vld [vmem:[%s1 + $0xd8] sm:$0xff]
  %v60 = vld [vmem:[%s1 + $0xe0] sm:$0xff]
  %v61 = vld [vmem:[%s1 + $0xe8] sm:$0xff]
  %v62 = vld [vmem:[%s1 + $0xf0] sm:$0xff]
  %v63 = vld [vmem:[%s1 + $0xf8] sm:$0xff]
  %v64 = vld [vmem:[%s1 + $0x100] sm:$0xff]
  %v65 = vld [vmem:[%s1 + $0x108] sm:$0xff]
  %v66 = vld [vmem:[%s1 + $0x110] sm:$0xff]
  %v67 = vld [vmem:[%s1 + $0x118] sm:$0xff]
  %v68 = vld [vmem:[%s1 + $0x120] sm:$0xff]
  %v69 = vld [vmem:[%s1 + $0x128] sm:$0xff]
  %v70 = vld [vmem:[%s1 + $0x130] sm:$0xff]
  %v71 = vld [vmem:[%s1 + $0x138] sm:$0xff]
  %v72 = vld [vmem:[%s1 + $0x140] sm:$0xff]
  %v73 = vld [vmem:[%s1 + $0x148] sm:$0xff]
  %v74 = vld [vmem:[%s1 + $0x150] sm:$0xff]
  %v75 = vld [vmem:[%s1 + $0x158] sm:$0xff]
  %v76 = vld [vmem:[%s1 + $0x160] sm:$0xff]
  %v77 = vld [vmem:[%s1 + $0x168] sm:$0xff]
  %v78 = vld [vmem:[%s1 + $0x170] sm:$0xff]
  %v79 = vld [vmem:[%s1 + $0x178] sm:$0xff]
  %v80 = vld [vmem:[%s1 + $0x180] sm:$0xff]
  %v81 = vld [vmem:[%s1 + $0x188] sm:$0xff]
  %v82 = vld [vmem:[%s1 + $0x190] sm:$0xff]
  %v83 = vld [vmem:[%s1 + $0x198] sm:$0xff]
  %v84 = vld [vmem:[%s1 + $0x1a0] sm:$0xff]
  %v85 = vld [vmem:[%s1 + $0x1a8] sm:$0xff]
  %v86 = vld [vmem:[%s1 + $0x1b0] sm:$0xff]
  %v87 = vld [vmem:[%s1 + $0x1b8] sm:$0xff]
  %v88 = vld [vmem:[%s1 + $0x1c0] sm:$0xff]
  %v89 = vld [vmem:[%s1 + $0x1c8] sm:$0xff]
  %v90 = vld [vmem:[%s1 + $0x1d0] sm:$0xff]
  %v91 = vld [vmem:[%s1 + $0x1d8] sm:$0xff]
  %v92 = vld [vmem:[%s1 + $0x1e0] sm:$0xff]
  %v93 = vld [vmem:[%s1 + $0x1e8] sm:$0xff]
  %v94 = vld [vmem:[%s1 + $0x1f0] sm:$0xff]
  %v95 = vld [vmem:[%s1 + $0x1f8] sm:$0xff]
  %v97 = vunpack.c.l.b16 %v31
  %v98 = vunpack.c.h.b16 %v31
  %v99 = vpack.c.b16 %v97, %v97
  %v100 = vpack.c.b16 %v98, %v98
  %v167 = vunpack.c.l.b16 %v32
  %v168 = vunpack.c.h.b16 %v32
  %v169 = vunpack.c.l.b16 %v33
  %v170 = vunpack.c.h.b16 %v33
  %v171 = vunpack.c.l.b16 %v34
  %v172 = vunpack.c.h.b16 %v34
  %v173 = vunpack.c.l.b16 %v35
  %v174 = vunpack.c.h.b16 %v35
  %v175 = vunpack.c.l.b16 %v36
  %v176 = vunpack.c.h.b16 %v36
  %v177 = vunpack.c.l.b16 %v37
  %v178 = vunpack.c.h.b16 %v37
  %v179 = vunpack.c.l.b16 %v38
  %v180 = vunpack.c.h.b16 %v38
  %v181 = vunpack.c.l.b16 %v39
  %v182 = vunpack.c.h.b16 %v39
  %v183 = vunpack.c.l.b16 %v40
  %v184 = vunpack.c.h.b16 %v40
  %v185 = vunpack.c.l.b16 %v41
  %v186 = vunpack.c.h.b16 %v41
  %v187 = vunpack.c.l.b16 %v42
  %v188 = vunpack.c.h.b16 %v42
  %v189 = vunpack.c.l.b16 %v43
  %v190 = vunpack.c.h.b16 %v43
  %v191 = vunpack.c.l.b16 %v44
  %v192 = vunpack.c.h.b16 %v44
  %v193 = vunpack.c.l.b16 %v45
  %v194 = vunpack.c.h.b16 %v45
  %v195 = vunpack.c.l.b16 %v46
  %v196 = vunpack.c.h.b16 %v46
  %v197 = vunpack.c.l.b16 %v47
  %v198 = vunpack.c.h.b16 %v47
  %v199 = vunpack.c.l.b16 %v48
  %v200 = vunpack.c.h.b16 %v48
  %v201 = vunpack.c.l.b16 %v49
  %v202 = vunpack.c.h.b16 %v49
  %v203 = vunpack.c.l.b16 %v50
  %v204 = vunpack.c.h.b16 %v50
  %v205 = vunpack.c.l.b16 %v51
  %v206 = vunpack.c.h.b16 %v51
  %v207 = vunpack.c.l.b16 %v52
  %v208 = vunpack.c.h.b16 %v52
  %v209 = vunpack.c.l.b16 %v53
  %v210 = vunpack.c.h.b16 %v53
  %v211 = vunpack.c.l.b16 %v54
  %v212 = vunpack.c.h.b16 %v54
  %v213 = vunpack.c.l.b16 %v55
  %v214 = vunpack.c.h.b16 %v55
  %v215 = vunpack.c.l.b16 %v56
  %v216 = vunpack.c.h.b16 %v56
  %v217 = vunpack.c.l.b16 %v57
  %v218 = vunpack.c.h.b16 %v57
  %v219 = vunpack.c.l.b16 %v58
  %v220 = vunpack.c.h.b16 %v58
  %v221 = vunpack.c.l.b16 %v59
  %v222 = vunpack.c.h.b16 %v59
  %v223 = vunpack.c.l.b16 %v60
  %v224 = vunpack.c.h.b16 %v60
  %v225 = vunpack.c.l.b16 %v61
  %v226 = vunpack.c.h.b16 %v61
  %v227 = vunpack.c.l.b16 %v62
  %v228 = vunpack.c.h.b16 %v62
  %v229 = vunpack.c.l.b16 %v63
  %v230 = vunpack.c.h.b16 %v63
  %v231 = vunpack.c.l.b16 %v64
  %v232 = vunpack.c.h.b16 %v64
  %v233 = vunpack.c.l.b16 %v65
  %v234 = vunpack.c.h.b16 %v65
  %v235 = vunpack.c.l.b16 %v66
  %v236 = vunpack.c.h.b16 %v66
  %v237 = vunpack.c.l.b16 %v67
  %v238 = vunpack.c.h.b16 %v67
  %v239 = vunpack.c.l.b16 %v68
  %v240 = vunpack.c.h.b16 %v68
  %v241 = vunpack.c.l.b16 %v69
  %v242 = vunpack.c.h.b16 %v69
  %v243 = vunpack.c.l.b16 %v70
  %v244 = vunpack.c.h.b16 %v70
  %v245 = vunpack.c.l.b16 %v71
  %v246 = vunpack.c.h.b16 %v71
  %v247 = vunpack.c.l.b16 %v72
  %v248 = vunpack.c.h.b16 %v72
  %v249 = vunpack.c.l.b16 %v73
  %v250 = vunpack.c.h.b16 %v73
  %v251 = vunpack.c.l.b16 %v74
  %v252 = vunpack.c.h.b16 %v74
  %v253 = vunpack.c.l.b16 %v75
  %v254 = vunpack.c.h.b16 %v75
  %v255 = vunpack.c.l.b16 %v76
  %v256 = vunpack.c.h.b16 %v76
  %v257 = vunpack.c.l.b16 %v77
  %v258 = vunpack.c.h.b16 %v77
  %v259 = vunpack.c.l.b16 %v78
  %v260 = vunpack.c.h.b16 %v78
  %v261 = vunpack.c.l.b16 %v79
  %v262 = vunpack.c.h.b16 %v79
  %v263 = vunpack.c.l.b16 %v80
  %v264 = vunpack.c.h.b16 %v80
  %v265 = vunpack.c.l.b16 %v81
  %v266 = vunpack.c.h.b16 %v81
  %v267 = vunpack.c.l.b16 %v82
  %v268 = vunpack.c.h.b16 %v82
  %v269 = vunpack.c.l.b16 %v83
  %v270 = vunpack.c.h.b16 %v83
  %v271 = vunpack.c.l.b16 %v84
  %v272 = vunpack.c.h.b16 %v84
  %v273 = vunpack.c.l.b16 %v85
  %v274 = vunpack.c.h.b16 %v85
  %v275 = vunpack.c.l.b16 %v86
  %v276 = vunpack.c.h.b16 %v86
  %v277 = vunpack.c.l.b16 %v87
  %v278 = vunpack.c.h.b16 %v87
  %v279 = vunpack.c.l.b16 %v88
  %v280 = vunpack.c.h.b16 %v88
  %v281 = vunpack.c.l.b16 %v89
  %v282 = vunpack.c.h.b16 %v89
  %v283 = vunpack.c.l.b16 %v90
  %v284 = vunpack.c.h.b16 %v90
  %v285 = vunpack.c.l.b16 %v91
  %v286 = vunpack.c.h.b16 %v91
  %v287 = vunpack.c.l.b16 %v92
  %v288 = vunpack.c.h.b16 %v92
  %v289 = vunpack.c.l.b16 %v93
  %v290 = vunpack.c.h.b16 %v93
  %v291 = vunpack.c.l.b16 %v94
  %v292 = vunpack.c.h.b16 %v94
  %v293 = vunpack.c.l.b16 %v95
  %v294 = vunpack.c.h.b16 %v95
  %v295 = vpack.c.b16 %v171, %v167
  %v296 = vpack.c.b16 %v172, %v168
  %v297 = vpack.c.b16 %v173, %v169
  %v298 = vpack.c.b16 %v174, %v170
  %v299 = vpack.c.b16 %v179, %v175
  %v300 = vpack.c.b16 %v180, %v176
  %v301 = vpack.c.b16 %v181, %v177
  %v302 = vpack.c.b16 %v182, %v178
  %v303 = vpack.c.b16 %v187, %v183
  %v304 = vpack.c.b16 %v188, %v184
  %v305 = vpack.c.b16 %v189, %v185
  %v306 = vpack.c.b16 %v190, %v186
  %v307 = vpack.c.b16 %v195, %v191
  %v308 = vpack.c.b16 %v196, %v192
  %v309 = vpack.c.b16 %v197, %v193
  %v310 = vpack.c.b16 %v198, %v194
  %v311 = vpack.c.b16 %v203, %v199
  %v312 = vpack.c.b16 %v204, %v200
  %v313 = vpack.c.b16 %v205, %v201
  %v314 = vpack.c.b16 %v206, %v202
  %v315 = vpack.c.b16 %v211, %v207
  %v316 = vpack.c.b16 %v212, %v208
  %v317 = vpack.c.b16 %v213, %v209
  %v318 = vpack.c.b16 %v214, %v210
  %v319 = vpack.c.b16 %v219, %v215
  %v320 = vpack.c.b16 %v220, %v216
  %v321 = vpack.c.b16 %v221, %v217
  %v322 = vpack.c.b16 %v222, %v218
  %v323 = vpack.c.b16 %v227, %v223
  %v324 = vpack.c.b16 %v228, %v224
  %v325 = vpack.c.b16 %v229, %v225
  %v326 = vpack.c.b16 %v230, %v226
  %v327 = vpack.c.b16 %v235, %v231
  %v328 = vpack.c.b16 %v236, %v232
  %v329 = vpack.c.b16 %v237, %v233
  %v330 = vpack.c.b16 %v238, %v234
  %v331 = vpack.c.b16 %v243, %v239
  %v332 = vpack.c.b16 %v244, %v240
  %v333 = vpack.c.b16 %v245, %v241
  %v334 = vpack.c.b16 %v246, %v242
  %v335 = vpack.c.b16 %v251, %v247
  %v336 = vpack.c.b16 %v252, %v248
  %v337 = vpack.c.b16 %v253, %v249
  %v338 = vpack.c.b16 %v254, %v250
  %v339 = vpack.c.b16 %v259, %v255
  %v340 = vpack.c.b16 %v260, %v256
  %v341 = vpack.c.b16 %v261, %v257
  %v342 = vpack.c.b16 %v262, %v258
  %v343 = vpack.c.b16 %v267, %v263
  %v344 = vpack.c.b16 %v268, %v264
  %v345 = vpack.c.b16 %v269, %v265
  %v346 = vpack.c.b16 %v270, %v266
  %v347 = vpack.c.b16 %v275, %v271
  %v348 = vpack.c.b16 %v276, %v272
  %v349 = vpack.c.b16 %v277, %v273
  %v350 = vpack.c.b16 %v278, %v274
  %v351 = vpack.c.b16 %v283, %v279
  %v352 = vpack.c.b16 %v284, %v280
  %v353 = vpack.c.b16 %v285, %v281
  %v354 = vpack.c.b16 %v286, %v282
  %v355 = vpack.c.b16 %v291, %v287
  %v356 = vpack.c.b16 %v292, %v288
  %v357 = vpack.c.b16 %v293, %v289
  %v358 = vpack.c.b16 %v294, %v290
  %423 = vmatprep.subr.bf16.mxu0 %v324
  %424 = vmatpush1.bf16.msra.mxu0 %v323
  %425 = vmatprep.subr.bf16.mxu0 %v320
  %426 = vmatpush1.bf16.msra.mxu0 %v319
  %427 = vmatprep.subr.bf16.mxu0 %v316
  %428 = vmatpush1.bf16.msra.mxu0 %v315
  %429 = vmatprep.subr.bf16.mxu0 %v312
  %430 = vmatpush1.bf16.msra.mxu0 %v311
  %431 = vmatprep.subr.bf16.mxu0 %v308
  %432 = vmatpush1.bf16.msra.mxu0 %v307
  %433 = vmatprep.subr.bf16.mxu0 %v304
  %434 = vmatpush1.bf16.msra.mxu0 %v303
  %435 = vmatprep.subr.bf16.mxu0 %v300
  %436 = vmatpush1.bf16.msra.mxu0 %v299
  %437 = vmatprep.subr.bf16.mxu0 %v296
  %438 = vmatpush1.bf16.msra.mxu0 %v295
  %439 = vmatprep.subr.bf16.mxu0 %v356
  %440 = vmatpush2.bf16.msra.mxu0 %v355
  %441 = vmatprep.subr.bf16.mxu0 %v352
  %442 = vmatpush2.bf16.msra.mxu0 %v351
  %443 = vmatprep.subr.bf16.mxu0 %v348
  %444 = vmatpush2.bf16.msra.mxu0 %v347
  %445 = vmatprep.subr.bf16.mxu0 %v344
  %446 = vmatpush2.bf16.msra.mxu0 %v343
  %447 = vmatprep.subr.bf16.mxu0 %v340
  %448 = vmatpush2.bf16.msra.mxu0 %v339
  %449 = vmatprep.subr.bf16.mxu0 %v336
  %450 = vmatpush2.bf16.msra.mxu0 %v335
  %451 = vmatprep.subr.bf16.mxu0 %v332
  %452 = vmatpush2.bf16.msra.mxu0 %v331
  %453 = vmatprep.subr.bf16.mxu0 %v328
  %454 = vmatpush2.bf16.msra.mxu0 %v327
  %455 = vmatprep.mubr.bf16.mxu0 %v100
  %456 = vmatmul.mubr.bf16.gmra.mxu0 %v99
  %v457 = vpop.f32.mrf.mxu0
  %v458 = vadd.f32 0.0, %v457
  %v459 = vpop.f32.mrf.mxu0
  %v460 = vadd.f32 0.0, %v459
  %v461 = vpop.f32.mrf.mxu0
  %v462 = vpop.f32.mrf.mxu0
  %463 = vdwg.mxu0
  %464 = vmatprep.subr.bf16.mxu0 %v326
  %465 = vmatpush1.bf16.msra.mxu0 %v325
  %466 = vmatprep.subr.bf16.mxu0 %v322
  %467 = vmatpush1.bf16.msra.mxu0 %v321
  %468 = vmatprep.subr.bf16.mxu0 %v318
  %469 = vmatpush1.bf16.msra.mxu0 %v317
  %470 = vmatprep.subr.bf16.mxu0 %v314
  %471 = vmatpush1.bf16.msra.mxu0 %v313
  %472 = vmatprep.subr.bf16.mxu0 %v310
  %473 = vmatpush1.bf16.msra.mxu0 %v309
  %474 = vmatprep.subr.bf16.mxu0 %v306
  %475 = vmatpush1.bf16.msra.mxu0 %v305
  %476 = vmatprep.subr.bf16.mxu0 %v302
  %477 = vmatpush1.bf16.msra.mxu0 %v301
  %478 = vmatprep.subr.bf16.mxu0 %v298
  %479 = vmatpush1.bf16.msra.mxu0 %v297
  %480 = vmatprep.subr.bf16.mxu0 %v358
  %481 = vmatpush2.bf16.msra.mxu0 %v357
  %482 = vmatprep.subr.bf16.mxu0 %v354
  %483 = vmatpush2.bf16.msra.mxu0 %v353
  %484 = vmatprep.subr.bf16.mxu0 %v350
  %485 = vmatpush2.bf16.msra.mxu0 %v349
  %486 = vmatprep.subr.bf16.mxu0 %v346
  %487 = vmatpush2.bf16.msra.mxu0 %v345
  %488 = vmatprep.subr.bf16.mxu0 %v342
  %489 = vmatpush2.bf16.msra.mxu0 %v341
  %490 = vmatprep.subr.bf16.mxu0 %v338
  %491 = vmatpush2.bf16.msra.mxu0 %v337
  %492 = vmatprep.subr.bf16.mxu0 %v334
  %493 = vmatpush2.bf16.msra.mxu0 %v333
  %494 = vmatprep.subr.bf16.mxu0 %v330
  %495 = vmatpush2.bf16.msra.mxu0 %v329
  %496 = vmatprep.mubr.bf16.mxu0 %v100
  %497 = vmatmul.mubr.bf16.gmra.mxu0 %v99
  %v498 = vpop.f32.mrf.mxu0
  %v499 = vadd.f32 0.0, %v498
  %v500 = vpop.f32.mrf.mxu0
  %v501 = vadd.f32 0.0, %v500
  %v502 = vpop.f32.mrf.mxu0
  %v503 = vpop.f32.mrf.mxu0
  %504 = vdwg.mxu0
  %v505 = vadd.f32 %v27, %v458
  %v506 = vadd.f32 %v28, %v460
  %v507 = vadd.f32 %v29, %v499
  %v508 = vadd.f32 %v30, %v501
  %509 = vst [vmem:[#allocation2] sm:$0xff] %v505
  %510 = vst [vmem:[#allocation2 + $0x8] sm:$0xff] %v506
  %511 = vst [vmem:[#allocation2 + $0x10] sm:$0xff] %v507
  %512 = vst [vmem:[#allocation2 + $0x18] sm:$0xff] %v508
  // Predicated region
  $region18: #{resnet34_forward.136} parent=0 // pred_check
    %p513 = pneg %p14
  $region19: #{resnet34_forward.136} parent=0 // pred_check_branch
    %515 = sbr.rel (%p513) target = $region21
  $region20: #{resnet34_forward.136} parent=0 // pred_region
    %v516 = vld [vmem:[#allocation2] sm:$0xff]
    %v517 = vld [vmem:[#allocation2 + $0x8] sm:$0xff]
    %v518 = vld [vmem:[#allocation2 + $0x10] sm:$0xff]
    %v519 = vld [vmem:[#allocation2 + $0x18] sm:$0xff]
    %520 = vst [vmem:[%s2] sm:$0xff] %v516
    %521 = vst [vmem:[%s2 + $0x8] sm:$0xff] %v517
    %522 = vst [vmem:[%s2 + $0x10] sm:$0xff] %v518
    %523 = vst [vmem:[%s2 + $0x18] sm:$0xff] %v519
    %v524 = vld [vmem:[%s3] sm:$0xff]
    %v525 = vrot.slane %v516, 4
    %v526 = vadd.f32 %v516, %v525
    %v527 = vrot.slane %v526, 2
    %v528 = vadd.f32 %v526, %v527
    %v529 = vrot.slane %v528, 1
    %v530 = vadd.f32 %v528, %v529
    %v531 = vrot.slane %v517, 4
    %v532 = vadd.f32 %v517, %v531
    %v533 = vrot.slane %v532, 2
    %v534 = vadd.f32 %v532, %v533
    %v535 = vrot.slane %v534, 1
    %v536 = vadd.f32 %v534, %v535
    %v537 = vrot.slane %v518, 4
    %v538 = vadd.f32 %v518, %v537
    %v539 = vrot.slane %v538, 2
    %v540 = vadd.f32 %v538, %v539
    %v541 = vrot.slane %v540, 1
    %v542 = vadd.f32 %v540, %v541
    %v543 = vrot.slane %v519, 4
    %v544 = vadd.f32 %v519, %v543
    %v545 = vrot.slane %v544, 2
    %v546 = vadd.f32 %v544, %v545
    %v547 = vrot.slane %v546, 1
    %v548 = vadd.f32 %v546, %v547
    %v549 = vmul.f32 %v516, %v516
    %v550 = vmul.f32 %v517, %v517
    %v551 = vmul.f32 %v518, %v518
    %v552 = vmul.f32 %v519, %v519
    %v553 = vrot.slane %v549, 4
    %v554 = vadd.f32 %v549, %v553
    %v555 = vrot.slane %v554, 2
    %v556 = vadd.f32 %v554, %v555
    %v557 = vrot.slane %v556, 1
    %v558 = vadd.f32 %v556, %v557
    %v559 = vrot.slane %v550, 4
    %v560 = vadd.f32 %v550, %v559
    %v561 = vrot.slane %v560, 2
    %v562 = vadd.f32 %v560, %v561
    %v563 = vrot.slane %v562, 1
    %v564 = vadd.f32 %v562, %v563
    %v565 = vrot.slane %v551, 4
    %v566 = vadd.f32 %v551, %v565
    %v567 = vrot.slane %v566, 2
    %v568 = vadd.f32 %v566, %v567
    %v569 = vrot.slane %v568, 1
    %v570 = vadd.f32 %v568, %v569
    %v571 = vrot.slane %v552, 4
    %v572 = vadd.f32 %v552, %v571
    %v573 = vrot.slane %v572, 2
    %v574 = vadd.f32 %v572, %v573
    %v575 = vrot.slane %v574, 1
    %v576 = vadd.f32 %v574, %v575
    %vm577 = vcmask 1040384
    %v578 = vsel %vm577, %v530, %v558
    %v579 = vsel %vm577, %v536, %v564
    %v580 = vsel %vm577, %v542, %v570
    %v581 = vsel %vm577, %v548, %v576
    %v586 = vcombine.low %v578, %v579
    %v587 = vcombine.low %v580, %v581
    %v589 = vunpack.c.l.s4 1983009808
    %v590 = vunpack.c.0.s8 %v589
    %v591 = vlaneseq
    %v592 = vshrl.u32 %v591, 7
    %v593 = vsub.s32 %v590, %v592
    %v594 = vrot.slane %v586, %v593
    %v596 = vunpack.c.l.s4 1983009808
    %v597 = vunpack.c.0.s8 %v596
    %v598 = vlaneseq
    %v599 = vshrl.u32 %v598, 7
    %v600 = vsub.s32 %v597, %v599
    %v601 = vrot.slane %v587, %v600
    %v602 = vcombine.low %v594, %v601
    %v604 = vadd.f32 %v524, %v602
    %605 = vst [vmem:[%s3] sm:$0xff] %v604
  $region21: #{resnet34_forward.136} parent=0 // pred_fallthru
    _
  // Predicated region
  $region22: #{resnet34_forward.136} parent=0 // pred_check
    _
  $region23: #{resnet34_forward.136} parent=0 // pred_check_branch
    %607 = sbr.rel (0) target = $region25
  $region24: #{resnet34_forward.136} parent=0 // pred_region
    _
  $region25: #{resnet34_forward.136} parent=0 // pred_fallthru
    _
  // Predicated region
  $region26: #{resnet34_forward.136} parent=0 // pred_check
    _
  $region27: #{resnet34_forward.136} parent=0 // pred_check_branch
    %609 = sbr.rel (0) target = $region29
  $region28: #{resnet34_forward.136} parent=0 // pred_region
    _
  $region29: #{resnet34_forward.136} parent=0 // pred_fallthru
    _
  // Predicated region
  $region30: #{resnet34_forward.136} parent=0 // pred_check
    _
  $region31: #{resnet34_forward.136} parent=0 // pred_check_branch
    %611 = sbr.rel (0) target = $region33
  $region32: #{resnet34_forward.136} parent=0 // pred_region
    _
  $region33: #{resnet34_forward.136} parent=0 // pred_fallthru
    _
  // Predicated region
  $region34: #{resnet34_forward.136} parent=0 // pred_check
    _
  $region35: #{resnet34_forward.136} parent=0 // pred_check_branch
    %613 = sbr.rel (0) target = $region37
  $region36: #{resnet34_forward.136} parent=0 // pred_region
    _
  $region37: #{resnet34_forward.136} parent=0 // pred_fallthru
    _

// kernel: resnet34_forward.134
$region0: #{resnet34_forward.134}
  #allocation0 [shape = 'u32[]', space=smem, size = 0x4, offset = 0x4, fixed_abs, tag = 'smem constant byte address 0x4 - core index']
  #allocation1 [shape = 'u32[144,128]{1,0:T(1,128)}', space=vmem, size = 0x12000, scoped, tag = 'internal scratch']
  %s0 = inlined_call_operand.vmem [shape: f32[8,512], index: 0, kind: input, shape index: {}]
  %s1 = inlined_call_operand.vmem [shape: f32[2,512], index: 1, kind: input, shape index: {}]
  %s2 = inlined_call_operand.vmem [shape: f32[1,512], index: 2, kind: input, shape index: {}]
  %s3 = inlined_call_operand.vmem [shape: f32[1,512], index: 3, kind: input, shape index: {}]
  %s4 = inlined_call_operand.vmem [shape: bf16[8,512], index: 4, kind: output, shape index: {}]
  %s5 = sld [smem:[#allocation0]]
  $region26: #{resnet34_forward.134} parent=0
    _
  %s7 = ssub.s32 1, %s5
  %s8 = scalar_select 0, %s7, %s5
  // Predicated region
  $region2: #{resnet34_forward.134} parent=0 // pred_check
    _
  $region3: #{resnet34_forward.134} parent=0 // pred_check_branch
    %10 = sbr.rel (0) target = $region5
  $region4: #{resnet34_forward.134} parent=0 // pred_region
    _
  $region5: #{resnet34_forward.134} parent=0 // pred_fallthru
    _
  // Predicated region
  $region6: #{resnet34_forward.134} parent=0 // pred_check
    _
  $region7: #{resnet34_forward.134} parent=0 // pred_check_branch
    %12 = sbr.rel (0) target = $region9
  $region8: #{resnet34_forward.134} parent=0 // pred_region
    _
  $region9: #{resnet34_forward.134} parent=0 // pred_fallthru
    _
  // Predicated region
  $region10: #{resnet34_forward.134} parent=0 // pred_check
    _
  $region11: #{resnet34_forward.134} parent=0 // pred_check_branch
    %14 = sbr.rel (0) target = $region13
  $region12: #{resnet34_forward.134} parent=0 // pred_region
    _
  $region13: #{resnet34_forward.134} parent=0 // pred_fallthru
    _
  // Predicated region
  $region14: #{resnet34_forward.134} parent=0 // pred_check
    _
  $region15: #{resnet34_forward.134} parent=0 // pred_check_branch
    %16 = sbr.rel (0) target = $region17
  $region16: #{resnet34_forward.134} parent=0 // pred_region
    _
  $region17: #{resnet34_forward.134} parent=0 // pred_fallthru
    _
  %v17 = vld [vmem:[%s0] sm:$0xff]
  %v18 = vld [vmem:[%s0 + $0x8] sm:$0xff]
  %v19 = vld [vmem:[%s0 + $0x10] sm:$0xff]
  %v20 = vld [vmem:[%s0 + $0x18] sm:$0xff]
  %v21 = vld [vmem:[%s1] ss:$2 sm:$0xf]
  %v22 = vmul.f32 %v21, 0.5
  %s23 = scalar_lea.vmem %s1, 1
  %v24 = vld [vmem:[%s23] ss:$2 sm:$0xf]
  %v25 = vmul.f32 %v24, 0.5
  %v26 = vmul.f32 %v22, %v22
  %v27 = vsub.f32 %v25, %v26
  %v28 = vmax.f32 %v27, 0.0
  %v30 = vlaneseq
  %v31 = vshrl.u32 %v30, 7
  %v32 = vsub.s32 0, %v31
  %v33 = vrot.slane %v22, %v32
  %v34 = vlaneseq
  %v35 = vshrl.u32 %v34, 7
  %v36 = vsub.s32 1, %v35
  %v37 = vrot.slane %v22, %v36
  %v38 = vlaneseq
  %v39 = vshrl.u32 %v38, 7
  %v40 = vsub.s32 2, %v39
  %v41 = vrot.slane %v22, %v40
  %v42 = vlaneseq
  %v43 = vshrl.u32 %v42, 7
  %v44 = vsub.s32 3, %v43
  %v45 = vrot.slane %v22, %v44
  %v50 = vsub.f32 %v17, %v33
  %v51 = vsub.f32 %v18, %v37
  %v52 = vsub.f32 %v19, %v41
  %v53 = vsub.f32 %v20, %v45
  %v54 = vadd.f32 %v28, 1e-05
  %v55 = vrsqrt.pop %v54
  %v57 = vlaneseq
  %v58 = vshrl.u32 %v57, 7
  %v59 = vsub.s32 0, %v58
  %v60 = vrot.slane %v55, %v59
  %v61 = vlaneseq
  %v62 = vshrl.u32 %v61, 7
  %v63 = vsub.s32 1, %v62
  %v64 = vrot.slane %v55, %v63
  %v65 = vlaneseq
  %v66 = vshrl.u32 %v65, 7
  %v67 = vsub.s32 2, %v66
  %v68 = vrot.slane %v55, %v67
  %v69 = vlaneseq
  %v70 = vshrl.u32 %v69, 7
  %v71 = vsub.s32 3, %v70
  %v72 = vrot.slane %v55, %v71
  %v77 = vmul.f32 %v50, %v60
  %v78 = vmul.f32 %v51, %v64
  %v79 = vmul.f32 %v52, %v68
  %v80 = vmul.f32 %v53, %v72
  %v81 = vld [vmem:[%s2] sm:$0xf]
  %v83 = vlaneseq
  %v84 = vshrl.u32 %v83, 7
  %v85 = vsub.s32 0, %v84
  %v86 = vrot.slane %v81, %v85
  %v87 = vlaneseq
  %v88 = vshrl.u32 %v87, 7
  %v89 = vsub.s32 1, %v88
  %v90 = vrot.slane %v81, %v89
  %v91 = vlaneseq
  %v92 = vshrl.u32 %v91, 7
  %v93 = vsub.s32 2, %v92
  %v94 = vrot.slane %v81, %v93
  %v95 = vlaneseq
  %v96 = vshrl.u32 %v95, 7
  %v97 = vsub.s32 3, %v96
  %v98 = vrot.slane %v81, %v97
  %v103 = vmul.f32 %v77, %v86
  %v104 = vmul.f32 %v78, %v90
  %v105 = vmul.f32 %v79, %v94
  %v106 = vmul.f32 %v80, %v98
  %v107 = vld [vmem:[%s3] sm:$0xf]
  %v109 = vlaneseq
  %v110 = vshrl.u32 %v109, 7
  %v111 = vsub.s32 0, %v110
  %v112 = vrot.slane %v107, %v111
  %v113 = vlaneseq
  %v114 = vshrl.u32 %v113, 7
  %v115 = vsub.s32 1, %v114
  %v116 = vrot.slane %v107, %v115
  %v117 = vlaneseq
  %v118 = vshrl.u32 %v117, 7
  %v119 = vsub.s32 2, %v118
  %v120 = vrot.slane %v107, %v119
  %v121 = vlaneseq
  %v122 = vshrl.u32 %v121, 7
  %v123 = vsub.s32 3, %v122
  %v124 = vrot.slane %v107, %v123
  %v129 = vadd.f32 %v103, %v112
  %v130 = vadd.f32 %v104, %v116
  %v131 = vadd.f32 %v105, %v120
  %v132 = vadd.f32 %v106, %v124
  %v133 = vmax.f32 %v129, 0.0
  %v134 = vmax.f32 %v130, 0.0
  %v135 = vmax.f32 %v131, 0.0
  %v136 = vmax.f32 %v132, 0.0
  %v137 = vpack.c.bf16 %v133, %v133
  %v138 = vpack.c.bf16 %v134, %v134
  %v139 = vpack.c.bf16 %v135, %v135
  %v140 = vpack.c.bf16 %v136, %v136
  %v145 = vunpack.c.l.b16 %v137
  %v146 = vunpack.c.l.b16 %v138
  %v147 = vunpack.c.l.b16 %v139
  %v148 = vunpack.c.l.b16 %v140
  %v149 = vpack.c.b16 %v146, %v145
  %v150 = vpack.c.b16 %v148, %v147
  %153 = vst [vmem:[%s4] sm:$0xff] %v149
  %154 = vst [vmem:[%s4 + $0x8] sm:$0xff] %v150
  // Predicated region
  $region18: #{resnet34_forward.134} parent=0 // pred_check
    _
  $region19: #{resnet34_forward.134} parent=0 // pred_check_branch
    %156 = sbr.rel (0) target = $region21
  $region20: #{resnet34_forward.134} parent=0 // pred_region
    _
  $region21: #{resnet34_forward.134} parent=0 // pred_fallthru
    _
  // Predicated region
  $region22: #{resnet34_forward.134} parent=0 // pred_check
    _
  $region23: #{resnet34_forward.134} parent=0 // pred_check_branch
    %158 = sbr.rel (0) target = $region25
  $region24: #{resnet34_forward.134} parent=0 // pred_region
    _
  $region25: #{resnet34_forward.134} parent=0 // pred_fallthru
    _

// kernel: resnet34_forward.133
$region0: #{resnet34_forward.133}
  #allocation0 [shape = 'u32[]', space=smem, size = 0x4, offset = 0x4, fixed_abs, tag = 'smem constant byte address 0x4 - core index']
  #allocation1 [shape = 'u32[144,128]{1,0:T(1,128)}', space=vmem, size = 0x12000, scoped, tag = 'internal scratch']
  #allocation2 [shape = 'f32[8,512]{1,0:T(8,128)}', space=vmem, size = 0x4000, scoped, tag = 'scratch operand']
  %s0 = inlined_call_operand.vmem [shape: bf16[8,2304], index: 0, kind: input, shape index: {}]
  %s1 = inlined_call_operand.vmem [shape: bf16[2304,512], index: 1, kind: input, shape index: {}]
  %s2 = inlined_call_operand.vmem [shape: f32[8,512], index: 2, kind: output, shape index: {0}]
  %s3 = inlined_call_operand.vmem [shape: f32[2,512], index: 3, kind: output, shape index: {1}]
  %4 = xla_tuple %s2, %s3
  %s5 = sld [smem:[#allocation0]]
  $region61: #{resnet34_forward.133} parent=0
    _
  %s7 = ssub.s32 1, %s5
  %s8 = scalar_select 0, %s7, %s5
  loop: start=0, step=1, limit=11
  $region2: #{resnet34_forward.133} parent=0 // loop_pre_header
    _
  $region3: #{resnet34_forward.133} parent=0 // loop_header
    %s10 = sphi 0, %s14
    %p11 = scmp.ge.s32.totalorder %s10, 11
    %s17 = sphi 0, %s29
    %s18 = sphi 0, %s25
    %s19 = sphi 0, %s17
    %s20 = sphi 0, %s18
    %s21 = sphi 0, %s19
    %s22 = sphi 0, %s20
    %s34 = sphi 0, %s36
    %s37 = sphi 0, %s34
    %s38 = sphi 0, %s37
    %s54 = sphi 0, %s38
    %s60 = sphi 0, %s62
    %s63 = sphi 0, %s60
    %s64 = sphi 0, %s63
    %s80 = sphi 0, %s64
    %s86 = sphi 0, %s88
    %s89 = sphi 0, %s86
    %s90 = sphi 0, %s89
    %s106 = sphi 0, %s90
    %s110 = sphi 0, %s110
    %s112 = sphi 0, %s110
    %s113 = sphi 0, %s112
    %s127 = sphi 0, %s113
  $region4: #{resnet34_forward.133} parent=0 // loop_header_branch
    %13 = sbr.rel (%p11) target = $region8
  $region5: #{resnet34_forward.133} parent=0 // loop_body
    %s15 = ssub.s32 %s10, 1
    %s16 = ssub.s32 %s10, 2
    %s23 = sadd.s32 1, %s18
    %p24 = scmp.ge.s32.totalorder %s23, 9
    %s25 = scalar_select %p24, 0, %s23
    %s26 = sadd.s32 1, %s17
    %s27 = scalar_select %p24, %s26, %s17
    %p28 = scmp.ge.s32.totalorder %s27, 1
    %s29 = scalar_select %p28, 0, %s27
    %s30 = ssub.s32 %s17, %s29
    %s31 = ssub.s32 %s18, %s25
    %s32 = sor.u32 %s30, %s31
    %p33 = scmp.eq.s32.totalorder %s32, 0
    %s35 = sadd.s32 %s34, 1
    %s36 = scalar_select %p33, %s34, %s35
    %p39 = pneg %p33
    %p40 = scmp.eq.s32.totalorder %s10, 8
    %p41 = por %p39, %p40
    %p42 = scmp.ne.s32.totalorder %s34, %s37
    %p43 = scmp.eq.s32.totalorder %s10, 0
    %p44 = por %p42, %p43
    %p45 = scmp.ne.s32.totalorder %s34, %s37
    %p46 = scmp.eq.s32.totalorder %s15, 8
    %p47 = por %p45, %p46
    %p48 = scmp.ne.s32.totalorder %s37, %s38
    %p49 = scmp.eq.s32.totalorder %s15, 0
    %p50 = por %p48, %p49
    %p51 = scmp.ne.s32.totalorder %s37, %s38
    %p52 = scmp.eq.s32.totalorder %s16, 8
    %p53 = por %p51, %p52
    %p55 = scmp.ne.s32.totalorder %s38, %s54
    %p56 = scmp.eq.s32.totalorder %s16, 0
    %p57 = por %p55, %p56
    %s58 = ssub.s32 %s18, %s25
    %p59 = scmp.eq.s32.totalorder %s58, 0
    %s61 = sadd.s32 %s60, 1
    %s62 = scalar_select %p59, %s60, %s61
    %p65 = pneg %p59
    %p66 = scmp.eq.s32.totalorder %s10, 8
    %p67 = por %p65, %p66
    %p68 = scmp.ne.s32.totalorder %s60, %s63
    %p69 = scmp.eq.s32.totalorder %s10, 0
    %p70 = por %p68, %p69
    %p71 = scmp.ne.s32.totalorder %s60, %s63
    %p72 = scmp.eq.s32.totalorder %s15, 8
    %p73 = por %p71, %p72
    %p74 = scmp.ne.s32.totalorder %s63, %s64
    %p75 = scmp.eq.s32.totalorder %s15, 0
    %p76 = por %p74, %p75
    %p77 = scmp.ne.s32.totalorder %s63, %s64
    %p78 = scmp.eq.s32.totalorder %s16, 8
    %p79 = por %p77, %p78
    %p81 = scmp.ne.s32.totalorder %s64, %s80
    %p82 = scmp.eq.s32.totalorder %s16, 0
    %p83 = por %p81, %p82
    %s84 = ssub.s32 %s17, %s29
    %p85 = scmp.eq.s32.totalorder %s84, 0
    %s87 = sadd.s32 %s86, 1
    %s88 = scalar_select %p85, %s86, %s87
    %p91 = pneg %p85
    %p92 = scmp.eq.s32.totalorder %s10, 8
    %p93 = por %p91, %p92
    %p94 = scmp.ne.s32.totalorder %s86, %s89
    %p95 = scmp.eq.s32.totalorder %s10, 0
    %p96 = por %p94, %p95
    %p97 = scmp.ne.s32.totalorder %s86, %s89
    %p98 = scmp.eq.s32.totalorder %s15, 8
    %p99 = por %p97, %p98
    %p100 = scmp.ne.s32.totalorder %s89, %s90
    %p101 = scmp.eq.s32.totalorder %s15, 0
    %p102 = por %p100, %p101
    %p103 = scmp.ne.s32.totalorder %s89, %s90
    %p104 = scmp.eq.s32.totalorder %s16, 8
    %p105 = por %p103, %p104
    %p107 = scmp.ne.s32.totalorder %s90, %s106
    %p108 = scmp.eq.s32.totalorder %s16, 0
    %p109 = por %p107, %p108
    %s111 = sadd.s32 %s110, 1
    %p114 = scmp.eq.s32.totalorder %s10, 8
    %p115 = scmp.ne.s32.totalorder %s110, %s112
    %p116 = scmp.eq.s32.totalorder %s10, 0
    %p117 = por %p115, %p116
    %p118 = scmp.ne.s32.totalorder %s110, %s112
    %p119 = scmp.eq.s32.totalorder %s15, 8
    %p120 = por %p118, %p119
    %p121 = scmp.ne.s32.totalorder %s112, %s113
    %p122 = scmp.eq.s32.totalorder %s15, 0
    %p123 = por %p121, %p122
    %p124 = scmp.ne.s32.totalorder %s112, %s113
    %p125 = scmp.eq.s32.totalorder %s16, 8
    %p126 = por %p124, %p125
    %p128 = scmp.ne.s32.totalorder %s113, %s127
    %p129 = scmp.eq.s32.totalorder %s16, 0
    %p130 = por %p128, %p129
    %p131 = scmp.le.s32.totalorder 1, %s10
    %p132 = scmp.lt.s32.totalorder %s10, 10
    %p133 = pnand %p131, %p132
    %p134 = pneg %p133
    // Predicated region
    $region9: #{resnet34_forward.133} parent=5 // pred_check
      _
    $region10: #{resnet34_forward.133} parent=5 // pred_check_branch
      %136 = sbr.rel (%p133) target = $region12
    $region11: #{resnet34_forward.133} parent=5 // pred_region
      %s137 = ssub.s32 %s10, 1
    $region12: #{resnet34_forward.133} parent=5 // pred_fallthru
      _
    %p138 = scmp.lt.s32.totalorder %s10, 9
    // Predicated region
    $region13: #{resnet34_forward.133} parent=5 // pred_check
      %p139 = pneg %p138
    $region14: #{resnet34_forward.133} parent=5 // pred_check_branch
      %141 = sbr.rel (%p139) target = $region16
    $region15: #{resnet34_forward.133} parent=5 // pred_region
      // Predicated region
      $region17: #{resnet34_forward.133} parent=15 // pred_check
        %p142 = pneg %p44
      $region18: #{resnet34_forward.133} parent=15 // pred_check_branch
        %144 = sbr.rel (%p142) target = $region20
      $region19: #{resnet34_forward.133} parent=15 // pred_region
        %s145 = smul.u32 2, %s18
        %p146 = scmp.lt.s32.totalorder %s17, 0
        %s147 = scalar_select %p146, %s17, 0
        %p148 = scmp.lt.s32.totalorder %s145, 17
        %s149 = scalar_select %p148, %s145, 17
        %s150 = smul.addr %s147, 18
        %s151 = sadd.s32 %s149, %s150
        %s152 = smul.addr %s151, 4
        %s153 = scalar_lea.vmem %s0, %s152
        %s154 = smul.u32 2, %s18
      $region20: #{resnet34_forward.133} parent=15 // pred_fallthru
        _
      // Predicated region
      $region21: #{resnet34_forward.133} parent=15 // pred_check
        %p155 = pneg %p70
      $region22: #{resnet34_forward.133} parent=15 // pred_check_branch
        %157 = sbr.rel (%p155) target = $region24
      $region23: #{resnet34_forward.133} parent=15 // pred_region
        %s158 = smul.u32 32, %s18
        %p159 = scmp.lt.s32.totalorder %s158, 287
        %s160 = scalar_select %p159, %s158, 287
        %s161 = smul.addr %s160, 4
        %s162 = smul.addr %s161, 4
        %s163 = scalar_lea.vmem %s1, %s162
        %s164 = smul.u32 32, %s18
      $region24: #{resnet34_forward.133} parent=15 // pred_fallthru
        _
    $region16: #{resnet34_forward.133} parent=5 // pred_fallthru
      _
    %p165 = scmp.le.s32.totalorder 1, %s10
    %p166 = scmp.lt.s32.totalorder %s10, 10
    %p167 = pnand %p165, %p166
    %p168 = pneg %p167
    // Predicated region
    $region25: #{resnet34_forward.133} parent=5 // pred_check
      _
    $region26: #{resnet34_forward.133} parent=5 // pred_check_branch
      %170 = sbr.rel (%p167) target = $region28
    $region27: #{resnet34_forward.133} parent=5 // pred_region
      %s171 = ssub.s32 %s10, 1
      %s172 = smul.u32 2, %s20
      %p173 = scmp.lt.s32.totalorder %s19, 0
      %s174 = scalar_select %p173, %s19, 0
      %p175 = scmp.lt.s32.totalorder %s172, 17
      %s176 = scalar_select %p175, %s172, 17
      %s177 = smul.addr %s174, 18
      %s178 = sadd.s32 %s176, %s177
      %s179 = smul.addr %s178, 4
      %s180 = scalar_lea.vmem %s0, %s179
      %p181 = pneg %p50
      %p182 = pneg %p47
      %s183 = smul.u32 32, %s20
      %p184 = scmp.lt.s32.totalorder %s183, 287
      %s185 = scalar_select %p184, %s183, 287
      %s186 = smul.addr %s185, 4
      %s187 = smul.addr %s186, 4
      %s188 = scalar_lea.vmem %s1, %s187
      %p189 = pneg %p76
      %p190 = pneg %p73
      %p191 = pneg %p102
      %p192 = pneg %p99
      %p193 = scmp.lt.s32.totalorder %s19, 0
      %s194 = scalar_select %p193, %s19, 0
      %s195 = smul.addr %s194, 4
      %s196 = smul.addr %s195, 8
      %s197 = scalar_lea.vmem %s2, %s196
      %p198 = pneg %p123
      %p199 = pneg %p120
      %s200 = smul.u32 2, %s20
      %p201 = scmp.lt.s32.totalorder %s19, 0
      %s202 = scalar_select %p201, %s19, 0
      %p203 = scmp.lt.s32.totalorder %s200, 17
      %s204 = scalar_select %p203, %s200, 17
      %s205 = smul.addr %s202, 18
      %s206 = sadd.s32 %s204, %s205
      %s207 = smul.addr %s206, 4
      %s208 = scalar_lea.vmem %s0, %s207
      %s209 = smul.u32 2, %s20
      %s210 = smul.u32 32, %s20
      %p211 = scmp.lt.s32.totalorder %s210, 287
      %s212 = scalar_select %p211, %s210, 287
      %s213 = smul.addr %s212, 4
      %s214 = smul.addr %s213, 4
      %s215 = scalar_lea.vmem %s1, %s214
      %s216 = smul.u32 32, %s20
      %p217 = scmp.lt.s32.totalorder %s19, 0
      %s218 = scalar_select %p217, %s19, 0
      %s219 = smul.addr %s218, 4
      %s220 = smul.addr %s219, 8
      %s221 = scalar_lea.vmem %s2, %s220
      %p222 = scmp.eq.s32.totalorder %s19, 0
      %p223 = scmp.eq.s32.totalorder %s20, 0
      %p224 = pnand %p222, %p223
      %p225 = pneg %p224
      // Predicated region
      $region29: #{resnet34_forward.133} parent=27 // pred_check
        _
      $region30: #{resnet34_forward.133} parent=27 // pred_check_branch
        %227 = sbr.rel (%p224) target = $region32
      $region31: #{resnet34_forward.133} parent=27 // pred_region
        %228 = vst [vmem:[%s3] sm:$0xff] 0.0
      $region32: #{resnet34_forward.133} parent=27 // pred_fallthru
        _
      // Predicated region
      $region33: #{resnet34_forward.133} parent=27 // pred_check
        %p229 = pneg %p223
      $region34: #{resnet34_forward.133} parent=27 // pred_check_branch
        %231 = sbr.rel (%p229) target = $region36
      $region35: #{resnet34_forward.133} parent=27 // pred_region
        %232 = vst [vmem:[#allocation2] sm:$0xff] 0.0
        %233 = vst [vmem:[#allocation2 + $0x8] sm:$0xff] 0.0
        %234 = vst [vmem:[#allocation2 + $0x10] sm:$0xff] 0.0
        %235 = vst [vmem:[#allocation2 + $0x18] sm:$0xff] 0.0
      $region36: #{resnet34_forward.133} parent=27 // pred_fallthru
        _
      %v236 = vld [vmem:[#allocation2] sm:$0xff]
      %v237 = vld [vmem:[#allocation2 + $0x8] sm:$0xff]
      %v238 = vld [vmem:[#allocation2 + $0x10] sm:$0xff]
      %v239 = vld [vmem:[#allocation2 + $0x18] sm:$0xff]
      %v240 = vld [vmem:[%s208] sm:$0xff]
      %v241 = vld [vmem:[%s215] sm:$0xff]
      %v242 = vld [vmem:[%s215 + $0x8] sm:$0xff]
      %v243 = vld [vmem:[%s215 + $0x10] sm:$0xff]
      %v244 = vld [vmem:[%s215 + $0x18] sm:$0xff]
      %v245 = vld [vmem:[%s215 + $0x20] sm:$0xff]
      %v246 = vld [vmem:[%s215 + $0x28] sm:$0xff]
      %v247 = vld [vmem:[%s215 + $0x30] sm:$0xff]
      %v248 = vld [vmem:[%s215 + $0x38] sm:$0xff]
      %v249 = vld [vmem:[%s215 + $0x40] sm:$0xff]
      %v250 = vld [vmem:[%s215 + $0x48] sm:$0xff]
      %v251 = vld [vmem:[%s215 + $0x50] sm:$0xff]
      %v252 = vld [vmem:[%s215 + $0x58] sm:$0xff]
      %v253 = vld [vmem:[%s215 + $0x60] sm:$0xff]
      %v254 = vld [vmem:[%s215 + $0x68] sm:$0xff]
      %v255 = vld [vmem:[%s215 + $0x70] sm:$0xff]
      %v256 = vld [vmem:[%s215 + $0x78] sm:$0xff]
      %v257 = vld [vmem:[%s215 + $0x80] sm:$0xff]
      %v258 = vld [vmem:[%s215 + $0x88] sm:$0xff]
      %v259 = vld [vmem:[%s215 + $0x90] sm:$0xff]
      %v260 = vld [vmem:[%s215 + $0x98] sm:$0xff]
      %v261 = vld [vmem:[%s215 + $0xa0] sm:$0xff]
      %v262 = vld [vmem:[%s215 + $0xa8] sm:$0xff]
      %v263 = vld [vmem:[%s215 + $0xb0] sm:$0xff]
      %v264 = vld [vmem:[%s215 + $0xb8] sm:$0xff]
      %v265 = vld [vmem:[%s215 + $0xc0] sm:$0xff]
      %v266 = vld [vmem:[%s215 + $0xc8] sm:$0xff]
      %v267 = vld [vmem:[%s215 + $0xd0] sm:$0xff]
      %v268 = vld [vmem:[%s215 + $0xd8] sm:$0xff]
      %v269 = vld [vmem:[%s215 + $0xe0] sm:$0xff]
      %v270 = vld [vmem:[%s215 + $0xe8] sm:$0xff]
      %v271 = vld [vmem:[%s215 + $0xf0] sm:$0xff]
      %v272 = vld [vmem:[%s215 + $0xf8] sm:$0xff]
      %v273 = vld [vmem:[%s215 + $0x100] sm:$0xff]
      %v274 = vld [vmem:[%s215 + $0x108] sm:$0xff]
      %v275 = vld [vmem:[%s215 + $0x110] sm:$0xff]
      %v276 = vld [vmem:[%s215 + $0x118] sm:$0xff]
      %v277 = vld [vmem:[%s215 + $0x120] sm:$0xff]
      %v278 = vld [vmem:[%s215 + $0x128] sm:$0xff]
      %v279 = vld [vmem:[%s215 + $0x130] sm:$0xff]
      %v280 = vld [vmem:[%s215 + $0x138] sm:$0xff]
      %v281 = vld [vmem:[%s215 + $0x140] sm:$0xff]
      %v282 = vld [vmem:[%s215 + $0x148] sm:$0xff]
      %v283 = vld [vmem:[%s215 + $0x150] sm:$0xff]
      %v284 = vld [vmem:[%s215 + $0x158] sm:$0xff]
      %v285 = vld [vmem:[%s215 + $0x160] sm:$0xff]
      %v286 = vld [vmem:[%s215 + $0x168] sm:$0xff]
      %v287 = vld [vmem:[%s215 + $0x170] sm:$0xff]
      %v288 = vld [vmem:[%s215 + $0x178] sm:$0xff]
      %v289 = vld [vmem:[%s215 + $0x180] sm:$0xff]
      %v290 = vld [vmem:[%s215 + $0x188] sm:$0xff]
      %v291 = vld [vmem:[%s215 + $0x190] sm:$0xff]
      %v292 = vld [vmem:[%s215 + $0x198] sm:$0xff]
      %v293 = vld [vmem:[%s215 + $0x1a0] sm:$0xff]
      %v294 = vld [vmem:[%s215 + $0x1a8] sm:$0xff]
      %v295 = vld [vmem:[%s215 + $0x1b0] sm:$0xff]
      %v296 = vld [vmem:[%s215 + $0x1b8] sm:$0xff]
      %v297 = vld [vmem:[%s215 + $0x1c0] sm:$0xff]
      %v298 = vld [vmem:[%s215 + $0x1c8] sm:$0xff]
      %v299 = vld [vmem:[%s215 + $0x1d0] sm:$0xff]
      %v300 = vld [vmem:[%s215 + $0x1d8] sm:$0xff]
      %v301 = vld [vmem:[%s215 + $0x1e0] sm:$0xff]
      %v302 = vld [vmem:[%s215 + $0x1e8] sm:$0xff]
      %v303 = vld [vmem:[%s215 + $0x1f0] sm:$0xff]
      %v304 = vld [vmem:[%s215 + $0x1f8] sm:$0xff]
      %v306 = vunpack.c.l.b16 %v240
      %v307 = vunpack.c.h.b16 %v240
      %v308 = vpack.c.b16 %v306, %v306
      %v309 = vpack.c.b16 %v307, %v307
      %v376 = vunpack.c.l.b16 %v241
      %v377 = vunpack.c.h.b16 %v241
      %v378 = vunpack.c.l.b16 %v242
      %v379 = vunpack.c.h.b16 %v242
      %v380 = vunpack.c.l.b16 %v243
      %v381 = vunpack.c.h.b16 %v243
      %v382 = vunpack.c.l.b16 %v244
      %v383 = vunpack.c.h.b16 %v244
      %v384 = vunpack.c.l.b16 %v245
      %v385 = vunpack.c.h.b16 %v245
      %v386 = vunpack.c.l.b16 %v246
      %v387 = vunpack.c.h.b16 %v246
      %v388 = vunpack.c.l.b16 %v247
      %v389 = vunpack.c.h.b16 %v247
      %v390 = vunpack.c.l.b16 %v248
      %v391 = vunpack.c.h.b16 %v248
      %v392 = vunpack.c.l.b16 %v249
      %v393 = vunpack.c.h.b16 %v249
      %v394 = vunpack.c.l.b16 %v250
      %v395 = vunpack.c.h.b16 %v250
      %v396 = vunpack.c.l.b16 %v251
      %v397 = vunpack.c.h.b16 %v251
      %v398 = vunpack.c.l.b16 %v252
      %v399 = vunpack.c.h.b16 %v252
      %v400 = vunpack.c.l.b16 %v253
      %v401 = vunpack.c.h.b16 %v253
      %v402 = vunpack.c.l.b16 %v254
      %v403 = vunpack.c.h.b16 %v254
      %v404 = vunpack.c.l.b16 %v255
      %v405 = vunpack.c.h.b16 %v255
      %v406 = vunpack.c.l.b16 %v256
      %v407 = vunpack.c.h.b16 %v256
      %v408 = vunpack.c.l.b16 %v257
      %v409 = vunpack.c.h.b16 %v257
      %v410 = vunpack.c.l.b16 %v258
      %v411 = vunpack.c.h.b16 %v258
      %v412 = vunpack.c.l.b16 %v259
      %v413 = vunpack.c.h.b16 %v259
      %v414 = vunpack.c.l.b16 %v260
      %v415 = vunpack.c.h.b16 %v260
      %v416 = vunpack.c.l.b16 %v261
      %v417 = vunpack.c.h.b16 %v261
      %v418 = vunpack.c.l.b16 %v262
      %v419 = vunpack.c.h.b16 %v262
      %v420 = vunpack.c.l.b16 %v263
      %v421 = vunpack.c.h.b16 %v263
      %v422 = vunpack.c.l.b16 %v264
      %v423 = vunpack.c.h.b16 %v264
      %v424 = vunpack.c.l.b16 %v265
      %v425 = vunpack.c.h.b16 %v265
      %v426 = vunpack.c.l.b16 %v266
      %v427 = vunpack.c.h.b16 %v266
      %v428 = vunpack.c.l.b16 %v267
      %v429 = vunpack.c.h.b16 %v267
      %v430 = vunpack.c.l.b16 %v268
      %v431 = vunpack.c.h.b16 %v268
      %v432 = vunpack.c.l.b16 %v269
      %v433 = vunpack.c.h.b16 %v269
      %v434 = vunpack.c.l.b16 %v270
      %v435 = vunpack.c.h.b16 %v270
      %v436 = vunpack.c.l.b16 %v271
      %v437 = vunpack.c.h.b16 %v271
      %v438 = vunpack.c.l.b16 %v272
      %v439 = vunpack.c.h.b16 %v272
      %v440 = vunpack.c.l.b16 %v273
      %v441 = vunpack.c.h.b16 %v273
      %v442 = vunpack.c.l.b16 %v274
      %v443 = vunpack.c.h.b16 %v274
      %v444 = vunpack.c.l.b16 %v275
      %v445 = vunpack.c.h.b16 %v275
      %v446 = vunpack.c.l.b16 %v276
      %v447 = vunpack.c.h.b16 %v276
      %v448 = vunpack.c.l.b16 %v277
      %v449 = vunpack.c.h.b16 %v277
      %v450 = vunpack.c.l.b16 %v278
      %v451 = vunpack.c.h.b16 %v278
      %v452 = vunpack.c.l.b16 %v279
      %v453 = vunpack.c.h.b16 %v279
      %v454 = vunpack.c.l.b16 %v280
      %v455 = vunpack.c.h.b16 %v280
      %v456 = vunpack.c.l.b16 %v281
      %v457 = vunpack.c.h.b16 %v281
      %v458 = vunpack.c.l.b16 %v282
      %v459 = vunpack.c.h.b16 %v282
      %v460 = vunpack.c.l.b16 %v283
      %v461 = vunpack.c.h.b16 %v283
      %v462 = vunpack.c.l.b16 %v284
      %v463 = vunpack.c.h.b16 %v284
      %v464 = vunpack.c.l.b16 %v285
      %v465 = vunpack.c.h.b16 %v285
      %v466 = vunpack.c.l.b16 %v286
      %v467 = vunpack.c.h.b16 %v286
      %v468 = vunpack.c.l.b16 %v287
      %v469 = vunpack.c.h.b16 %v287
      %v470 = vunpack.c.l.b16 %v288
      %v471 = vunpack.c.h.b16 %v288
      %v472 = vunpack.c.l.b16 %v289
      %v473 = vunpack.c.h.b16 %v289
      %v474 = vunpack.c.l.b16 %v290
      %v475 = vunpack.c.h.b16 %v290
      %v476 = vunpack.c.l.b16 %v291
      %v477 = vunpack.c.h.b16 %v291
      %v478 = vunpack.c.l.b16 %v292
      %v479 = vunpack.c.h.b16 %v292
      %v480 = vunpack.c.l.b16 %v293
      %v481 = vunpack.c.h.b16 %v293
      %v482 = vunpack.c.l.b16 %v294
      %v483 = vunpack.c.h.b16 %v294
      %v484 = vunpack.c.l.b16 %v295
      %v485 = vunpack.c.h.b16 %v295
      %v486 = vunpack.c.l.b16 %v296
      %v487 = vunpack.c.h.b16 %v296
      %v488 = vunpack.c.l.b16 %v297
      %v489 = vunpack.c.h.b16 %v297
      %v490 = vunpack.c.l.b16 %v298
      %v491 = vunpack.c.h.b16 %v298
      %v492 = vunpack.c.l.b16 %v299
      %v493 = vunpack.c.h.b16 %v299
      %v494 = vunpack.c.l.b16 %v300
      %v495 = vunpack.c.h.b16 %v300
      %v496 = vunpack.c.l.b16 %v301
      %v497 = vunpack.c.h.b16 %v301
      %v498 = vunpack.c.l.b16 %v302
      %v499 = vunpack.c.h.b16 %v302
      %v500 = vunpack.c.l.b16 %v303
      %v501 = vunpack.c.h.b16 %v303
      %v502 = vunpack.c.l.b16 %v304
      %v503 = vunpack.c.h.b16 %v304
      %v504 = vpack.c.b16 %v380, %v376
      %v505 = vpack.c.b16 %v381, %v377
      %v506 = vpack.c.b16 %v382, %v378
      %v507 = vpack.c.b16 %v383, %v379
      %v508 = vpack.c.b16 %v388, %v384
      %v509 = vpack.c.b16 %v389, %v385
      %v510 = vpack.c.b16 %v390, %v386
      %v511 = vpack.c.b16 %v391, %v387
      %v512 = vpack.c.b16 %v396, %v392
      %v513 = vpack.c.b16 %v397, %v393
      %v514 = vpack.c.b16 %v398, %v394
      %v515 = vpack.c.b16 %v399, %v395
      %v516 = vpack.c.b16 %v404, %v400
      %v517 = vpack.c.b16 %v405, %v401
      %v518 = vpack.c.b16 %v406, %v402
      %v519 = vpack.c.b16 %v407, %v403
      %v520 = vpack.c.b16 %v412, %v408
      %v521 = vpack.c.b16 %v413, %v409
      %v522 = vpack.c.b16 %v414, %v410
      %v523 = vpack.c.b16 %v415, %v411
      %v524 = vpack.c.b16 %v420, %v416
      %v525 = vpack.c.b16 %v421, %v417
      %v526 = vpack.c.b16 %v422, %v418
      %v527 = vpack.c.b16 %v423, %v419
      %v528 = vpack.c.b16 %v428, %v424
      %v529 = vpack.c.b16 %v429, %v425
      %v530 = vpack.c.b16 %v430, %v426
      %v531 = vpack.c.b16 %v431, %v427
      %v532 = vpack.c.b16 %v436, %v432
      %v533 = vpack.c.b16 %v437, %v433
      %v534 = vpack.c.b16 %v438, %v434
      %v535 = vpack.c.b16 %v439, %v435
      %v536 = vpack.c.b16 %v444, %v440
      %v537 = vpack.c.b16 %v445, %v441
      %v538 = vpack.c.b16 %v446, %v442
      %v539 = vpack.c.b16 %v447, %v443
      %v540 = vpack.c.b16 %v452, %v448
      %v541 = vpack.c.b16 %v453, %v449
      %v542 = vpack.c.b16 %v454, %v450
      %v543 = vpack.c.b16 %v455, %v451
      %v544 = vpack.c.b16 %v460, %v456
      %v545 = vpack.c.b16 %v461, %v457
      %v546 = vpack.c.b16 %v462, %v458
      %v547 = vpack.c.b16 %v463, %v459
      %v548 = vpack.c.b16 %v468, %v464
      %v549 = vpack.c.b16 %v469, %v465
      %v550 = vpack.c.b16 %v470, %v466
      %v551 = vpack.c.b16 %v471, %v467
      %v552 = vpack.c.b16 %v476, %v472
      %v553 = vpack.c.b16 %v477, %v473
      %v554 = vpack.c.b16 %v478, %v474
      %v555 = vpack.c.b16 %v479, %v475
      %v556 = vpack.c.b16 %v484, %v480
      %v557 = vpack.c.b16 %v485, %v481
      %v558 = vpack.c.b16 %v486, %v482
      %v559 = vpack.c.b16 %v487, %v483
      %v560 = vpack.c.b16 %v492, %v488
      %v561 = vpack.c.b16 %v493, %v489
      %v562 = vpack.c.b16 %v494, %v490
      %v563 = vpack.c.b16 %v495, %v491
      %v564 = vpack.c.b16 %v500, %v496
      %v565 = vpack.c.b16 %v501, %v497
      %v566 = vpack.c.b16 %v502, %v498
      %v567 = vpack.c.b16 %v503, %v499
      %632 = vmatprep.subr.bf16.mxu0 %v533
      %633 = vmatpush1.bf16.msra.mxu0 %v532
      %634 = vmatprep.subr.bf16.mxu0 %v529
      %635 = vmatpush1.bf16.msra.mxu0 %v528
      %636 = vmatprep.subr.bf16.mxu0 %v525
      %637 = vmatpush1.bf16.msra.mxu0 %v524
      %638 = vmatprep.subr.bf16.mxu0 %v521
      %639 = vmatpush1.bf16.msra.mxu0 %v520
      %640 = vmatprep.subr.bf16.mxu0 %v517
      %641 = vmatpush1.bf16.msra.mxu0 %v516
      %642 = vmatprep.subr.bf16.mxu0 %v513
      %643 = vmatpush1.bf16.msra.mxu0 %v512
      %644 = vmatprep.subr.bf16.mxu0 %v509
      %645 = vmatpush1.bf16.msra.mxu0 %v508
      %646 = vmatprep.subr.bf16.mxu0 %v505
      %647 = vmatpush1.bf16.msra.mxu0 %v504
      %648 = vmatprep.subr.bf16.mxu0 %v565
      %649 = vmatpush2.bf16.msra.mxu0 %v564
      %650 = vmatprep.subr.bf16.mxu0 %v561
      %651 = vmatpush2.bf16.msra.mxu0 %v560
      %652 = vmatprep.subr.bf16.mxu0 %v557
      %653 = vmatpush2.bf16.msra.mxu0 %v556
      %654 = vmatprep.subr.bf16.mxu0 %v553
      %655 = vmatpush2.bf16.msra.mxu0 %v552
      %656 = vmatprep.subr.bf16.mxu0 %v549
      %657 = vmatpush2.bf16.msra.mxu0 %v548
      %658 = vmatprep.subr.bf16.mxu0 %v545
      %659 = vmatpush2.bf16.msra.mxu0 %v544
      %660 = vmatprep.subr.bf16.mxu0 %v541
      %661 = vmatpush2.bf16.msra.mxu0 %v540
      %662 = vmatprep.subr.bf16.mxu0 %v537
      %663 = vmatpush2.bf16.msra.mxu0 %v536
      %664 = vmatprep.mubr.bf16.mxu0 %v309
      %665 = vmatmul.mubr.bf16.gmra.mxu0 %v308
      %v666 = vpop.f32.mrf.mxu0
      %v667 = vadd.f32 0.0, %v666
      %v668 = vpop.f32.mrf.mxu0
      %v669 = vadd.f32 0.0, %v668
      %v670 = vpop.f32.mrf.mxu0
      %v671 = vpop.f32.mrf.mxu0
      %672 = vdwg.mxu0
      %673 = vmatprep.subr.bf16.mxu0 %v535
      %674 = vmatpush1.bf16.msra.mxu0 %v534
      %675 = vmatprep.subr.bf16.mxu0 %v531
      %676 = vmatpush1.bf16.msra.mxu0 %v530
      %677 = vmatprep.subr.bf16.mxu0 %v527
      %678 = vmatpush1.bf16.msra.mxu0 %v526
      %679 = vmatprep.subr.bf16.mxu0 %v523
      %680 = vmatpush1.bf16.msra.mxu0 %v522
      %681 = vmatprep.subr.bf16.mxu0 %v519
      %682 = vmatpush1.bf16.msra.mxu0 %v518
      %683 = vmatprep.subr.bf16.mxu0 %v515
      %684 = vmatpush1.bf16.msra.mxu0 %v514
      %685 = vmatprep.subr.bf16.mxu0 %v511
      %686 = vmatpush1.bf16.msra.mxu0 %v510
      %687 = vmatprep.subr.bf16.mxu0 %v507
      %688 = vmatpush1.bf16.msra.mxu0 %v506
      %689 = vmatprep.subr.bf16.mxu0 %v567
      %690 = vmatpush2.bf16.msra.mxu0 %v566
      %691 = vmatprep.subr.bf16.mxu0 %v563
      %692 = vmatpush2.bf16.msra.mxu0 %v562
      %693 = vmatprep.subr.bf16.mxu0 %v559
      %694 = vmatpush2.bf16.msra.mxu0 %v558
      %695 = vmatprep.subr.bf16.mxu0 %v555
      %696 = vmatpush2.bf16.msra.mxu0 %v554
      %697 = vmatprep.subr.bf16.mxu0 %v551
      %698 = vmatpush2.bf16.msra.mxu0 %v550
      %699 = vmatprep.subr.bf16.mxu0 %v547
      %700 = vmatpush2.bf16.msra.mxu0 %v546
      %701 = vmatprep.subr.bf16.mxu0 %v543
      %702 = vmatpush2.bf16.msra.mxu0 %v542
      %703 = vmatprep.subr.bf16.mxu0 %v539
      %704 = vmatpush2.bf16.msra.mxu0 %v538
      %705 = vmatprep.mubr.bf16.mxu0 %v309
      %706 = vmatmul.mubr.bf16.gmra.mxu0 %v308
      %v707 = vpop.f32.mrf.mxu0
      %v708 = vadd.f32 0.0, %v707
      %v709 = vpop.f32.mrf.mxu0
      %v710 = vadd.f32 0.0, %v709
      %v711 = vpop.f32.mrf.mxu0
      %v712 = vpop.f32.mrf.mxu0
      %713 = vdwg.mxu0
      %v714 = vadd.f32 %v236, %v667
      %v715 = vadd.f32 %v237, %v669
      %v716 = vadd.f32 %v238, %v708
      %v717 = vadd.f32 %v239, %v710
      %718 = vst [vmem:[#allocation2] sm:$0xff] %v714
      %719 = vst [vmem:[#allocation2 + $0x8] sm:$0xff] %v715
      %720 = vst [vmem:[#allocation2 + $0x10] sm:$0xff] %v716
      %721 = vst [vmem:[#allocation2 + $0x18] sm:$0xff] %v717
      %p722 = scmp.eq.s32.totalorder %s20, 8
      // Predicated region
      $region37: #{resnet34_forward.133} parent=27 // pred_check
        %p723 = pneg %p722
      $region38: #{resnet34_forward.133} parent=27 // pred_check_branch
        %725 = sbr.rel (%p723) target = $region40
      $region39: #{resnet34_forward.133} parent=27 // pred_region
        %v726 = vld [vmem:[#allocation2] sm:$0xff]
        %v727 = vld [vmem:[#allocation2 + $0x8] sm:$0xff]
        %v728 = vld [vmem:[#allocation2 + $0x10] sm:$0xff]
        %v729 = vld [vmem:[#allocation2 + $0x18] sm:$0xff]
        %730 = vst [vmem:[%s221] sm:$0xff] %v726
        %731 = vst [vmem:[%s221 + $0x8] sm:$0xff] %v727
        %732 = vst [vmem:[%s221 + $0x10] sm:$0xff] %v728
        %733 = vst [vmem:[%s221 + $0x18] sm:$0xff] %v729
        %v734 = vld [vmem:[%s3] sm:$0xff]
        %v735 = vrot.slane %v726, 4
        %v736 = vadd.f32 %v726, %v735
        %v737 = vrot.slane %v736, 2
        %v738 = vadd.f32 %v736, %v737
        %v739 = vrot.slane %v738, 1
        %v740 = vadd.f32 %v738, %v739
        %v741 = vrot.slane %v727, 4
        %v742 = vadd.f32 %v727, %v741
        %v743 = vrot.slane %v742, 2
        %v744 = vadd.f32 %v742, %v743
        %v745 = vrot.slane %v744, 1
        %v746 = vadd.f32 %v744, %v745
        %v747 = vrot.slane %v728, 4
        %v748 = vadd.f32 %v728, %v747
        %v749 = vrot.slane %v748, 2
        %v750 = vadd.f32 %v748, %v749
        %v751 = vrot.slane %v750, 1
        %v752 = vadd.f32 %v750, %v751
        %v753 = vrot.slane %v729, 4
        %v754 = vadd.f32 %v729, %v753
        %v755 = vrot.slane %v754, 2
        %v756 = vadd.f32 %v754, %v755
        %v757 = vrot.slane %v756, 1
        %v758 = vadd.f32 %v756, %v757
        %v759 = vmul.f32 %v726, %v726
        %v760 = vmul.f32 %v727, %v727
        %v761 = vmul.f32 %v728, %v728
        %v762 = vmul.f32 %v729, %v729
        %v763 = vrot.slane %v759, 4
        %v764 = vadd.f32 %v759, %v763
        %v765 = vrot.slane %v764, 2
        %v766 = vadd.f32 %v764, %v765
        %v767 = vrot.slane %v766, 1
        %v768 = vadd.f32 %v766, %v767
        %v769 = vrot.slane %v760, 4
        %v770 = vadd.f32 %v760, %v769
        %v771 = vrot.slane %v770, 2
        %v772 = vadd.f32 %v770, %v771
        %v773 = vrot.slane %v772, 1
        %v774 = vadd.f32 %v772, %v773
        %v775 = vrot.slane %v761, 4
        %v776 = vadd.f32 %v761, %v775
        %v777 = vrot.slane %v776, 2
        %v778 = vadd.f32 %v776, %v777
        %v779 = vrot.slane %v778, 1
        %v780 = vadd.f32 %v778, %v779
        %v781 = vrot.slane %v762, 4
        %v782 = vadd.f32 %v762, %v781
        %v783 = vrot.slane %v782, 2
        %v784 = vadd.f32 %v782, %v783
        %v785 = vrot.slane %v784, 1
        %v786 = vadd.f32 %v784, %v785
        %vm787 = vcmask 1040384
        %v788 = vsel %vm787, %v740, %v768
        %v789 = vsel %vm787, %v746, %v774
        %v790 = vsel %vm787, %v752, %v780
        %v791 = vsel %vm787, %v758, %v786
        %v796 = vcombine.low %v788, %v789
        %v797 = vcombine.low %v790, %v791
        %v799 = vunpack.c.l.s4 1983009808
        %v800 = vunpack.c.0.s8 %v799
        %v801 = vlaneseq
        %v802 = vshrl.u32 %v801, 7
        %v803 = vsub.s32 %v800, %v802
        %v804 = vrot.slane %v796, %v803
        %v806 = vunpack.c.l.s4 1983009808
        %v807 = vunpack.c.0.s8 %v806
        %v808 = vlaneseq
        %v809 = vshrl.u32 %v808, 7
        %v810 = vsub.s32 %v807, %v809
        %v811 = vrot.slane %v797, %v810
        %v812 = vcombine.low %v804, %v811
        %v814 = vadd.f32 %v734, %v812
        %815 = vst [vmem:[%s3] sm:$0xff] %v814
      $region40: #{resnet34_forward.133} parent=27 // pred_fallthru
        _
      %p816 = scmp.lt.s32.totalorder %s19, 0
      %s817 = scalar_select %p816, %s19, 0
      %s818 = smul.addr %s817, 4
      %s819 = smul.addr %s818, 8
      %s820 = scalar_lea.vmem %s2, %s819
      // Predicated region
      $region41: #{resnet34_forward.133} parent=27 // pred_check
        %p821 = pneg %p99
      $region42: #{resnet34_forward.133} parent=27 // pred_check_branch
        %823 = sbr.rel (%p821) target = $region44
      $region43: #{resnet34_forward.133} parent=27 // pred_region
        _
      $region44: #{resnet34_forward.133} parent=27 // pred_fallthru
        _
      // Predicated region
      $region45: #{resnet34_forward.133} parent=27 // pred_check
        %p824 = pneg %p120
      $region46: #{resnet34_forward.133} parent=27 // pred_check_branch
        %826 = sbr.rel (%p824) target = $region48
      $region47: #{resnet34_forward.133} parent=27 // pred_region
        _
      $region48: #{resnet34_forward.133} parent=27 // pred_fallthru
        _
      // Predicated region
      $region49: #{resnet34_forward.133} parent=27 // pred_check
        %p827 = pneg %p99
      $region50: #{resnet34_forward.133} parent=27 // pred_check_branch
        %829 = sbr.rel (%p827) target = $region52
      $region51: #{resnet34_forward.133} parent=27 // pred_region
        %p830 = scmp.lt.s32.totalorder %s19, 0
        %s831 = scalar_select %p830, %s19, 0
        %s832 = smul.addr %s831, 4
        %s833 = smul.addr %s832, 8
        %s834 = scalar_lea.vmem %s2, %s833
      $region52: #{resnet34_forward.133} parent=27 // pred_fallthru
        _
      // Predicated region
      $region53: #{resnet34_forward.133} parent=27 // pred_check
        %p835 = pneg %p120
      $region54: #{resnet34_forward.133} parent=27 // pred_check_branch
        %837 = sbr.rel (%p835) target = $region56
      $region55: #{resnet34_forward.133} parent=27 // pred_region
        _
      $region56: #{resnet34_forward.133} parent=27 // pred_fallthru
        _
    $region28: #{resnet34_forward.133} parent=5 // pred_fallthru
      _
    %p838 = scmp.le.s32.totalorder 2, %s10
    // Predicated region
    $region57: #{resnet34_forward.133} parent=5 // pred_check
      %p839 = pneg %p838
    $region58: #{resnet34_forward.133} parent=5 // pred_check_branch
      %841 = sbr.rel (%p839) target = $region60
    $region59: #{resnet34_forward.133} parent=5 // pred_region
      %s842 = ssub.s32 %s10, 2
    $region60: #{resnet34_forward.133} parent=5 // pred_fallthru
      _
  $region6: #{resnet34_forward.133} parent=0 // loop_footer
    %s14 = sadd.s32 1, %s10
  $region7: #{resnet34_forward.133} parent=0 // loop_footer_branch
    %9 = sbr.rel target = $region3
  $region8: #{resnet34_forward.133} parent=0 // loop_exit
    _

// kernel: resnet34_forward.135
$region0: #{resnet34_forward.135}
  #allocation0 [shape = 'u32[]', space=smem, size = 0x4, offset = 0x4, fixed_abs, tag = 'smem constant byte address 0x4 - core index']
  #allocation1 [shape = 'u32[144,128]{1,0:T(1,128)}', space=vmem, size = 0x12000, scoped, tag = 'internal scratch']
  #allocation2 [shape = 'f32[8,512]{1,0:T(8,128)}', space=vmem, size = 0x4000, scoped, tag = 'scratch operand']
  %s0 = inlined_call_operand.vmem [shape: bf16[8,4608], index: 0, kind: input, shape index: {}]
  %s1 = inlined_call_operand.vmem [shape: bf16[4608,512], index: 1, kind: input, shape index: {}]
  %s2 = inlined_call_operand.vmem [shape: f32[8,512], index: 2, kind: output, shape index: {0}]
  %s3 = inlined_call_operand.vmem [shape: f32[2,512], index: 3, kind: output, shape index: {1}]
  %4 = xla_tuple %s2, %s3
  %s5 = sld [smem:[#allocation0]]
  $region61: #{resnet34_forward.135} parent=0
    _
  %s7 = ssub.s32 1, %s5
  %s8 = scalar_select 0, %s7, %s5
  loop: start=0, step=1, limit=11
  $region2: #{resnet34_forward.135} parent=0 // loop_pre_header
    _
  $region3: #{resnet34_forward.135} parent=0 // loop_header
    %s10 = sphi 0, %s14
    %p11 = scmp.ge.s32.totalorder %s10, 11
    %s17 = sphi 0, %s29
    %s18 = sphi 0, %s25
    %s19 = sphi 0, %s17
    %s20 = sphi 0, %s18
    %s21 = sphi 0, %s19
    %s22 = sphi 0, %s20
    %s34 = sphi 0, %s36
    %s37 = sphi 0, %s34
    %s38 = sphi 0, %s37
    %s54 = sphi 0, %s38
    %s60 = sphi 0, %s62
    %s63 = sphi 0, %s60
    %s64 = sphi 0, %s63
    %s80 = sphi 0, %s64
    %s86 = sphi 0, %s88
    %s89 = sphi 0, %s86
    %s90 = sphi 0, %s89
    %s106 = sphi 0, %s90
    %s110 = sphi 0, %s110
    %s112 = sphi 0, %s110
    %s113 = sphi 0, %s112
    %s127 = sphi 0, %s113
  $region4: #{resnet34_forward.135} parent=0 // loop_header_branch
    %13 = sbr.rel (%p11) target = $region8
  $region5: #{resnet34_forward.135} parent=0 // loop_body
    %s15 = ssub.s32 %s10, 1
    %s16 = ssub.s32 %s10, 2
    %s23 = sadd.s32 1, %s18
    %p24 = scmp.ge.s32.totalorder %s23, 9
    %s25 = scalar_select %p24, 0, %s23
    %s26 = sadd.s32 1, %s17
    %s27 = scalar_select %p24, %s26, %s17
    %p28 = scmp.ge.s32.totalorder %s27, 1
    %s29 = scalar_select %p28, 0, %s27
    %s30 = ssub.s32 %s17, %s29
    %s31 = ssub.s32 %s18, %s25
    %s32 = sor.u32 %s30, %s31
    %p33 = scmp.eq.s32.totalorder %s32, 0
    %s35 = sadd.s32 %s34, 1
    %s36 = scalar_select %p33, %s34, %s35
    %p39 = pneg %p33
    %p40 = scmp.eq.s32.totalorder %s10, 8
    %p41 = por %p39, %p40
    %p42 = scmp.ne.s32.totalorder %s34, %s37
    %p43 = scmp.eq.s32.totalorder %s10, 0
    %p44 = por %p42, %p43
    %p45 = scmp.ne.s32.totalorder %s34, %s37
    %p46 = scmp.eq.s32.totalorder %s15, 8
    %p47 = por %p45, %p46
    %p48 = scmp.ne.s32.totalorder %s37, %s38
    %p49 = scmp.eq.s32.totalorder %s15, 0
    %p50 = por %p48, %p49
    %p51 = scmp.ne.s32.totalorder %s37, %s38
    %p52 = scmp.eq.s32.totalorder %s16, 8
    %p53 = por %p51, %p52
    %p55 = scmp.ne.s32.totalorder %s38, %s54
    %p56 = scmp.eq.s32.totalorder %s16, 0
    %p57 = por %p55, %p56
    %s58 = ssub.s32 %s18, %s25
    %p59 = scmp.eq.s32.totalorder %s58, 0
    %s61 = sadd.s32 %s60, 1
    %s62 = scalar_select %p59, %s60, %s61
    %p65 = pneg %p59
    %p66 = scmp.eq.s32.totalorder %s10, 8
    %p67 = por %p65, %p66
    %p68 = scmp.ne.s32.totalorder %s60, %s63
    %p69 = scmp.eq.s32.totalorder %s10, 0
    %p70 = por %p68, %p69
    %p71 = scmp.ne.s32.totalorder %s60, %s63
    %p72 = scmp.eq.s32.totalorder %s15, 8
    %p73 = por %p71, %p72
    %p74 = scmp.ne.s32.totalorder %s63, %s64
    %p75 = scmp.eq.s32.totalorder %s15, 0
    %p76 = por %p74, %p75
    %p77 = scmp.ne.s32.totalorder %s63, %s64
    %p78 = scmp.eq.s32.totalorder %s16, 8
    %p79 = por %p77, %p78
    %p81 = scmp.ne.s32.totalorder %s64, %s80
    %p82 = scmp.eq.s32.totalorder %s16, 0
    %p83 = por %p81, %p82
    %s84 = ssub.s32 %s17, %s29
    %p85 = scmp.eq.s32.totalorder %s84, 0
    %s87 = sadd.s32 %s86, 1
    %s88 = scalar_select %p85, %s86, %s87
    %p91 = pneg %p85
    %p92 = scmp.eq.s32.totalorder %s10, 8
    %p93 = por %p91, %p92
    %p94 = scmp.ne.s32.totalorder %s86, %s89
    %p95 = scmp.eq.s32.totalorder %s10, 0
    %p96 = por %p94, %p95
    %p97 = scmp.ne.s32.totalorder %s86, %s89
    %p98 = scmp.eq.s32.totalorder %s15, 8
    %p99 = por %p97, %p98
    %p100 = scmp.ne.s32.totalorder %s89, %s90
    %p101 = scmp.eq.s32.totalorder %s15, 0
    %p102 = por %p100, %p101
    %p103 = scmp.ne.s32.totalorder %s89, %s90
    %p104 = scmp.eq.s32.totalorder %s16, 8
    %p105 = por %p103, %p104
    %p107 = scmp.ne.s32.totalorder %s90, %s106
    %p108 = scmp.eq.s32.totalorder %s16, 0
    %p109 = por %p107, %p108
    %s111 = sadd.s32 %s110, 1
    %p114 = scmp.eq.s32.totalorder %s10, 8
    %p115 = scmp.ne.s32.totalorder %s110, %s112
    %p116 = scmp.eq.s32.totalorder %s10, 0
    %p117 = por %p115, %p116
    %p118 = scmp.ne.s32.totalorder %s110, %s112
    %p119 = scmp.eq.s32.totalorder %s15, 8
    %p120 = por %p118, %p119
    %p121 = scmp.ne.s32.totalorder %s112, %s113
    %p122 = scmp.eq.s32.totalorder %s15, 0
    %p123 = por %p121, %p122
    %p124 = scmp.ne.s32.totalorder %s112, %s113
    %p125 = scmp.eq.s32.totalorder %s16, 8
    %p126 = por %p124, %p125
    %p128 = scmp.ne.s32.totalorder %s113, %s127
    %p129 = scmp.eq.s32.totalorder %s16, 0
    %p130 = por %p128, %p129
    %p131 = scmp.le.s32.totalorder 1, %s10
    %p132 = scmp.lt.s32.totalorder %s10, 10
    %p133 = pnand %p131, %p132
    %p134 = pneg %p133
    // Predicated region
    $region9: #{resnet34_forward.135} parent=5 // pred_check
      _
    $region10: #{resnet34_forward.135} parent=5 // pred_check_branch
      %136 = sbr.rel (%p133) target = $region12
    $region11: #{resnet34_forward.135} parent=5 // pred_region
      %s137 = ssub.s32 %s10, 1
    $region12: #{resnet34_forward.135} parent=5 // pred_fallthru
      _
    %p138 = scmp.lt.s32.totalorder %s10, 9
    // Predicated region
    $region13: #{resnet34_forward.135} parent=5 // pred_check
      %p139 = pneg %p138
    $region14: #{resnet34_forward.135} parent=5 // pred_check_branch
      %141 = sbr.rel (%p139) target = $region16
    $region15: #{resnet34_forward.135} parent=5 // pred_region
      // Predicated region
      $region17: #{resnet34_forward.135} parent=15 // pred_check
        %p142 = pneg %p44
      $region18: #{resnet34_forward.135} parent=15 // pred_check_branch
        %144 = sbr.rel (%p142) target = $region20
      $region19: #{resnet34_forward.135} parent=15 // pred_region
        %s145 = smul.u32 4, %s18
        %p146 = scmp.lt.s32.totalorder %s17, 0
        %s147 = scalar_select %p146, %s17, 0
        %p148 = scmp.lt.s32.totalorder %s145, 35
        %s149 = scalar_select %p148, %s145, 35
        %s150 = smul.addr %s147, 36
        %s151 = sadd.s32 %s149, %s150
        %s152 = smul.addr %s151, 4
        %s153 = scalar_lea.vmem %s0, %s152
        %s154 = smul.u32 4, %s18
      $region20: #{resnet34_forward.135} parent=15 // pred_fallthru
        _
      // Predicated region
      $region21: #{resnet34_forward.135} parent=15 // pred_check
        %p155 = pneg %p70
      $region22: #{resnet34_forward.135} parent=15 // pred_check_branch
        %157 = sbr.rel (%p155) target = $region24
      $region23: #{resnet34_forward.135} parent=15 // pred_region
        %s158 = smul.u32 64, %s18
        %p159 = scmp.lt.s32.totalorder %s158, 575
        %s160 = scalar_select %p159, %s158, 575
        %s161 = smul.addr %s160, 4
        %s162 = smul.addr %s161, 4
        %s163 = scalar_lea.vmem %s1, %s162
        %s164 = smul.u32 64, %s18
      $region24: #{resnet34_forward.135} parent=15 // pred_fallthru
        _
    $region16: #{resnet34_forward.135} parent=5 // pred_fallthru
      _
    %p165 = scmp.le.s32.totalorder 1, %s10
    %p166 = scmp.lt.s32.totalorder %s10, 10
    %p167 = pnand %p165, %p166
    %p168 = pneg %p167
    // Predicated region
    $region25: #{resnet34_forward.135} parent=5 // pred_check
      _
    $region26: #{resnet34_forward.135} parent=5 // pred_check_branch
      %170 = sbr.rel (%p167) target = $region28
    $region27: #{resnet34_forward.135} parent=5 // pred_region
      %s171 = ssub.s32 %s10, 1
      %s172 = smul.u32 4, %s20
      %p173 = scmp.lt.s32.totalorder %s19, 0
      %s174 = scalar_select %p173, %s19, 0
      %p175 = scmp.lt.s32.totalorder %s172, 35
      %s176 = scalar_select %p175, %s172, 35
      %s177 = smul.addr %s174, 36
      %s178 = sadd.s32 %s176, %s177
      %s179 = smul.addr %s178, 4
      %s180 = scalar_lea.vmem %s0, %s179
      %p181 = pneg %p50
      %p182 = pneg %p47
      %s183 = smul.u32 64, %s20
      %p184 = scmp.lt.s32.totalorder %s183, 575
      %s185 = scalar_select %p184, %s183, 575
      %s186 = smul.addr %s185, 4
      %s187 = smul.addr %s186, 4
      %s188 = scalar_lea.vmem %s1, %s187
      %p189 = pneg %p76
      %p190 = pneg %p73
      %p191 = pneg %p102
      %p192 = pneg %p99
      %p193 = scmp.lt.s32.totalorder %s19, 0
      %s194 = scalar_select %p193, %s19, 0
      %s195 = smul.addr %s194, 4
      %s196 = smul.addr %s195, 8
      %s197 = scalar_lea.vmem %s2, %s196
      %p198 = pneg %p123
      %p199 = pneg %p120
      %s200 = smul.u32 4, %s20
      %p201 = scmp.lt.s32.totalorder %s19, 0
      %s202 = scalar_select %p201, %s19, 0
      %p203 = scmp.lt.s32.totalorder %s200, 35
      %s204 = scalar_select %p203, %s200, 35
      %s205 = smul.addr %s202, 36
      %s206 = sadd.s32 %s204, %s205
      %s207 = smul.addr %s206, 4
      %s208 = scalar_lea.vmem %s0, %s207
      %s209 = smul.u32 4, %s20
      %s210 = smul.u32 64, %s20
      %p211 = scmp.lt.s32.totalorder %s210, 575
      %s212 = scalar_select %p211, %s210, 575
      %s213 = smul.addr %s212, 4
      %s214 = smul.addr %s213, 4
      %s215 = scalar_lea.vmem %s1, %s214
      %s216 = smul.u32 64, %s20
      %p217 = scmp.lt.s32.totalorder %s19, 0
      %s218 = scalar_select %p217, %s19, 0
      %s219 = smul.addr %s218, 4
      %s220 = smul.addr %s219, 8
      %s221 = scalar_lea.vmem %s2, %s220
      %p222 = scmp.eq.s32.totalorder %s19, 0
      %p223 = scmp.eq.s32.totalorder %s20, 0
      %p224 = pnand %p222, %p223
      %p225 = pneg %p224
      // Predicated region
      $region29: #{resnet34_forward.135} parent=27 // pred_check
        _
      $region30: #{resnet34_forward.135} parent=27 // pred_check_branch
        %227 = sbr.rel (%p224) target = $region32
      $region31: #{resnet34_forward.135} parent=27 // pred_region
        %228 = vst [vmem:[%s3] sm:$0xff] 0.0
      $region32: #{resnet34_forward.135} parent=27 // pred_fallthru
        _
      // Predicated region
      $region33: #{resnet34_forward.135} parent=27 // pred_check
        %p229 = pneg %p223
      $region34: #{resnet34_forward.135} parent=27 // pred_check_branch
        %231 = sbr.rel (%p229) target = $region36
      $region35: #{resnet34_forward.135} parent=27 // pred_region
        %232 = vst [vmem:[#allocation2] sm:$0xff] 0.0
        %233 = vst [vmem:[#allocation2 + $0x8] sm:$0xff] 0.0
        %234 = vst [vmem:[#allocation2 + $0x10] sm:$0xff] 0.0
        %235 = vst [vmem:[#allocation2 + $0x18] sm:$0xff] 0.0
      $region36: #{resnet34_forward.135} parent=27 // pred_fallthru
        _
      %v236 = vld [vmem:[#allocation2] sm:$0xff]
      %v237 = vld [vmem:[#allocation2 + $0x8] sm:$0xff]
      %v238 = vld [vmem:[#allocation2 + $0x10] sm:$0xff]
      %v239 = vld [vmem:[#allocation2 + $0x18] sm:$0xff]
      %v240 = vld [vmem:[%s208] sm:$0xff]
      %v241 = vld [vmem:[%s208 + $0x8] sm:$0xff]
      %v242 = vld [vmem:[%s215] sm:$0xff]
      %v243 = vld [vmem:[%s215 + $0x8] sm:$0xff]
      %v244 = vld [vmem:[%s215 + $0x10] sm:$0xff]
      %v245 = vld [vmem:[%s215 + $0x18] sm:$0xff]
      %v246 = vld [vmem:[%s215 + $0x20] sm:$0xff]
      %v247 = vld [vmem:[%s215 + $0x28] sm:$0xff]
      %v248 = vld [vmem:[%s215 + $0x30] sm:$0xff]
      %v249 = vld [vmem:[%s215 + $0x38] sm:$0xff]
      %v250 = vld [vmem:[%s215 + $0x40] sm:$0xff]
      %v251 = vld [vmem:[%s215 + $0x48] sm:$0xff]
      %v252 = vld [vmem:[%s215 + $0x50] sm:$0xff]
      %v253 = vld [vmem:[%s215 + $0x58] sm:$0xff]
      %v254 = vld [vmem:[%s215 + $0x60] sm:$0xff]
      %v255 = vld [vmem:[%s215 + $0x68] sm:$0xff]
      %v256 = vld [vmem:[%s215 + $0x70] sm:$0xff]
      %v257 = vld [vmem:[%s215 + $0x78] sm:$0xff]
      %v258 = vld [vmem:[%s215 + $0x80] sm:$0xff]
      %v259 = vld [vmem:[%s215 + $0x88] sm:$0xff]
      %v260 = vld [vmem:[%s215 + $0x90] sm:$0xff]
      %v261 = vld [vmem:[%s215 + $0x98] sm:$0xff]
      %v262 = vld [vmem:[%s215 + $0xa0] sm:$0xff]
      %v263 = vld [vmem:[%s215 + $0xa8] sm:$0xff]
      %v264 = vld [vmem:[%s215 + $0xb0] sm:$0xff]
      %v265 = vld [vmem:[%s215 + $0xb8] sm:$0xff]
      %v266 = vld [vmem:[%s215 + $0xc0] sm:$0xff]
      %v267 = vld [vmem:[%s215 + $0xc8] sm:$0xff]
      %v268 = vld [vmem:[%s215 + $0xd0] sm:$0xff]
      %v269 = vld [vmem:[%s215 + $0xd8] sm:$0xff]
      %v270 = vld [vmem:[%s215 + $0xe0] sm:$0xff]
      %v271 = vld [vmem:[%s215 + $0xe8] sm:$0xff]
      %v272 = vld [vmem:[%s215 + $0xf0] sm:$0xff]
      %v273 = vld [vmem:[%s215 + $0xf8] sm:$0xff]
      %v274 = vld [vmem:[%s215 + $0x100] sm:$0xff]
      %v275 = vld [vmem:[%s215 + $0x108] sm:$0xff]
      %v276 = vld [vmem:[%s215 + $0x110] sm:$0xff]
      %v277 = vld [vmem:[%s215 + $0x118] sm:$0xff]
      %v278 = vld [vmem:[%s215 + $0x120] sm:$0xff]
      %v279 = vld [vmem:[%s215 + $0x128] sm:$0xff]
      %v280 = vld [vmem:[%s215 + $0x130] sm:$0xff]
      %v281 = vld [vmem:[%s215 + $0x138] sm:$0xff]
      %v282 = vld [vmem:[%s215 + $0x140] sm:$0xff]
      %v283 = vld [vmem:[%s215 + $0x148] sm:$0xff]
      %v284 = vld [vmem:[%s215 + $0x150] sm:$0xff]
      %v285 = vld [vmem:[%s215 + $0x158] sm:$0xff]
      %v286 = vld [vmem:[%s215 + $0x160] sm:$0xff]
      %v287 = vld [vmem:[%s215 + $0x168] sm:$0xff]
      %v288 = vld [vmem:[%s215 + $0x170] sm:$0xff]
      %v289 = vld [vmem:[%s215 + $0x178] sm:$0xff]
      %v290 = vld [vmem:[%s215 + $0x180] sm:$0xff]
      %v291 = vld [vmem:[%s215 + $0x188] sm:$0xff]
      %v292 = vld [vmem:[%s215 + $0x190] sm:$0xff]
      %v293 = vld [vmem:[%s215 + $0x198] sm:$0xff]
      %v294 = vld [vmem:[%s215 + $0x1a0] sm:$0xff]
      %v295 = vld [vmem:[%s215 + $0x1a8] sm:$0xff]
      %v296 = vld [vmem:[%s215 + $0x1b0] sm:$0xff]
      %v297 = vld [vmem:[%s215 + $0x1b8] sm:$0xff]
      %v298 = vld [vmem:[%s215 + $0x1c0] sm:$0xff]
      %v299 = vld [vmem:[%s215 + $0x1c8] sm:$0xff]
      %v300 = vld [vmem:[%s215 + $0x1d0] sm:$0xff]
      %v301 = vld [vmem:[%s215 + $0x1d8] sm:$0xff]
      %v302 = vld [vmem:[%s215 + $0x1e0] sm:$0xff]
      %v303 = vld [vmem:[%s215 + $0x1e8] sm:$0xff]
      %v304 = vld [vmem:[%s215 + $0x1f0] sm:$0xff]
      %v305 = vld [vmem:[%s215 + $0x1f8] sm:$0xff]
      %v306 = vld [vmem:[%s215 + $0x200] sm:$0xff]
      %v307 = vld [vmem:[%s215 + $0x208] sm:$0xff]
      %v308 = vld [vmem:[%s215 + $0x210] sm:$0xff]
      %v309 = vld [vmem:[%s215 + $0x218] sm:$0xff]
      %v310 = vld [vmem:[%s215 + $0x220] sm:$0xff]
      %v311 = vld [vmem:[%s215 + $0x228] sm:$0xff]
      %v312 = vld [vmem:[%s215 + $0x230] sm:$0xff]
      %v313 = vld [vmem:[%s215 + $0x238] sm:$0xff]
      %v314 = vld [vmem:[%s215 + $0x240] sm:$0xff]
      %v315 = vld [vmem:[%s215 + $0x248] sm:$0xff]
      %v316 = vld [vmem:[%s215 + $0x250] sm:$0xff]
      %v317 = vld [vmem:[%s215 + $0x258] sm:$0xff]
      %v318 = vld [vmem:[%s215 + $0x260] sm:$0xff]
      %v319 = vld [vmem:[%s215 + $0x268] sm:$0xff]
      %v320 = vld [vmem:[%s215 + $0x270] sm:$0xff]
      %v321 = vld [vmem:[%s215 + $0x278] sm:$0xff]
      %v322 = vld [vmem:[%s215 + $0x280] sm:$0xff]
      %v323 = vld [vmem:[%s215 + $0x288] sm:$0xff]
      %v324 = vld [vmem:[%s215 + $0x290] sm:$0xff]
      %v325 = vld [vmem:[%s215 + $0x298] sm:$0xff]
      %v326 = vld [vmem:[%s215 + $0x2a0] sm:$0xff]
      %v327 = vld [vmem:[%s215 + $0x2a8] sm:$0xff]
      %v328 = vld [vmem:[%s215 + $0x2b0] sm:$0xff]
      %v329 = vld [vmem:[%s215 + $0x2b8] sm:$0xff]
      %v330 = vld [vmem:[%s215 + $0x2c0] sm:$0xff]
      %v331 = vld [vmem:[%s215 + $0x2c8] sm:$0xff]
      %v332 = vld [vmem:[%s215 + $0x2d0] sm:$0xff]
      %v333 = vld [vmem:[%s215 + $0x2d8] sm:$0xff]
      %v334 = vld [vmem:[%s215 + $0x2e0] sm:$0xff]
      %v335 = vld [vmem:[%s215 + $0x2e8] sm:$0xff]
      %v336 = vld [vmem:[%s215 + $0x2f0] sm:$0xff]
      %v337 = vld [vmem:[%s215 + $0x2f8] sm:$0xff]
      %v338 = vld [vmem:[%s215 + $0x300] sm:$0xff]
      %v339 = vld [vmem:[%s215 + $0x308] sm:$0xff]
      %v340 = vld [vmem:[%s215 + $0x310] sm:$0xff]
      %v341 = vld [vmem:[%s215 + $0x318] sm:$0xff]
      %v342 = vld [vmem:[%s215 + $0x320] sm:$0xff]
      %v343 = vld [vmem:[%s215 + $0x328] sm:$0xff]
      %v344 = vld [vmem:[%s215 + $0x330] sm:$0xff]
      %v345 = vld [vmem:[%s215 + $0x338] sm:$0xff]
      %v346 = vld [vmem:[%s215 + $0x340] sm:$0xff]
      %v347 = vld [vmem:[%s215 + $0x348] sm:$0xff]
      %v348 = vld [vmem:[%s215 + $0x350] sm:$0xff]
      %v349 = vld [vmem:[%s215 + $0x358] sm:$0xff]
      %v350 = vld [vmem:[%s215 + $0x360] sm:$0xff]
      %v351 = vld [vmem:[%s215 + $0x368] sm:$0xff]
      %v352 = vld [vmem:[%s215 + $0x370] sm:$0xff]
      %v353 = vld [vmem:[%s215 + $0x378] sm:$0xff]
      %v354 = vld [vmem:[%s215 + $0x380] sm:$0xff]
      %v355 = vld [vmem:[%s215 + $0x388] sm:$0xff]
      %v356 = vld [vmem:[%s215 + $0x390] sm:$0xff]
      %v357 = vld [vmem:[%s215 + $0x398] sm:$0xff]
      %v358 = vld [vmem:[%s215 + $0x3a0] sm:$0xff]
      %v359 = vld [vmem:[%s215 + $0x3a8] sm:$0xff]
      %v360 = vld [vmem:[%s215 + $0x3b0] sm:$0xff]
      %v361 = vld [vmem:[%s215 + $0x3b8] sm:$0xff]
      %v362 = vld [vmem:[%s215 + $0x3c0] sm:$0xff]
      %v363 = vld [vmem:[%s215 + $0x3c8] sm:$0xff]
      %v364 = vld [vmem:[%s215 + $0x3d0] sm:$0xff]
      %v365 = vld [vmem:[%s215 + $0x3d8] sm:$0xff]
      %v366 = vld [vmem:[%s215 + $0x3e0] sm:$0xff]
      %v367 = vld [vmem:[%s215 + $0x3e8] sm:$0xff]
      %v368 = vld [vmem:[%s215 + $0x3f0] sm:$0xff]
      %v369 = vld [vmem:[%s215 + $0x3f8] sm:$0xff]
      %v372 = vunpack.c.l.b16 %v240
      %v373 = vunpack.c.h.b16 %v240
      %v374 = vunpack.c.l.b16 %v241
      %v375 = vunpack.c.h.b16 %v241
      %v376 = vpack.c.b16 %v372, %v372
      %v377 = vpack.c.b16 %v373, %v373
      %v378 = vpack.c.b16 %v374, %v374
      %v379 = vpack.c.b16 %v375, %v375
      %v512 = vunpack.c.l.b16 %v242
      %v513 = vunpack.c.h.b16 %v242
      %v514 = vunpack.c.l.b16 %v243
      %v515 = vunpack.c.h.b16 %v243
      %v516 = vunpack.c.l.b16 %v244
      %v517 = vunpack.c.h.b16 %v244
      %v518 = vunpack.c.l.b16 %v245
      %v519 = vunpack.c.h.b16 %v245
      %v520 = vunpack.c.l.b16 %v246
      %v521 = vunpack.c.h.b16 %v246
      %v522 = vunpack.c.l.b16 %v247
      %v523 = vunpack.c.h.b16 %v247
      %v524 = vunpack.c.l.b16 %v248
      %v525 = vunpack.c.h.b16 %v248
      %v526 = vunpack.c.l.b16 %v249
      %v527 = vunpack.c.h.b16 %v249
      %v528 = vunpack.c.l.b16 %v250
      %v529 = vunpack.c.h.b16 %v250
      %v530 = vunpack.c.l.b16 %v251
      %v531 = vunpack.c.h.b16 %v251
      %v532 = vunpack.c.l.b16 %v252
      %v533 = vunpack.c.h.b16 %v252
      %v534 = vunpack.c.l.b16 %v253
      %v535 = vunpack.c.h.b16 %v253
      %v536 = vunpack.c.l.b16 %v254
      %v537 = vunpack.c.h.b16 %v254
      %v538 = vunpack.c.l.b16 %v255
      %v539 = vunpack.c.h.b16 %v255
      %v540 = vunpack.c.l.b16 %v256
      %v541 = vunpack.c.h.b16 %v256
      %v542 = vunpack.c.l.b16 %v257
      %v543 = vunpack.c.h.b16 %v257
      %v544 = vunpack.c.l.b16 %v258
      %v545 = vunpack.c.h.b16 %v258
      %v546 = vunpack.c.l.b16 %v259
      %v547 = vunpack.c.h.b16 %v259
      %v548 = vunpack.c.l.b16 %v260
      %v549 = vunpack.c.h.b16 %v260
      %v550 = vunpack.c.l.b16 %v261
      %v551 = vunpack.c.h.b16 %v261
      %v552 = vunpack.c.l.b16 %v262
      %v553 = vunpack.c.h.b16 %v262
      %v554 = vunpack.c.l.b16 %v263
      %v555 = vunpack.c.h.b16 %v263
      %v556 = vunpack.c.l.b16 %v264
      %v557 = vunpack.c.h.b16 %v264
      %v558 = vunpack.c.l.b16 %v265
      %v559 = vunpack.c.h.b16 %v265
      %v560 = vunpack.c.l.b16 %v266
      %v561 = vunpack.c.h.b16 %v266
      %v562 = vunpack.c.l.b16 %v267
      %v563 = vunpack.c.h.b16 %v267
      %v564 = vunpack.c.l.b16 %v268
      %v565 = vunpack.c.h.b16 %v268
      %v566 = vunpack.c.l.b16 %v269
      %v567 = vunpack.c.h.b16 %v269
      %v568 = vunpack.c.l.b16 %v270
      %v569 = vunpack.c.h.b16 %v270
      %v570 = vunpack.c.l.b16 %v271
      %v571 = vunpack.c.h.b16 %v271
      %v572 = vunpack.c.l.b16 %v272
      %v573 = vunpack.c.h.b16 %v272
      %v574 = vunpack.c.l.b16 %v273
      %v575 = vunpack.c.h.b16 %v273
      %v576 = vunpack.c.l.b16 %v274
      %v577 = vunpack.c.h.b16 %v274
      %v578 = vunpack.c.l.b16 %v275
      %v579 = vunpack.c.h.b16 %v275
      %v580 = vunpack.c.l.b16 %v276
      %v581 = vunpack.c.h.b16 %v276
      %v582 = vunpack.c.l.b16 %v277
      %v583 = vunpack.c.h.b16 %v277
      %v584 = vunpack.c.l.b16 %v278
      %v585 = vunpack.c.h.b16 %v278
      %v586 = vunpack.c.l.b16 %v279
      %v587 = vunpack.c.h.b16 %v279
      %v588 = vunpack.c.l.b16 %v280
      %v589 = vunpack.c.h.b16 %v280
      %v590 = vunpack.c.l.b16 %v281
      %v591 = vunpack.c.h.b16 %v281
      %v592 = vunpack.c.l.b16 %v282
      %v593 = vunpack.c.h.b16 %v282
      %v594 = vunpack.c.l.b16 %v283
      %v595 = vunpack.c.h.b16 %v283
      %v596 = vunpack.c.l.b16 %v284
      %v597 = vunpack.c.h.b16 %v284
      %v598 = vunpack.c.l.b16 %v285
      %v599 = vunpack.c.h.b16 %v285
      %v600 = vunpack.c.l.b16 %v286
      %v601 = vunpack.c.h.b16 %v286
      %v602 = vunpack.c.l.b16 %v287
      %v603 = vunpack.c.h.b16 %v287
      %v604 = vunpack.c.l.b16 %v288
      %v605 = vunpack.c.h.b16 %v288
      %v606 = vunpack.c.l.b16 %v289
      %v607 = vunpack.c.h.b16 %v289
      %v608 = vunpack.c.l.b16 %v290
      %v609 = vunpack.c.h.b16 %v290
      %v610 = vunpack.c.l.b16 %v291
      %v611 = vunpack.c.h.b16 %v291
      %v612 = vunpack.c.l.b16 %v292
      %v613 = vunpack.c.h.b16 %v292
      %v614 = vunpack.c.l.b16 %v293
      %v615 = vunpack.c.h.b16 %v293
      %v616 = vunpack.c.l.b16 %v294
      %v617 = vunpack.c.h.b16 %v294
      %v618 = vunpack.c.l.b16 %v295
      %v619 = vunpack.c.h.b16 %v295
      %v620 = vunpack.c.l.b16 %v296
      %v621 = vunpack.c.h.b16 %v296
      %v622 = vunpack.c.l.b16 %v297
      %v623 = vunpack.c.h.b16 %v297
      %v624 = vunpack.c.l.b16 %v298
      %v625 = vunpack.c.h.b16 %v298
      %v626 = vunpack.c.l.b16 %v299
      %v627 = vunpack.c.h.b16 %v299
      %v628 = vunpack.c.l.b16 %v300
      %v629 = vunpack.c.h.b16 %v300
      %v630 = vunpack.c.l.b16 %v301
      %v631 = vunpack.c.h.b16 %v301
      %v632 = vunpack.c.l.b16 %v302
      %v633 = vunpack.c.h.b16 %v302
      %v634 = vunpack.c.l.b16 %v303
      %v635 = vunpack.c.h.b16 %v303
      %v636 = vunpack.c.l.b16 %v304
      %v637 = vunpack.c.h.b16 %v304
      %v638 = vunpack.c.l.b16 %v305
      %v639 = vunpack.c.h.b16 %v305
      %v640 = vunpack.c.l.b16 %v306
      %v641 = vunpack.c.h.b16 %v306
      %v642 = vunpack.c.l.b16 %v307
      %v643 = vunpack.c.h.b16 %v307
      %v644 = vunpack.c.l.b16 %v308
      %v645 = vunpack.c.h.b16 %v308
      %v646 = vunpack.c.l.b16 %v309
      %v647 = vunpack.c.h.b16 %v309
      %v648 = vunpack.c.l.b16 %v310
      %v649 = vunpack.c.h.b16 %v310
      %v650 = vunpack.c.l.b16 %v311
      %v651 = vunpack.c.h.b16 %v311
      %v652 = vunpack.c.l.b16 %v312
      %v653 = vunpack.c.h.b16 %v312
      %v654 = vunpack.c.l.b16 %v313
      %v655 = vunpack.c.h.b16 %v313
      %v656 = vunpack.c.l.b16 %v314
      %v657 = vunpack.c.h.b16 %v314
      %v658 = vunpack.c.l.b16 %v315
      %v659 = vunpack.c.h.b16 %v315
      %v660 = vunpack.c.l.b16 %v316
      %v661 = vunpack.c.h.b16 %v316
      %v662 = vunpack.c.l.b16 %v317
      %v663 = vunpack.c.h.b16 %v317
      %v664 = vunpack.c.l.b16 %v318
      %v665 = vunpack.c.h.b16 %v318
      %v666 = vunpack.c.l.b16 %v319
      %v667 = vunpack.c.h.b16 %v319
      %v668 = vunpack.c.l.b16 %v320
      %v669 = vunpack.c.h.b16 %v320
      %v670 = vunpack.c.l.b16 %v321
      %v671 = vunpack.c.h.b16 %v321
      %v672 = vunpack.c.l.b16 %v322
      %v673 = vunpack.c.h.b16 %v322
      %v674 = vunpack.c.l.b16 %v323
      %v675 = vunpack.c.h.b16 %v323
      %v676 = vunpack.c.l.b16 %v324
      %v677 = vunpack.c.h.b16 %v324
      %v678 = vunpack.c.l.b16 %v325
      %v679 = vunpack.c.h.b16 %v325
      %v680 = vunpack.c.l.b16 %v326
      %v681 = vunpack.c.h.b16 %v326
      %v682 = vunpack.c.l.b16 %v327
      %v683 = vunpack.c.h.b16 %v327
      %v684 = vunpack.c.l.b16 %v328
      %v685 = vunpack.c.h.b16 %v328
      %v686 = vunpack.c.l.b16 %v329
      %v687 = vunpack.c.h.b16 %v329
      %v688 = vunpack.c.l.b16 %v330
      %v689 = vunpack.c.h.b16 %v330
      %v690 = vunpack.c.l.b16 %v331
      %v691 = vunpack.c.h.b16 %v331
      %v692 = vunpack.c.l.b16 %v332
      %v693 = vunpack.c.h.b16 %v332
      %v694 = vunpack.c.l.b16 %v333
      %v695 = vunpack.c.h.b16 %v333
      %v696 = vunpack.c.l.b16 %v334
      %v697 = vunpack.c.h.b16 %v334
      %v698 = vunpack.c.l.b16 %v335
      %v699 = vunpack.c.h.b16 %v335
      %v700 = vunpack.c.l.b16 %v336
      %v701 = vunpack.c.h.b16 %v336
      %v702 = vunpack.c.l.b16 %v337
      %v703 = vunpack.c.h.b16 %v337
      %v704 = vunpack.c.l.b16 %v338
      %v705 = vunpack.c.h.b16 %v338
      %v706 = vunpack.c.l.b16 %v339
      %v707 = vunpack.c.h.b16 %v339
      %v708 = vunpack.c.l.b16 %v340
      %v709 = vunpack.c.h.b16 %v340
      %v710 = vunpack.c.l.b16 %v341
      %v711 = vunpack.c.h.b16 %v341
      %v712 = vunpack.c.l.b16 %v342
      %v713 = vunpack.c.h.b16 %v342
      %v714 = vunpack.c.l.b16 %v343
      %v715 = vunpack.c.h.b16 %v343
      %v716 = vunpack.c.l.b16 %v344
      %v717 = vunpack.c.h.b16 %v344
      %v718 = vunpack.c.l.b16 %v345
      %v719 = vunpack.c.h.b16 %v345
      %v720 = vunpack.c.l.b16 %v346
      %v721 = vunpack.c.h.b16 %v346
      %v722 = vunpack.c.l.b16 %v347
      %v723 = vunpack.c.h.b16 %v347
      %v724 = vunpack.c.l.b16 %v348
      %v725 = vunpack.c.h.b16 %v348
      %v726 = vunpack.c.l.b16 %v349
      %v727 = vunpack.c.h.b16 %v349
      %v728 = vunpack.c.l.b16 %v350
      %v729 = vunpack.c.h.b16 %v350
      %v730 = vunpack.c.l.b16 %v351
      %v731 = vunpack.c.h.b16 %v351
      %v732 = vunpack.c.l.b16 %v352
      %v733 = vunpack.c.h.b16 %v352
      %v734 = vunpack.c.l.b16 %v353
      %v735 = vunpack.c.h.b16 %v353
      %v736 = vunpack.c.l.b16 %v354
      %v737 = vunpack.c.h.b16 %v354
      %v738 = vunpack.c.l.b16 %v355
      %v739 = vunpack.c.h.b16 %v355
      %v740 = vunpack.c.l.b16 %v356
      %v741 = vunpack.c.h.b16 %v356
      %v742 = vunpack.c.l.b16 %v357
      %v743 = vunpack.c.h.b16 %v357
      %v744 = vunpack.c.l.b16 %v358
      %v745 = vunpack.c.h.b16 %v358
      %v746 = vunpack.c.l.b16 %v359
      %v747 = vunpack.c.h.b16 %v359
      %v748 = vunpack.c.l.b16 %v360
      %v749 = vunpack.c.h.b16 %v360
      %v750 = vunpack.c.l.b16 %v361
      %v751 = vunpack.c.h.b16 %v361
      %v752 = vunpack.c.l.b16 %v362
      %v753 = vunpack.c.h.b16 %v362
      %v754 = vunpack.c.l.b16 %v363
      %v755 = vunpack.c.h.b16 %v363
      %v756 = vunpack.c.l.b16 %v364
      %v757 = vunpack.c.h.b16 %v364
      %v758 = vunpack.c.l.b16 %v365
      %v759 = vunpack.c.h.b16 %v365
      %v760 = vunpack.c.l.b16 %v366
      %v761 = vunpack.c.h.b16 %v366
      %v762 = vunpack.c.l.b16 %v367
      %v763 = vunpack.c.h.b16 %v367
      %v764 = vunpack.c.l.b16 %v368
      %v765 = vunpack.c.h.b16 %v368
      %v766 = vunpack.c.l.b16 %v369
      %v767 = vunpack.c.h.b16 %v369
      %v768 = vpack.c.b16 %v516, %v512
      %v769 = vpack.c.b16 %v517, %v513
      %v770 = vpack.c.b16 %v518, %v514
      %v771 = vpack.c.b16 %v519, %v515
      %v772 = vpack.c.b16 %v524, %v520
      %v773 = vpack.c.b16 %v525, %v521
      %v774 = vpack.c.b16 %v526, %v522
      %v775 = vpack.c.b16 %v527, %v523
      %v776 = vpack.c.b16 %v532, %v528
      %v777 = vpack.c.b16 %v533, %v529
      %v778 = vpack.c.b16 %v534, %v530
      %v779 = vpack.c.b16 %v535, %v531
      %v780 = vpack.c.b16 %v540, %v536
      %v781 = vpack.c.b16 %v541, %v537
      %v782 = vpack.c.b16 %v542, %v538
      %v783 = vpack.c.b16 %v543, %v539
      %v784 = vpack.c.b16 %v548, %v544
      %v785 = vpack.c.b16 %v549, %v545
      %v786 = vpack.c.b16 %v550, %v546
      %v787 = vpack.c.b16 %v551, %v547
      %v788 = vpack.c.b16 %v556, %v552
      %v789 = vpack.c.b16 %v557, %v553
      %v790 = vpack.c.b16 %v558, %v554
      %v791 = vpack.c.b16 %v559, %v555
      %v792 = vpack.c.b16 %v564, %v560
      %v793 = vpack.c.b16 %v565, %v561
      %v794 = vpack.c.b16 %v566, %v562
      %v795 = vpack.c.b16 %v567, %v563
      %v796 = vpack.c.b16 %v572, %v568
      %v797 = vpack.c.b16 %v573, %v569
      %v798 = vpack.c.b16 %v574, %v570
      %v799 = vpack.c.b16 %v575, %v571
      %v800 = vpack.c.b16 %v580, %v576
      %v801 = vpack.c.b16 %v581, %v577
      %v802 = vpack.c.b16 %v582, %v578
      %v803 = vpack.c.b16 %v583, %v579
      %v804 = vpack.c.b16 %v588, %v584
      %v805 = vpack.c.b16 %v589, %v585
      %v806 = vpack.c.b16 %v590, %v586
      %v807 = vpack.c.b16 %v591, %v587
      %v808 = vpack.c.b16 %v596, %v592
      %v809 = vpack.c.b16 %v597, %v593
      %v810 = vpack.c.b16 %v598, %v594
      %v811 = vpack.c.b16 %v599, %v595
      %v812 = vpack.c.b16 %v604, %v600
      %v813 = vpack.c.b16 %v605, %v601
      %v814 = vpack.c.b16 %v606, %v602
      %v815 = vpack.c.b16 %v607, %v603
      %v816 = vpack.c.b16 %v612, %v608
      %v817 = vpack.c.b16 %v613, %v609
      %v818 = vpack.c.b16 %v614, %v610
      %v819 = vpack.c.b16 %v615, %v611
      %v820 = vpack.c.b16 %v620, %v616
      %v821 = vpack.c.b16 %v621, %v617
      %v822 = vpack.c.b16 %v622, %v618
      %v823 = vpack.c.b16 %v623, %v619
      %v824 = vpack.c.b16 %v628, %v624
      %v825 = vpack.c.b16 %v629, %v625
      %v826 = vpack.c.b16 %v630, %v626
      %v827 = vpack.c.b16 %v631, %v627
      %v828 = vpack.c.b16 %v636, %v632
      %v829 = vpack.c.b16 %v637, %v633
      %v830 = vpack.c.b16 %v638, %v634
      %v831 = vpack.c.b16 %v639, %v635
      %v832 = vpack.c.b16 %v644, %v640
      %v833 = vpack.c.b16 %v645, %v641
      %v834 = vpack.c.b16 %v646, %v642
      %v835 = vpack.c.b16 %v647, %v643
      %v836 = vpack.c.b16 %v652, %v648
      %v837 = vpack.c.b16 %v653, %v649
      %v838 = vpack.c.b16 %v654, %v650
      %v839 = vpack.c.b16 %v655, %v651
      %v840 = vpack.c.b16 %v660, %v656
      %v841 = vpack.c.b16 %v661, %v657
      %v842 = vpack.c.b16 %v662, %v658
      %v843 = vpack.c.b16 %v663, %v659
      %v844 = vpack.c.b16 %v668, %v664
      %v845 = vpack.c.b16 %v669, %v665
      %v846 = vpack.c.b16 %v670, %v666
      %v847 = vpack.c.b16 %v671, %v667
      %v848 = vpack.c.b16 %v676, %v672
      %v849 = vpack.c.b16 %v677, %v673
      %v850 = vpack.c.b16 %v678, %v674
      %v851 = vpack.c.b16 %v679, %v675
      %v852 = vpack.c.b16 %v684, %v680
      %v853 = vpack.c.b16 %v685, %v681
      %v854 = vpack.c.b16 %v686, %v682
      %v855 = vpack.c.b16 %v687, %v683
      %v856 = vpack.c.b16 %v692, %v688
      %v857 = vpack.c.b16 %v693, %v689
      %v858 = vpack.c.b16 %v694, %v690
      %v859 = vpack.c.b16 %v695, %v691
      %v860 = vpack.c.b16 %v700, %v696
      %v861 = vpack.c.b16 %v701, %v697
      %v862 = vpack.c.b16 %v702, %v698
      %v863 = vpack.c.b16 %v703, %v699
      %v864 = vpack.c.b16 %v708, %v704
      %v865 = vpack.c.b16 %v709, %v705
      %v866 = vpack.c.b16 %v710, %v706
      %v867 = vpack.c.b16 %v711, %v707
      %v868 = vpack.c.b16 %v716, %v712
      %v869 = vpack.c.b16 %v717, %v713
      %v870 = vpack.c.b16 %v718, %v714
      %v871 = vpack.c.b16 %v719, %v715
      %v872 = vpack.c.b16 %v724, %v720
      %v873 = vpack.c.b16 %v725, %v721
      %v874 = vpack.c.b16 %v726, %v722
      %v875 = vpack.c.b16 %v727, %v723
      %v876 = vpack.c.b16 %v732, %v728
      %v877 = vpack.c.b16 %v733, %v729
      %v878 = vpack.c.b16 %v734, %v730
      %v879 = vpack.c.b16 %v735, %v731
      %v880 = vpack.c.b16 %v740, %v736
      %v881 = vpack.c.b16 %v741, %v737
      %v882 = vpack.c.b16 %v742, %v738
      %v883 = vpack.c.b16 %v743, %v739
      %v884 = vpack.c.b16 %v748, %v744
      %v885 = vpack.c.b16 %v749, %v745
      %v886 = vpack.c.b16 %v750, %v746
      %v887 = vpack.c.b16 %v751, %v747
      %v888 = vpack.c.b16 %v756, %v752
      %v889 = vpack.c.b16 %v757, %v753
      %v890 = vpack.c.b16 %v758, %v754
      %v891 = vpack.c.b16 %v759, %v755
      %v892 = vpack.c.b16 %v764, %v760
      %v893 = vpack.c.b16 %v765, %v761
      %v894 = vpack.c.b16 %v766, %v762
      %v895 = vpack.c.b16 %v767, %v763
      %1024 = vmatprep.subr.bf16.mxu0 %v797
      %1025 = vmatpush1.bf16.msra.mxu0 %v796
      %1026 = vmatprep.subr.bf16.mxu0 %v793
      %1027 = vmatpush1.bf16.msra.mxu0 %v792
      %1028 = vmatprep.subr.bf16.mxu0 %v789
      %1029 = vmatpush1.bf16.msra.mxu0 %v788
      %1030 = vmatprep.subr.bf16.mxu0 %v785
      %1031 = vmatpush1.bf16.msra.mxu0 %v784
      %1032 = vmatprep.subr.bf16.mxu0 %v781
      %1033 = vmatpush1.bf16.msra.mxu0 %v780
      %1034 = vmatprep.subr.bf16.mxu0 %v777
      %1035 = vmatpush1.bf16.msra.mxu0 %v776
      %1036 = vmatprep.subr.bf16.mxu0 %v773
      %1037 = vmatpush1.bf16.msra.mxu0 %v772
      %1038 = vmatprep.subr.bf16.mxu0 %v769
      %1039 = vmatpush1.bf16.msra.mxu0 %v768
      %1040 = vmatprep.subr.bf16.mxu0 %v829
      %1041 = vmatpush2.bf16.msra.mxu0 %v828
      %1042 = vmatprep.subr.bf16.mxu0 %v825
      %1043 = vmatpush2.bf16.msra.mxu0 %v824
      %1044 = vmatprep.subr.bf16.mxu0 %v821
      %1045 = vmatpush2.bf16.msra.mxu0 %v820
      %1046 = vmatprep.subr.bf16.mxu0 %v817
      %1047 = vmatpush2.bf16.msra.mxu0 %v816
      %1048 = vmatprep.subr.bf16.mxu0 %v813
      %1049 = vmatpush2.bf16.msra.mxu0 %v812
      %1050 = vmatprep.subr.bf16.mxu0 %v809
      %1051 = vmatpush2.bf16.msra.mxu0 %v808
      %1052 = vmatprep.subr.bf16.mxu0 %v805
      %1053 = vmatpush2.bf16.msra.mxu0 %v804
      %1054 = vmatprep.subr.bf16.mxu0 %v801
      %1055 = vmatpush2.bf16.msra.mxu0 %v800
      %1056 = vmatprep.mubr.bf16.mxu0 %v377
      %1057 = vmatmul.mubr.bf16.gmra.mxu0 %v376
      %v1058 = vpop.f32.mrf.mxu0
      %v1059 = vadd.f32 0.0, %v1058
      %v1060 = vpop.f32.mrf.mxu0
      %v1061 = vadd.f32 0.0, %v1060
      %v1062 = vpop.f32.mrf.mxu0
      %v1063 = vpop.f32.mrf.mxu0
      %1064 = vdwg.mxu0
      %1065 = vmatprep.subr.bf16.mxu0 %v861
      %1066 = vmatpush1.bf16.msra.mxu0 %v860
      %1067 = vmatprep.subr.bf16.mxu0 %v857
      %1068 = vmatpush1.bf16.msra.mxu0 %v856
      %1069 = vmatprep.subr.bf16.mxu0 %v853
      %1070 = vmatpush1.bf16.msra.mxu0 %v852
      %1071 = vmatprep.subr.bf16.mxu0 %v849
      %1072 = vmatpush1.bf16.msra.mxu0 %v848
      %1073 = vmatprep.subr.bf16.mxu0 %v845
      %1074 = vmatpush1.bf16.msra.mxu0 %v844
      %1075 = vmatprep.subr.bf16.mxu0 %v841
      %1076 = vmatpush1.bf16.msra.mxu0 %v840
      %1077 = vmatprep.subr.bf16.mxu0 %v837
      %1078 = vmatpush1.bf16.msra.mxu0 %v836
      %1079 = vmatprep.subr.bf16.mxu0 %v833
      %1080 = vmatpush1.bf16.msra.mxu0 %v832
      %1081 = vmatprep.subr.bf16.mxu0 %v893
      %1082 = vmatpush2.bf16.msra.mxu0 %v892
      %1083 = vmatprep.subr.bf16.mxu0 %v889
      %1084 = vmatpush2.bf16.msra.mxu0 %v888
      %1085 = vmatprep.subr.bf16.mxu0 %v885
      %1086 = vmatpush2.bf16.msra.mxu0 %v884
      %1087 = vmatprep.subr.bf16.mxu0 %v881
      %1088 = vmatpush2.bf16.msra.mxu0 %v880
      %1089 = vmatprep.subr.bf16.mxu0 %v877
      %1090 = vmatpush2.bf16.msra.mxu0 %v876
      %1091 = vmatprep.subr.bf16.mxu0 %v873
      %1092 = vmatpush2.bf16.msra.mxu0 %v872
      %1093 = vmatprep.subr.bf16.mxu0 %v869
      %1094 = vmatpush2.bf16.msra.mxu0 %v868
      %1095 = vmatprep.subr.bf16.mxu0 %v865
      %1096 = vmatpush2.bf16.msra.mxu0 %v864
      %1097 = vmatprep.mubr.bf16.mxu0 %v379
      %1098 = vmatmul.mubr.bf16.gmra.mxu0 %v378
      %v1099 = vpop.f32.mrf.mxu0
      %v1100 = vadd.f32 %v1059, %v1099
      %v1101 = vpop.f32.mrf.mxu0
      %v1102 = vadd.f32 %v1061, %v1101
      %v1103 = vpop.f32.mrf.mxu0
      %v1104 = vpop.f32.mrf.mxu0
      %1105 = vdwg.mxu0
      %1106 = vmatprep.subr.bf16.mxu0 %v799
      %1107 = vmatpush1.bf16.msra.mxu0 %v798
      %1108 = vmatprep.subr.bf16.mxu0 %v795
      %1109 = vmatpush1.bf16.msra.mxu0 %v794
      %1110 = vmatprep.subr.bf16.mxu0 %v791
      %1111 = vmatpush1.bf16.msra.mxu0 %v790
      %1112 = vmatprep.subr.bf16.mxu0 %v787
      %1113 = vmatpush1.bf16.msra.mxu0 %v786
      %1114 = vmatprep.subr.bf16.mxu0 %v783
      %1115 = vmatpush1.bf16.msra.mxu0 %v782
      %1116 = vmatprep.subr.bf16.mxu0 %v779
      %1117 = vmatpush1.bf16.msra.mxu0 %v778
      %1118 = vmatprep.subr.bf16.mxu0 %v775
      %1119 = vmatpush1.bf16.msra.mxu0 %v774
      %1120 = vmatprep.subr.bf16.mxu0 %v771
      %1121 = vmatpush1.bf16.msra.mxu0 %v770
      %1122 = vmatprep.subr.bf16.mxu0 %v831
      %1123 = vmatpush2.bf16.msra.mxu0 %v830
      %1124 = vmatprep.subr.bf16.mxu0 %v827
      %1125 = vmatpush2.bf16.msra.mxu0 %v826
      %1126 = vmatprep.subr.bf16.mxu0 %v823
      %1127 = vmatpush2.bf16.msra.mxu0 %v822
      %1128 = vmatprep.subr.bf16.mxu0 %v819
      %1129 = vmatpush2.bf16.msra.mxu0 %v818
      %1130 = vmatprep.subr.bf16.mxu0 %v815
      %1131 = vmatpush2.bf16.msra.mxu0 %v814
      %1132 = vmatprep.subr.bf16.mxu0 %v811
      %1133 = vmatpush2.bf16.msra.mxu0 %v810
      %1134 = vmatprep.subr.bf16.mxu0 %v807
      %1135 = vmatpush2.bf16.msra.mxu0 %v806
      %1136 = vmatprep.subr.bf16.mxu0 %v803
      %1137 = vmatpush2.bf16.msra.mxu0 %v802
      %1138 = vmatprep.mubr.bf16.mxu0 %v377
      %1139 = vmatmul.mubr.bf16.gmra.mxu0 %v376
      %v1140 = vpop.f32.mrf.mxu0
      %v1141 = vadd.f32 0.0, %v1140
      %v1142 = vpop.f32.mrf.mxu0
      %v1143 = vadd.f32 0.0, %v1142
      %v1144 = vpop.f32.mrf.mxu0
      %v1145 = vpop.f32.mrf.mxu0
      %1146 = vdwg.mxu0
      %1147 = vmatprep.subr.bf16.mxu0 %v863
      %1148 = vmatpush1.bf16.msra.mxu0 %v862
      %1149 = vmatprep.subr.bf16.mxu0 %v859
      %1150 = vmatpush1.bf16.msra.mxu0 %v858
      %1151 = vmatprep.subr.bf16.mxu0 %v855
      %1152 = vmatpush1.bf16.msra.mxu0 %v854
      %1153 = vmatprep.subr.bf16.mxu0 %v851
      %1154 = vmatpush1.bf16.msra.mxu0 %v850
      %1155 = vmatprep.subr.bf16.mxu0 %v847
      %1156 = vmatpush1.bf16.msra.mxu0 %v846
      %1157 = vmatprep.subr.bf16.mxu0 %v843
      %1158 = vmatpush1.bf16.msra.mxu0 %v842
      %1159 = vmatprep.subr.bf16.mxu0 %v839
      %1160 = vmatpush1.bf16.msra.mxu0 %v838
      %1161 = vmatprep.subr.bf16.mxu0 %v835
      %1162 = vmatpush1.bf16.msra.mxu0 %v834
      %1163 = vmatprep.subr.bf16.mxu0 %v895
      %1164 = vmatpush2.bf16.msra.mxu0 %v894
      %1165 = vmatprep.subr.bf16.mxu0 %v891
      %1166 = vmatpush2.bf16.msra.mxu0 %v890
      %1167 = vmatprep.subr.bf16.mxu0 %v887
      %1168 = vmatpush2.bf16.msra.mxu0 %v886
      %1169 = vmatprep.subr.bf16.mxu0 %v883
      %1170 = vmatpush2.bf16.msra.mxu0 %v882
      %1171 = vmatprep.subr.bf16.mxu0 %v879
      %1172 = vmatpush2.bf16.msra.mxu0 %v878
      %1173 = vmatprep.subr.bf16.mxu0 %v875
      %1174 = vmatpush2.bf16.msra.mxu0 %v874
      %1175 = vmatprep.subr.bf16.mxu0 %v871
      %1176 = vmatpush2.bf16.msra.mxu0 %v870
      %1177 = vmatprep.subr.bf16.mxu0 %v867
      %1178 = vmatpush2.bf16.msra.mxu0 %v866
      %1179 = vmatprep.mubr.bf16.mxu0 %v379
      %1180 = vmatmul.mubr.bf16.gmra.mxu0 %v378
      %v1181 = vpop.f32.mrf.mxu0
      %v1182 = vadd.f32 %v1141, %v1181
      %v1183 = vpop.f32.mrf.mxu0
      %v1184 = vadd.f32 %v1143, %v1183
      %v1185 = vpop.f32.mrf.mxu0
      %v1186 = vpop.f32.mrf.mxu0
      %1187 = vdwg.mxu0
      %v1188 = vadd.f32 %v236, %v1100
      %v1189 = vadd.f32 %v237, %v1102
      %v1190 = vadd.f32 %v238, %v1182
      %v1191 = vadd.f32 %v239, %v1184
      %1192 = vst [vmem:[#allocation2] sm:$0xff] %v1188
      %1193 = vst [vmem:[#allocation2 + $0x8] sm:$0xff] %v1189
      %1194 = vst [vmem:[#allocation2 + $0x10] sm:$0xff] %v1190
      %1195 = vst [vmem:[#allocation2 + $0x18] sm:$0xff] %v1191
      %p1196 = scmp.eq.s32.totalorder %s20, 8
      // Predicated region
      $region37: #{resnet34_forward.135} parent=27 // pred_check
        %p1197 = pneg %p1196
      $region38: #{resnet34_forward.135} parent=27 // pred_check_branch
        %1199 = sbr.rel (%p1197) target = $region40
      $region39: #{resnet34_forward.135} parent=27 // pred_region
        %v1200 = vld [vmem:[#allocation2] sm:$0xff]
        %v1201 = vld [vmem:[#allocation2 + $0x8] sm:$0xff]
        %v1202 = vld [vmem:[#allocation2 + $0x10] sm:$0xff]
        %v1203 = vld [vmem:[#allocation2 + $0x18] sm:$0xff]
        %1204 = vst [vmem:[%s221] sm:$0xff] %v1200
        %1205 = vst [vmem:[%s221 + $0x8] sm:$0xff] %v1201
        %1206 = vst [vmem:[%s221 + $0x10] sm:$0xff] %v1202
        %1207 = vst [vmem:[%s221 + $0x18] sm:$0xff] %v1203
        %v1208 = vld [vmem:[%s3] sm:$0xff]
        %v1209 = vrot.slane %v1200, 4
        %v1210 = vadd.f32 %v1200, %v1209
        %v1211 = vrot.slane %v1210, 2
        %v1212 = vadd.f32 %v1210, %v1211
        %v1213 = vrot.slane %v1212, 1
        %v1214 = vadd.f32 %v1212, %v1213
        %v1215 = vrot.slane %v1201, 4
        %v1216 = vadd.f32 %v1201, %v1215
        %v1217 = vrot.slane %v1216, 2
        %v1218 = vadd.f32 %v1216, %v1217
        %v1219 = vrot.slane %v1218, 1
        %v1220 = vadd.f32 %v1218, %v1219
        %v1221 = vrot.slane %v1202, 4
        %v1222 = vadd.f32 %v1202, %v1221
        %v1223 = vrot.slane %v1222, 2
        %v1224 = vadd.f32 %v1222, %v1223
        %v1225 = vrot.slane %v1224, 1
        %v1226 = vadd.f32 %v1224, %v1225
        %v1227 = vrot.slane %v1203, 4
        %v1228 = vadd.f32 %v1203, %v1227
        %v1229 = vrot.slane %v1228, 2
        %v1230 = vadd.f32 %v1228, %v1229
        %v1231 = vrot.slane %v1230, 1
        %v1232 = vadd.f32 %v1230, %v1231
        %v1233 = vmul.f32 %v1200, %v1200
        %v1234 = vmul.f32 %v1201, %v1201
        %v1235 = vmul.f32 %v1202, %v1202
        %v1236 = vmul.f32 %v1203, %v1203
        %v1237 = vrot.slane %v1233, 4
        %v1238 = vadd.f32 %v1233, %v1237
        %v1239 = vrot.slane %v1238, 2
        %v1240 = vadd.f32 %v1238, %v1239
        %v1241 = vrot.slane %v1240, 1
        %v1242 = vadd.f32 %v1240, %v1241
        %v1243 = vrot.slane %v1234, 4
        %v1244 = vadd.f32 %v1234, %v1243
        %v1245 = vrot.slane %v1244, 2
        %v1246 = vadd.f32 %v1244, %v1245
        %v1247 = vrot.slane %v1246, 1
        %v1248 = vadd.f32 %v1246, %v1247
        %v1249 = vrot.slane %v1235, 4
        %v1250 = vadd.f32 %v1235, %v1249
        %v1251 = vrot.slane %v1250, 2
        %v1252 = vadd.f32 %v1250, %v1251
        %v1253 = vrot.slane %v1252, 1
        %v1254 = vadd.f32 %v1252, %v1253
        %v1255 = vrot.slane %v1236, 4
        %v1256 = vadd.f32 %v1236, %v1255
        %v1257 = vrot.slane %v1256, 2
        %v1258 = vadd.f32 %v1256, %v1257
        %v1259 = vrot.slane %v1258, 1
        %v1260 = vadd.f32 %v1258, %v1259
        %vm1261 = vcmask 1040384
        %v1262 = vsel %vm1261, %v1214, %v1242
        %v1263 = vsel %vm1261, %v1220, %v1248
        %v1264 = vsel %vm1261, %v1226, %v1254
        %v1265 = vsel %vm1261, %v1232, %v1260
        %v1270 = vcombine.low %v1262, %v1263
        %v1271 = vcombine.low %v1264, %v1265
        %v1273 = vunpack.c.l.s4 1983009808
        %v1274 = vunpack.c.0.s8 %v1273
        %v1275 = vlaneseq
        %v1276 = vshrl.u32 %v1275, 7
        %v1277 = vsub.s32 %v1274, %v1276
        %v1278 = vrot.slane %v1270, %v1277
        %v1280 = vunpack.c.l.s4 1983009808
        %v1281 = vunpack.c.0.s8 %v1280
        %v1282 = vlaneseq
        %v1283 = vshrl.u32 %v1282, 7
        %v1284 = vsub.s32 %v1281, %v1283
        %v1285 = vrot.slane %v1271, %v1284
        %v1286 = vcombine.low %v1278, %v1285
        %v1288 = vadd.f32 %v1208, %v1286
        %1289 = vst [vmem:[%s3] sm:$0xff] %v1288
      $region40: #{resnet34_forward.135} parent=27 // pred_fallthru
        _
      %p1290 = scmp.lt.s32.totalorder %s19, 0
      %s1291 = scalar_select %p1290, %s19, 0
      %s1292 = smul.addr %s1291, 4
      %s1293 = smul.addr %s1292, 8
      %s1294 = scalar_lea.vmem %s2, %s1293
      // Predicated region
      $region41: #{resnet34_forward.135} parent=27 // pred_check
        %p1295 = pneg %p99
      $region42: #{resnet34_forward.135} parent=27 // pred_check_branch
        %1297 = sbr.rel (%p1295) target = $region44
      $region43: #{resnet34_forward.135} parent=27 // pred_region
        _
      $region44: #{resnet34_forward.135} parent=27 // pred_fallthru
        _
      // Predicated region
      $region45: #{resnet34_forward.135} parent=27 // pred_check
        %p1298 = pneg %p120
      $region46: #{resnet34_forward.135} parent=27 // pred_check_branch
        %1300 = sbr.rel (%p1298) target = $region48
      $region47: #{resnet34_forward.135} parent=27 // pred_region
        _
      $region48: #{resnet34_forward.135} parent=27 // pred_fallthru
        _
      // Predicated region
      $region49: #{resnet34_forward.135} parent=27 // pred_check
        %p1301 = pneg %p99
      $region50: #{resnet34_forward.135} parent=27 // pred_check_branch
        %1303 = sbr.rel (%p1301) target = $region52
      $region51: #{resnet34_forward.135} parent=27 // pred_region
        %p1304 = scmp.lt.s32.totalorder %s19, 0
        %s1305 = scalar_select %p1304, %s19, 0
        %s1306 = smul.addr %s1305, 4
        %s1307 = smul.addr %s1306, 8
        %s1308 = scalar_lea.vmem %s2, %s1307
      $region52: #{resnet34_forward.135} parent=27 // pred_fallthru
        _
      // Predicated region
      $region53: #{resnet34_forward.135} parent=27 // pred_check
        %p1309 = pneg %p120
      $region54: #{resnet34_forward.135} parent=27 // pred_check_branch
        %1311 = sbr.rel (%p1309) target = $region56
      $region55: #{resnet34_forward.135} parent=27 // pred_region
        _
      $region56: #{resnet34_forward.135} parent=27 // pred_fallthru
        _
    $region28: #{resnet34_forward.135} parent=5 // pred_fallthru
      _
    %p1312 = scmp.le.s32.totalorder 2, %s10
    // Predicated region
    $region57: #{resnet34_forward.135} parent=5 // pred_check
      %p1313 = pneg %p1312
    $region58: #{resnet34_forward.135} parent=5 // pred_check_branch
      %1315 = sbr.rel (%p1313) target = $region60
    $region59: #{resnet34_forward.135} parent=5 // pred_region
      %s1316 = ssub.s32 %s10, 2
    $region60: #{resnet34_forward.135} parent=5 // pred_fallthru
      _
  $region6: #{resnet34_forward.135} parent=0 // loop_footer
    %s14 = sadd.s32 1, %s10
  $region7: #{resnet34_forward.135} parent=0 // loop_footer_branch
    %9 = sbr.rel target = $region3
  $region8: #{resnet34_forward.135} parent=0 // loop_exit
    _

// kernel: resnet34_forward.138
$region0: #{resnet34_forward.138}
  #allocation0 [shape = 'u32[]', space=smem, size = 0x4, offset = 0x4, fixed_abs, tag = 'smem constant byte address 0x4 - core index']
  #allocation1 [shape = 'u32[144,128]{1,0:T(1,128)}', space=vmem, size = 0x12000, scoped, tag = 'internal scratch']
  %s0 = inlined_call_operand.vmem [shape: f32[8,512], index: 0, kind: input, shape index: {}]
  %s1 = inlined_call_operand.vmem [shape: bf16[8,512], index: 1, kind: input, shape index: {}]
  %s2 = inlined_call_operand.vmem [shape: f32[2,512], index: 2, kind: input, shape index: {}]
  %s3 = inlined_call_operand.vmem [shape: f32[1,512], index: 3, kind: input, shape index: {}]
  %s4 = inlined_call_operand.vmem [shape: f32[1,512], index: 4, kind: input, shape index: {}]
  %s5 = inlined_call_operand.vmem [shape: bf16[8,512], index: 5, kind: output, shape index: {}]
  %s6 = sld [smem:[#allocation0]]
  $region30: #{resnet34_forward.138} parent=0
    _
  %s8 = ssub.s32 1, %s6
  %s9 = scalar_select 0, %s8, %s6
  // Predicated region
  $region2: #{resnet34_forward.138} parent=0 // pred_check
    _
  $region3: #{resnet34_forward.138} parent=0 // pred_check_branch
    %11 = sbr.rel (0) target = $region5
  $region4: #{resnet34_forward.138} parent=0 // pred_region
    _
  $region5: #{resnet34_forward.138} parent=0 // pred_fallthru
    _
  // Predicated region
  $region6: #{resnet34_forward.138} parent=0 // pred_check
    _
  $region7: #{resnet34_forward.138} parent=0 // pred_check_branch
    %13 = sbr.rel (0) target = $region9
  $region8: #{resnet34_forward.138} parent=0 // pred_region
    _
  $region9: #{resnet34_forward.138} parent=0 // pred_fallthru
    _
  // Predicated region
  $region10: #{resnet34_forward.138} parent=0 // pred_check
    _
  $region11: #{resnet34_forward.138} parent=0 // pred_check_branch
    %15 = sbr.rel (0) target = $region13
  $region12: #{resnet34_forward.138} parent=0 // pred_region
    _
  $region13: #{resnet34_forward.138} parent=0 // pred_fallthru
    _
  // Predicated region
  $region14: #{resnet34_forward.138} parent=0 // pred_check
    _
  $region15: #{resnet34_forward.138} parent=0 // pred_check_branch
    %17 = sbr.rel (0) target = $region17
  $region16: #{resnet34_forward.138} parent=0 // pred_region
    _
  $region17: #{resnet34_forward.138} parent=0 // pred_fallthru
    _
  // Predicated region
  $region18: #{resnet34_forward.138} parent=0 // pred_check
    _
  $region19: #{resnet34_forward.138} parent=0 // pred_check_branch
    %19 = sbr.rel (0) target = $region21
  $region20: #{resnet34_forward.138} parent=0 // pred_region
    _
  $region21: #{resnet34_forward.138} parent=0 // pred_fallthru
    _
  %v20 = vld [vmem:[%s0] sm:$0xff]
  %v21 = vld [vmem:[%s0 + $0x8] sm:$0xff]
  %v22 = vld [vmem:[%s0 + $0x10] sm:$0xff]
  %v23 = vld [vmem:[%s0 + $0x18] sm:$0xff]
  %v24 = vld [vmem:[%s2] ss:$2 sm:$0xf]
  %v25 = vmul.f32 %v24, 0.5
  %s26 = scalar_lea.vmem %s2, 1
  %v27 = vld [vmem:[%s26] ss:$2 sm:$0xf]
  %v28 = vmul.f32 %v27, 0.5
  %v29 = vmul.f32 %v25, %v25
  %v30 = vsub.f32 %v28, %v29
  %v31 = vmax.f32 %v30, 0.0
  %v33 = vlaneseq
  %v34 = vshrl.u32 %v33, 7
  %v35 = vsub.s32 0, %v34
  %v36 = vrot.slane %v25, %v35
  %v37 = vlaneseq
  %v38 = vshrl.u32 %v37, 7
  %v39 = vsub.s32 1, %v38
  %v40 = vrot.slane %v25, %v39
  %v41 = vlaneseq
  %v42 = vshrl.u32 %v41, 7
  %v43 = vsub.s32 2, %v42
  %v44 = vrot.slane %v25, %v43
  %v45 = vlaneseq
  %v46 = vshrl.u32 %v45, 7
  %v47 = vsub.s32 3, %v46
  %v48 = vrot.slane %v25, %v47
  %v53 = vsub.f32 %v20, %v36
  %v54 = vsub.f32 %v21, %v40
  %v55 = vsub.f32 %v22, %v44
  %v56 = vsub.f32 %v23, %v48
  %v57 = vadd.f32 %v31, 1e-05
  %v58 = vrsqrt.pop %v57
  %v60 = vlaneseq
  %v61 = vshrl.u32 %v60, 7
  %v62 = vsub.s32 0, %v61
  %v63 = vrot.slane %v58, %v62
  %v64 = vlaneseq
  %v65 = vshrl.u32 %v64, 7
  %v66 = vsub.s32 1, %v65
  %v67 = vrot.slane %v58, %v66
  %v68 = vlaneseq
  %v69 = vshrl.u32 %v68, 7
  %v70 = vsub.s32 2, %v69
  %v71 = vrot.slane %v58, %v70
  %v72 = vlaneseq
  %v73 = vshrl.u32 %v72, 7
  %v74 = vsub.s32 3, %v73
  %v75 = vrot.slane %v58, %v74
  %v80 = vmul.f32 %v53, %v63
  %v81 = vmul.f32 %v54, %v67
  %v82 = vmul.f32 %v55, %v71
  %v83 = vmul.f32 %v56, %v75
  %v84 = vld [vmem:[%s3] sm:$0xf]
  %v86 = vlaneseq
  %v87 = vshrl.u32 %v86, 7
  %v88 = vsub.s32 0, %v87
  %v89 = vrot.slane %v84, %v88
  %v90 = vlaneseq
  %v91 = vshrl.u32 %v90, 7
  %v92 = vsub.s32 1, %v91
  %v93 = vrot.slane %v84, %v92
  %v94 = vlaneseq
  %v95 = vshrl.u32 %v94, 7
  %v96 = vsub.s32 2, %v95
  %v97 = vrot.slane %v84, %v96
  %v98 = vlaneseq
  %v99 = vshrl.u32 %v98, 7
  %v100 = vsub.s32 3, %v99
  %v101 = vrot.slane %v84, %v100
  %v106 = vmul.f32 %v80, %v89
  %v107 = vmul.f32 %v81, %v93
  %v108 = vmul.f32 %v82, %v97
  %v109 = vmul.f32 %v83, %v101
  %v110 = vld [vmem:[%s4] sm:$0xf]
  %v112 = vlaneseq
  %v113 = vshrl.u32 %v112, 7
  %v114 = vsub.s32 0, %v113
  %v115 = vrot.slane %v110, %v114
  %v116 = vlaneseq
  %v117 = vshrl.u32 %v116, 7
  %v118 = vsub.s32 1, %v117
  %v119 = vrot.slane %v110, %v118
  %v120 = vlaneseq
  %v121 = vshrl.u32 %v120, 7
  %v122 = vsub.s32 2, %v121
  %v123 = vrot.slane %v110, %v122
  %v124 = vlaneseq
  %v125 = vshrl.u32 %v124, 7
  %v126 = vsub.s32 3, %v125
  %v127 = vrot.slane %v110, %v126
  %v132 = vadd.f32 %v106, %v115
  %v133 = vadd.f32 %v107, %v119
  %v134 = vadd.f32 %v108, %v123
  %v135 = vadd.f32 %v109, %v127
  %v136 = vld [vmem:[%s1] sm:$0xff]
  %v137 = vld [vmem:[%s1 + $0x8] sm:$0xff]
  %v138 = vunpack.c.l.bf16 %v136
  %v139 = vunpack.c.h.bf16 %v136
  %v140 = vunpack.c.l.bf16 %v137
  %v141 = vunpack.c.h.bf16 %v137
  %v142 = vadd.f32 %v132, %v138
  %v143 = vadd.f32 %v133, %v139
  %v144 = vadd.f32 %v134, %v140
  %v145 = vadd.f32 %v135, %v141
  %v146 = vmax.f32 %v142, 0.0
  %v147 = vmax.f32 %v143, 0.0
  %v148 = vmax.f32 %v144, 0.0
  %v149 = vmax.f32 %v145, 0.0
  %v150 = vpack.c.bf16 %v146, %v146
  %v151 = vpack.c.bf16 %v147, %v147
  %v152 = vpack.c.bf16 %v148, %v148
  %v153 = vpack.c.bf16 %v149, %v149
  %v158 = vunpack.c.l.b16 %v150
  %v159 = vunpack.c.l.b16 %v151
  %v160 = vunpack.c.l.b16 %v152
  %v161 = vunpack.c.l.b16 %v153
  %v162 = vpack.c.b16 %v159, %v158
  %v163 = vpack.c.b16 %v161, %v160
  %166 = vst [vmem:[%s5] sm:$0xff] %v162
  %167 = vst [vmem:[%s5 + $0x8] sm:$0xff] %v163
  // Predicated region
  $region22: #{resnet34_forward.138} parent=0 // pred_check
    _
  $region23: #{resnet34_forward.138} parent=0 // pred_check_branch
    %169 = sbr.rel (0) target = $region25
  $region24: #{resnet34_forward.138} parent=0 // pred_region
    _
  $region25: #{resnet34_forward.138} parent=0 // pred_fallthru
    _
  // Predicated region
  $region26: #{resnet34_forward.138} parent=0 // pred_check
    _
  $region27: #{resnet34_forward.138} parent=0 // pred_check_branch
    %171 = sbr.rel (0) target = $region29
  $region28: #{resnet34_forward.138} parent=0 // pred_region
    _
  $region29: #{resnet34_forward.138} parent=0 // pred_fallthru
    _

// kernel: resnet34_forward.147
$region0: #{resnet34_forward.147}
  #allocation0 [shape = 'u32[]', space=smem, size = 0x4, offset = 0x4, fixed_abs, tag = 'smem constant byte address 0x4 - core index']
  #allocation1 [shape = 'u32[144,128]{1,0:T(1,128)}', space=vmem, size = 0x12000, scoped, tag = 'internal scratch']
  %s0 = inlined_call_operand.vmem [shape: bf16[2,1,512], index: 0, kind: input, shape index: {}]
  %s1 = inlined_call_operand.hbm [shape: f32[2,512], index: 1, kind: output, shape index: {}]
  %s2 = sld [smem:[#allocation0]]
  $region14: #{resnet34_forward.147} parent=0
    _
  %s4 = ssub.s32 1, %s2
  %s5 = scalar_select 0, %s4, %s2
  $region1: #{resnet34_forward.147} parent=0
    #allocation2 [shape = 'u8[4096]{0}', space=vmem, size = 0x1000, scoped, tag = 'output window, operand 0, single buffered']
    #allocation3 [shape = 's32[1]{0}', space=sflag, size = 0x4, scoped, tag = 'scoped memory for resnet34_forward.147']
    %6 = vsyncpa [#allocation3], 0
    // Predicated region
    $region2: #{resnet34_forward.147} parent=1 // pred_check
      _
    $region3: #{resnet34_forward.147} parent=1 // pred_check_branch
      %8 = sbr.rel (0) target = $region5
    $region4: #{resnet34_forward.147} parent=1 // pred_region
      _
    $region5: #{resnet34_forward.147} parent=1 // pred_fallthru
      _
    %v9 = vld [vmem:[%s0] sm:$0xf]
    %v10 = vld [vmem:[%s0 + $0x4] sm:$0xf]
    %v11 = vunpack.c.l.bf16 %v9
    %v12 = vunpack.c.l.bf16 %v10
    %v13 = vadd.f32 %v11, 0.0
    %v14 = vadd.f32 %v12, 0.0
    %vm17 = vcmask 1044484
    %v18 = vsel %vm17, %v13, %v13
    %vm19 = vcmask 1046534
    %v20 = vsel %vm19, %v13, %v18
    %v21 = vrot.slane %v14, 7
    %vm22 = vcmask 1041409
    %v23 = vsel %vm22, %v21, %v20
    %vm24 = vcmask 1043459
    %v25 = vsel %vm24, %v21, %v23
    %vm26 = vcmask 1045509
    %v27 = vsel %vm26, %v21, %v25
    %vm28 = vcmask 1047559
    %v29 = vsel %vm28, %v21, %v27
    %31 = vst [vmem:[#allocation2] sm:$0xff] %v29
    // Predicated region
    $region6: #{resnet34_forward.147} parent=1 // pred_check
      _
    $region7: #{resnet34_forward.147} parent=1 // pred_check_branch
      %33 = sbr.rel (0) target = $region9
    $region8: #{resnet34_forward.147} parent=1 // pred_region
      %s35 = ssub.s32 128, 128
      %36 = vsyncadd [#allocation3], %s35
      %s38 = sshll.u32 [#allocation2], 4
      %s39 = int_to_ptr.vmem [resolvable:$true] %s38
      %41 = dma.vmem_to_hbm [thread:$0]  %s39, 128, %s1, [#allocation3]
    $region9: #{resnet34_forward.147} parent=1 // pred_fallthru
      _
    // Predicated region
    $region10: #{resnet34_forward.147} parent=1 // pred_check
      _
    $region11: #{resnet34_forward.147} parent=1 // pred_check_branch
      %43 = sbr.rel (0) target = $region13
    $region12: #{resnet34_forward.147} parent=1 // pred_region
      %44 = dma.done [#allocation3], 128
    $region13: #{resnet34_forward.147} parent=1 // pred_fallthru
      _
    %45 = vsyncpa [#allocation3], 1

</llo_original>
